<compile_context>
chip_gen: v6e
topology: v6e:2x2x1
jax: 0.10.0
libtpu: 0.0.40
codegen_flags: <defaults>
</compile_context>

<pallas_src>
import math
from functools import partial

import jax
import jax.numpy as jnp
from jax.experimental import pallas as pl
from jax.experimental.pallas import tpu as pltpu


# ----------------------------------------------------------------------------------
# In-kernel helpers
# ----------------------------------------------------------------------------------
def _ln_axis1(x, gamma, beta, eps=1e-5):
    """LayerNorm over axis=1 (the feature axis) of a (T, E, S) tensor."""
    mu = jnp.mean(x, axis=1, keepdims=True)
    var = jnp.mean(jnp.square(x - mu), axis=1, keepdims=True)
    return (x - mu) * jax.lax.rsqrt(var + eps) * gamma + beta


def _tam_kernel(x_ref, w_ref, vp_ref, o_ref):
    """One (batch, spatial-tile) block.

    x_ref : (T, C, S)            input pixels, S on lanes
    w_ref : (5*T*E, T*C) bf16    [qkv block-diag ; ffn block-diag ; proj_out block-diag]
    vp_ref: (3*T*E, 8)   f32     packed biases / LayerNorm params (column vectors)
    o_ref : (T, C, S)            output
    """
    T, C, S = x_ref.shape
    E = C                      # embed_dim == num_inp_channels (asserted in wrapper)
    TC = T * C
    TE = T * E

    x32 = x_ref[...].astype(jnp.float32).reshape(TC, S)   # f32 copy for residuals
    xmm = x32.astype(w_ref.dtype)                          # bf16 matmul operand

    # ---- fused block-diagonal QKV projection: (3*T*E, T*C) @ (T*C, S) on the MXU ----
    qkv = jnp.dot(w_ref[0:3 * TE, :], xmm, preferred_element_type=jnp.float32)
    qkv = qkv + vp_ref[:, 0:1]                             # bias, lane-broadcast
    q = qkv[0:TE].reshape(T, E, S)
    k = qkv[TE:2 * TE].reshape(T, E, S)
    v = qkv[2 * TE:3 * TE].reshape(T, E, S)

    # ---- single-head attention over frames; pixels stay on the lane axis (VPU) ----
    scale = 1.0 / math.sqrt(E)
    s = jnp.sum(q[:, None, :, :] * k[None, :, :, :], axis=2) * scale   # (T, T, S)
    m = jnp.max(s, axis=1, keepdims=True)                              # sublane reduce
    p = jnp.exp(s - m)
    denom = jnp.sum(p, axis=1, keepdims=True)
    p = p * pl.reciprocal(denom, approx=True)                          # EUP
    attn = jnp.sum(p[:, :, None, :] * v[None, :, :, :], axis=1)        # (T, E, S)

    # ---- residual + LayerNorm1 ----
    g1 = vp_ref[0:TE, 1:2].reshape(T, E, 1)
    b1 = vp_ref[0:TE, 2:3].reshape(T, E, 1)
    h1 = attn + x32.reshape(T, E, S)
    n1 = _ln_axis1(h1, g1, b1)

    # ---- ffn (block-diag, bf16 MXU) + residual + LayerNorm2 ----
    f = jnp.dot(w_ref[3 * TE:4 * TE, :], n1.reshape(TE, S).astype(w_ref.dtype),
                preferred_element_type=jnp.float32)
    f = f + vp_ref[0:TE, 3:4]
    g2 = vp_ref[0:TE, 4:5].reshape(T, E, 1)
    b2 = vp_ref[0:TE, 5:6].reshape(T, E, 1)
    n2 = _ln_axis1(n1 + f.reshape(T, E, S), g2, b2)

    # ---- proj_out (1x1 conv == per-pixel linear) + final residual ----
    out = jnp.dot(w_ref[4 * TE:4 * TE + TC, :], n2.reshape(TE, S).astype(w_ref.dtype),
                  preferred_element_type=jnp.float32)
    out = out + vp_ref[0:TC, 6:7]
    out = out + x32
    o_ref[...] = out.reshape(T, C, S).astype(o_ref.dtype)


# ----------------------------------------------------------------------------------
# Wrapper
# ----------------------------------------------------------------------------------
def _pack_params(params, T, compute_dtype=jnp.bfloat16):
    """Pack the 14 small parameter arrays into one weight slab and one vector slab."""
    wq, wk, wv = params['wq'], params['wk'], params['wv']     # (E, C)
    wf, wo = params['wf'], params['wo']                       # (E, E), (C, C)
    E, C = wq.shape
    assert E == C, "embed_dim must equal num_inp_channels"
    TE, TC = T * E, T * C

    eye = jnp.eye(T, dtype=jnp.float32)
    bd = lambda w: jnp.kron(eye, w.astype(jnp.float32))       # block-diagonal over frames
    # rows: [q frames | k frames | v frames | ffn frames | proj_out frames]
    w_slab = jnp.concatenate([bd(wq), bd(wk), bd(wv), bd(wf), bd(wo)],
                             axis=0).astype(compute_dtype)     # (5*T*E, T*C)

    til = lambda vec: jnp.tile(vec.reshape(-1), T)             # (E,) -> (T*E,)
    vp = jnp.zeros((3 * TE, 8), jnp.float32)
    vp = vp.at[:, 0].set(jnp.concatenate(
        [til(params['bq']), til(params['bk']), til(params['bv'])]))
    vp = vp.at[0:TE, 1].set(til(params['g1']))
    vp = vp.at[0:TE, 2].set(til(params['b1']))
    vp = vp.at[0:TE, 3].set(til(params['bf']))
    vp = vp.at[0:TE, 4].set(til(params['g2']))
    vp = vp.at[0:TE, 5].set(til(params['b2']))
    vp = vp.at[0:TC, 6].set(til(params['bo']))
    return w_slab, vp


def _choose_spatial_tile(s_total, max_tile=512):
    """Largest lane-dense (multiple of 128) tile dividing H*W, else the full extent."""
    for cand in range(max_tile, 127, -128):
        if cand % 128 == 0 and s_total % cand == 0:
            return cand
    return s_total


def temporal_attention_pallas(x_nchw, params, num_frames,
                              max_pixel_tile=512, compute_dtype=jnp.bfloat16):
    BT, C, H, W = x_nchw.shape
    T = num_frames
    assert BT % T == 0
    B = BT // T
    S_total = H * W
    E = params['wq'].shape[0]
    assert E == C, "embed_dim must equal num_inp_channels (residual adds require it)"

    S_tile = _choose_spatial_tile(S_total, max_pixel_tile)
    n_sp = S_total // S_tile
    TE, TC = T * E, T * C

    w_slab, v_slab = _pack_params(params, T, compute_dtype)

    # (B*T, C, H, W) -> (B, T, C, H*W): pure reshape, no HBM relayout.
    xg = x_nchw.reshape(B, T, C, S_total)

    flops = 2 * B * S_total * T * (3 * C * E + 2 * T * E + E * E + E * C)
    cost = pl.CostEstimate(
        flops=int(flops),
        transcendentals=int(B * S_total * T * T),
        bytes_accessed=int(2 * B * S_total * T * C * x_nchw.dtype.itemsize
                           + w_slab.size * w_slab.dtype.itemsize
                           + v_slab.size * 4))

    out_g = pl.pallas_call(
        _tam_kernel,
        out_shape=jax.ShapeDtypeStruct((B, T, C, S_total), x_nchw.dtype),
        grid_spec=pltpu.PrefetchScalarGridSpec(
            num_scalar_prefetch=0,
            grid=(B, n_sp),
            in_specs=[
                pl.BlockSpec((None, T, C, S_tile), lambda b, s: (b, 0, 0, s)),
                pl.BlockSpec((5 * TE, TC), lambda b, s: (0, 0)),       # weight slab
                pl.BlockSpec((3 * TE, 8), lambda b, s: (0, 0)),        # bias/LN slab
            ],
            out_specs=pl.BlockSpec((None, T, C, S_tile), lambda b, s: (b, 0, 0, s)),
        ),
        compiler_params=pltpu.CompilerParams(
            dimension_semantics=("parallel", "parallel"),
            vmem_limit_bytes=32 * 1024 * 1024),
        cost_estimate=cost,
    )(xg, w_slab, v_slab)

    # (B, T, C, H*W) -> (B*T, C, H, W): pure reshape, no HBM relayout.
    return out_g.reshape(BT, C, H, W)


# ----------------------------------------------------------------------------------
# Pure-JAX reference (f32) matching the PyTorch forward semantics
# ----------------------------------------------------------------------------------
def _layernorm_last(x, gamma, beta, eps=1e-5):
    mu = jnp.mean(x, axis=-1, keepdims=True)
    var = jnp.mean(jnp.square(x - mu), axis=-1, keepdims=True)
    return (x - mu) * jax.lax.rsqrt(var + eps) * gamma + beta


def reference_jax(x_nchw, params, num_frames):
    BT, C, H, W = x_nchw.shape
    T = num_frames
    B = BT // T
    xg = (x_nchw.reshape(B, T, C, H * W).transpose(0, 3, 1, 2)
                .reshape(B * H * W, T, C)).astype(jnp.float32)
    lin = lambda x, w, b: x @ w.T + b
    q = lin(xg, params['wq'], params['bq'])
    k = lin(xg, params['wk'], params['bk'])
    v = lin(xg, params['wv'], params['bv'])
    E = q.shape[-1]
    s = jnp.einsum('nte,nse->nts', q, k) / math.sqrt(E)
    p = jax.nn.softmax(s, axis=-1)
    attn = jnp.einsum('nts,nse->nte', p, v)
    n1 = _layernorm_last(attn + xg, params['g1'], params['b1'])
    f = lin(n1, params['wf'], params['bf'])
    n2 = _layernorm_last(n1 + f, params['g2'], params['b2'])
    out = lin(n2, params['wo'], params['bo']) + xg
    return (out.reshape(B, H * W, T, C).transpose(0, 2, 3, 1)
               .reshape(BT, C, H, W)).astype(x_nchw.dtype)


def init_params(key, C, E):
    ks = jax.random.split(key, 8)
    s = 0.1
    return {
        'wq': s * jax.random.normal(ks[0], (E, C), jnp.float32),
        'bq': s * jax.random.normal(ks[1], (E,), jnp.float32),
        'wk': s * jax.random.normal(ks[2], (E, C), jnp.float32),
        'bk': s * jax.random.normal(ks[3], (E,), jnp.float32),
        'wv': s * jax.random.normal(ks[4], (E, C), jnp.float32),
        'bv': s * jax.random.normal(ks[5], (E,), jnp.float32),
        'g1': jnp.ones((E,), jnp.float32),
        'b1': jnp.zeros((E,), jnp.float32),
        'wf': s * jax.random.normal(ks[6], (E, E), jnp.float32),
        'bf': jnp.zeros((E,), jnp.float32),
        'g2': jnp.ones((E,), jnp.float32),
        'b2': jnp.zeros((E,), jnp.float32),
        # proj_out: Conv2d(C, C, 1) weight (C, C, 1, 1) -> (C, C)
        'wo': s * jax.random.normal(ks[7], (C, C), jnp.float32),
        'bo': jnp.zeros((C,), jnp.float32),
    }


if __name__ == "__main__":
    # Small shapes consistent with the module: embed_dim == num_inp_channels,
    # H*W a multiple of 128 so the pixel (lane) axis is lane-dense.
    B, T, C, H, W = 2, 8, 32, 16, 16
    E = C

    key = jax.random.PRNGKey(0)
    kx, kp = jax.random.split(key)
    x = jax.random.normal(kx, (B * T, C, H, W), jnp.float32)   # NCHW (B*T, C, H, W)
    params = init_params(kp, C, E)

    run = jax.jit(partial(temporal_attention_pallas, num_frames=T))
    out = run(x, params)
    out = jax.block_until_ready(out)

    ref = reference_jax(x, params, T)
    assert out.shape == x.shape
    # bf16 MXU operands (f32 accumulation) + approx reciprocal -> loosened tolerance.
    assert jnp.allclose(out, ref, atol=5e-2, rtol=5e-2), \
        f"max abs err = {jnp.max(jnp.abs(out - ref))}"

    print("KERNEL_OK")
</pallas_src>

<mosaic_0001>
module attributes {stable_mosaic.version = 11 : i64} {
  func.func @_tam_kernel(%arg0: i32, %arg1: i32, %arg2: memref<1x8x32x256xf32, #tpu.memory_space<vmem>>, %arg3: memref<1280x256xbf16, #tpu.memory_space<vmem>>, %arg4: memref<768x8xf32, #tpu.memory_space<vmem>>, %arg5: memref<1x8x32x256xf32, #tpu.memory_space<vmem>>) attributes {dimension_semantics = [#tpu.dimension_semantics<parallel>, #tpu.dimension_semantics<parallel>], iteration_bounds = array<i64: 2, 1>, scalar_prefetch = 0 : i64, scratch_operands = 0 : i64, tpu.core_type = #tpu.core_type<tc>, window_params = [{transform_indices = @transform_0, window_bounds = array<i64: 1, 8, 32, 256>}, {pipeline_mode = #tpu.pipeline_mode<synchronous>, transform_indices = @transform_1, window_bounds = array<i64: 1280, 256>}, {pipeline_mode = #tpu.pipeline_mode<synchronous>, transform_indices = @transform_2, window_bounds = array<i64: 768, 8>}, {transform_indices = @transform_3, window_bounds = array<i64: 1, 8, 32, 256>}]} {
    %c0 = arith.constant 0 : index
    %c0_0 = arith.constant 0 : index
    %c0_1 = arith.constant 0 : index
    %c0_2 = arith.constant 0 : index
    %0 = vector.load %arg2[%c0, %c0_0, %c0_1, %c0_2] : memref<1x8x32x256xf32, #tpu.memory_space<vmem>>, vector<1x8x32x256xf32>
    %1 = vector.shape_cast %0 : vector<1x8x32x256xf32> to vector<8x32x256xf32>
    %2 = vector.shape_cast %1 : vector<8x32x256xf32> to vector<256x256xf32>
    %3 = arith.truncf %2 : vector<256x256xf32> to vector<256x256xbf16>
    %c0_3 = arith.constant 0 : index
    %c0_4 = arith.constant 0 : index
    %4 = vector.load %arg3[%c0_3, %c0_4] : memref<1280x256xbf16, #tpu.memory_space<vmem>>, vector<768x256xbf16>
    %cst = arith.constant dense<0.000000e+00> : vector<768x256xf32>
    %5 = tpu.matmul %4, %3, %cst {dimension_numbers = #tpu.dot_dimension_numbers<[1], [0], [0], [1], [0, 0, 1, 1], [], []>} : vector<768x256xbf16>, vector<256x256xbf16>, vector<768x256xf32> -> vector<768x256xf32>
    %c0_5 = arith.constant 0 : index
    %c0_6 = arith.constant 0 : index
    %6 = vector.load %arg4[%c0_5, %c0_6] : memref<768x8xf32, #tpu.memory_space<vmem>>, vector<768x1xf32>
    %7 = vector.broadcast %6 : vector<768x1xf32> to vector<768x256xf32>
    %8 = arith.addf %5, %7 : vector<768x256xf32>
    %9 = vector.extract_strided_slice %8 {offsets = [0, 0], sizes = [256, 256], strides = [1, 1]} : vector<768x256xf32> to vector<256x256xf32>
    %10 = vector.shape_cast %9 : vector<256x256xf32> to vector<8x32x256xf32>
    %11 = vector.extract_strided_slice %8 {offsets = [256, 0], sizes = [256, 256], strides = [1, 1]} : vector<768x256xf32> to vector<256x256xf32>
    %12 = vector.shape_cast %11 : vector<256x256xf32> to vector<8x32x256xf32>
    %13 = vector.extract_strided_slice %8 {offsets = [512, 0], sizes = [256, 256], strides = [1, 1]} : vector<768x256xf32> to vector<256x256xf32>
    %14 = vector.shape_cast %13 : vector<256x256xf32> to vector<8x32x256xf32>
    %15 = vector.shape_cast %10 : vector<8x32x256xf32> to vector<8x1x32x256xf32>
    %16 = vector.shape_cast %12 : vector<8x32x256xf32> to vector<1x8x32x256xf32>
    %17 = vector.broadcast %15 : vector<8x1x32x256xf32> to vector<8x8x32x256xf32>
    %18 = vector.broadcast %16 : vector<1x8x32x256xf32> to vector<8x8x32x256xf32>
    %19 = arith.mulf %17, %18 : vector<8x8x32x256xf32>
    %cst_7 = arith.constant dense<0.000000e+00> : vector<8x8x256xf32>
    %20 = vector.multi_reduction <add>, %19, %cst_7 [2] : vector<8x8x32x256xf32> to vector<8x8x256xf32>
    %cst_8 = arith.constant 0.176776692 : f32
    %21 = vector.broadcast %cst_8 : f32 to vector<8x8x256xf32>
    %22 = arith.mulf %20, %21 : vector<8x8x256xf32>
    %cst_9 = arith.constant dense<0xFF800000> : vector<8x256xf32>
    %23 = vector.multi_reduction <maximumf>, %22, %cst_9 [1] : vector<8x8x256xf32> to vector<8x256xf32>
    %24 = vector.shape_cast %23 : vector<8x256xf32> to vector<8x1x256xf32>
    %25 = vector.broadcast %24 : vector<8x1x256xf32> to vector<8x8x256xf32>
    %26 = arith.subf %22, %25 : vector<8x8x256xf32>
    %27 = math.exp %26 : vector<8x8x256xf32>
    %cst_10 = arith.constant dense<0.000000e+00> : vector<8x256xf32>
    %28 = vector.multi_reduction <add>, %27, %cst_10 [1] : vector<8x8x256xf32> to vector<8x256xf32>
    %29 = vector.shape_cast %28 : vector<8x256xf32> to vector<8x1x256xf32>
    %30 = tpu.reciprocal %29 {approx = true} : vector<8x1x256xf32> -> vector<8x1x256xf32>
    %31 = vector.broadcast %30 : vector<8x1x256xf32> to vector<8x8x256xf32>
    %32 = arith.mulf %27, %31 : vector<8x8x256xf32>
    %33 = vector.shape_cast %32 : vector<8x8x256xf32> to vector<8x8x1x256xf32>
    %34 = vector.shape_cast %14 : vector<8x32x256xf32> to vector<1x8x32x256xf32>
    %35 = vector.broadcast %33 : vector<8x8x1x256xf32> to vector<8x8x32x256xf32>
    %36 = vector.broadcast %34 : vector<1x8x32x256xf32> to vector<8x8x32x256xf32>
    %37 = arith.mulf %35, %36 : vector<8x8x32x256xf32>
    %cst_11 = arith.constant dense<0.000000e+00> : vector<8x32x256xf32>
    %38 = vector.multi_reduction <add>, %37, %cst_11 [1] : vector<8x8x32x256xf32> to vector<8x32x256xf32>
    %c0_12 = arith.constant 0 : index
    %c1 = arith.constant 1 : index
    %39 = vector.load %arg4[%c0_12, %c1] : memref<768x8xf32, #tpu.memory_space<vmem>>, vector<256x1xf32>
    %40 = vector.shape_cast %39 : vector<256x1xf32> to vector<8x32x1xf32>
    %c0_13 = arith.constant 0 : index
    %c2 = arith.constant 2 : index
    %41 = vector.load %arg4[%c0_13, %c2] : memref<768x8xf32, #tpu.memory_space<vmem>>, vector<256x1xf32>
    %42 = vector.shape_cast %41 : vector<256x1xf32> to vector<8x32x1xf32>
    %43 = vector.shape_cast %2 : vector<256x256xf32> to vector<8x32x256xf32>
    %44 = arith.addf %38, %43 : vector<8x32x256xf32>
    %cst_14 = arith.constant dense<0.000000e+00> : vector<8x256xf32>
    %45 = vector.multi_reduction <add>, %44, %cst_14 [1] : vector<8x32x256xf32> to vector<8x256xf32>
    %46 = vector.shape_cast %45 : vector<8x256xf32> to vector<8x1x256xf32>
    %cst_15 = arith.constant 3.200000e+01 : f32
    %47 = vector.broadcast %cst_15 : f32 to vector<8x1x256xf32>
    %48 = arith.divf %46, %47 : vector<8x1x256xf32>
    %49 = vector.broadcast %48 : vector<8x1x256xf32> to vector<8x32x256xf32>
    %50 = arith.subf %44, %49 : vector<8x32x256xf32>
    %51 = arith.mulf %50, %50 : vector<8x32x256xf32>
    %cst_16 = arith.constant dense<0.000000e+00> : vector<8x256xf32>
    %52 = vector.multi_reduction <add>, %51, %cst_16 [1] : vector<8x32x256xf32> to vector<8x256xf32>
    %53 = vector.shape_cast %52 : vector<8x256xf32> to vector<8x1x256xf32>
    %cst_17 = arith.constant 3.200000e+01 : f32
    %54 = vector.broadcast %cst_17 : f32 to vector<8x1x256xf32>
    %55 = arith.divf %53, %54 : vector<8x1x256xf32>
    %56 = vector.broadcast %48 : vector<8x1x256xf32> to vector<8x32x256xf32>
    %57 = arith.subf %44, %56 : vector<8x32x256xf32>
    %cst_18 = arith.constant 9.99999974E-6 : f32
    %58 = vector.broadcast %cst_18 : f32 to vector<8x1x256xf32>
    %59 = arith.addf %55, %58 : vector<8x1x256xf32>
    %60 = math.rsqrt %59 : vector<8x1x256xf32>
    %61 = vector.broadcast %60 : vector<8x1x256xf32> to vector<8x32x256xf32>
    %62 = arith.mulf %57, %61 : vector<8x32x256xf32>
    %63 = vector.broadcast %40 : vector<8x32x1xf32> to vector<8x32x256xf32>
    %64 = arith.mulf %62, %63 : vector<8x32x256xf32>
    %65 = vector.broadcast %42 : vector<8x32x1xf32> to vector<8x32x256xf32>
    %66 = arith.addf %64, %65 : vector<8x32x256xf32>
    %c768 = arith.constant 768 : index
    %c0_19 = arith.constant 0 : index
    %67 = vector.load %arg3[%c768, %c0_19] : memref<1280x256xbf16, #tpu.memory_space<vmem>>, vector<256x256xbf16>
    %68 = vector.shape_cast %66 : vector<8x32x256xf32> to vector<256x256xf32>
    %69 = arith.truncf %68 : vector<256x256xf32> to vector<256x256xbf16>
    %cst_20 = arith.constant dense<0.000000e+00> : vector<256x256xf32>
    %70 = tpu.matmul %67, %69, %cst_20 {dimension_numbers = #tpu.dot_dimension_numbers<[1], [0], [0], [1], [0, 0, 1, 1], [], []>} : vector<256x256xbf16>, vector<256x256xbf16>, vector<256x256xf32> -> vector<256x256xf32>
    %c0_21 = arith.constant 0 : index
    %c3 = arith.constant 3 : index
    %71 = vector.load %arg4[%c0_21, %c3] : memref<768x8xf32, #tpu.memory_space<vmem>>, vector<256x1xf32>
    %72 = vector.broadcast %71 : vector<256x1xf32> to vector<256x256xf32>
    %73 = arith.addf %70, %72 : vector<256x256xf32>
    %c0_22 = arith.constant 0 : index
    %c4 = arith.constant 4 : index
    %74 = vector.load %arg4[%c0_22, %c4] : memref<768x8xf32, #tpu.memory_space<vmem>>, vector<256x1xf32>
    %75 = vector.shape_cast %74 : vector<256x1xf32> to vector<8x32x1xf32>
    %c0_23 = arith.constant 0 : index
    %c5 = arith.constant 5 : index
    %76 = vector.load %arg4[%c0_23, %c5] : memref<768x8xf32, #tpu.memory_space<vmem>>, vector<256x1xf32>
    %77 = vector.shape_cast %76 : vector<256x1xf32> to vector<8x32x1xf32>
    %78 = vector.shape_cast %73 : vector<256x256xf32> to vector<8x32x256xf32>
    %79 = arith.addf %66, %78 : vector<8x32x256xf32>
    %cst_24 = arith.constant dense<0.000000e+00> : vector<8x256xf32>
    %80 = vector.multi_reduction <add>, %79, %cst_24 [1] : vector<8x32x256xf32> to vector<8x256xf32>
    %81 = vector.shape_cast %80 : vector<8x256xf32> to vector<8x1x256xf32>
    %cst_25 = arith.constant 3.200000e+01 : f32
    %82 = vector.broadcast %cst_25 : f32 to vector<8x1x256xf32>
    %83 = arith.divf %81, %82 : vector<8x1x256xf32>
    %84 = vector.broadcast %83 : vector<8x1x256xf32> to vector<8x32x256xf32>
    %85 = arith.subf %79, %84 : vector<8x32x256xf32>
    %86 = arith.mulf %85, %85 : vector<8x32x256xf32>
    %cst_26 = arith.constant dense<0.000000e+00> : vector<8x256xf32>
    %87 = vector.multi_reduction <add>, %86, %cst_26 [1] : vector<8x32x256xf32> to vector<8x256xf32>
    %88 = vector.shape_cast %87 : vector<8x256xf32> to vector<8x1x256xf32>
    %cst_27 = arith.constant 3.200000e+01 : f32
    %89 = vector.broadcast %cst_27 : f32 to vector<8x1x256xf32>
    %90 = arith.divf %88, %89 : vector<8x1x256xf32>
    %91 = vector.broadcast %83 : vector<8x1x256xf32> to vector<8x32x256xf32>
    %92 = arith.subf %79, %91 : vector<8x32x256xf32>
    %cst_28 = arith.constant 9.99999974E-6 : f32
    %93 = vector.broadcast %cst_28 : f32 to vector<8x1x256xf32>
    %94 = arith.addf %90, %93 : vector<8x1x256xf32>
    %95 = math.rsqrt %94 : vector<8x1x256xf32>
    %96 = vector.broadcast %95 : vector<8x1x256xf32> to vector<8x32x256xf32>
    %97 = arith.mulf %92, %96 : vector<8x32x256xf32>
    %98 = vector.broadcast %75 : vector<8x32x1xf32> to vector<8x32x256xf32>
    %99 = arith.mulf %97, %98 : vector<8x32x256xf32>
    %100 = vector.broadcast %77 : vector<8x32x1xf32> to vector<8x32x256xf32>
    %101 = arith.addf %99, %100 : vector<8x32x256xf32>
    %c1024 = arith.constant 1024 : index
    %c0_29 = arith.constant 0 : index
    %102 = vector.load %arg3[%c1024, %c0_29] : memref<1280x256xbf16, #tpu.memory_space<vmem>>, vector<256x256xbf16>
    %103 = vector.shape_cast %101 : vector<8x32x256xf32> to vector<256x256xf32>
    %104 = arith.truncf %103 : vector<256x256xf32> to vector<256x256xbf16>
    %cst_30 = arith.constant dense<0.000000e+00> : vector<256x256xf32>
    %105 = tpu.matmul %102, %104, %cst_30 {dimension_numbers = #tpu.dot_dimension_numbers<[1], [0], [0], [1], [0, 0, 1, 1], [], []>} : vector<256x256xbf16>, vector<256x256xbf16>, vector<256x256xf32> -> vector<256x256xf32>
    %c0_31 = arith.constant 0 : index
    %c6 = arith.constant 6 : index
    %106 = vector.load %arg4[%c0_31, %c6] : memref<768x8xf32, #tpu.memory_space<vmem>>, vector<256x1xf32>
    %107 = vector.broadcast %106 : vector<256x1xf32> to vector<256x256xf32>
    %108 = arith.addf %105, %107 : vector<256x256xf32>
    %109 = arith.addf %108, %2 : vector<256x256xf32>
    %110 = vector.shape_cast %109 : vector<256x256xf32> to vector<8x32x256xf32>
    %c0_32 = arith.constant 0 : index
    %c0_33 = arith.constant 0 : index
    %c0_34 = arith.constant 0 : index
    %c0_35 = arith.constant 0 : index
    %111 = vector.load %arg5[%c0_32, %c0_33, %c0_34, %c0_35] : memref<1x8x32x256xf32, #tpu.memory_space<vmem>>, vector<1x8x32x256xf32>
    %112 = vector.shape_cast %111 : vector<1x8x32x256xf32> to vector<8x32x256xf32>
    %113 = vector.shape_cast %110 : vector<8x32x256xf32> to vector<1x8x32x256xf32>
    tpu.vector_store %arg5[%c0_32, %c0_33, %c0_34, %c0_35], %113 {strides = array<i32>} : memref<1x8x32x256xf32, #tpu.memory_space<vmem>>, vector<1x8x32x256xf32>,
    return
  }
  func.func @transform_0(%arg0: i32, %arg1: i32) -> (i32, i32, i32, i32) {
    %c0_i32 = arith.constant 0 : i32
    %c0_i32_0 = arith.constant 0 : i32
    %c0_i32_1 = arith.constant 0 : i32
    return %arg0, %c0_i32, %c0_i32_0, %arg1 : i32, i32, i32, i32
  }
  func.func @transform_1(%arg0: i32, %arg1: i32) -> (i32, i32) {
    %c0_i32 = arith.constant 0 : i32
    %c0_i32_0 = arith.constant 0 : i32
    %c0_i32_1 = arith.constant 0 : i32
    return %c0_i32, %c0_i32_0 : i32, i32
  }
  func.func @transform_2(%arg0: i32, %arg1: i32) -> (i32, i32) {
    %c0_i32 = arith.constant 0 : i32
    %c0_i32_0 = arith.constant 0 : i32
    %c0_i32_1 = arith.constant 0 : i32
    return %c0_i32, %c0_i32_0 : i32, i32
  }
  func.func @transform_3(%arg0: i32, %arg1: i32) -> (i32, i32, i32, i32) {
    %c0_i32 = arith.constant 0 : i32
    %c0_i32_0 = arith.constant 0 : i32
    %c0_i32_1 = arith.constant 0 : i32
    return %arg0, %c0_i32, %c0_i32_0, %arg1 : i32, i32, i32, i32
  }
}

</mosaic_0001>

<llo_original>
// kernel: tile.48
$region0: #{tile.48}
  #allocation2 [shape = 's32[1]{0}', space=sflag, size = 0x4, scoped, tag = 'scoped memory for tile.48']
  %s0 = inlined_call_operand.hbm [shape: f32[32], index: 0, kind: input, shape index: {}]
  %s1 = inlined_call_operand.vmem [shape: f32[8,32], index: 1, kind: output, shape index: {}]
  $region1: #{tile.48} parent=0
    #allocation0 [shape = 'u8[512]{0}', space=vmem, size = 0x400, scoped, tag = 'operand span for operand 0']
    #allocation1 [shape = 's32[1]{0}', space=sflag, size = 0x4, scoped, tag = 'scoped memory for tile.48']
    %2 = vsyncpa [#allocation1], 0
    // Predicated region
    $region2: #{tile.48} parent=1 // pred_check
      _
    $region3: #{tile.48} parent=1 // pred_check_branch
      %4 = sbr.rel (0) target = $region5
    $region4: #{tile.48} parent=1 // pred_region
      %s6 = ssub.s32 16, 16
      %7 = vsyncadd [#allocation1], %s6
      %s9 = sshll.u32 [#allocation0], 4
      %s10 = int_to_ptr.vmem [resolvable:$true] %s9
      %12 = dma.hbm_to_vmem [thread:$0]  %s0, 16, %s10, [#allocation1]
    $region5: #{tile.48} parent=1 // pred_fallthru
      _
    // Predicated region
    $region6: #{tile.48} parent=1 // pred_check
      _
    $region7: #{tile.48} parent=1 // pred_check_branch
      %14 = sbr.rel (0) target = $region9
    $region8: #{tile.48} parent=1 // pred_region
      %15 = dma.done [#allocation1], 16
    $region9: #{tile.48} parent=1 // pred_fallthru
      _
    %v16 = vld [vmem:[#allocation0] ss:$0 sm:$0xff]
    %17 = vst [vmem:[%s1] sm:$0xff] %v16
    %18 = vsyncpa [#allocation1], 1

// kernel: tile.68
$region0: #{tile.68}
  #allocation0 [shape = 's32[1]{0}', space=sflag, size = 0x4, scoped, tag = 'scoped memory for tile.68']
  %s0 = inlined_call_operand.vmem [shape: f32[32], index: 0, kind: input, shape index: {}]
  %s1 = inlined_call_operand.vmem [shape: f32[8,32], index: 1, kind: output, shape index: {}]
  // Predicated region
  $region2: #{tile.68} parent=0 // pred_check
    _
  $region3: #{tile.68} parent=0 // pred_check_branch
    %3 = sbr.rel (0) target = $region5
  $region4: #{tile.68} parent=0 // pred_region
    _
  $region5: #{tile.68} parent=0 // pred_fallthru
    _
  %v4 = vld [vmem:[%s0] ss:$0 sm:$0xff]
  %5 = vst [vmem:[%s1] sm:$0xff] %v4

// kernel: temporal_attention_pallas.1
$region0: #{temporal_attention_pallas.1}
  #allocation0 [shape = 'u32[]', space=smem, size = 0x4, offset = 0x4, fixed_abs, tag = 'smem constant byte address 0x4 - core index']
  #allocation1 [shape = 'u32[144,128]{1,0:T(1,128)}', space=vmem, size = 0x12000, scoped, tag = 'internal scratch']
  %s0 = inlined_call_operand.vmem [shape: f32[2,8,32,256], index: 0, kind: input, shape index: {}]
  %s1 = inlined_call_operand.vmem [shape: bf16[1280,256], index: 1, kind: input, shape index: {}]
  %s2 = inlined_call_operand.vmem [shape: f32[768,8], index: 2, kind: input, shape index: {}]
  %s3 = inlined_call_operand.vmem [shape: f32[2,8,32,256], index: 3, kind: output, shape index: {}]
  %s4 = sld [smem:[#allocation0]]
  $region45: #{temporal_attention_pallas.1} parent=0
    _
  %s6 = ssub.s32 1, %s4
  %s7 = scalar_select 0, %s6, %s4
  loop: start=0, step=1, limit=4
  $region2: #{temporal_attention_pallas.1} parent=0 // loop_pre_header
    _
  $region3: #{temporal_attention_pallas.1} parent=0 // loop_header
    %s9 = sphi 0, %s13
    %p10 = scmp.ge.s32.totalorder %s9, 4
    %s16 = sphi 0, %s28
    %s17 = sphi 0, %s24
    %s18 = sphi 0, %s16
    %s19 = sphi 0, %s17
    %s20 = sphi 0, %s18
    %s21 = sphi 0, %s19
    %s33 = sphi 0, %s35
    %s36 = sphi 0, %s33
    %s37 = sphi 0, %s36
    %s53 = sphi 0, %s37
    %s57 = sphi 0, %s57
    %s59 = sphi 0, %s57
    %s60 = sphi 0, %s59
    %s74 = sphi 0, %s60
    %s78 = sphi 0, %s78
    %s80 = sphi 0, %s78
    %s81 = sphi 0, %s80
    %s95 = sphi 0, %s81
    %s103 = sphi 0, %s105
    %s106 = sphi 0, %s103
    %s107 = sphi 0, %s106
    %s123 = sphi 0, %s107
  $region4: #{temporal_attention_pallas.1} parent=0 // loop_header_branch
    %12 = sbr.rel (%p10) target = $region8
  $region5: #{temporal_attention_pallas.1} parent=0 // loop_body
    %s14 = ssub.s32 %s9, 1
    %s15 = ssub.s32 %s9, 2
    %s22 = sadd.s32 1, %s17
    %p23 = scmp.ge.s32.totalorder %s22, 1
    %s24 = scalar_select %p23, 0, %s22
    %s25 = sadd.s32 1, %s16
    %s26 = scalar_select %p23, %s25, %s16
    %p27 = scmp.ge.s32.totalorder %s26, 2
    %s28 = scalar_select %p27, 0, %s26
    %s29 = ssub.s32 %s16, %s28
    %s30 = ssub.s32 %s17, %s24
    %s31 = sor.u32 %s29, %s30
    %p32 = scmp.eq.s32.totalorder %s31, 0
    %s34 = sadd.s32 %s33, 1
    %s35 = scalar_select %p32, %s33, %s34
    %p38 = pneg %p32
    %p39 = scmp.eq.s32.totalorder %s9, 1
    %p40 = por %p38, %p39
    %p41 = scmp.ne.s32.totalorder %s33, %s36
    %p42 = scmp.eq.s32.totalorder %s9, 0
    %p43 = por %p41, %p42
    %p44 = scmp.ne.s32.totalorder %s33, %s36
    %p45 = scmp.eq.s32.totalorder %s14, 1
    %p46 = por %p44, %p45
    %p47 = scmp.ne.s32.totalorder %s36, %s37
    %p48 = scmp.eq.s32.totalorder %s14, 0
    %p49 = por %p47, %p48
    %p50 = scmp.ne.s32.totalorder %s36, %s37
    %p51 = scmp.eq.s32.totalorder %s15, 1
    %p52 = por %p50, %p51
    %p54 = scmp.ne.s32.totalorder %s37, %s53
    %p55 = scmp.eq.s32.totalorder %s15, 0
    %p56 = por %p54, %p55
    %s58 = sadd.s32 %s57, 1
    %p61 = scmp.eq.s32.totalorder %s9, 1
    %p62 = scmp.ne.s32.totalorder %s57, %s59
    %p63 = scmp.eq.s32.totalorder %s9, 0
    %p64 = por %p62, %p63
    %p65 = scmp.ne.s32.totalorder %s57, %s59
    %p66 = scmp.eq.s32.totalorder %s14, 1
    %p67 = por %p65, %p66
    %p68 = scmp.ne.s32.totalorder %s59, %s60
    %p69 = scmp.eq.s32.totalorder %s14, 0
    %p70 = por %p68, %p69
    %p71 = scmp.ne.s32.totalorder %s59, %s60
    %p72 = scmp.eq.s32.totalorder %s15, 1
    %p73 = por %p71, %p72
    %p75 = scmp.ne.s32.totalorder %s60, %s74
    %p76 = scmp.eq.s32.totalorder %s15, 0
    %p77 = por %p75, %p76
    %s79 = sadd.s32 %s78, 1
    %p82 = scmp.eq.s32.totalorder %s9, 1
    %p83 = scmp.ne.s32.totalorder %s78, %s80
    %p84 = scmp.eq.s32.totalorder %s9, 0
    %p85 = por %p83, %p84
    %p86 = scmp.ne.s32.totalorder %s78, %s80
    %p87 = scmp.eq.s32.totalorder %s14, 1
    %p88 = por %p86, %p87
    %p89 = scmp.ne.s32.totalorder %s80, %s81
    %p90 = scmp.eq.s32.totalorder %s14, 0
    %p91 = por %p89, %p90
    %p92 = scmp.ne.s32.totalorder %s80, %s81
    %p93 = scmp.eq.s32.totalorder %s15, 1
    %p94 = por %p92, %p93
    %p96 = scmp.ne.s32.totalorder %s81, %s95
    %p97 = scmp.eq.s32.totalorder %s15, 0
    %p98 = por %p96, %p97
    %s99 = ssub.s32 %s16, %s28
    %s100 = ssub.s32 %s17, %s24
    %s101 = sor.u32 %s99, %s100
    %p102 = scmp.eq.s32.totalorder %s101, 0
    %s104 = sadd.s32 %s103, 1
    %s105 = scalar_select %p102, %s103, %s104
    %p108 = pneg %p102
    %p109 = scmp.eq.s32.totalorder %s9, 1
    %p110 = por %p108, %p109
    %p111 = scmp.ne.s32.totalorder %s103, %s106
    %p112 = scmp.eq.s32.totalorder %s9, 0
    %p113 = por %p111, %p112
    %p114 = scmp.ne.s32.totalorder %s103, %s106
    %p115 = scmp.eq.s32.totalorder %s14, 1
    %p116 = por %p114, %p115
    %p117 = scmp.ne.s32.totalorder %s106, %s107
    %p118 = scmp.eq.s32.totalorder %s14, 0
    %p119 = por %p117, %p118
    %p120 = scmp.ne.s32.totalorder %s106, %s107
    %p121 = scmp.eq.s32.totalorder %s15, 1
    %p122 = por %p120, %p121
    %p124 = scmp.ne.s32.totalorder %s107, %s123
    %p125 = scmp.eq.s32.totalorder %s15, 0
    %p126 = por %p124, %p125
    %p127 = scmp.le.s32.totalorder 1, %s9
    %p128 = scmp.lt.s32.totalorder %s9, 3
    %p129 = pnand %p127, %p128
    %p130 = pneg %p129
    // Predicated region
    $region9: #{temporal_attention_pallas.1} parent=5 // pred_check
      _
    $region10: #{temporal_attention_pallas.1} parent=5 // pred_check_branch
      %132 = sbr.rel (%p129) target = $region12
    $region11: #{temporal_attention_pallas.1} parent=5 // pred_region
      %s133 = ssub.s32 %s9, 1
      // Predicated region
      $region13: #{temporal_attention_pallas.1} parent=11 // pred_check
        %p134 = pneg %p70
      $region14: #{temporal_attention_pallas.1} parent=11 // pred_check_branch
        %136 = sbr.rel (%p134) target = $region16
      $region15: #{temporal_attention_pallas.1} parent=11 // pred_region
        _
      $region16: #{temporal_attention_pallas.1} parent=11 // pred_fallthru
        _
      // Predicated region
      $region17: #{temporal_attention_pallas.1} parent=11 // pred_check
        %p137 = pneg %p91
      $region18: #{temporal_attention_pallas.1} parent=11 // pred_check_branch
        %139 = sbr.rel (%p137) target = $region20
      $region19: #{temporal_attention_pallas.1} parent=11 // pred_region
        _
      $region20: #{temporal_attention_pallas.1} parent=11 // pred_fallthru
        _
    $region12: #{temporal_attention_pallas.1} parent=5 // pred_fallthru
      _
    %p140 = scmp.lt.s32.totalorder %s9, 2
    // Predicated region
    $region21: #{temporal_attention_pallas.1} parent=5 // pred_check
      %p141 = pneg %p140
    $region22: #{temporal_attention_pallas.1} parent=5 // pred_check_branch
      %143 = sbr.rel (%p141) target = $region24
    $region23: #{temporal_attention_pallas.1} parent=5 // pred_region
      // Predicated region
      $region25: #{temporal_attention_pallas.1} parent=23 // pred_check
        %p144 = pneg %p43
      $region26: #{temporal_attention_pallas.1} parent=23 // pred_check_branch
        %146 = sbr.rel (%p144) target = $region28
      $region27: #{temporal_attention_pallas.1} parent=23 // pred_region
        %s147 = smul.u32 2, %s17
        %p148 = scmp.lt.s32.totalorder %s16, 1
        %s149 = scalar_select %p148, %s16, 1
        %p150 = scmp.lt.s32.totalorder %s147, 1
        %s151 = scalar_select %p150, %s147, 1
        %s152 = smul.addr %s149, 64
        %s153 = sadd.s32 %s151, %s152
        %s154 = smul.addr %s153, 8
        %s155 = scalar_lea.vmem %s0, %s154
        %s156 = smul.u32 2, %s17
      $region28: #{temporal_attention_pallas.1} parent=23 // pred_fallthru
        _
    $region24: #{temporal_attention_pallas.1} parent=5 // pred_fallthru
      _
    %p157 = scmp.le.s32.totalorder 1, %s9
    %p158 = scmp.lt.s32.totalorder %s9, 3
    %p159 = pnand %p157, %p158
    %p160 = pneg %p159
    // Predicated region
    $region29: #{temporal_attention_pallas.1} parent=5 // pred_check
      _
    $region30: #{temporal_attention_pallas.1} parent=5 // pred_check_branch
      %162 = sbr.rel (%p159) target = $region32
    $region31: #{temporal_attention_pallas.1} parent=5 // pred_region
      %s163 = ssub.s32 %s9, 1
      %s164 = smul.u32 2, %s19
      %p165 = scmp.lt.s32.totalorder %s18, 1
      %s166 = scalar_select %p165, %s18, 1
      %p167 = scmp.lt.s32.totalorder %s164, 1
      %s168 = scalar_select %p167, %s164, 1
      %s169 = smul.addr %s166, 64
      %s170 = sadd.s32 %s168, %s169
      %s171 = smul.addr %s170, 8
      %s172 = scalar_lea.vmem %s0, %s171
      %p173 = pneg %p49
      %p174 = pneg %p46
      %p175 = pneg %p70
      %p176 = pneg %p67
      %p177 = pneg %p91
      %p178 = pneg %p88
      %p179 = pneg %p119
      %p180 = pneg %p116
      %s181 = smul.u32 2, %s19
      %p182 = scmp.lt.s32.totalorder %s18, 1
      %s183 = scalar_select %p182, %s18, 1
      %p184 = scmp.lt.s32.totalorder %s181, 1
      %s185 = scalar_select %p184, %s181, 1
      %s186 = smul.addr %s183, 64
      %s187 = sadd.s32 %s185, %s186
      %s188 = smul.addr %s187, 8
      %s189 = scalar_lea.vmem %s3, %s188
      %s190 = smul.u32 2, %s19
      %p191 = scmp.lt.s32.totalorder %s18, 1
      %s192 = scalar_select %p191, %s18, 1
      %p193 = scmp.lt.s32.totalorder %s190, 1
      %s194 = scalar_select %p193, %s190, 1
      %s195 = smul.addr %s192, 64
      %s196 = sadd.s32 %s194, %s195
      %s197 = smul.addr %s196, 8
      %s198 = scalar_lea.vmem %s0, %s197
      %s199 = smul.u32 2, %s19
      %s200 = smul.u32 2, %s19
      %p201 = scmp.lt.s32.totalorder %s18, 1
      %s202 = scalar_select %p201, %s18, 1
      %p203 = scmp.lt.s32.totalorder %s200, 1
      %s204 = scalar_select %p203, %s200, 1
      %s205 = smul.addr %s202, 64
      %s206 = sadd.s32 %s204, %s205
      %s207 = smul.addr %s206, 8
      %s208 = scalar_lea.vmem %s3, %s207
      %s209 = smul.u32 2, %s19
      %v210 = vld [vmem:[%s198] sm:$0xff]
      %v211 = vld [vmem:[%s198 + $0x8] sm:$0xff]
      %v212 = vld [vmem:[%s198 + $0x10] sm:$0xff]
      %v213 = vld [vmem:[%s198 + $0x18] sm:$0xff]
      %v214 = vld [vmem:[%s198 + $0x20] sm:$0xff]
      %v215 = vld [vmem:[%s198 + $0x28] sm:$0xff]
      %v216 = vld [vmem:[%s198 + $0x30] sm:$0xff]
      %v217 = vld [vmem:[%s198 + $0x38] sm:$0xff]
      %v218 = vld [vmem:[%s198 + $0x40] sm:$0xff]
      %v219 = vld [vmem:[%s198 + $0x48] sm:$0xff]
      %v220 = vld [vmem:[%s198 + $0x50] sm:$0xff]
      %v221 = vld [vmem:[%s198 + $0x58] sm:$0xff]
      %v222 = vld [vmem:[%s198 + $0x60] sm:$0xff]
      %v223 = vld [vmem:[%s198 + $0x68] sm:$0xff]
      %v224 = vld [vmem:[%s198 + $0x70] sm:$0xff]
      %v225 = vld [vmem:[%s198 + $0x78] sm:$0xff]
      %v226 = vld [vmem:[%s198 + $0x80] sm:$0xff]
      %v227 = vld [vmem:[%s198 + $0x88] sm:$0xff]
      %v228 = vld [vmem:[%s198 + $0x90] sm:$0xff]
      %v229 = vld [vmem:[%s198 + $0x98] sm:$0xff]
      %v230 = vld [vmem:[%s198 + $0xa0] sm:$0xff]
      %v231 = vld [vmem:[%s198 + $0xa8] sm:$0xff]
      %v232 = vld [vmem:[%s198 + $0xb0] sm:$0xff]
      %v233 = vld [vmem:[%s198 + $0xb8] sm:$0xff]
      %v234 = vld [vmem:[%s198 + $0xc0] sm:$0xff]
      %v235 = vld [vmem:[%s198 + $0xc8] sm:$0xff]
      %v236 = vld [vmem:[%s198 + $0xd0] sm:$0xff]
      %v237 = vld [vmem:[%s198 + $0xd8] sm:$0xff]
      %v238 = vld [vmem:[%s198 + $0xe0] sm:$0xff]
      %v239 = vld [vmem:[%s198 + $0xe8] sm:$0xff]
      %v240 = vld [vmem:[%s198 + $0xf0] sm:$0xff]
      %v241 = vld [vmem:[%s198 + $0xf8] sm:$0xff]
      %v242 = vld [vmem:[%s198 + $0x100] sm:$0xff]
      %v243 = vld [vmem:[%s198 + $0x108] sm:$0xff]
      %v244 = vld [vmem:[%s198 + $0x110] sm:$0xff]
      %v245 = vld [vmem:[%s198 + $0x118] sm:$0xff]
      %v246 = vld [vmem:[%s198 + $0x120] sm:$0xff]
      %v247 = vld [vmem:[%s198 + $0x128] sm:$0xff]
      %v248 = vld [vmem:[%s198 + $0x130] sm:$0xff]
      %v249 = vld [vmem:[%s198 + $0x138] sm:$0xff]
      %v250 = vld [vmem:[%s198 + $0x140] sm:$0xff]
      %v251 = vld [vmem:[%s198 + $0x148] sm:$0xff]
      %v252 = vld [vmem:[%s198 + $0x150] sm:$0xff]
      %v253 = vld [vmem:[%s198 + $0x158] sm:$0xff]
      %v254 = vld [vmem:[%s198 + $0x160] sm:$0xff]
      %v255 = vld [vmem:[%s198 + $0x168] sm:$0xff]
      %v256 = vld [vmem:[%s198 + $0x170] sm:$0xff]
      %v257 = vld [vmem:[%s198 + $0x178] sm:$0xff]
      %v258 = vld [vmem:[%s198 + $0x180] sm:$0xff]
      %v259 = vld [vmem:[%s198 + $0x188] sm:$0xff]
      %v260 = vld [vmem:[%s198 + $0x190] sm:$0xff]
      %v261 = vld [vmem:[%s198 + $0x198] sm:$0xff]
      %v262 = vld [vmem:[%s198 + $0x1a0] sm:$0xff]
      %v263 = vld [vmem:[%s198 + $0x1a8] sm:$0xff]
      %v264 = vld [vmem:[%s198 + $0x1b0] sm:$0xff]
      %v265 = vld [vmem:[%s198 + $0x1b8] sm:$0xff]
      %v266 = vld [vmem:[%s198 + $0x1c0] sm:$0xff]
      %v267 = vld [vmem:[%s198 + $0x1c8] sm:$0xff]
      %v268 = vld [vmem:[%s198 + $0x1d0] sm:$0xff]
      %v269 = vld [vmem:[%s198 + $0x1d8] sm:$0xff]
      %v270 = vld [vmem:[%s198 + $0x1e0] sm:$0xff]
      %v271 = vld [vmem:[%s198 + $0x1e8] sm:$0xff]
      %v272 = vld [vmem:[%s198 + $0x1f0] sm:$0xff]
      %v273 = vld [vmem:[%s198 + $0x1f8] sm:$0xff]
      %v274 = vpack.c.bf16 %v212, %v210
      %v275 = vpack.c.bf16 %v213, %v211
      %v276 = vpack.c.bf16 %v216, %v214
      %v277 = vpack.c.bf16 %v217, %v215
      %v278 = vpack.c.bf16 %v220, %v218
      %v279 = vpack.c.bf16 %v221, %v219
      %v280 = vpack.c.bf16 %v224, %v222
      %v281 = vpack.c.bf16 %v225, %v223
      %v282 = vpack.c.bf16 %v228, %v226
      %v283 = vpack.c.bf16 %v229, %v227
      %v284 = vpack.c.bf16 %v232, %v230
      %v285 = vpack.c.bf16 %v233, %v231
      %v286 = vpack.c.bf16 %v236, %v234
      %v287 = vpack.c.bf16 %v237, %v235
      %v288 = vpack.c.bf16 %v240, %v238
      %v289 = vpack.c.bf16 %v241, %v239
      %v290 = vpack.c.bf16 %v244, %v242
      %v291 = vpack.c.bf16 %v245, %v243
      %v292 = vpack.c.bf16 %v248, %v246
      %v293 = vpack.c.bf16 %v249, %v247
      %v294 = vpack.c.bf16 %v252, %v250
      %v295 = vpack.c.bf16 %v253, %v251
      %v296 = vpack.c.bf16 %v256, %v254
      %v297 = vpack.c.bf16 %v257, %v255
      %v298 = vpack.c.bf16 %v260, %v258
      %v299 = vpack.c.bf16 %v261, %v259
      %v300 = vpack.c.bf16 %v264, %v262
      %v301 = vpack.c.bf16 %v265, %v263
      %v302 = vpack.c.bf16 %v268, %v266
      %v303 = vpack.c.bf16 %v269, %v267
      %v304 = vpack.c.bf16 %v272, %v270
      %v305 = vpack.c.bf16 %v273, %v271
      %v306 = vld [vmem:[%s1] sm:$0xff]
      %v307 = vld [vmem:[%s1 + $0x8] sm:$0xff]
      %v308 = vld [vmem:[%s1 + $0x10] sm:$0xff]
      %v309 = vld [vmem:[%s1 + $0x18] sm:$0xff]
      %v310 = vld [vmem:[%s1 + $0x20] sm:$0xff]
      %v311 = vld [vmem:[%s1 + $0x28] sm:$0xff]
      %v312 = vld [vmem:[%s1 + $0x30] sm:$0xff]
      %v313 = vld [vmem:[%s1 + $0x38] sm:$0xff]
      %v314 = vld [vmem:[%s1 + $0x40] sm:$0xff]
      %v315 = vld [vmem:[%s1 + $0x48] sm:$0xff]
      %v316 = vld [vmem:[%s1 + $0x50] sm:$0xff]
      %v317 = vld [vmem:[%s1 + $0x58] sm:$0xff]
      %v318 = vld [vmem:[%s1 + $0x60] sm:$0xff]
      %v319 = vld [vmem:[%s1 + $0x68] sm:$0xff]
      %v320 = vld [vmem:[%s1 + $0x70] sm:$0xff]
      %v321 = vld [vmem:[%s1 + $0x78] sm:$0xff]
      %v322 = vld [vmem:[%s1 + $0x80] sm:$0xff]
      %v323 = vld [vmem:[%s1 + $0x88] sm:$0xff]
      %v324 = vld [vmem:[%s1 + $0x90] sm:$0xff]
      %v325 = vld [vmem:[%s1 + $0x98] sm:$0xff]
      %v326 = vld [vmem:[%s1 + $0xa0] sm:$0xff]
      %v327 = vld [vmem:[%s1 + $0xa8] sm:$0xff]
      %v328 = vld [vmem:[%s1 + $0xb0] sm:$0xff]
      %v329 = vld [vmem:[%s1 + $0xb8] sm:$0xff]
      %v330 = vld [vmem:[%s1 + $0xc0] sm:$0xff]
      %v331 = vld [vmem:[%s1 + $0xc8] sm:$0xff]
      %v332 = vld [vmem:[%s1 + $0xd0] sm:$0xff]
      %v333 = vld [vmem:[%s1 + $0xd8] sm:$0xff]
      %v334 = vld [vmem:[%s1 + $0xe0] sm:$0xff]
      %v335 = vld [vmem:[%s1 + $0xe8] sm:$0xff]
      %v336 = vld [vmem:[%s1 + $0xf0] sm:$0xff]
      %v337 = vld [vmem:[%s1 + $0xf8] sm:$0xff]
      %v338 = vld [vmem:[%s1 + $0x100] sm:$0xff]
      %v339 = vld [vmem:[%s1 + $0x108] sm:$0xff]
      %v340 = vld [vmem:[%s1 + $0x110] sm:$0xff]
      %v341 = vld [vmem:[%s1 + $0x118] sm:$0xff]
      %v342 = vld [vmem:[%s1 + $0x120] sm:$0xff]
      %v343 = vld [vmem:[%s1 + $0x128] sm:$0xff]
      %v344 = vld [vmem:[%s1 + $0x130] sm:$0xff]
      %v345 = vld [vmem:[%s1 + $0x138] sm:$0xff]
      %v346 = vld [vmem:[%s1 + $0x140] sm:$0xff]
      %v347 = vld [vmem:[%s1 + $0x148] sm:$0xff]
      %v348 = vld [vmem:[%s1 + $0x150] sm:$0xff]
      %v349 = vld [vmem:[%s1 + $0x158] sm:$0xff]
      %v350 = vld [vmem:[%s1 + $0x160] sm:$0xff]
      %v351 = vld [vmem:[%s1 + $0x168] sm:$0xff]
      %v352 = vld [vmem:[%s1 + $0x170] sm:$0xff]
      %v353 = vld [vmem:[%s1 + $0x178] sm:$0xff]
      %v354 = vld [vmem:[%s1 + $0x180] sm:$0xff]
      %v355 = vld [vmem:[%s1 + $0x188] sm:$0xff]
      %v356 = vld [vmem:[%s1 + $0x190] sm:$0xff]
      %v357 = vld [vmem:[%s1 + $0x198] sm:$0xff]
      %v358 = vld [vmem:[%s1 + $0x1a0] sm:$0xff]
      %v359 = vld [vmem:[%s1 + $0x1a8] sm:$0xff]
      %v360 = vld [vmem:[%s1 + $0x1b0] sm:$0xff]
      %v361 = vld [vmem:[%s1 + $0x1b8] sm:$0xff]
      %v362 = vld [vmem:[%s1 + $0x1c0] sm:$0xff]
      %v363 = vld [vmem:[%s1 + $0x1c8] sm:$0xff]
      %v364 = vld [vmem:[%s1 + $0x1d0] sm:$0xff]
      %v365 = vld [vmem:[%s1 + $0x1d8] sm:$0xff]
      %v366 = vld [vmem:[%s1 + $0x1e0] sm:$0xff]
      %v367 = vld [vmem:[%s1 + $0x1e8] sm:$0xff]
      %v368 = vld [vmem:[%s1 + $0x1f0] sm:$0xff]
      %v369 = vld [vmem:[%s1 + $0x1f8] sm:$0xff]
      %v370 = vld [vmem:[%s1 + $0x200] sm:$0xff]
      %v371 = vld [vmem:[%s1 + $0x208] sm:$0xff]
      %v372 = vld [vmem:[%s1 + $0x210] sm:$0xff]
      %v373 = vld [vmem:[%s1 + $0x218] sm:$0xff]
      %v374 = vld [vmem:[%s1 + $0x220] sm:$0xff]
      %v375 = vld [vmem:[%s1 + $0x228] sm:$0xff]
      %v376 = vld [vmem:[%s1 + $0x230] sm:$0xff]
      %v377 = vld [vmem:[%s1 + $0x238] sm:$0xff]
      %v378 = vld [vmem:[%s1 + $0x240] sm:$0xff]
      %v379 = vld [vmem:[%s1 + $0x248] sm:$0xff]
      %v380 = vld [vmem:[%s1 + $0x250] sm:$0xff]
      %v381 = vld [vmem:[%s1 + $0x258] sm:$0xff]
      %v382 = vld [vmem:[%s1 + $0x260] sm:$0xff]
      %v383 = vld [vmem:[%s1 + $0x268] sm:$0xff]
      %v384 = vld [vmem:[%s1 + $0x270] sm:$0xff]
      %v385 = vld [vmem:[%s1 + $0x278] sm:$0xff]
      %v386 = vld [vmem:[%s1 + $0x280] sm:$0xff]
      %v387 = vld [vmem:[%s1 + $0x288] sm:$0xff]
      %v388 = vld [vmem:[%s1 + $0x290] sm:$0xff]
      %v389 = vld [vmem:[%s1 + $0x298] sm:$0xff]
      %v390 = vld [vmem:[%s1 + $0x2a0] sm:$0xff]
      %v391 = vld [vmem:[%s1 + $0x2a8] sm:$0xff]
      %v392 = vld [vmem:[%s1 + $0x2b0] sm:$0xff]
      %v393 = vld [vmem:[%s1 + $0x2b8] sm:$0xff]
      %v394 = vld [vmem:[%s1 + $0x2c0] sm:$0xff]
      %v395 = vld [vmem:[%s1 + $0x2c8] sm:$0xff]
      %v396 = vld [vmem:[%s1 + $0x2d0] sm:$0xff]
      %v397 = vld [vmem:[%s1 + $0x2d8] sm:$0xff]
      %v398 = vld [vmem:[%s1 + $0x2e0] sm:$0xff]
      %v399 = vld [vmem:[%s1 + $0x2e8] sm:$0xff]
      %v400 = vld [vmem:[%s1 + $0x2f0] sm:$0xff]
      %v401 = vld [vmem:[%s1 + $0x2f8] sm:$0xff]
      %v402 = vld [vmem:[%s2] sm:$0xff]
      %v403 = vld [vmem:[%s2 + $0x8] sm:$0xff]
      %v404 = vld [vmem:[%s2 + $0x10] sm:$0xff]
      %v405 = vld [vmem:[%s2 + $0x18] sm:$0xff]
      %v406 = vld [vmem:[%s2 + $0x20] sm:$0xff]
      %v407 = vld [vmem:[%s2 + $0x28] sm:$0xff]
      %v408 = vld [vmem:[%s2 + $0x30] sm:$0xff]
      %v409 = vld [vmem:[%s2 + $0x38] sm:$0xff]
      %v410 = vld [vmem:[%s2 + $0x40] sm:$0xff]
      %v411 = vld [vmem:[%s2 + $0x48] sm:$0xff]
      %v412 = vld [vmem:[%s2 + $0x50] sm:$0xff]
      %v413 = vld [vmem:[%s2 + $0x58] sm:$0xff]
      %v414 = vld [vmem:[%s2 + $0x60] sm:$0xff]
      %v415 = vld [vmem:[%s2 + $0x68] sm:$0xff]
      %v416 = vld [vmem:[%s2 + $0x70] sm:$0xff]
      %v417 = vld [vmem:[%s2 + $0x78] sm:$0xff]
      %v418 = vld [vmem:[%s2 + $0x80] sm:$0xff]
      %v419 = vld [vmem:[%s2 + $0x88] sm:$0xff]
      %v420 = vld [vmem:[%s2 + $0x90] sm:$0xff]
      %v421 = vld [vmem:[%s2 + $0x98] sm:$0xff]
      %v422 = vld [vmem:[%s2 + $0xa0] sm:$0xff]
      %v423 = vld [vmem:[%s2 + $0xa8] sm:$0xff]
      %v424 = vld [vmem:[%s2 + $0xb0] sm:$0xff]
      %v425 = vld [vmem:[%s2 + $0xb8] sm:$0xff]
      %v426 = vld [vmem:[%s2 + $0xc0] sm:$0xff]
      %v427 = vld [vmem:[%s2 + $0xc8] sm:$0xff]
      %v428 = vld [vmem:[%s2 + $0xd0] sm:$0xff]
      %v429 = vld [vmem:[%s2 + $0xd8] sm:$0xff]
      %v430 = vld [vmem:[%s2 + $0xe0] sm:$0xff]
      %v431 = vld [vmem:[%s2 + $0xe8] sm:$0xff]
      %v432 = vld [vmem:[%s2 + $0xf0] sm:$0xff]
      %v433 = vld [vmem:[%s2 + $0xf8] sm:$0xff]
      %v434 = vld [vmem:[%s2 + $0x100] sm:$0xff]
      %v435 = vld [vmem:[%s2 + $0x108] sm:$0xff]
      %v436 = vld [vmem:[%s2 + $0x110] sm:$0xff]
      %v437 = vld [vmem:[%s2 + $0x118] sm:$0xff]
      %v438 = vld [vmem:[%s2 + $0x120] sm:$0xff]
      %v439 = vld [vmem:[%s2 + $0x128] sm:$0xff]
      %v440 = vld [vmem:[%s2 + $0x130] sm:$0xff]
      %v441 = vld [vmem:[%s2 + $0x138] sm:$0xff]
      %v442 = vld [vmem:[%s2 + $0x140] sm:$0xff]
      %v443 = vld [vmem:[%s2 + $0x148] sm:$0xff]
      %v444 = vld [vmem:[%s2 + $0x150] sm:$0xff]
      %v445 = vld [vmem:[%s2 + $0x158] sm:$0xff]
      %v446 = vld [vmem:[%s2 + $0x160] sm:$0xff]
      %v447 = vld [vmem:[%s2 + $0x168] sm:$0xff]
      %v448 = vld [vmem:[%s2 + $0x170] sm:$0xff]
      %v449 = vld [vmem:[%s2 + $0x178] sm:$0xff]
      %v450 = vld [vmem:[%s2 + $0x180] sm:$0xff]
      %v451 = vld [vmem:[%s2 + $0x188] sm:$0xff]
      %v452 = vld [vmem:[%s2 + $0x190] sm:$0xff]
      %v453 = vld [vmem:[%s2 + $0x198] sm:$0xff]
      %v454 = vld [vmem:[%s2 + $0x1a0] sm:$0xff]
      %v455 = vld [vmem:[%s2 + $0x1a8] sm:$0xff]
      %v456 = vld [vmem:[%s2 + $0x1b0] sm:$0xff]
      %v457 = vld [vmem:[%s2 + $0x1b8] sm:$0xff]
      %v458 = vld [vmem:[%s2 + $0x1c0] sm:$0xff]
      %v459 = vld [vmem:[%s2 + $0x1c8] sm:$0xff]
      %v460 = vld [vmem:[%s2 + $0x1d0] sm:$0xff]
      %v461 = vld [vmem:[%s2 + $0x1d8] sm:$0xff]
      %v462 = vld [vmem:[%s2 + $0x1e0] sm:$0xff]
      %v463 = vld [vmem:[%s2 + $0x1e8] sm:$0xff]
      %v464 = vld [vmem:[%s2 + $0x1f0] sm:$0xff]
      %v465 = vld [vmem:[%s2 + $0x1f8] sm:$0xff]
      %v466 = vld [vmem:[%s2 + $0x200] sm:$0xff]
      %v467 = vld [vmem:[%s2 + $0x208] sm:$0xff]
      %v468 = vld [vmem:[%s2 + $0x210] sm:$0xff]
      %v469 = vld [vmem:[%s2 + $0x218] sm:$0xff]
      %v470 = vld [vmem:[%s2 + $0x220] sm:$0xff]
      %v471 = vld [vmem:[%s2 + $0x228] sm:$0xff]
      %v472 = vld [vmem:[%s2 + $0x230] sm:$0xff]
      %v473 = vld [vmem:[%s2 + $0x238] sm:$0xff]
      %v474 = vld [vmem:[%s2 + $0x240] sm:$0xff]
      %v475 = vld [vmem:[%s2 + $0x248] sm:$0xff]
      %v476 = vld [vmem:[%s2 + $0x250] sm:$0xff]
      %v477 = vld [vmem:[%s2 + $0x258] sm:$0xff]
      %v478 = vld [vmem:[%s2 + $0x260] sm:$0xff]
      %v479 = vld [vmem:[%s2 + $0x268] sm:$0xff]
      %v480 = vld [vmem:[%s2 + $0x270] sm:$0xff]
      %v481 = vld [vmem:[%s2 + $0x278] sm:$0xff]
      %v482 = vld [vmem:[%s2 + $0x280] sm:$0xff]
      %v483 = vld [vmem:[%s2 + $0x288] sm:$0xff]
      %v484 = vld [vmem:[%s2 + $0x290] sm:$0xff]
      %v485 = vld [vmem:[%s2 + $0x298] sm:$0xff]
      %v486 = vld [vmem:[%s2 + $0x2a0] sm:$0xff]
      %v487 = vld [vmem:[%s2 + $0x2a8] sm:$0xff]
      %v488 = vld [vmem:[%s2 + $0x2b0] sm:$0xff]
      %v489 = vld [vmem:[%s2 + $0x2b8] sm:$0xff]
      %v490 = vld [vmem:[%s2 + $0x2c0] sm:$0xff]
      %v491 = vld [vmem:[%s2 + $0x2c8] sm:$0xff]
      %v492 = vld [vmem:[%s2 + $0x2d0] sm:$0xff]
      %v493 = vld [vmem:[%s2 + $0x2d8] sm:$0xff]
      %v494 = vld [vmem:[%s2 + $0x2e0] sm:$0xff]
      %v495 = vld [vmem:[%s2 + $0x2e8] sm:$0xff]
      %v496 = vld [vmem:[%s2 + $0x2f0] sm:$0xff]
      %v497 = vld [vmem:[%s2 + $0x2f8] sm:$0xff]
      %499 = vset.pattern.permute.xlu0 0
      %500 = vperm.xlu0 %499, %v402
      %v501 = vpop.permute.xlu0 %500
      %504 = vset.pattern.permute.xlu0 0
      %505 = vperm.xlu0 %504, %v403
      %v506 = vpop.permute.xlu0 %505
      %509 = vset.pattern.permute.xlu0 0
      %510 = vperm.xlu0 %509, %v404
      %v511 = vpop.permute.xlu0 %510
      %514 = vset.pattern.permute.xlu0 0
      %515 = vperm.xlu0 %514, %v405
      %v516 = vpop.permute.xlu0 %515
      %519 = vset.pattern.permute.xlu0 0
      %520 = vperm.xlu0 %519, %v406
      %v521 = vpop.permute.xlu0 %520
      %524 = vset.pattern.permute.xlu0 0
      %525 = vperm.xlu0 %524, %v407
      %v526 = vpop.permute.xlu0 %525
      %529 = vset.pattern.permute.xlu0 0
      %530 = vperm.xlu0 %529, %v408
      %v531 = vpop.permute.xlu0 %530
      %534 = vset.pattern.permute.xlu0 0
      %535 = vperm.xlu0 %534, %v409
      %v536 = vpop.permute.xlu0 %535
      %539 = vset.pattern.permute.xlu0 0
      %540 = vperm.xlu0 %539, %v410
      %v541 = vpop.permute.xlu0 %540
      %544 = vset.pattern.permute.xlu0 0
      %545 = vperm.xlu0 %544, %v411
      %v546 = vpop.permute.xlu0 %545
      %549 = vset.pattern.permute.xlu0 0
      %550 = vperm.xlu0 %549, %v412
      %v551 = vpop.permute.xlu0 %550
      %554 = vset.pattern.permute.xlu0 0
      %555 = vperm.xlu0 %554, %v413
      %v556 = vpop.permute.xlu0 %555
      %559 = vset.pattern.permute.xlu0 0
      %560 = vperm.xlu0 %559, %v414
      %v561 = vpop.permute.xlu0 %560
      %564 = vset.pattern.permute.xlu0 0
      %565 = vperm.xlu0 %564, %v415
      %v566 = vpop.permute.xlu0 %565
      %569 = vset.pattern.permute.xlu0 0
      %570 = vperm.xlu0 %569, %v416
      %v571 = vpop.permute.xlu0 %570
      %574 = vset.pattern.permute.xlu0 0
      %575 = vperm.xlu0 %574, %v417
      %v576 = vpop.permute.xlu0 %575
      %579 = vset.pattern.permute.xlu0 0
      %580 = vperm.xlu0 %579, %v418
      %v581 = vpop.permute.xlu0 %580
      %584 = vset.pattern.permute.xlu0 0
      %585 = vperm.xlu0 %584, %v419
      %v586 = vpop.permute.xlu0 %585
      %589 = vset.pattern.permute.xlu0 0
      %590 = vperm.xlu0 %589, %v420
      %v591 = vpop.permute.xlu0 %590
      %594 = vset.pattern.permute.xlu0 0
      %595 = vperm.xlu0 %594, %v421
      %v596 = vpop.permute.xlu0 %595
      %599 = vset.pattern.permute.xlu0 0
      %600 = vperm.xlu0 %599, %v422
      %v601 = vpop.permute.xlu0 %600
      %604 = vset.pattern.permute.xlu0 0
      %605 = vperm.xlu0 %604, %v423
      %v606 = vpop.permute.xlu0 %605
      %609 = vset.pattern.permute.xlu0 0
      %610 = vperm.xlu0 %609, %v424
      %v611 = vpop.permute.xlu0 %610
      %614 = vset.pattern.permute.xlu0 0
      %615 = vperm.xlu0 %614, %v425
      %v616 = vpop.permute.xlu0 %615
      %619 = vset.pattern.permute.xlu0 0
      %620 = vperm.xlu0 %619, %v426
      %v621 = vpop.permute.xlu0 %620
      %624 = vset.pattern.permute.xlu0 0
      %625 = vperm.xlu0 %624, %v427
      %v626 = vpop.permute.xlu0 %625
      %629 = vset.pattern.permute.xlu0 0
      %630 = vperm.xlu0 %629, %v428
      %v631 = vpop.permute.xlu0 %630
      %634 = vset.pattern.permute.xlu0 0
      %635 = vperm.xlu0 %634, %v429
      %v636 = vpop.permute.xlu0 %635
      %639 = vset.pattern.permute.xlu0 0
      %640 = vperm.xlu0 %639, %v430
      %v641 = vpop.permute.xlu0 %640
      %644 = vset.pattern.permute.xlu0 0
      %645 = vperm.xlu0 %644, %v431
      %v646 = vpop.permute.xlu0 %645
      %649 = vset.pattern.permute.xlu0 0
      %650 = vperm.xlu0 %649, %v432
      %v651 = vpop.permute.xlu0 %650
      %654 = vset.pattern.permute.xlu0 0
      %655 = vperm.xlu0 %654, %v433
      %v656 = vpop.permute.xlu0 %655
      %659 = vset.pattern.permute.xlu0 0
      %660 = vperm.xlu0 %659, %v434
      %v661 = vpop.permute.xlu0 %660
      %664 = vset.pattern.permute.xlu0 0
      %665 = vperm.xlu0 %664, %v435
      %v666 = vpop.permute.xlu0 %665
      %669 = vset.pattern.permute.xlu0 0
      %670 = vperm.xlu0 %669, %v436
      %v671 = vpop.permute.xlu0 %670
      %674 = vset.pattern.permute.xlu0 0
      %675 = vperm.xlu0 %674, %v437
      %v676 = vpop.permute.xlu0 %675
      %679 = vset.pattern.permute.xlu0 0
      %680 = vperm.xlu0 %679, %v438
      %v681 = vpop.permute.xlu0 %680
      %684 = vset.pattern.permute.xlu0 0
      %685 = vperm.xlu0 %684, %v439
      %v686 = vpop.permute.xlu0 %685
      %689 = vset.pattern.permute.xlu0 0
      %690 = vperm.xlu0 %689, %v440
      %v691 = vpop.permute.xlu0 %690
      %694 = vset.pattern.permute.xlu0 0
      %695 = vperm.xlu0 %694, %v441
      %v696 = vpop.permute.xlu0 %695
      %699 = vset.pattern.permute.xlu0 0
      %700 = vperm.xlu0 %699, %v442
      %v701 = vpop.permute.xlu0 %700
      %704 = vset.pattern.permute.xlu0 0
      %705 = vperm.xlu0 %704, %v443
      %v706 = vpop.permute.xlu0 %705
      %709 = vset.pattern.permute.xlu0 0
      %710 = vperm.xlu0 %709, %v444
      %v711 = vpop.permute.xlu0 %710
      %714 = vset.pattern.permute.xlu0 0
      %715 = vperm.xlu0 %714, %v445
      %v716 = vpop.permute.xlu0 %715
      %719 = vset.pattern.permute.xlu0 0
      %720 = vperm.xlu0 %719, %v446
      %v721 = vpop.permute.xlu0 %720
      %724 = vset.pattern.permute.xlu0 0
      %725 = vperm.xlu0 %724, %v447
      %v726 = vpop.permute.xlu0 %725
      %729 = vset.pattern.permute.xlu0 0
      %730 = vperm.xlu0 %729, %v448
      %v731 = vpop.permute.xlu0 %730
      %734 = vset.pattern.permute.xlu0 0
      %735 = vperm.xlu0 %734, %v449
      %v736 = vpop.permute.xlu0 %735
      %739 = vset.pattern.permute.xlu0 0
      %740 = vperm.xlu0 %739, %v450
      %v741 = vpop.permute.xlu0 %740
      %744 = vset.pattern.permute.xlu0 0
      %745 = vperm.xlu0 %744, %v451
      %v746 = vpop.permute.xlu0 %745
      %749 = vset.pattern.permute.xlu0 0
      %750 = vperm.xlu0 %749, %v452
      %v751 = vpop.permute.xlu0 %750
      %754 = vset.pattern.permute.xlu0 0
      %755 = vperm.xlu0 %754, %v453
      %v756 = vpop.permute.xlu0 %755
      %759 = vset.pattern.permute.xlu0 0
      %760 = vperm.xlu0 %759, %v454
      %v761 = vpop.permute.xlu0 %760
      %764 = vset.pattern.permute.xlu0 0
      %765 = vperm.xlu0 %764, %v455
      %v766 = vpop.permute.xlu0 %765
      %769 = vset.pattern.permute.xlu0 0
      %770 = vperm.xlu0 %769, %v456
      %v771 = vpop.permute.xlu0 %770
      %774 = vset.pattern.permute.xlu0 0
      %775 = vperm.xlu0 %774, %v457
      %v776 = vpop.permute.xlu0 %775
      %779 = vset.pattern.permute.xlu0 0
      %780 = vperm.xlu0 %779, %v458
      %v781 = vpop.permute.xlu0 %780
      %784 = vset.pattern.permute.xlu0 0
      %785 = vperm.xlu0 %784, %v459
      %v786 = vpop.permute.xlu0 %785
      %789 = vset.pattern.permute.xlu0 0
      %790 = vperm.xlu0 %789, %v460
      %v791 = vpop.permute.xlu0 %790
      %794 = vset.pattern.permute.xlu0 0
      %795 = vperm.xlu0 %794, %v461
      %v796 = vpop.permute.xlu0 %795
      %799 = vset.pattern.permute.xlu0 0
      %800 = vperm.xlu0 %799, %v462
      %v801 = vpop.permute.xlu0 %800
      %804 = vset.pattern.permute.xlu0 0
      %805 = vperm.xlu0 %804, %v463
      %v806 = vpop.permute.xlu0 %805
      %809 = vset.pattern.permute.xlu0 0
      %810 = vperm.xlu0 %809, %v464
      %v811 = vpop.permute.xlu0 %810
      %814 = vset.pattern.permute.xlu0 0
      %815 = vperm.xlu0 %814, %v465
      %v816 = vpop.permute.xlu0 %815
      %819 = vset.pattern.permute.xlu0 0
      %820 = vperm.xlu0 %819, %v466
      %v821 = vpop.permute.xlu0 %820
      %824 = vset.pattern.permute.xlu0 0
      %825 = vperm.xlu0 %824, %v467
      %v826 = vpop.permute.xlu0 %825
      %829 = vset.pattern.permute.xlu0 0
      %830 = vperm.xlu0 %829, %v468
      %v831 = vpop.permute.xlu0 %830
      %834 = vset.pattern.permute.xlu0 0
      %835 = vperm.xlu0 %834, %v469
      %v836 = vpop.permute.xlu0 %835
      %839 = vset.pattern.permute.xlu0 0
      %840 = vperm.xlu0 %839, %v470
      %v841 = vpop.permute.xlu0 %840
      %844 = vset.pattern.permute.xlu0 0
      %845 = vperm.xlu0 %844, %v471
      %v846 = vpop.permute.xlu0 %845
      %849 = vset.pattern.permute.xlu0 0
      %850 = vperm.xlu0 %849, %v472
      %v851 = vpop.permute.xlu0 %850
      %854 = vset.pattern.permute.xlu0 0
      %855 = vperm.xlu0 %854, %v473
      %v856 = vpop.permute.xlu0 %855
      %859 = vset.pattern.permute.xlu0 0
      %860 = vperm.xlu0 %859, %v474
      %v861 = vpop.permute.xlu0 %860
      %864 = vset.pattern.permute.xlu0 0
      %865 = vperm.xlu0 %864, %v475
      %v866 = vpop.permute.xlu0 %865
      %869 = vset.pattern.permute.xlu0 0
      %870 = vperm.xlu0 %869, %v476
      %v871 = vpop.permute.xlu0 %870
      %874 = vset.pattern.permute.xlu0 0
      %875 = vperm.xlu0 %874, %v477
      %v876 = vpop.permute.xlu0 %875
      %879 = vset.pattern.permute.xlu0 0
      %880 = vperm.xlu0 %879, %v478
      %v881 = vpop.permute.xlu0 %880
      %884 = vset.pattern.permute.xlu0 0
      %885 = vperm.xlu0 %884, %v479
      %v886 = vpop.permute.xlu0 %885
      %889 = vset.pattern.permute.xlu0 0
      %890 = vperm.xlu0 %889, %v480
      %v891 = vpop.permute.xlu0 %890
      %894 = vset.pattern.permute.xlu0 0
      %895 = vperm.xlu0 %894, %v481
      %v896 = vpop.permute.xlu0 %895
      %899 = vset.pattern.permute.xlu0 0
      %900 = vperm.xlu0 %899, %v482
      %v901 = vpop.permute.xlu0 %900
      %904 = vset.pattern.permute.xlu0 0
      %905 = vperm.xlu0 %904, %v483
      %v906 = vpop.permute.xlu0 %905
      %909 = vset.pattern.permute.xlu0 0
      %910 = vperm.xlu0 %909, %v484
      %v911 = vpop.permute.xlu0 %910
      %914 = vset.pattern.permute.xlu0 0
      %915 = vperm.xlu0 %914, %v485
      %v916 = vpop.permute.xlu0 %915
      %919 = vset.pattern.permute.xlu0 0
      %920 = vperm.xlu0 %919, %v486
      %v921 = vpop.permute.xlu0 %920
      %924 = vset.pattern.permute.xlu0 0
      %925 = vperm.xlu0 %924, %v487
      %v926 = vpop.permute.xlu0 %925
      %929 = vset.pattern.permute.xlu0 0
      %930 = vperm.xlu0 %929, %v488
      %v931 = vpop.permute.xlu0 %930
      %934 = vset.pattern.permute.xlu0 0
      %935 = vperm.xlu0 %934, %v489
      %v936 = vpop.permute.xlu0 %935
      %939 = vset.pattern.permute.xlu0 0
      %940 = vperm.xlu0 %939, %v490
      %v941 = vpop.permute.xlu0 %940
      %944 = vset.pattern.permute.xlu0 0
      %945 = vperm.xlu0 %944, %v491
      %v946 = vpop.permute.xlu0 %945
      %949 = vset.pattern.permute.xlu0 0
      %950 = vperm.xlu0 %949, %v492
      %v951 = vpop.permute.xlu0 %950
      %954 = vset.pattern.permute.xlu0 0
      %955 = vperm.xlu0 %954, %v493
      %v956 = vpop.permute.xlu0 %955
      %959 = vset.pattern.permute.xlu0 0
      %960 = vperm.xlu0 %959, %v494
      %v961 = vpop.permute.xlu0 %960
      %964 = vset.pattern.permute.xlu0 0
      %965 = vperm.xlu0 %964, %v495
      %v966 = vpop.permute.xlu0 %965
      %969 = vset.pattern.permute.xlu0 0
      %970 = vperm.xlu0 %969, %v496
      %v971 = vpop.permute.xlu0 %970
      %974 = vset.pattern.permute.xlu0 0
      %975 = vperm.xlu0 %974, %v497
      %v976 = vpop.permute.xlu0 %975
      %v1074 = vunpack.c.l.b16 %v306
      %v1075 = vunpack.c.h.b16 %v306
      %v1076 = vunpack.c.l.b16 %v307
      %v1077 = vunpack.c.h.b16 %v307
      %v1078 = vunpack.c.l.b16 %v308
      %v1079 = vunpack.c.h.b16 %v308
      %v1080 = vunpack.c.l.b16 %v309
      %v1081 = vunpack.c.h.b16 %v309
      %v1082 = vunpack.c.l.b16 %v310
      %v1083 = vunpack.c.h.b16 %v310
      %v1084 = vunpack.c.l.b16 %v311
      %v1085 = vunpack.c.h.b16 %v311
      %v1086 = vunpack.c.l.b16 %v312
      %v1087 = vunpack.c.h.b16 %v312
      %v1088 = vunpack.c.l.b16 %v313
      %v1089 = vunpack.c.h.b16 %v313
      %v1090 = vunpack.c.l.b16 %v314
      %v1091 = vunpack.c.h.b16 %v314
      %v1092 = vunpack.c.l.b16 %v315
      %v1093 = vunpack.c.h.b16 %v315
      %v1094 = vunpack.c.l.b16 %v316
      %v1095 = vunpack.c.h.b16 %v316
      %v1096 = vunpack.c.l.b16 %v317
      %v1097 = vunpack.c.h.b16 %v317
      %v1098 = vunpack.c.l.b16 %v318
      %v1099 = vunpack.c.h.b16 %v318
      %v1100 = vunpack.c.l.b16 %v319
      %v1101 = vunpack.c.h.b16 %v319
      %v1102 = vunpack.c.l.b16 %v320
      %v1103 = vunpack.c.h.b16 %v320
      %v1104 = vunpack.c.l.b16 %v321
      %v1105 = vunpack.c.h.b16 %v321
      %v1106 = vunpack.c.l.b16 %v322
      %v1107 = vunpack.c.h.b16 %v322
      %v1108 = vunpack.c.l.b16 %v323
      %v1109 = vunpack.c.h.b16 %v323
      %v1110 = vunpack.c.l.b16 %v324
      %v1111 = vunpack.c.h.b16 %v324
      %v1112 = vunpack.c.l.b16 %v325
      %v1113 = vunpack.c.h.b16 %v325
      %v1114 = vunpack.c.l.b16 %v326
      %v1115 = vunpack.c.h.b16 %v326
      %v1116 = vunpack.c.l.b16 %v327
      %v1117 = vunpack.c.h.b16 %v327
      %v1118 = vunpack.c.l.b16 %v328
      %v1119 = vunpack.c.h.b16 %v328
      %v1120 = vunpack.c.l.b16 %v329
      %v1121 = vunpack.c.h.b16 %v329
      %v1122 = vunpack.c.l.b16 %v330
      %v1123 = vunpack.c.h.b16 %v330
      %v1124 = vunpack.c.l.b16 %v331
      %v1125 = vunpack.c.h.b16 %v331
      %v1126 = vunpack.c.l.b16 %v332
      %v1127 = vunpack.c.h.b16 %v332
      %v1128 = vunpack.c.l.b16 %v333
      %v1129 = vunpack.c.h.b16 %v333
      %v1130 = vunpack.c.l.b16 %v334
      %v1131 = vunpack.c.h.b16 %v334
      %v1132 = vunpack.c.l.b16 %v335
      %v1133 = vunpack.c.h.b16 %v335
      %v1134 = vunpack.c.l.b16 %v336
      %v1135 = vunpack.c.h.b16 %v336
      %v1136 = vunpack.c.l.b16 %v337
      %v1137 = vunpack.c.h.b16 %v337
      %v1138 = vunpack.c.l.b16 %v338
      %v1139 = vunpack.c.h.b16 %v338
      %v1140 = vunpack.c.l.b16 %v339
      %v1141 = vunpack.c.h.b16 %v339
      %v1142 = vunpack.c.l.b16 %v340
      %v1143 = vunpack.c.h.b16 %v340
      %v1144 = vunpack.c.l.b16 %v341
      %v1145 = vunpack.c.h.b16 %v341
      %v1146 = vunpack.c.l.b16 %v342
      %v1147 = vunpack.c.h.b16 %v342
      %v1148 = vunpack.c.l.b16 %v343
      %v1149 = vunpack.c.h.b16 %v343
      %v1150 = vunpack.c.l.b16 %v344
      %v1151 = vunpack.c.h.b16 %v344
      %v1152 = vunpack.c.l.b16 %v345
      %v1153 = vunpack.c.h.b16 %v345
      %v1154 = vunpack.c.l.b16 %v346
      %v1155 = vunpack.c.h.b16 %v346
      %v1156 = vunpack.c.l.b16 %v347
      %v1157 = vunpack.c.h.b16 %v347
      %v1158 = vunpack.c.l.b16 %v348
      %v1159 = vunpack.c.h.b16 %v348
      %v1160 = vunpack.c.l.b16 %v349
      %v1161 = vunpack.c.h.b16 %v349
      %v1162 = vunpack.c.l.b16 %v350
      %v1163 = vunpack.c.h.b16 %v350
      %v1164 = vunpack.c.l.b16 %v351
      %v1165 = vunpack.c.h.b16 %v351
      %v1166 = vunpack.c.l.b16 %v352
      %v1167 = vunpack.c.h.b16 %v352
      %v1168 = vunpack.c.l.b16 %v353
      %v1169 = vunpack.c.h.b16 %v353
      %v1170 = vunpack.c.l.b16 %v354
      %v1171 = vunpack.c.h.b16 %v354
      %v1172 = vunpack.c.l.b16 %v355
      %v1173 = vunpack.c.h.b16 %v355
      %v1174 = vunpack.c.l.b16 %v356
      %v1175 = vunpack.c.h.b16 %v356
      %v1176 = vunpack.c.l.b16 %v357
      %v1177 = vunpack.c.h.b16 %v357
      %v1178 = vunpack.c.l.b16 %v358
      %v1179 = vunpack.c.h.b16 %v358
      %v1180 = vunpack.c.l.b16 %v359
      %v1181 = vunpack.c.h.b16 %v359
      %v1182 = vunpack.c.l.b16 %v360
      %v1183 = vunpack.c.h.b16 %v360
      %v1184 = vunpack.c.l.b16 %v361
      %v1185 = vunpack.c.h.b16 %v361
      %v1186 = vunpack.c.l.b16 %v362
      %v1187 = vunpack.c.h.b16 %v362
      %v1188 = vunpack.c.l.b16 %v363
      %v1189 = vunpack.c.h.b16 %v363
      %v1190 = vunpack.c.l.b16 %v364
      %v1191 = vunpack.c.h.b16 %v364
      %v1192 = vunpack.c.l.b16 %v365
      %v1193 = vunpack.c.h.b16 %v365
      %v1194 = vunpack.c.l.b16 %v366
      %v1195 = vunpack.c.h.b16 %v366
      %v1196 = vunpack.c.l.b16 %v367
      %v1197 = vunpack.c.h.b16 %v367
      %v1198 = vunpack.c.l.b16 %v368
      %v1199 = vunpack.c.h.b16 %v368
      %v1200 = vunpack.c.l.b16 %v369
      %v1201 = vunpack.c.h.b16 %v369
      %v1202 = vunpack.c.l.b16 %v370
      %v1203 = vunpack.c.h.b16 %v370
      %v1204 = vunpack.c.l.b16 %v371
      %v1205 = vunpack.c.h.b16 %v371
      %v1206 = vunpack.c.l.b16 %v372
      %v1207 = vunpack.c.h.b16 %v372
      %v1208 = vunpack.c.l.b16 %v373
      %v1209 = vunpack.c.h.b16 %v373
      %v1210 = vunpack.c.l.b16 %v374
      %v1211 = vunpack.c.h.b16 %v374
      %v1212 = vunpack.c.l.b16 %v375
      %v1213 = vunpack.c.h.b16 %v375
      %v1214 = vunpack.c.l.b16 %v376
      %v1215 = vunpack.c.h.b16 %v376
      %v1216 = vunpack.c.l.b16 %v377
      %v1217 = vunpack.c.h.b16 %v377
      %v1218 = vunpack.c.l.b16 %v378
      %v1219 = vunpack.c.h.b16 %v378
      %v1220 = vunpack.c.l.b16 %v379
      %v1221 = vunpack.c.h.b16 %v379
      %v1222 = vunpack.c.l.b16 %v380
      %v1223 = vunpack.c.h.b16 %v380
      %v1224 = vunpack.c.l.b16 %v381
      %v1225 = vunpack.c.h.b16 %v381
      %v1226 = vunpack.c.l.b16 %v382
      %v1227 = vunpack.c.h.b16 %v382
      %v1228 = vunpack.c.l.b16 %v383
      %v1229 = vunpack.c.h.b16 %v383
      %v1230 = vunpack.c.l.b16 %v384
      %v1231 = vunpack.c.h.b16 %v384
      %v1232 = vunpack.c.l.b16 %v385
      %v1233 = vunpack.c.h.b16 %v385
      %v1234 = vunpack.c.l.b16 %v386
      %v1235 = vunpack.c.h.b16 %v386
      %v1236 = vunpack.c.l.b16 %v387
      %v1237 = vunpack.c.h.b16 %v387
      %v1238 = vunpack.c.l.b16 %v388
      %v1239 = vunpack.c.h.b16 %v388
      %v1240 = vunpack.c.l.b16 %v389
      %v1241 = vunpack.c.h.b16 %v389
      %v1242 = vunpack.c.l.b16 %v390
      %v1243 = vunpack.c.h.b16 %v390
      %v1244 = vunpack.c.l.b16 %v391
      %v1245 = vunpack.c.h.b16 %v391
      %v1246 = vunpack.c.l.b16 %v392
      %v1247 = vunpack.c.h.b16 %v392
      %v1248 = vunpack.c.l.b16 %v393
      %v1249 = vunpack.c.h.b16 %v393
      %v1250 = vunpack.c.l.b16 %v394
      %v1251 = vunpack.c.h.b16 %v394
      %v1252 = vunpack.c.l.b16 %v395
      %v1253 = vunpack.c.h.b16 %v395
      %v1254 = vunpack.c.l.b16 %v396
      %v1255 = vunpack.c.h.b16 %v396
      %v1256 = vunpack.c.l.b16 %v397
      %v1257 = vunpack.c.h.b16 %v397
      %v1258 = vunpack.c.l.b16 %v398
      %v1259 = vunpack.c.h.b16 %v398
      %v1260 = vunpack.c.l.b16 %v399
      %v1261 = vunpack.c.h.b16 %v399
      %v1262 = vunpack.c.l.b16 %v400
      %v1263 = vunpack.c.h.b16 %v400
      %v1264 = vunpack.c.l.b16 %v401
      %v1265 = vunpack.c.h.b16 %v401
      %v1266 = vpack.c.b16 %v1076, %v1074
      %v1267 = vpack.c.b16 %v1077, %v1075
      %v1268 = vpack.c.b16 %v1080, %v1078
      %v1269 = vpack.c.b16 %v1081, %v1079
      %v1270 = vpack.c.b16 %v1084, %v1082
      %v1271 = vpack.c.b16 %v1085, %v1083
      %v1272 = vpack.c.b16 %v1088, %v1086
      %v1273 = vpack.c.b16 %v1089, %v1087
      %v1274 = vpack.c.b16 %v1092, %v1090
      %v1275 = vpack.c.b16 %v1093, %v1091
      %v1276 = vpack.c.b16 %v1096, %v1094
      %v1277 = vpack.c.b16 %v1097, %v1095
      %v1278 = vpack.c.b16 %v1100, %v1098
      %v1279 = vpack.c.b16 %v1101, %v1099
      %v1280 = vpack.c.b16 %v1104, %v1102
      %v1281 = vpack.c.b16 %v1105, %v1103
      %v1282 = vpack.c.b16 %v1108, %v1106
      %v1283 = vpack.c.b16 %v1109, %v1107
      %v1284 = vpack.c.b16 %v1112, %v1110
      %v1285 = vpack.c.b16 %v1113, %v1111
      %v1286 = vpack.c.b16 %v1116, %v1114
      %v1287 = vpack.c.b16 %v1117, %v1115
      %v1288 = vpack.c.b16 %v1120, %v1118
      %v1289 = vpack.c.b16 %v1121, %v1119
      %v1290 = vpack.c.b16 %v1124, %v1122
      %v1291 = vpack.c.b16 %v1125, %v1123
      %v1292 = vpack.c.b16 %v1128, %v1126
      %v1293 = vpack.c.b16 %v1129, %v1127
      %v1294 = vpack.c.b16 %v1132, %v1130
      %v1295 = vpack.c.b16 %v1133, %v1131
      %v1296 = vpack.c.b16 %v1136, %v1134
      %v1297 = vpack.c.b16 %v1137, %v1135
      %v1298 = vpack.c.b16 %v1140, %v1138
      %v1299 = vpack.c.b16 %v1141, %v1139
      %v1300 = vpack.c.b16 %v1144, %v1142
      %v1301 = vpack.c.b16 %v1145, %v1143
      %v1302 = vpack.c.b16 %v1148, %v1146
      %v1303 = vpack.c.b16 %v1149, %v1147
      %v1304 = vpack.c.b16 %v1152, %v1150
      %v1305 = vpack.c.b16 %v1153, %v1151
      %v1306 = vpack.c.b16 %v1156, %v1154
      %v1307 = vpack.c.b16 %v1157, %v1155
      %v1308 = vpack.c.b16 %v1160, %v1158
      %v1309 = vpack.c.b16 %v1161, %v1159
      %v1310 = vpack.c.b16 %v1164, %v1162
      %v1311 = vpack.c.b16 %v1165, %v1163
      %v1312 = vpack.c.b16 %v1168, %v1166
      %v1313 = vpack.c.b16 %v1169, %v1167
      %v1314 = vpack.c.b16 %v1172, %v1170
      %v1315 = vpack.c.b16 %v1173, %v1171
      %v1316 = vpack.c.b16 %v1176, %v1174
      %v1317 = vpack.c.b16 %v1177, %v1175
      %v1318 = vpack.c.b16 %v1180, %v1178
      %v1319 = vpack.c.b16 %v1181, %v1179
      %v1320 = vpack.c.b16 %v1184, %v1182
      %v1321 = vpack.c.b16 %v1185, %v1183
      %v1322 = vpack.c.b16 %v1188, %v1186
      %v1323 = vpack.c.b16 %v1189, %v1187
      %v1324 = vpack.c.b16 %v1192, %v1190
      %v1325 = vpack.c.b16 %v1193, %v1191
      %v1326 = vpack.c.b16 %v1196, %v1194
      %v1327 = vpack.c.b16 %v1197, %v1195
      %v1328 = vpack.c.b16 %v1200, %v1198
      %v1329 = vpack.c.b16 %v1201, %v1199
      %v1330 = vpack.c.b16 %v1204, %v1202
      %v1331 = vpack.c.b16 %v1205, %v1203
      %v1332 = vpack.c.b16 %v1208, %v1206
      %v1333 = vpack.c.b16 %v1209, %v1207
      %v1334 = vpack.c.b16 %v1212, %v1210
      %v1335 = vpack.c.b16 %v1213, %v1211
      %v1336 = vpack.c.b16 %v1216, %v1214
      %v1337 = vpack.c.b16 %v1217, %v1215
      %v1338 = vpack.c.b16 %v1220, %v1218
      %v1339 = vpack.c.b16 %v1221, %v1219
      %v1340 = vpack.c.b16 %v1224, %v1222
      %v1341 = vpack.c.b16 %v1225, %v1223
      %v1342 = vpack.c.b16 %v1228, %v1226
      %v1343 = vpack.c.b16 %v1229, %v1227
      %v1344 = vpack.c.b16 %v1232, %v1230
      %v1345 = vpack.c.b16 %v1233, %v1231
      %v1346 = vpack.c.b16 %v1236, %v1234
      %v1347 = vpack.c.b16 %v1237, %v1235
      %v1348 = vpack.c.b16 %v1240, %v1238
      %v1349 = vpack.c.b16 %v1241, %v1239
      %v1350 = vpack.c.b16 %v1244, %v1242
      %v1351 = vpack.c.b16 %v1245, %v1243
      %v1352 = vpack.c.b16 %v1248, %v1246
      %v1353 = vpack.c.b16 %v1249, %v1247
      %v1354 = vpack.c.b16 %v1252, %v1250
      %v1355 = vpack.c.b16 %v1253, %v1251
      %v1356 = vpack.c.b16 %v1256, %v1254
      %v1357 = vpack.c.b16 %v1257, %v1255
      %v1358 = vpack.c.b16 %v1260, %v1258
      %v1359 = vpack.c.b16 %v1261, %v1259
      %v1360 = vpack.c.b16 %v1264, %v1262
      %v1361 = vpack.c.b16 %v1265, %v1263
      %1458 = vmatprep.subr.bf16.mxu0 %v289
      %1459 = vmatpush1.bf16.msra.mxu0 %v288
      %1460 = vmatprep.subr.bf16.mxu0 %v287
      %1461 = vmatpush1.bf16.msra.mxu0 %v286
      %1462 = vmatprep.subr.bf16.mxu0 %v285
      %1463 = vmatpush1.bf16.msra.mxu0 %v284
      %1464 = vmatprep.subr.bf16.mxu0 %v283
      %1465 = vmatpush1.bf16.msra.mxu0 %v282
      %1466 = vmatprep.subr.bf16.mxu0 %v281
      %1467 = vmatpush1.bf16.msra.mxu0 %v280
      %1468 = vmatprep.subr.bf16.mxu0 %v279
      %1469 = vmatpush1.bf16.msra.mxu0 %v278
      %1470 = vmatprep.subr.bf16.mxu0 %v277
      %1471 = vmatpush1.bf16.msra.mxu0 %v276
      %1472 = vmatprep.subr.bf16.mxu0 %v275
      %1473 = vmatpush1.bf16.msra.mxu0 %v274
      %1474 = vmatprep.subr.bf16.mxu0 %v305
      %1475 = vmatpush2.bf16.msra.mxu0 %v304
      %1476 = vmatprep.subr.bf16.mxu0 %v303
      %1477 = vmatpush2.bf16.msra.mxu0 %v302
      %1478 = vmatprep.subr.bf16.mxu0 %v301
      %1479 = vmatpush2.bf16.msra.mxu0 %v300
      %1480 = vmatprep.subr.bf16.mxu0 %v299
      %1481 = vmatpush2.bf16.msra.mxu0 %v298
      %1482 = vmatprep.subr.bf16.mxu0 %v297
      %1483 = vmatpush2.bf16.msra.mxu0 %v296
      %1484 = vmatprep.subr.bf16.mxu0 %v295
      %1485 = vmatpush2.bf16.msra.mxu0 %v294
      %1486 = vmatprep.subr.bf16.mxu0 %v293
      %1487 = vmatpush2.bf16.msra.mxu0 %v292
      %1488 = vmatprep.subr.bf16.mxu0 %v291
      %1489 = vmatpush2.bf16.msra.mxu0 %v290
      %1490 = vmatprep.mubr.bf16.mxu0 %v1267
      %1491 = vmatmul.mubr.bf16.gmra.mxu0 %v1266
      %v1492 = vpop.f32.mrf.mxu0
      %v1493 = vadd.f32 %v501, %v1492
      %v1494 = vpop.f32.mrf.mxu0
      %v1495 = vadd.f32 %v501, %v1494
      %v1496 = vpop.f32.mrf.mxu0
      %v1497 = vadd.f32 %v506, %v1496
      %v1498 = vpop.f32.mrf.mxu0
      %v1499 = vadd.f32 %v506, %v1498
      %1500 = vmatprep.mubr.bf16.mxu0 %v1269
      %1501 = vmatmul.mubr.bf16.gmra.mxu0 %v1268
      %v1502 = vpop.f32.mrf.mxu0
      %v1503 = vadd.f32 %v511, %v1502
      %v1504 = vpop.f32.mrf.mxu0
      %v1505 = vadd.f32 %v511, %v1504
      %v1506 = vpop.f32.mrf.mxu0
      %v1507 = vadd.f32 %v516, %v1506
      %v1508 = vpop.f32.mrf.mxu0
      %v1509 = vadd.f32 %v516, %v1508
      %1510 = vmatprep.mubr.bf16.mxu0 %v1271
      %1511 = vmatmul.mubr.bf16.gmra.mxu0 %v1270
      %v1512 = vpop.f32.mrf.mxu0
      %v1513 = vadd.f32 %v521, %v1512
      %v1514 = vpop.f32.mrf.mxu0
      %v1515 = vadd.f32 %v521, %v1514
      %v1516 = vpop.f32.mrf.mxu0
      %v1517 = vadd.f32 %v526, %v1516
      %v1518 = vpop.f32.mrf.mxu0
      %v1519 = vadd.f32 %v526, %v1518
      %1520 = vmatprep.mubr.bf16.mxu0 %v1273
      %1521 = vmatmul.mubr.bf16.gmra.mxu0 %v1272
      %v1522 = vpop.f32.mrf.mxu0
      %v1523 = vadd.f32 %v531, %v1522
      %v1524 = vpop.f32.mrf.mxu0
      %v1525 = vadd.f32 %v531, %v1524
      %v1526 = vpop.f32.mrf.mxu0
      %v1527 = vadd.f32 %v536, %v1526
      %v1528 = vpop.f32.mrf.mxu0
      %v1529 = vadd.f32 %v536, %v1528
      %1530 = vmatprep.mubr.bf16.mxu0 %v1275
      %1531 = vmatmul.mubr.bf16.gmra.mxu0 %v1274
      %v1532 = vpop.f32.mrf.mxu0
      %v1533 = vadd.f32 %v541, %v1532
      %v1534 = vpop.f32.mrf.mxu0
      %v1535 = vadd.f32 %v541, %v1534
      %v1536 = vpop.f32.mrf.mxu0
      %v1537 = vadd.f32 %v546, %v1536
      %v1538 = vpop.f32.mrf.mxu0
      %v1539 = vadd.f32 %v546, %v1538
      %1540 = vmatprep.mubr.bf16.mxu0 %v1277
      %1541 = vmatmul.mubr.bf16.gmra.mxu0 %v1276
      %v1542 = vpop.f32.mrf.mxu0
      %v1543 = vadd.f32 %v551, %v1542
      %v1544 = vpop.f32.mrf.mxu0
      %v1545 = vadd.f32 %v551, %v1544
      %v1546 = vpop.f32.mrf.mxu0
      %v1547 = vadd.f32 %v556, %v1546
      %v1548 = vpop.f32.mrf.mxu0
      %v1549 = vadd.f32 %v556, %v1548
      %1550 = vmatprep.mubr.bf16.mxu0 %v1279
      %1551 = vmatmul.mubr.bf16.gmra.mxu0 %v1278
      %v1552 = vpop.f32.mrf.mxu0
      %v1553 = vadd.f32 %v561, %v1552
      %v1554 = vpop.f32.mrf.mxu0
      %v1555 = vadd.f32 %v561, %v1554
      %v1556 = vpop.f32.mrf.mxu0
      %v1557 = vadd.f32 %v566, %v1556
      %v1558 = vpop.f32.mrf.mxu0
      %v1559 = vadd.f32 %v566, %v1558
      %1560 = vmatprep.mubr.bf16.mxu0 %v1281
      %1561 = vmatmul.mubr.bf16.gmra.mxu0 %v1280
      %v1562 = vpop.f32.mrf.mxu0
      %v1563 = vadd.f32 %v571, %v1562
      %v1564 = vpop.f32.mrf.mxu0
      %v1565 = vadd.f32 %v571, %v1564
      %v1566 = vpop.f32.mrf.mxu0
      %v1567 = vadd.f32 %v576, %v1566
      %v1568 = vpop.f32.mrf.mxu0
      %v1569 = vadd.f32 %v576, %v1568
      %1570 = vmatprep.mubr.bf16.mxu0 %v1283
      %1571 = vmatmul.mubr.bf16.gmra.mxu0 %v1282
      %v1572 = vpop.f32.mrf.mxu0
      %v1573 = vadd.f32 %v581, %v1572
      %v1574 = vpop.f32.mrf.mxu0
      %v1575 = vadd.f32 %v581, %v1574
      %v1576 = vpop.f32.mrf.mxu0
      %v1577 = vadd.f32 %v586, %v1576
      %v1578 = vpop.f32.mrf.mxu0
      %v1579 = vadd.f32 %v586, %v1578
      %1580 = vmatprep.mubr.bf16.mxu0 %v1285
      %1581 = vmatmul.mubr.bf16.gmra.mxu0 %v1284
      %v1582 = vpop.f32.mrf.mxu0
      %v1583 = vadd.f32 %v591, %v1582
      %v1584 = vpop.f32.mrf.mxu0
      %v1585 = vadd.f32 %v591, %v1584
      %v1586 = vpop.f32.mrf.mxu0
      %v1587 = vadd.f32 %v596, %v1586
      %v1588 = vpop.f32.mrf.mxu0
      %v1589 = vadd.f32 %v596, %v1588
      %1590 = vmatprep.mubr.bf16.mxu0 %v1287
      %1591 = vmatmul.mubr.bf16.gmra.mxu0 %v1286
      %v1592 = vpop.f32.mrf.mxu0
      %v1593 = vadd.f32 %v601, %v1592
      %v1594 = vpop.f32.mrf.mxu0
      %v1595 = vadd.f32 %v601, %v1594
      %v1596 = vpop.f32.mrf.mxu0
      %v1597 = vadd.f32 %v606, %v1596
      %v1598 = vpop.f32.mrf.mxu0
      %v1599 = vadd.f32 %v606, %v1598
      %1600 = vmatprep.mubr.bf16.mxu0 %v1289
      %1601 = vmatmul.mubr.bf16.gmra.mxu0 %v1288
      %v1602 = vpop.f32.mrf.mxu0
      %v1603 = vadd.f32 %v611, %v1602
      %v1604 = vpop.f32.mrf.mxu0
      %v1605 = vadd.f32 %v611, %v1604
      %v1606 = vpop.f32.mrf.mxu0
      %v1607 = vadd.f32 %v616, %v1606
      %v1608 = vpop.f32.mrf.mxu0
      %v1609 = vadd.f32 %v616, %v1608
      %1610 = vmatprep.mubr.bf16.mxu0 %v1291
      %1611 = vmatmul.mubr.bf16.gmra.mxu0 %v1290
      %v1612 = vpop.f32.mrf.mxu0
      %v1613 = vadd.f32 %v621, %v1612
      %v1614 = vpop.f32.mrf.mxu0
      %v1615 = vadd.f32 %v621, %v1614
      %v1616 = vpop.f32.mrf.mxu0
      %v1617 = vadd.f32 %v626, %v1616
      %v1618 = vpop.f32.mrf.mxu0
      %v1619 = vadd.f32 %v626, %v1618
      %1620 = vmatprep.mubr.bf16.mxu0 %v1293
      %1621 = vmatmul.mubr.bf16.gmra.mxu0 %v1292
      %v1622 = vpop.f32.mrf.mxu0
      %v1623 = vadd.f32 %v631, %v1622
      %v1624 = vpop.f32.mrf.mxu0
      %v1625 = vadd.f32 %v631, %v1624
      %v1626 = vpop.f32.mrf.mxu0
      %v1627 = vadd.f32 %v636, %v1626
      %v1628 = vpop.f32.mrf.mxu0
      %v1629 = vadd.f32 %v636, %v1628
      %1630 = vmatprep.mubr.bf16.mxu0 %v1295
      %1631 = vmatmul.mubr.bf16.gmra.mxu0 %v1294
      %v1632 = vpop.f32.mrf.mxu0
      %v1633 = vadd.f32 %v641, %v1632
      %v1634 = vpop.f32.mrf.mxu0
      %v1635 = vadd.f32 %v641, %v1634
      %v1636 = vpop.f32.mrf.mxu0
      %v1637 = vadd.f32 %v646, %v1636
      %v1638 = vpop.f32.mrf.mxu0
      %v1639 = vadd.f32 %v646, %v1638
      %1640 = vmatprep.mubr.bf16.mxu0 %v1297
      %1641 = vmatmul.mubr.bf16.gmra.mxu0 %v1296
      %v1642 = vpop.f32.mrf.mxu0
      %v1643 = vadd.f32 %v651, %v1642
      %v1644 = vpop.f32.mrf.mxu0
      %v1645 = vadd.f32 %v651, %v1644
      %v1646 = vpop.f32.mrf.mxu0
      %v1647 = vadd.f32 %v656, %v1646
      %v1648 = vpop.f32.mrf.mxu0
      %v1649 = vadd.f32 %v656, %v1648
      %1650 = vmatprep.mubr.bf16.mxu0 %v1299
      %1651 = vmatmul.mubr.bf16.gmra.mxu0 %v1298
      %v1652 = vpop.f32.mrf.mxu0
      %v1653 = vadd.f32 %v661, %v1652
      %v1654 = vpop.f32.mrf.mxu0
      %v1655 = vadd.f32 %v661, %v1654
      %v1656 = vpop.f32.mrf.mxu0
      %v1657 = vadd.f32 %v666, %v1656
      %v1658 = vpop.f32.mrf.mxu0
      %v1659 = vadd.f32 %v666, %v1658
      %1660 = vmatprep.mubr.bf16.mxu0 %v1301
      %1661 = vmatmul.mubr.bf16.gmra.mxu0 %v1300
      %v1662 = vpop.f32.mrf.mxu0
      %v1663 = vadd.f32 %v671, %v1662
      %v1664 = vpop.f32.mrf.mxu0
      %v1665 = vadd.f32 %v671, %v1664
      %v1666 = vpop.f32.mrf.mxu0
      %v1667 = vadd.f32 %v676, %v1666
      %v1668 = vpop.f32.mrf.mxu0
      %v1669 = vadd.f32 %v676, %v1668
      %1670 = vmatprep.mubr.bf16.mxu0 %v1303
      %1671 = vmatmul.mubr.bf16.gmra.mxu0 %v1302
      %v1672 = vpop.f32.mrf.mxu0
      %v1673 = vadd.f32 %v681, %v1672
      %v1674 = vpop.f32.mrf.mxu0
      %v1675 = vadd.f32 %v681, %v1674
      %v1676 = vpop.f32.mrf.mxu0
      %v1677 = vadd.f32 %v686, %v1676
      %v1678 = vpop.f32.mrf.mxu0
      %v1679 = vadd.f32 %v686, %v1678
      %1680 = vmatprep.mubr.bf16.mxu0 %v1305
      %1681 = vmatmul.mubr.bf16.gmra.mxu0 %v1304
      %v1682 = vpop.f32.mrf.mxu0
      %v1683 = vadd.f32 %v691, %v1682
      %v1684 = vpop.f32.mrf.mxu0
      %v1685 = vadd.f32 %v691, %v1684
      %v1686 = vpop.f32.mrf.mxu0
      %v1687 = vadd.f32 %v696, %v1686
      %v1688 = vpop.f32.mrf.mxu0
      %v1689 = vadd.f32 %v696, %v1688
      %1690 = vmatprep.mubr.bf16.mxu0 %v1307
      %1691 = vmatmul.mubr.bf16.gmra.mxu0 %v1306
      %v1692 = vpop.f32.mrf.mxu0
      %v1693 = vadd.f32 %v701, %v1692
      %v1694 = vpop.f32.mrf.mxu0
      %v1695 = vadd.f32 %v701, %v1694
      %v1696 = vpop.f32.mrf.mxu0
      %v1697 = vadd.f32 %v706, %v1696
      %v1698 = vpop.f32.mrf.mxu0
      %v1699 = vadd.f32 %v706, %v1698
      %1700 = vmatprep.mubr.bf16.mxu0 %v1309
      %1701 = vmatmul.mubr.bf16.gmra.mxu0 %v1308
      %v1702 = vpop.f32.mrf.mxu0
      %v1703 = vadd.f32 %v711, %v1702
      %v1704 = vpop.f32.mrf.mxu0
      %v1705 = vadd.f32 %v711, %v1704
      %v1706 = vpop.f32.mrf.mxu0
      %v1707 = vadd.f32 %v716, %v1706
      %v1708 = vpop.f32.mrf.mxu0
      %v1709 = vadd.f32 %v716, %v1708
      %1710 = vmatprep.mubr.bf16.mxu0 %v1311
      %1711 = vmatmul.mubr.bf16.gmra.mxu0 %v1310
      %v1712 = vpop.f32.mrf.mxu0
      %v1713 = vadd.f32 %v721, %v1712
      %v1714 = vpop.f32.mrf.mxu0
      %v1715 = vadd.f32 %v721, %v1714
      %v1716 = vpop.f32.mrf.mxu0
      %v1717 = vadd.f32 %v726, %v1716
      %v1718 = vpop.f32.mrf.mxu0
      %v1719 = vadd.f32 %v726, %v1718
      %1720 = vmatprep.mubr.bf16.mxu0 %v1313
      %1721 = vmatmul.mubr.bf16.gmra.mxu0 %v1312
      %v1722 = vpop.f32.mrf.mxu0
      %v1723 = vadd.f32 %v731, %v1722
      %v1724 = vpop.f32.mrf.mxu0
      %v1725 = vadd.f32 %v731, %v1724
      %v1726 = vpop.f32.mrf.mxu0
      %v1727 = vadd.f32 %v736, %v1726
      %v1728 = vpop.f32.mrf.mxu0
      %v1729 = vadd.f32 %v736, %v1728
      %1730 = vmatprep.mubr.bf16.mxu0 %v1315
      %1731 = vmatmul.mubr.bf16.gmra.mxu0 %v1314
      %v1732 = vpop.f32.mrf.mxu0
      %v1733 = vadd.f32 %v741, %v1732
      %v1734 = vpop.f32.mrf.mxu0
      %v1735 = vadd.f32 %v741, %v1734
      %v1736 = vpop.f32.mrf.mxu0
      %v1737 = vadd.f32 %v746, %v1736
      %v1738 = vpop.f32.mrf.mxu0
      %v1739 = vadd.f32 %v746, %v1738
      %1740 = vmatprep.mubr.bf16.mxu0 %v1317
      %1741 = vmatmul.mubr.bf16.gmra.mxu0 %v1316
      %v1742 = vpop.f32.mrf.mxu0
      %v1743 = vadd.f32 %v751, %v1742
      %v1744 = vpop.f32.mrf.mxu0
      %v1745 = vadd.f32 %v751, %v1744
      %v1746 = vpop.f32.mrf.mxu0
      %v1747 = vadd.f32 %v756, %v1746
      %v1748 = vpop.f32.mrf.mxu0
      %v1749 = vadd.f32 %v756, %v1748
      %1750 = vmatprep.mubr.bf16.mxu0 %v1319
      %1751 = vmatmul.mubr.bf16.gmra.mxu0 %v1318
      %v1752 = vpop.f32.mrf.mxu0
      %v1753 = vadd.f32 %v761, %v1752
      %v1754 = vpop.f32.mrf.mxu0
      %v1755 = vadd.f32 %v761, %v1754
      %v1756 = vpop.f32.mrf.mxu0
      %v1757 = vadd.f32 %v766, %v1756
      %v1758 = vpop.f32.mrf.mxu0
      %v1759 = vadd.f32 %v766, %v1758
      %1760 = vmatprep.mubr.bf16.mxu0 %v1321
      %1761 = vmatmul.mubr.bf16.gmra.mxu0 %v1320
      %v1762 = vpop.f32.mrf.mxu0
      %v1763 = vadd.f32 %v771, %v1762
      %v1764 = vpop.f32.mrf.mxu0
      %v1765 = vadd.f32 %v771, %v1764
      %v1766 = vpop.f32.mrf.mxu0
      %v1767 = vadd.f32 %v776, %v1766
      %v1768 = vpop.f32.mrf.mxu0
      %v1769 = vadd.f32 %v776, %v1768
      %1770 = vmatprep.mubr.bf16.mxu0 %v1323
      %1771 = vmatmul.mubr.bf16.gmra.mxu0 %v1322
      %v1772 = vpop.f32.mrf.mxu0
      %v1773 = vadd.f32 %v781, %v1772
      %v1774 = vpop.f32.mrf.mxu0
      %v1775 = vadd.f32 %v781, %v1774
      %v1776 = vpop.f32.mrf.mxu0
      %v1777 = vadd.f32 %v786, %v1776
      %v1778 = vpop.f32.mrf.mxu0
      %v1779 = vadd.f32 %v786, %v1778
      %1780 = vmatprep.mubr.bf16.mxu0 %v1325
      %1781 = vmatmul.mubr.bf16.gmra.mxu0 %v1324
      %v1782 = vpop.f32.mrf.mxu0
      %v1783 = vadd.f32 %v791, %v1782
      %v1784 = vpop.f32.mrf.mxu0
      %v1785 = vadd.f32 %v791, %v1784
      %v1786 = vpop.f32.mrf.mxu0
      %v1787 = vadd.f32 %v796, %v1786
      %v1788 = vpop.f32.mrf.mxu0
      %v1789 = vadd.f32 %v796, %v1788
      %1790 = vmatprep.mubr.bf16.mxu0 %v1327
      %1791 = vmatmul.mubr.bf16.gmra.mxu0 %v1326
      %v1792 = vpop.f32.mrf.mxu0
      %v1793 = vadd.f32 %v801, %v1792
      %v1794 = vpop.f32.mrf.mxu0
      %v1795 = vadd.f32 %v801, %v1794
      %v1796 = vpop.f32.mrf.mxu0
      %v1797 = vadd.f32 %v806, %v1796
      %v1798 = vpop.f32.mrf.mxu0
      %v1799 = vadd.f32 %v806, %v1798
      %1800 = vmatprep.mubr.bf16.mxu0 %v1329
      %1801 = vmatmul.mubr.bf16.gmra.mxu0 %v1328
      %v1802 = vpop.f32.mrf.mxu0
      %v1803 = vadd.f32 %v811, %v1802
      %v1804 = vpop.f32.mrf.mxu0
      %v1805 = vadd.f32 %v811, %v1804
      %v1806 = vpop.f32.mrf.mxu0
      %v1807 = vadd.f32 %v816, %v1806
      %v1808 = vpop.f32.mrf.mxu0
      %v1809 = vadd.f32 %v816, %v1808
      %1810 = vmatprep.mubr.bf16.mxu0 %v1331
      %1811 = vmatmul.mubr.bf16.gmra.mxu0 %v1330
      %v1812 = vpop.f32.mrf.mxu0
      %v1813 = vadd.f32 %v821, %v1812
      %v1814 = vpop.f32.mrf.mxu0
      %v1815 = vadd.f32 %v821, %v1814
      %v1816 = vpop.f32.mrf.mxu0
      %v1817 = vadd.f32 %v826, %v1816
      %v1818 = vpop.f32.mrf.mxu0
      %v1819 = vadd.f32 %v826, %v1818
      %1820 = vmatprep.mubr.bf16.mxu0 %v1333
      %1821 = vmatmul.mubr.bf16.gmra.mxu0 %v1332
      %v1822 = vpop.f32.mrf.mxu0
      %v1823 = vadd.f32 %v831, %v1822
      %v1824 = vpop.f32.mrf.mxu0
      %v1825 = vadd.f32 %v831, %v1824
      %v1826 = vpop.f32.mrf.mxu0
      %v1827 = vadd.f32 %v836, %v1826
      %v1828 = vpop.f32.mrf.mxu0
      %v1829 = vadd.f32 %v836, %v1828
      %1830 = vmatprep.mubr.bf16.mxu0 %v1335
      %1831 = vmatmul.mubr.bf16.gmra.mxu0 %v1334
      %v1832 = vpop.f32.mrf.mxu0
      %v1833 = vadd.f32 %v841, %v1832
      %v1834 = vpop.f32.mrf.mxu0
      %v1835 = vadd.f32 %v841, %v1834
      %v1836 = vpop.f32.mrf.mxu0
      %v1837 = vadd.f32 %v846, %v1836
      %v1838 = vpop.f32.mrf.mxu0
      %v1839 = vadd.f32 %v846, %v1838
      %1840 = vmatprep.mubr.bf16.mxu0 %v1337
      %1841 = vmatmul.mubr.bf16.gmra.mxu0 %v1336
      %v1842 = vpop.f32.mrf.mxu0
      %v1843 = vadd.f32 %v851, %v1842
      %v1844 = vpop.f32.mrf.mxu0
      %v1845 = vadd.f32 %v851, %v1844
      %v1846 = vpop.f32.mrf.mxu0
      %v1847 = vadd.f32 %v856, %v1846
      %v1848 = vpop.f32.mrf.mxu0
      %v1849 = vadd.f32 %v856, %v1848
      %1850 = vmatprep.mubr.bf16.mxu0 %v1339
      %1851 = vmatmul.mubr.bf16.gmra.mxu0 %v1338
      %v1852 = vpop.f32.mrf.mxu0
      %v1853 = vadd.f32 %v861, %v1852
      %v1854 = vpop.f32.mrf.mxu0
      %v1855 = vadd.f32 %v861, %v1854
      %v1856 = vpop.f32.mrf.mxu0
      %v1857 = vadd.f32 %v866, %v1856
      %v1858 = vpop.f32.mrf.mxu0
      %v1859 = vadd.f32 %v866, %v1858
      %1860 = vmatprep.mubr.bf16.mxu0 %v1341
      %1861 = vmatmul.mubr.bf16.gmra.mxu0 %v1340
      %v1862 = vpop.f32.mrf.mxu0
      %v1863 = vadd.f32 %v871, %v1862
      %v1864 = vpop.f32.mrf.mxu0
      %v1865 = vadd.f32 %v871, %v1864
      %v1866 = vpop.f32.mrf.mxu0
      %v1867 = vadd.f32 %v876, %v1866
      %v1868 = vpop.f32.mrf.mxu0
      %v1869 = vadd.f32 %v876, %v1868
      %1870 = vmatprep.mubr.bf16.mxu0 %v1343
      %1871 = vmatmul.mubr.bf16.gmra.mxu0 %v1342
      %v1872 = vpop.f32.mrf.mxu0
      %v1873 = vadd.f32 %v881, %v1872
      %v1874 = vpop.f32.mrf.mxu0
      %v1875 = vadd.f32 %v881, %v1874
      %v1876 = vpop.f32.mrf.mxu0
      %v1877 = vadd.f32 %v886, %v1876
      %v1878 = vpop.f32.mrf.mxu0
      %v1879 = vadd.f32 %v886, %v1878
      %1880 = vmatprep.mubr.bf16.mxu0 %v1345
      %1881 = vmatmul.mubr.bf16.gmra.mxu0 %v1344
      %v1882 = vpop.f32.mrf.mxu0
      %v1883 = vadd.f32 %v891, %v1882
      %v1884 = vpop.f32.mrf.mxu0
      %v1885 = vadd.f32 %v891, %v1884
      %v1886 = vpop.f32.mrf.mxu0
      %v1887 = vadd.f32 %v896, %v1886
      %v1888 = vpop.f32.mrf.mxu0
      %v1889 = vadd.f32 %v896, %v1888
      %1890 = vmatprep.mubr.bf16.mxu0 %v1347
      %1891 = vmatmul.mubr.bf16.gmra.mxu0 %v1346
      %v1892 = vpop.f32.mrf.mxu0
      %v1893 = vadd.f32 %v901, %v1892
      %v1894 = vpop.f32.mrf.mxu0
      %v1895 = vadd.f32 %v901, %v1894
      %v1896 = vpop.f32.mrf.mxu0
      %v1897 = vadd.f32 %v906, %v1896
      %v1898 = vpop.f32.mrf.mxu0
      %v1899 = vadd.f32 %v906, %v1898
      %1900 = vmatprep.mubr.bf16.mxu0 %v1349
      %1901 = vmatmul.mubr.bf16.gmra.mxu0 %v1348
      %v1902 = vpop.f32.mrf.mxu0
      %v1903 = vadd.f32 %v911, %v1902
      %v1904 = vpop.f32.mrf.mxu0
      %v1905 = vadd.f32 %v911, %v1904
      %v1906 = vpop.f32.mrf.mxu0
      %v1907 = vadd.f32 %v916, %v1906
      %v1908 = vpop.f32.mrf.mxu0
      %v1909 = vadd.f32 %v916, %v1908
      %1910 = vmatprep.mubr.bf16.mxu0 %v1351
      %1911 = vmatmul.mubr.bf16.gmra.mxu0 %v1350
      %v1912 = vpop.f32.mrf.mxu0
      %v1913 = vadd.f32 %v921, %v1912
      %v1914 = vpop.f32.mrf.mxu0
      %v1915 = vadd.f32 %v921, %v1914
      %v1916 = vpop.f32.mrf.mxu0
      %v1917 = vadd.f32 %v926, %v1916
      %v1918 = vpop.f32.mrf.mxu0
      %v1919 = vadd.f32 %v926, %v1918
      %1920 = vmatprep.mubr.bf16.mxu0 %v1353
      %1921 = vmatmul.mubr.bf16.gmra.mxu0 %v1352
      %v1922 = vpop.f32.mrf.mxu0
      %v1923 = vadd.f32 %v931, %v1922
      %v1924 = vpop.f32.mrf.mxu0
      %v1925 = vadd.f32 %v931, %v1924
      %v1926 = vpop.f32.mrf.mxu0
      %v1927 = vadd.f32 %v936, %v1926
      %v1928 = vpop.f32.mrf.mxu0
      %v1929 = vadd.f32 %v936, %v1928
      %1930 = vmatprep.mubr.bf16.mxu0 %v1355
      %1931 = vmatmul.mubr.bf16.gmra.mxu0 %v1354
      %v1932 = vpop.f32.mrf.mxu0
      %v1933 = vadd.f32 %v941, %v1932
      %v1934 = vpop.f32.mrf.mxu0
      %v1935 = vadd.f32 %v941, %v1934
      %v1936 = vpop.f32.mrf.mxu0
      %v1937 = vadd.f32 %v946, %v1936
      %v1938 = vpop.f32.mrf.mxu0
      %v1939 = vadd.f32 %v946, %v1938
      %1940 = vmatprep.mubr.bf16.mxu0 %v1357
      %1941 = vmatmul.mubr.bf16.gmra.mxu0 %v1356
      %v1942 = vpop.f32.mrf.mxu0
      %v1943 = vadd.f32 %v951, %v1942
      %v1944 = vpop.f32.mrf.mxu0
      %v1945 = vadd.f32 %v951, %v1944
      %v1946 = vpop.f32.mrf.mxu0
      %v1947 = vadd.f32 %v956, %v1946
      %v1948 = vpop.f32.mrf.mxu0
      %v1949 = vadd.f32 %v956, %v1948
      %1950 = vmatprep.mubr.bf16.mxu0 %v1359
      %1951 = vmatmul.mubr.bf16.gmra.mxu0 %v1358
      %v1952 = vpop.f32.mrf.mxu0
      %v1953 = vadd.f32 %v961, %v1952
      %v1954 = vpop.f32.mrf.mxu0
      %v1955 = vadd.f32 %v961, %v1954
      %v1956 = vpop.f32.mrf.mxu0
      %v1957 = vadd.f32 %v966, %v1956
      %v1958 = vpop.f32.mrf.mxu0
      %v1959 = vadd.f32 %v966, %v1958
      %1960 = vmatprep.mubr.bf16.mxu0 %v1361
      %1961 = vmatmul.mubr.bf16.gmra.mxu0 %v1360
      %v1962 = vpop.f32.mrf.mxu0
      %v1963 = vadd.f32 %v971, %v1962
      %v1964 = vpop.f32.mrf.mxu0
      %v1965 = vadd.f32 %v971, %v1964
      %v1966 = vpop.f32.mrf.mxu0
      %v1967 = vadd.f32 %v976, %v1966
      %v1968 = vpop.f32.mrf.mxu0
      %v1969 = vadd.f32 %v976, %v1968
      %1970 = vdwg.mxu0
      %v1971 = vmul.f32 %v1493, %v1653
      %v1972 = vmul.f32 %v1495, %v1655
      %v1973 = vmul.f32 %v1497, %v1657
      %v1974 = vmul.f32 %v1499, %v1659
      %v1975 = vmul.f32 %v1503, %v1663
      %v1976 = vmul.f32 %v1505, %v1665
      %v1977 = vmul.f32 %v1507, %v1667
      %v1978 = vmul.f32 %v1509, %v1669
      %v1979 = vmul.f32 %v1493, %v1673
      %v1980 = vmul.f32 %v1495, %v1675
      %v1981 = vmul.f32 %v1497, %v1677
      %v1982 = vmul.f32 %v1499, %v1679
      %v1983 = vmul.f32 %v1503, %v1683
      %v1984 = vmul.f32 %v1505, %v1685
      %v1985 = vmul.f32 %v1507, %v1687
      %v1986 = vmul.f32 %v1509, %v1689
      %v1987 = vmul.f32 %v1493, %v1693
      %v1988 = vmul.f32 %v1495, %v1695
      %v1989 = vmul.f32 %v1497, %v1697
      %v1990 = vmul.f32 %v1499, %v1699
      %v1991 = vmul.f32 %v1503, %v1703
      %v1992 = vmul.f32 %v1505, %v1705
      %v1993 = vmul.f32 %v1507, %v1707
      %v1994 = vmul.f32 %v1509, %v1709
      %v1995 = vmul.f32 %v1493, %v1713
      %v1996 = vmul.f32 %v1495, %v1715
      %v1997 = vmul.f32 %v1497, %v1717
      %v1998 = vmul.f32 %v1499, %v1719
      %v1999 = vmul.f32 %v1503, %v1723
      %v2000 = vmul.f32 %v1505, %v1725
      %v2001 = vmul.f32 %v1507, %v1727
      %v2002 = vmul.f32 %v1509, %v1729
      %v2003 = vmul.f32 %v1493, %v1733
      %v2004 = vmul.f32 %v1495, %v1735
      %v2005 = vmul.f32 %v1497, %v1737
      %v2006 = vmul.f32 %v1499, %v1739
      %v2007 = vmul.f32 %v1503, %v1743
      %v2008 = vmul.f32 %v1505, %v1745
      %v2009 = vmul.f32 %v1507, %v1747
      %v2010 = vmul.f32 %v1509, %v1749
      %v2011 = vmul.f32 %v1493, %v1753
      %v2012 = vmul.f32 %v1495, %v1755
      %v2013 = vmul.f32 %v1497, %v1757
      %v2014 = vmul.f32 %v1499, %v1759
      %v2015 = vmul.f32 %v1503, %v1763
      %v2016 = vmul.f32 %v1505, %v1765
      %v2017 = vmul.f32 %v1507, %v1767
      %v2018 = vmul.f32 %v1509, %v1769
      %v2019 = vmul.f32 %v1493, %v1773
      %v2020 = vmul.f32 %v1495, %v1775
      %v2021 = vmul.f32 %v1497, %v1777
      %v2022 = vmul.f32 %v1499, %v1779
      %v2023 = vmul.f32 %v1503, %v1783
      %v2024 = vmul.f32 %v1505, %v1785
      %v2025 = vmul.f32 %v1507, %v1787
      %v2026 = vmul.f32 %v1509, %v1789
      %v2027 = vmul.f32 %v1493, %v1793
      %v2028 = vmul.f32 %v1495, %v1795
      %v2029 = vmul.f32 %v1497, %v1797
      %v2030 = vmul.f32 %v1499, %v1799
      %v2031 = vmul.f32 %v1503, %v1803
      %v2032 = vmul.f32 %v1505, %v1805
      %v2033 = vmul.f32 %v1507, %v1807
      %v2034 = vmul.f32 %v1509, %v1809
      %v2035 = vmul.f32 %v1513, %v1653
      %v2036 = vmul.f32 %v1515, %v1655
      %v2037 = vmul.f32 %v1517, %v1657
      %v2038 = vmul.f32 %v1519, %v1659
      %v2039 = vmul.f32 %v1523, %v1663
      %v2040 = vmul.f32 %v1525, %v1665
      %v2041 = vmul.f32 %v1527, %v1667
      %v2042 = vmul.f32 %v1529, %v1669
      %v2043 = vmul.f32 %v1513, %v1673
      %v2044 = vmul.f32 %v1515, %v1675
      %v2045 = vmul.f32 %v1517, %v1677
      %v2046 = vmul.f32 %v1519, %v1679
      %v2047 = vmul.f32 %v1523, %v1683
      %v2048 = vmul.f32 %v1525, %v1685
      %v2049 = vmul.f32 %v1527, %v1687
      %v2050 = vmul.f32 %v1529, %v1689
      %v2051 = vmul.f32 %v1513, %v1693
      %v2052 = vmul.f32 %v1515, %v1695
      %v2053 = vmul.f32 %v1517, %v1697
      %v2054 = vmul.f32 %v1519, %v1699
      %v2055 = vmul.f32 %v1523, %v1703
      %v2056 = vmul.f32 %v1525, %v1705
      %v2057 = vmul.f32 %v1527, %v1707
      %v2058 = vmul.f32 %v1529, %v1709
      %v2059 = vmul.f32 %v1513, %v1713
      %v2060 = vmul.f32 %v1515, %v1715
      %v2061 = vmul.f32 %v1517, %v1717
      %v2062 = vmul.f32 %v1519, %v1719
      %v2063 = vmul.f32 %v1523, %v1723
      %v2064 = vmul.f32 %v1525, %v1725
      %v2065 = vmul.f32 %v1527, %v1727
      %v2066 = vmul.f32 %v1529, %v1729
      %v2067 = vmul.f32 %v1513, %v1733
      %v2068 = vmul.f32 %v1515, %v1735
      %v2069 = vmul.f32 %v1517, %v1737
      %v2070 = vmul.f32 %v1519, %v1739
      %v2071 = vmul.f32 %v1523, %v1743
      %v2072 = vmul.f32 %v1525, %v1745
      %v2073 = vmul.f32 %v1527, %v1747
      %v2074 = vmul.f32 %v1529, %v1749
      %v2075 = vmul.f32 %v1513, %v1753
      %v2076 = vmul.f32 %v1515, %v1755
      %v2077 = vmul.f32 %v1517, %v1757
      %v2078 = vmul.f32 %v1519, %v1759
      %v2079 = vmul.f32 %v1523, %v1763
      %v2080 = vmul.f32 %v1525, %v1765
      %v2081 = vmul.f32 %v1527, %v1767
      %v2082 = vmul.f32 %v1529, %v1769
      %v2083 = vmul.f32 %v1513, %v1773
      %v2084 = vmul.f32 %v1515, %v1775
      %v2085 = vmul.f32 %v1517, %v1777
      %v2086 = vmul.f32 %v1519, %v1779
      %v2087 = vmul.f32 %v1523, %v1783
      %v2088 = vmul.f32 %v1525, %v1785
      %v2089 = vmul.f32 %v1527, %v1787
      %v2090 = vmul.f32 %v1529, %v1789
      %v2091 = vmul.f32 %v1513, %v1793
      %v2092 = vmul.f32 %v1515, %v1795
      %v2093 = vmul.f32 %v1517, %v1797
      %v2094 = vmul.f32 %v1519, %v1799
      %v2095 = vmul.f32 %v1523, %v1803
      %v2096 = vmul.f32 %v1525, %v1805
      %v2097 = vmul.f32 %v1527, %v1807
      %v2098 = vmul.f32 %v1529, %v1809
      %v2099 = vmul.f32 %v1533, %v1653
      %v2100 = vmul.f32 %v1535, %v1655
      %v2101 = vmul.f32 %v1537, %v1657
      %v2102 = vmul.f32 %v1539, %v1659
      %v2103 = vmul.f32 %v1543, %v1663
      %v2104 = vmul.f32 %v1545, %v1665
      %v2105 = vmul.f32 %v1547, %v1667
      %v2106 = vmul.f32 %v1549, %v1669
      %v2107 = vmul.f32 %v1533, %v1673
      %v2108 = vmul.f32 %v1535, %v1675
      %v2109 = vmul.f32 %v1537, %v1677
      %v2110 = vmul.f32 %v1539, %v1679
      %v2111 = vmul.f32 %v1543, %v1683
      %v2112 = vmul.f32 %v1545, %v1685
      %v2113 = vmul.f32 %v1547, %v1687
      %v2114 = vmul.f32 %v1549, %v1689
      %v2115 = vmul.f32 %v1533, %v1693
      %v2116 = vmul.f32 %v1535, %v1695
      %v2117 = vmul.f32 %v1537, %v1697
      %v2118 = vmul.f32 %v1539, %v1699
      %v2119 = vmul.f32 %v1543, %v1703
      %v2120 = vmul.f32 %v1545, %v1705
      %v2121 = vmul.f32 %v1547, %v1707
      %v2122 = vmul.f32 %v1549, %v1709
      %v2123 = vmul.f32 %v1533, %v1713
      %v2124 = vmul.f32 %v1535, %v1715
      %v2125 = vmul.f32 %v1537, %v1717
      %v2126 = vmul.f32 %v1539, %v1719
      %v2127 = vmul.f32 %v1543, %v1723
      %v2128 = vmul.f32 %v1545, %v1725
      %v2129 = vmul.f32 %v1547, %v1727
      %v2130 = vmul.f32 %v1549, %v1729
      %v2131 = vmul.f32 %v1533, %v1733
      %v2132 = vmul.f32 %v1535, %v1735
      %v2133 = vmul.f32 %v1537, %v1737
      %v2134 = vmul.f32 %v1539, %v1739
      %v2135 = vmul.f32 %v1543, %v1743
      %v2136 = vmul.f32 %v1545, %v1745
      %v2137 = vmul.f32 %v1547, %v1747
      %v2138 = vmul.f32 %v1549, %v1749
      %v2139 = vmul.f32 %v1533, %v1753
      %v2140 = vmul.f32 %v1535, %v1755
      %v2141 = vmul.f32 %v1537, %v1757
      %v2142 = vmul.f32 %v1539, %v1759
      %v2143 = vmul.f32 %v1543, %v1763
      %v2144 = vmul.f32 %v1545, %v1765
      %v2145 = vmul.f32 %v1547, %v1767
      %v2146 = vmul.f32 %v1549, %v1769
      %v2147 = vmul.f32 %v1533, %v1773
      %v2148 = vmul.f32 %v1535, %v1775
      %v2149 = vmul.f32 %v1537, %v1777
      %v2150 = vmul.f32 %v1539, %v1779
      %v2151 = vmul.f32 %v1543, %v1783
      %v2152 = vmul.f32 %v1545, %v1785
      %v2153 = vmul.f32 %v1547, %v1787
      %v2154 = vmul.f32 %v1549, %v1789
      %v2155 = vmul.f32 %v1533, %v1793
      %v2156 = vmul.f32 %v1535, %v1795
      %v2157 = vmul.f32 %v1537, %v1797
      %v2158 = vmul.f32 %v1539, %v1799
      %v2159 = vmul.f32 %v1543, %v1803
      %v2160 = vmul.f32 %v1545, %v1805
      %v2161 = vmul.f32 %v1547, %v1807
      %v2162 = vmul.f32 %v1549, %v1809
      %v2163 = vmul.f32 %v1553, %v1653
      %v2164 = vmul.f32 %v1555, %v1655
      %v2165 = vmul.f32 %v1557, %v1657
      %v2166 = vmul.f32 %v1559, %v1659
      %v2167 = vmul.f32 %v1563, %v1663
      %v2168 = vmul.f32 %v1565, %v1665
      %v2169 = vmul.f32 %v1567, %v1667
      %v2170 = vmul.f32 %v1569, %v1669
      %v2171 = vmul.f32 %v1553, %v1673
      %v2172 = vmul.f32 %v1555, %v1675
      %v2173 = vmul.f32 %v1557, %v1677
      %v2174 = vmul.f32 %v1559, %v1679
      %v2175 = vmul.f32 %v1563, %v1683
      %v2176 = vmul.f32 %v1565, %v1685
      %v2177 = vmul.f32 %v1567, %v1687
      %v2178 = vmul.f32 %v1569, %v1689
      %v2179 = vmul.f32 %v1553, %v1693
      %v2180 = vmul.f32 %v1555, %v1695
      %v2181 = vmul.f32 %v1557, %v1697
      %v2182 = vmul.f32 %v1559, %v1699
      %v2183 = vmul.f32 %v1563, %v1703
      %v2184 = vmul.f32 %v1565, %v1705
      %v2185 = vmul.f32 %v1567, %v1707
      %v2186 = vmul.f32 %v1569, %v1709
      %v2187 = vmul.f32 %v1553, %v1713
      %v2188 = vmul.f32 %v1555, %v1715
      %v2189 = vmul.f32 %v1557, %v1717
      %v2190 = vmul.f32 %v1559, %v1719
      %v2191 = vmul.f32 %v1563, %v1723
      %v2192 = vmul.f32 %v1565, %v1725
      %v2193 = vmul.f32 %v1567, %v1727
      %v2194 = vmul.f32 %v1569, %v1729
      %v2195 = vmul.f32 %v1553, %v1733
      %v2196 = vmul.f32 %v1555, %v1735
      %v2197 = vmul.f32 %v1557, %v1737
      %v2198 = vmul.f32 %v1559, %v1739
      %v2199 = vmul.f32 %v1563, %v1743
      %v2200 = vmul.f32 %v1565, %v1745
      %v2201 = vmul.f32 %v1567, %v1747
      %v2202 = vmul.f32 %v1569, %v1749
      %v2203 = vmul.f32 %v1553, %v1753
      %v2204 = vmul.f32 %v1555, %v1755
      %v2205 = vmul.f32 %v1557, %v1757
      %v2206 = vmul.f32 %v1559, %v1759
      %v2207 = vmul.f32 %v1563, %v1763
      %v2208 = vmul.f32 %v1565, %v1765
      %v2209 = vmul.f32 %v1567, %v1767
      %v2210 = vmul.f32 %v1569, %v1769
      %v2211 = vmul.f32 %v1553, %v1773
      %v2212 = vmul.f32 %v1555, %v1775
      %v2213 = vmul.f32 %v1557, %v1777
      %v2214 = vmul.f32 %v1559, %v1779
      %v2215 = vmul.f32 %v1563, %v1783
      %v2216 = vmul.f32 %v1565, %v1785
      %v2217 = vmul.f32 %v1567, %v1787
      %v2218 = vmul.f32 %v1569, %v1789
      %v2219 = vmul.f32 %v1553, %v1793
      %v2220 = vmul.f32 %v1555, %v1795
      %v2221 = vmul.f32 %v1557, %v1797
      %v2222 = vmul.f32 %v1559, %v1799
      %v2223 = vmul.f32 %v1563, %v1803
      %v2224 = vmul.f32 %v1565, %v1805
      %v2225 = vmul.f32 %v1567, %v1807
      %v2226 = vmul.f32 %v1569, %v1809
      %v2227 = vmul.f32 %v1573, %v1653
      %v2228 = vmul.f32 %v1575, %v1655
      %v2229 = vmul.f32 %v1577, %v1657
      %v2230 = vmul.f32 %v1579, %v1659
      %v2231 = vmul.f32 %v1583, %v1663
      %v2232 = vmul.f32 %v1585, %v1665
      %v2233 = vmul.f32 %v1587, %v1667
      %v2234 = vmul.f32 %v1589, %v1669
      %v2235 = vmul.f32 %v1573, %v1673
      %v2236 = vmul.f32 %v1575, %v1675
      %v2237 = vmul.f32 %v1577, %v1677
      %v2238 = vmul.f32 %v1579, %v1679
      %v2239 = vmul.f32 %v1583, %v1683
      %v2240 = vmul.f32 %v1585, %v1685
      %v2241 = vmul.f32 %v1587, %v1687
      %v2242 = vmul.f32 %v1589, %v1689
      %v2243 = vmul.f32 %v1573, %v1693
      %v2244 = vmul.f32 %v1575, %v1695
      %v2245 = vmul.f32 %v1577, %v1697
      %v2246 = vmul.f32 %v1579, %v1699
      %v2247 = vmul.f32 %v1583, %v1703
      %v2248 = vmul.f32 %v1585, %v1705
      %v2249 = vmul.f32 %v1587, %v1707
      %v2250 = vmul.f32 %v1589, %v1709
      %v2251 = vmul.f32 %v1573, %v1713
      %v2252 = vmul.f32 %v1575, %v1715
      %v2253 = vmul.f32 %v1577, %v1717
      %v2254 = vmul.f32 %v1579, %v1719
      %v2255 = vmul.f32 %v1583, %v1723
      %v2256 = vmul.f32 %v1585, %v1725
      %v2257 = vmul.f32 %v1587, %v1727
      %v2258 = vmul.f32 %v1589, %v1729
      %v2259 = vmul.f32 %v1573, %v1733
      %v2260 = vmul.f32 %v1575, %v1735
      %v2261 = vmul.f32 %v1577, %v1737
      %v2262 = vmul.f32 %v1579, %v1739
      %v2263 = vmul.f32 %v1583, %v1743
      %v2264 = vmul.f32 %v1585, %v1745
      %v2265 = vmul.f32 %v1587, %v1747
      %v2266 = vmul.f32 %v1589, %v1749
      %v2267 = vmul.f32 %v1573, %v1753
      %v2268 = vmul.f32 %v1575, %v1755
      %v2269 = vmul.f32 %v1577, %v1757
      %v2270 = vmul.f32 %v1579, %v1759
      %v2271 = vmul.f32 %v1583, %v1763
      %v2272 = vmul.f32 %v1585, %v1765
      %v2273 = vmul.f32 %v1587, %v1767
      %v2274 = vmul.f32 %v1589, %v1769
      %v2275 = vmul.f32 %v1573, %v1773
      %v2276 = vmul.f32 %v1575, %v1775
      %v2277 = vmul.f32 %v1577, %v1777
      %v2278 = vmul.f32 %v1579, %v1779
      %v2279 = vmul.f32 %v1583, %v1783
      %v2280 = vmul.f32 %v1585, %v1785
      %v2281 = vmul.f32 %v1587, %v1787
      %v2282 = vmul.f32 %v1589, %v1789
      %v2283 = vmul.f32 %v1573, %v1793
      %v2284 = vmul.f32 %v1575, %v1795
      %v2285 = vmul.f32 %v1577, %v1797
      %v2286 = vmul.f32 %v1579, %v1799
      %v2287 = vmul.f32 %v1583, %v1803
      %v2288 = vmul.f32 %v1585, %v1805
      %v2289 = vmul.f32 %v1587, %v1807
      %v2290 = vmul.f32 %v1589, %v1809
      %v2291 = vmul.f32 %v1593, %v1653
      %v2292 = vmul.f32 %v1595, %v1655
      %v2293 = vmul.f32 %v1597, %v1657
      %v2294 = vmul.f32 %v1599, %v1659
      %v2295 = vmul.f32 %v1603, %v1663
      %v2296 = vmul.f32 %v1605, %v1665
      %v2297 = vmul.f32 %v1607, %v1667
      %v2298 = vmul.f32 %v1609, %v1669
      %v2299 = vmul.f32 %v1593, %v1673
      %v2300 = vmul.f32 %v1595, %v1675
      %v2301 = vmul.f32 %v1597, %v1677
      %v2302 = vmul.f32 %v1599, %v1679
      %v2303 = vmul.f32 %v1603, %v1683
      %v2304 = vmul.f32 %v1605, %v1685
      %v2305 = vmul.f32 %v1607, %v1687
      %v2306 = vmul.f32 %v1609, %v1689
      %v2307 = vmul.f32 %v1593, %v1693
      %v2308 = vmul.f32 %v1595, %v1695
      %v2309 = vmul.f32 %v1597, %v1697
      %v2310 = vmul.f32 %v1599, %v1699
      %v2311 = vmul.f32 %v1603, %v1703
      %v2312 = vmul.f32 %v1605, %v1705
      %v2313 = vmul.f32 %v1607, %v1707
      %v2314 = vmul.f32 %v1609, %v1709
      %v2315 = vmul.f32 %v1593, %v1713
      %v2316 = vmul.f32 %v1595, %v1715
      %v2317 = vmul.f32 %v1597, %v1717
      %v2318 = vmul.f32 %v1599, %v1719
      %v2319 = vmul.f32 %v1603, %v1723
      %v2320 = vmul.f32 %v1605, %v1725
      %v2321 = vmul.f32 %v1607, %v1727
      %v2322 = vmul.f32 %v1609, %v1729
      %v2323 = vmul.f32 %v1593, %v1733
      %v2324 = vmul.f32 %v1595, %v1735
      %v2325 = vmul.f32 %v1597, %v1737
      %v2326 = vmul.f32 %v1599, %v1739
      %v2327 = vmul.f32 %v1603, %v1743
      %v2328 = vmul.f32 %v1605, %v1745
      %v2329 = vmul.f32 %v1607, %v1747
      %v2330 = vmul.f32 %v1609, %v1749
      %v2331 = vmul.f32 %v1593, %v1753
      %v2332 = vmul.f32 %v1595, %v1755
      %v2333 = vmul.f32 %v1597, %v1757
      %v2334 = vmul.f32 %v1599, %v1759
      %v2335 = vmul.f32 %v1603, %v1763
      %v2336 = vmul.f32 %v1605, %v1765
      %v2337 = vmul.f32 %v1607, %v1767
      %v2338 = vmul.f32 %v1609, %v1769
      %v2339 = vmul.f32 %v1593, %v1773
      %v2340 = vmul.f32 %v1595, %v1775
      %v2341 = vmul.f32 %v1597, %v1777
      %v2342 = vmul.f32 %v1599, %v1779
      %v2343 = vmul.f32 %v1603, %v1783
      %v2344 = vmul.f32 %v1605, %v1785
      %v2345 = vmul.f32 %v1607, %v1787
      %v2346 = vmul.f32 %v1609, %v1789
      %v2347 = vmul.f32 %v1593, %v1793
      %v2348 = vmul.f32 %v1595, %v1795
      %v2349 = vmul.f32 %v1597, %v1797
      %v2350 = vmul.f32 %v1599, %v1799
      %v2351 = vmul.f32 %v1603, %v1803
      %v2352 = vmul.f32 %v1605, %v1805
      %v2353 = vmul.f32 %v1607, %v1807
      %v2354 = vmul.f32 %v1609, %v1809
      %v2355 = vmul.f32 %v1613, %v1653
      %v2356 = vmul.f32 %v1615, %v1655
      %v2357 = vmul.f32 %v1617, %v1657
      %v2358 = vmul.f32 %v1619, %v1659
      %v2359 = vmul.f32 %v1623, %v1663
      %v2360 = vmul.f32 %v1625, %v1665
      %v2361 = vmul.f32 %v1627, %v1667
      %v2362 = vmul.f32 %v1629, %v1669
      %v2363 = vmul.f32 %v1613, %v1673
      %v2364 = vmul.f32 %v1615, %v1675
      %v2365 = vmul.f32 %v1617, %v1677
      %v2366 = vmul.f32 %v1619, %v1679
      %v2367 = vmul.f32 %v1623, %v1683
      %v2368 = vmul.f32 %v1625, %v1685
      %v2369 = vmul.f32 %v1627, %v1687
      %v2370 = vmul.f32 %v1629, %v1689
      %v2371 = vmul.f32 %v1613, %v1693
      %v2372 = vmul.f32 %v1615, %v1695
      %v2373 = vmul.f32 %v1617, %v1697
      %v2374 = vmul.f32 %v1619, %v1699
      %v2375 = vmul.f32 %v1623, %v1703
      %v2376 = vmul.f32 %v1625, %v1705
      %v2377 = vmul.f32 %v1627, %v1707
      %v2378 = vmul.f32 %v1629, %v1709
      %v2379 = vmul.f32 %v1613, %v1713
      %v2380 = vmul.f32 %v1615, %v1715
      %v2381 = vmul.f32 %v1617, %v1717
      %v2382 = vmul.f32 %v1619, %v1719
      %v2383 = vmul.f32 %v1623, %v1723
      %v2384 = vmul.f32 %v1625, %v1725
      %v2385 = vmul.f32 %v1627, %v1727
      %v2386 = vmul.f32 %v1629, %v1729
      %v2387 = vmul.f32 %v1613, %v1733
      %v2388 = vmul.f32 %v1615, %v1735
      %v2389 = vmul.f32 %v1617, %v1737
      %v2390 = vmul.f32 %v1619, %v1739
      %v2391 = vmul.f32 %v1623, %v1743
      %v2392 = vmul.f32 %v1625, %v1745
      %v2393 = vmul.f32 %v1627, %v1747
      %v2394 = vmul.f32 %v1629, %v1749
      %v2395 = vmul.f32 %v1613, %v1753
      %v2396 = vmul.f32 %v1615, %v1755
      %v2397 = vmul.f32 %v1617, %v1757
      %v2398 = vmul.f32 %v1619, %v1759
      %v2399 = vmul.f32 %v1623, %v1763
      %v2400 = vmul.f32 %v1625, %v1765
      %v2401 = vmul.f32 %v1627, %v1767
      %v2402 = vmul.f32 %v1629, %v1769
      %v2403 = vmul.f32 %v1613, %v1773
      %v2404 = vmul.f32 %v1615, %v1775
      %v2405 = vmul.f32 %v1617, %v1777
      %v2406 = vmul.f32 %v1619, %v1779
      %v2407 = vmul.f32 %v1623, %v1783
      %v2408 = vmul.f32 %v1625, %v1785
      %v2409 = vmul.f32 %v1627, %v1787
      %v2410 = vmul.f32 %v1629, %v1789
      %v2411 = vmul.f32 %v1613, %v1793
      %v2412 = vmul.f32 %v1615, %v1795
      %v2413 = vmul.f32 %v1617, %v1797
      %v2414 = vmul.f32 %v1619, %v1799
      %v2415 = vmul.f32 %v1623, %v1803
      %v2416 = vmul.f32 %v1625, %v1805
      %v2417 = vmul.f32 %v1627, %v1807
      %v2418 = vmul.f32 %v1629, %v1809
      %v2419 = vmul.f32 %v1633, %v1653
      %v2420 = vmul.f32 %v1635, %v1655
      %v2421 = vmul.f32 %v1637, %v1657
      %v2422 = vmul.f32 %v1639, %v1659
      %v2423 = vmul.f32 %v1643, %v1663
      %v2424 = vmul.f32 %v1645, %v1665
      %v2425 = vmul.f32 %v1647, %v1667
      %v2426 = vmul.f32 %v1649, %v1669
      %v2427 = vmul.f32 %v1633, %v1673
      %v2428 = vmul.f32 %v1635, %v1675
      %v2429 = vmul.f32 %v1637, %v1677
      %v2430 = vmul.f32 %v1639, %v1679
      %v2431 = vmul.f32 %v1643, %v1683
      %v2432 = vmul.f32 %v1645, %v1685
      %v2433 = vmul.f32 %v1647, %v1687
      %v2434 = vmul.f32 %v1649, %v1689
      %v2435 = vmul.f32 %v1633, %v1693
      %v2436 = vmul.f32 %v1635, %v1695
      %v2437 = vmul.f32 %v1637, %v1697
      %v2438 = vmul.f32 %v1639, %v1699
      %v2439 = vmul.f32 %v1643, %v1703
      %v2440 = vmul.f32 %v1645, %v1705
      %v2441 = vmul.f32 %v1647, %v1707
      %v2442 = vmul.f32 %v1649, %v1709
      %v2443 = vmul.f32 %v1633, %v1713
      %v2444 = vmul.f32 %v1635, %v1715
      %v2445 = vmul.f32 %v1637, %v1717
      %v2446 = vmul.f32 %v1639, %v1719
      %v2447 = vmul.f32 %v1643, %v1723
      %v2448 = vmul.f32 %v1645, %v1725
      %v2449 = vmul.f32 %v1647, %v1727
      %v2450 = vmul.f32 %v1649, %v1729
      %v2451 = vmul.f32 %v1633, %v1733
      %v2452 = vmul.f32 %v1635, %v1735
      %v2453 = vmul.f32 %v1637, %v1737
      %v2454 = vmul.f32 %v1639, %v1739
      %v2455 = vmul.f32 %v1643, %v1743
      %v2456 = vmul.f32 %v1645, %v1745
      %v2457 = vmul.f32 %v1647, %v1747
      %v2458 = vmul.f32 %v1649, %v1749
      %v2459 = vmul.f32 %v1633, %v1753
      %v2460 = vmul.f32 %v1635, %v1755
      %v2461 = vmul.f32 %v1637, %v1757
      %v2462 = vmul.f32 %v1639, %v1759
      %v2463 = vmul.f32 %v1643, %v1763
      %v2464 = vmul.f32 %v1645, %v1765
      %v2465 = vmul.f32 %v1647, %v1767
      %v2466 = vmul.f32 %v1649, %v1769
      %v2467 = vmul.f32 %v1633, %v1773
      %v2468 = vmul.f32 %v1635, %v1775
      %v2469 = vmul.f32 %v1637, %v1777
      %v2470 = vmul.f32 %v1639, %v1779
      %v2471 = vmul.f32 %v1643, %v1783
      %v2472 = vmul.f32 %v1645, %v1785
      %v2473 = vmul.f32 %v1647, %v1787
      %v2474 = vmul.f32 %v1649, %v1789
      %v2475 = vmul.f32 %v1633, %v1793
      %v2476 = vmul.f32 %v1635, %v1795
      %v2477 = vmul.f32 %v1637, %v1797
      %v2478 = vmul.f32 %v1639, %v1799
      %v2479 = vmul.f32 %v1643, %v1803
      %v2480 = vmul.f32 %v1645, %v1805
      %v2481 = vmul.f32 %v1647, %v1807
      %v2482 = vmul.f32 %v1649, %v1809
      %v2483 = vadd.f32 %v1971, %v1973
      %v2484 = vadd.f32 %v2483, %v1975
      %v2485 = vadd.f32 %v2484, %v1977
      %v2486 = vrot.slane %v2485, 4
      %v2487 = vadd.f32 %v2485, %v2486
      %v2488 = vrot.slane %v2487, 2
      %v2489 = vadd.f32 %v2487, %v2488
      %v2490 = vrot.slane %v2489, 1
      %v2491 = vadd.f32 %v2489, %v2490
      %v2492 = vadd.f32 %v1972, %v1974
      %v2493 = vadd.f32 %v2492, %v1976
      %v2494 = vadd.f32 %v2493, %v1978
      %v2495 = vrot.slane %v2494, 4
      %v2496 = vadd.f32 %v2494, %v2495
      %v2497 = vrot.slane %v2496, 2
      %v2498 = vadd.f32 %v2496, %v2497
      %v2499 = vrot.slane %v2498, 1
      %v2500 = vadd.f32 %v2498, %v2499
      %v2501 = vadd.f32 %v1979, %v1981
      %v2502 = vadd.f32 %v2501, %v1983
      %v2503 = vadd.f32 %v2502, %v1985
      %v2504 = vrot.slane %v2503, 4
      %v2505 = vadd.f32 %v2503, %v2504
      %v2506 = vrot.slane %v2505, 2
      %v2507 = vadd.f32 %v2505, %v2506
      %v2508 = vrot.slane %v2507, 1
      %v2509 = vadd.f32 %v2507, %v2508
      %v2510 = vadd.f32 %v1980, %v1982
      %v2511 = vadd.f32 %v2510, %v1984
      %v2512 = vadd.f32 %v2511, %v1986
      %v2513 = vrot.slane %v2512, 4
      %v2514 = vadd.f32 %v2512, %v2513
      %v2515 = vrot.slane %v2514, 2
      %v2516 = vadd.f32 %v2514, %v2515
      %v2517 = vrot.slane %v2516, 1
      %v2518 = vadd.f32 %v2516, %v2517
      %v2519 = vadd.f32 %v1987, %v1989
      %v2520 = vadd.f32 %v2519, %v1991
      %v2521 = vadd.f32 %v2520, %v1993
      %v2522 = vrot.slane %v2521, 4
      %v2523 = vadd.f32 %v2521, %v2522
      %v2524 = vrot.slane %v2523, 2
      %v2525 = vadd.f32 %v2523, %v2524
      %v2526 = vrot.slane %v2525, 1
      %v2527 = vadd.f32 %v2525, %v2526
      %v2528 = vadd.f32 %v1988, %v1990
      %v2529 = vadd.f32 %v2528, %v1992
      %v2530 = vadd.f32 %v2529, %v1994
      %v2531 = vrot.slane %v2530, 4
      %v2532 = vadd.f32 %v2530, %v2531
      %v2533 = vrot.slane %v2532, 2
      %v2534 = vadd.f32 %v2532, %v2533
      %v2535 = vrot.slane %v2534, 1
      %v2536 = vadd.f32 %v2534, %v2535
      %v2537 = vadd.f32 %v1995, %v1997
      %v2538 = vadd.f32 %v2537, %v1999
      %v2539 = vadd.f32 %v2538, %v2001
      %v2540 = vrot.slane %v2539, 4
      %v2541 = vadd.f32 %v2539, %v2540
      %v2542 = vrot.slane %v2541, 2
      %v2543 = vadd.f32 %v2541, %v2542
      %v2544 = vrot.slane %v2543, 1
      %v2545 = vadd.f32 %v2543, %v2544
      %v2546 = vadd.f32 %v1996, %v1998
      %v2547 = vadd.f32 %v2546, %v2000
      %v2548 = vadd.f32 %v2547, %v2002
      %v2549 = vrot.slane %v2548, 4
      %v2550 = vadd.f32 %v2548, %v2549
      %v2551 = vrot.slane %v2550, 2
      %v2552 = vadd.f32 %v2550, %v2551
      %v2553 = vrot.slane %v2552, 1
      %v2554 = vadd.f32 %v2552, %v2553
      %v2555 = vadd.f32 %v2003, %v2005
      %v2556 = vadd.f32 %v2555, %v2007
      %v2557 = vadd.f32 %v2556, %v2009
      %v2558 = vrot.slane %v2557, 4
      %v2559 = vadd.f32 %v2557, %v2558
      %v2560 = vrot.slane %v2559, 2
      %v2561 = vadd.f32 %v2559, %v2560
      %v2562 = vrot.slane %v2561, 1
      %v2563 = vadd.f32 %v2561, %v2562
      %v2564 = vadd.f32 %v2004, %v2006
      %v2565 = vadd.f32 %v2564, %v2008
      %v2566 = vadd.f32 %v2565, %v2010
      %v2567 = vrot.slane %v2566, 4
      %v2568 = vadd.f32 %v2566, %v2567
      %v2569 = vrot.slane %v2568, 2
      %v2570 = vadd.f32 %v2568, %v2569
      %v2571 = vrot.slane %v2570, 1
      %v2572 = vadd.f32 %v2570, %v2571
      %v2573 = vadd.f32 %v2011, %v2013
      %v2574 = vadd.f32 %v2573, %v2015
      %v2575 = vadd.f32 %v2574, %v2017
      %v2576 = vrot.slane %v2575, 4
      %v2577 = vadd.f32 %v2575, %v2576
      %v2578 = vrot.slane %v2577, 2
      %v2579 = vadd.f32 %v2577, %v2578
      %v2580 = vrot.slane %v2579, 1
      %v2581 = vadd.f32 %v2579, %v2580
      %v2582 = vadd.f32 %v2012, %v2014
      %v2583 = vadd.f32 %v2582, %v2016
      %v2584 = vadd.f32 %v2583, %v2018
      %v2585 = vrot.slane %v2584, 4
      %v2586 = vadd.f32 %v2584, %v2585
      %v2587 = vrot.slane %v2586, 2
      %v2588 = vadd.f32 %v2586, %v2587
      %v2589 = vrot.slane %v2588, 1
      %v2590 = vadd.f32 %v2588, %v2589
      %v2591 = vadd.f32 %v2019, %v2021
      %v2592 = vadd.f32 %v2591, %v2023
      %v2593 = vadd.f32 %v2592, %v2025
      %v2594 = vrot.slane %v2593, 4
      %v2595 = vadd.f32 %v2593, %v2594
      %v2596 = vrot.slane %v2595, 2
      %v2597 = vadd.f32 %v2595, %v2596
      %v2598 = vrot.slane %v2597, 1
      %v2599 = vadd.f32 %v2597, %v2598
      %v2600 = vadd.f32 %v2020, %v2022
      %v2601 = vadd.f32 %v2600, %v2024
      %v2602 = vadd.f32 %v2601, %v2026
      %v2603 = vrot.slane %v2602, 4
      %v2604 = vadd.f32 %v2602, %v2603
      %v2605 = vrot.slane %v2604, 2
      %v2606 = vadd.f32 %v2604, %v2605
      %v2607 = vrot.slane %v2606, 1
      %v2608 = vadd.f32 %v2606, %v2607
      %v2609 = vadd.f32 %v2027, %v2029
      %v2610 = vadd.f32 %v2609, %v2031
      %v2611 = vadd.f32 %v2610, %v2033
      %v2612 = vrot.slane %v2611, 4
      %v2613 = vadd.f32 %v2611, %v2612
      %v2614 = vrot.slane %v2613, 2
      %v2615 = vadd.f32 %v2613, %v2614
      %v2616 = vrot.slane %v2615, 1
      %v2617 = vadd.f32 %v2615, %v2616
      %v2618 = vadd.f32 %v2028, %v2030
      %v2619 = vadd.f32 %v2618, %v2032
      %v2620 = vadd.f32 %v2619, %v2034
      %v2621 = vrot.slane %v2620, 4
      %v2622 = vadd.f32 %v2620, %v2621
      %v2623 = vrot.slane %v2622, 2
      %v2624 = vadd.f32 %v2622, %v2623
      %v2625 = vrot.slane %v2624, 1
      %v2626 = vadd.f32 %v2624, %v2625
      %v2627 = vadd.f32 %v2035, %v2037
      %v2628 = vadd.f32 %v2627, %v2039
      %v2629 = vadd.f32 %v2628, %v2041
      %v2630 = vrot.slane %v2629, 4
      %v2631 = vadd.f32 %v2629, %v2630
      %v2632 = vrot.slane %v2631, 2
      %v2633 = vadd.f32 %v2631, %v2632
      %v2634 = vrot.slane %v2633, 1
      %v2635 = vadd.f32 %v2633, %v2634
      %v2636 = vadd.f32 %v2036, %v2038
      %v2637 = vadd.f32 %v2636, %v2040
      %v2638 = vadd.f32 %v2637, %v2042
      %v2639 = vrot.slane %v2638, 4
      %v2640 = vadd.f32 %v2638, %v2639
      %v2641 = vrot.slane %v2640, 2
      %v2642 = vadd.f32 %v2640, %v2641
      %v2643 = vrot.slane %v2642, 1
      %v2644 = vadd.f32 %v2642, %v2643
      %v2645 = vadd.f32 %v2043, %v2045
      %v2646 = vadd.f32 %v2645, %v2047
      %v2647 = vadd.f32 %v2646, %v2049
      %v2648 = vrot.slane %v2647, 4
      %v2649 = vadd.f32 %v2647, %v2648
      %v2650 = vrot.slane %v2649, 2
      %v2651 = vadd.f32 %v2649, %v2650
      %v2652 = vrot.slane %v2651, 1
      %v2653 = vadd.f32 %v2651, %v2652
      %v2654 = vadd.f32 %v2044, %v2046
      %v2655 = vadd.f32 %v2654, %v2048
      %v2656 = vadd.f32 %v2655, %v2050
      %v2657 = vrot.slane %v2656, 4
      %v2658 = vadd.f32 %v2656, %v2657
      %v2659 = vrot.slane %v2658, 2
      %v2660 = vadd.f32 %v2658, %v2659
      %v2661 = vrot.slane %v2660, 1
      %v2662 = vadd.f32 %v2660, %v2661
      %v2663 = vadd.f32 %v2051, %v2053
      %v2664 = vadd.f32 %v2663, %v2055
      %v2665 = vadd.f32 %v2664, %v2057
      %v2666 = vrot.slane %v2665, 4
      %v2667 = vadd.f32 %v2665, %v2666
      %v2668 = vrot.slane %v2667, 2
      %v2669 = vadd.f32 %v2667, %v2668
      %v2670 = vrot.slane %v2669, 1
      %v2671 = vadd.f32 %v2669, %v2670
      %v2672 = vadd.f32 %v2052, %v2054
      %v2673 = vadd.f32 %v2672, %v2056
      %v2674 = vadd.f32 %v2673, %v2058
      %v2675 = vrot.slane %v2674, 4
      %v2676 = vadd.f32 %v2674, %v2675
      %v2677 = vrot.slane %v2676, 2
      %v2678 = vadd.f32 %v2676, %v2677
      %v2679 = vrot.slane %v2678, 1
      %v2680 = vadd.f32 %v2678, %v2679
      %v2681 = vadd.f32 %v2059, %v2061
      %v2682 = vadd.f32 %v2681, %v2063
      %v2683 = vadd.f32 %v2682, %v2065
      %v2684 = vrot.slane %v2683, 4
      %v2685 = vadd.f32 %v2683, %v2684
      %v2686 = vrot.slane %v2685, 2
      %v2687 = vadd.f32 %v2685, %v2686
      %v2688 = vrot.slane %v2687, 1
      %v2689 = vadd.f32 %v2687, %v2688
      %v2690 = vadd.f32 %v2060, %v2062
      %v2691 = vadd.f32 %v2690, %v2064
      %v2692 = vadd.f32 %v2691, %v2066
      %v2693 = vrot.slane %v2692, 4
      %v2694 = vadd.f32 %v2692, %v2693
      %v2695 = vrot.slane %v2694, 2
      %v2696 = vadd.f32 %v2694, %v2695
      %v2697 = vrot.slane %v2696, 1
      %v2698 = vadd.f32 %v2696, %v2697
      %v2699 = vadd.f32 %v2067, %v2069
      %v2700 = vadd.f32 %v2699, %v2071
      %v2701 = vadd.f32 %v2700, %v2073
      %v2702 = vrot.slane %v2701, 4
      %v2703 = vadd.f32 %v2701, %v2702
      %v2704 = vrot.slane %v2703, 2
      %v2705 = vadd.f32 %v2703, %v2704
      %v2706 = vrot.slane %v2705, 1
      %v2707 = vadd.f32 %v2705, %v2706
      %v2708 = vadd.f32 %v2068, %v2070
      %v2709 = vadd.f32 %v2708, %v2072
      %v2710 = vadd.f32 %v2709, %v2074
      %v2711 = vrot.slane %v2710, 4
      %v2712 = vadd.f32 %v2710, %v2711
      %v2713 = vrot.slane %v2712, 2
      %v2714 = vadd.f32 %v2712, %v2713
      %v2715 = vrot.slane %v2714, 1
      %v2716 = vadd.f32 %v2714, %v2715
      %v2717 = vadd.f32 %v2075, %v2077
      %v2718 = vadd.f32 %v2717, %v2079
      %v2719 = vadd.f32 %v2718, %v2081
      %v2720 = vrot.slane %v2719, 4
      %v2721 = vadd.f32 %v2719, %v2720
      %v2722 = vrot.slane %v2721, 2
      %v2723 = vadd.f32 %v2721, %v2722
      %v2724 = vrot.slane %v2723, 1
      %v2725 = vadd.f32 %v2723, %v2724
      %v2726 = vadd.f32 %v2076, %v2078
      %v2727 = vadd.f32 %v2726, %v2080
      %v2728 = vadd.f32 %v2727, %v2082
      %v2729 = vrot.slane %v2728, 4
      %v2730 = vadd.f32 %v2728, %v2729
      %v2731 = vrot.slane %v2730, 2
      %v2732 = vadd.f32 %v2730, %v2731
      %v2733 = vrot.slane %v2732, 1
      %v2734 = vadd.f32 %v2732, %v2733
      %v2735 = vadd.f32 %v2083, %v2085
      %v2736 = vadd.f32 %v2735, %v2087
      %v2737 = vadd.f32 %v2736, %v2089
      %v2738 = vrot.slane %v2737, 4
      %v2739 = vadd.f32 %v2737, %v2738
      %v2740 = vrot.slane %v2739, 2
      %v2741 = vadd.f32 %v2739, %v2740
      %v2742 = vrot.slane %v2741, 1
      %v2743 = vadd.f32 %v2741, %v2742
      %v2744 = vadd.f32 %v2084, %v2086
      %v2745 = vadd.f32 %v2744, %v2088
      %v2746 = vadd.f32 %v2745, %v2090
      %v2747 = vrot.slane %v2746, 4
      %v2748 = vadd.f32 %v2746, %v2747
      %v2749 = vrot.slane %v2748, 2
      %v2750 = vadd.f32 %v2748, %v2749
      %v2751 = vrot.slane %v2750, 1
      %v2752 = vadd.f32 %v2750, %v2751
      %v2753 = vadd.f32 %v2091, %v2093
      %v2754 = vadd.f32 %v2753, %v2095
      %v2755 = vadd.f32 %v2754, %v2097
      %v2756 = vrot.slane %v2755, 4
      %v2757 = vadd.f32 %v2755, %v2756
      %v2758 = vrot.slane %v2757, 2
      %v2759 = vadd.f32 %v2757, %v2758
      %v2760 = vrot.slane %v2759, 1
      %v2761 = vadd.f32 %v2759, %v2760
      %v2762 = vadd.f32 %v2092, %v2094
      %v2763 = vadd.f32 %v2762, %v2096
      %v2764 = vadd.f32 %v2763, %v2098
      %v2765 = vrot.slane %v2764, 4
      %v2766 = vadd.f32 %v2764, %v2765
      %v2767 = vrot.slane %v2766, 2
      %v2768 = vadd.f32 %v2766, %v2767
      %v2769 = vrot.slane %v2768, 1
      %v2770 = vadd.f32 %v2768, %v2769
      %v2771 = vadd.f32 %v2099, %v2101
      %v2772 = vadd.f32 %v2771, %v2103
      %v2773 = vadd.f32 %v2772, %v2105
      %v2774 = vrot.slane %v2773, 4
      %v2775 = vadd.f32 %v2773, %v2774
      %v2776 = vrot.slane %v2775, 2
      %v2777 = vadd.f32 %v2775, %v2776
      %v2778 = vrot.slane %v2777, 1
      %v2779 = vadd.f32 %v2777, %v2778
      %v2780 = vadd.f32 %v2100, %v2102
      %v2781 = vadd.f32 %v2780, %v2104
      %v2782 = vadd.f32 %v2781, %v2106
      %v2783 = vrot.slane %v2782, 4
      %v2784 = vadd.f32 %v2782, %v2783
      %v2785 = vrot.slane %v2784, 2
      %v2786 = vadd.f32 %v2784, %v2785
      %v2787 = vrot.slane %v2786, 1
      %v2788 = vadd.f32 %v2786, %v2787
      %v2789 = vadd.f32 %v2107, %v2109
      %v2790 = vadd.f32 %v2789, %v2111
      %v2791 = vadd.f32 %v2790, %v2113
      %v2792 = vrot.slane %v2791, 4
      %v2793 = vadd.f32 %v2791, %v2792
      %v2794 = vrot.slane %v2793, 2
      %v2795 = vadd.f32 %v2793, %v2794
      %v2796 = vrot.slane %v2795, 1
      %v2797 = vadd.f32 %v2795, %v2796
      %v2798 = vadd.f32 %v2108, %v2110
      %v2799 = vadd.f32 %v2798, %v2112
      %v2800 = vadd.f32 %v2799, %v2114
      %v2801 = vrot.slane %v2800, 4
      %v2802 = vadd.f32 %v2800, %v2801
      %v2803 = vrot.slane %v2802, 2
      %v2804 = vadd.f32 %v2802, %v2803
      %v2805 = vrot.slane %v2804, 1
      %v2806 = vadd.f32 %v2804, %v2805
      %v2807 = vadd.f32 %v2115, %v2117
      %v2808 = vadd.f32 %v2807, %v2119
      %v2809 = vadd.f32 %v2808, %v2121
      %v2810 = vrot.slane %v2809, 4
      %v2811 = vadd.f32 %v2809, %v2810
      %v2812 = vrot.slane %v2811, 2
      %v2813 = vadd.f32 %v2811, %v2812
      %v2814 = vrot.slane %v2813, 1
      %v2815 = vadd.f32 %v2813, %v2814
      %v2816 = vadd.f32 %v2116, %v2118
      %v2817 = vadd.f32 %v2816, %v2120
      %v2818 = vadd.f32 %v2817, %v2122
      %v2819 = vrot.slane %v2818, 4
      %v2820 = vadd.f32 %v2818, %v2819
      %v2821 = vrot.slane %v2820, 2
      %v2822 = vadd.f32 %v2820, %v2821
      %v2823 = vrot.slane %v2822, 1
      %v2824 = vadd.f32 %v2822, %v2823
      %v2825 = vadd.f32 %v2123, %v2125
      %v2826 = vadd.f32 %v2825, %v2127
      %v2827 = vadd.f32 %v2826, %v2129
      %v2828 = vrot.slane %v2827, 4
      %v2829 = vadd.f32 %v2827, %v2828
      %v2830 = vrot.slane %v2829, 2
      %v2831 = vadd.f32 %v2829, %v2830
      %v2832 = vrot.slane %v2831, 1
      %v2833 = vadd.f32 %v2831, %v2832
      %v2834 = vadd.f32 %v2124, %v2126
      %v2835 = vadd.f32 %v2834, %v2128
      %v2836 = vadd.f32 %v2835, %v2130
      %v2837 = vrot.slane %v2836, 4
      %v2838 = vadd.f32 %v2836, %v2837
      %v2839 = vrot.slane %v2838, 2
      %v2840 = vadd.f32 %v2838, %v2839
      %v2841 = vrot.slane %v2840, 1
      %v2842 = vadd.f32 %v2840, %v2841
      %v2843 = vadd.f32 %v2131, %v2133
      %v2844 = vadd.f32 %v2843, %v2135
      %v2845 = vadd.f32 %v2844, %v2137
      %v2846 = vrot.slane %v2845, 4
      %v2847 = vadd.f32 %v2845, %v2846
      %v2848 = vrot.slane %v2847, 2
      %v2849 = vadd.f32 %v2847, %v2848
      %v2850 = vrot.slane %v2849, 1
      %v2851 = vadd.f32 %v2849, %v2850
      %v2852 = vadd.f32 %v2132, %v2134
      %v2853 = vadd.f32 %v2852, %v2136
      %v2854 = vadd.f32 %v2853, %v2138
      %v2855 = vrot.slane %v2854, 4
      %v2856 = vadd.f32 %v2854, %v2855
      %v2857 = vrot.slane %v2856, 2
      %v2858 = vadd.f32 %v2856, %v2857
      %v2859 = vrot.slane %v2858, 1
      %v2860 = vadd.f32 %v2858, %v2859
      %v2861 = vadd.f32 %v2139, %v2141
      %v2862 = vadd.f32 %v2861, %v2143
      %v2863 = vadd.f32 %v2862, %v2145
      %v2864 = vrot.slane %v2863, 4
      %v2865 = vadd.f32 %v2863, %v2864
      %v2866 = vrot.slane %v2865, 2
      %v2867 = vadd.f32 %v2865, %v2866
      %v2868 = vrot.slane %v2867, 1
      %v2869 = vadd.f32 %v2867, %v2868
      %v2870 = vadd.f32 %v2140, %v2142
      %v2871 = vadd.f32 %v2870, %v2144
      %v2872 = vadd.f32 %v2871, %v2146
      %v2873 = vrot.slane %v2872, 4
      %v2874 = vadd.f32 %v2872, %v2873
      %v2875 = vrot.slane %v2874, 2
      %v2876 = vadd.f32 %v2874, %v2875
      %v2877 = vrot.slane %v2876, 1
      %v2878 = vadd.f32 %v2876, %v2877
      %v2879 = vadd.f32 %v2147, %v2149
      %v2880 = vadd.f32 %v2879, %v2151
      %v2881 = vadd.f32 %v2880, %v2153
      %v2882 = vrot.slane %v2881, 4
      %v2883 = vadd.f32 %v2881, %v2882
      %v2884 = vrot.slane %v2883, 2
      %v2885 = vadd.f32 %v2883, %v2884
      %v2886 = vrot.slane %v2885, 1
      %v2887 = vadd.f32 %v2885, %v2886
      %v2888 = vadd.f32 %v2148, %v2150
      %v2889 = vadd.f32 %v2888, %v2152
      %v2890 = vadd.f32 %v2889, %v2154
      %v2891 = vrot.slane %v2890, 4
      %v2892 = vadd.f32 %v2890, %v2891
      %v2893 = vrot.slane %v2892, 2
      %v2894 = vadd.f32 %v2892, %v2893
      %v2895 = vrot.slane %v2894, 1
      %v2896 = vadd.f32 %v2894, %v2895
      %v2897 = vadd.f32 %v2155, %v2157
      %v2898 = vadd.f32 %v2897, %v2159
      %v2899 = vadd.f32 %v2898, %v2161
      %v2900 = vrot.slane %v2899, 4
      %v2901 = vadd.f32 %v2899, %v2900
      %v2902 = vrot.slane %v2901, 2
      %v2903 = vadd.f32 %v2901, %v2902
      %v2904 = vrot.slane %v2903, 1
      %v2905 = vadd.f32 %v2903, %v2904
      %v2906 = vadd.f32 %v2156, %v2158
      %v2907 = vadd.f32 %v2906, %v2160
      %v2908 = vadd.f32 %v2907, %v2162
      %v2909 = vrot.slane %v2908, 4
      %v2910 = vadd.f32 %v2908, %v2909
      %v2911 = vrot.slane %v2910, 2
      %v2912 = vadd.f32 %v2910, %v2911
      %v2913 = vrot.slane %v2912, 1
      %v2914 = vadd.f32 %v2912, %v2913
      %v2915 = vadd.f32 %v2163, %v2165
      %v2916 = vadd.f32 %v2915, %v2167
      %v2917 = vadd.f32 %v2916, %v2169
      %v2918 = vrot.slane %v2917, 4
      %v2919 = vadd.f32 %v2917, %v2918
      %v2920 = vrot.slane %v2919, 2
      %v2921 = vadd.f32 %v2919, %v2920
      %v2922 = vrot.slane %v2921, 1
      %v2923 = vadd.f32 %v2921, %v2922
      %v2924 = vadd.f32 %v2164, %v2166
      %v2925 = vadd.f32 %v2924, %v2168
      %v2926 = vadd.f32 %v2925, %v2170
      %v2927 = vrot.slane %v2926, 4
      %v2928 = vadd.f32 %v2926, %v2927
      %v2929 = vrot.slane %v2928, 2
      %v2930 = vadd.f32 %v2928, %v2929
      %v2931 = vrot.slane %v2930, 1
      %v2932 = vadd.f32 %v2930, %v2931
      %v2933 = vadd.f32 %v2171, %v2173
      %v2934 = vadd.f32 %v2933, %v2175
      %v2935 = vadd.f32 %v2934, %v2177
      %v2936 = vrot.slane %v2935, 4
      %v2937 = vadd.f32 %v2935, %v2936
      %v2938 = vrot.slane %v2937, 2
      %v2939 = vadd.f32 %v2937, %v2938
      %v2940 = vrot.slane %v2939, 1
      %v2941 = vadd.f32 %v2939, %v2940
      %v2942 = vadd.f32 %v2172, %v2174
      %v2943 = vadd.f32 %v2942, %v2176
      %v2944 = vadd.f32 %v2943, %v2178
      %v2945 = vrot.slane %v2944, 4
      %v2946 = vadd.f32 %v2944, %v2945
      %v2947 = vrot.slane %v2946, 2
      %v2948 = vadd.f32 %v2946, %v2947
      %v2949 = vrot.slane %v2948, 1
      %v2950 = vadd.f32 %v2948, %v2949
      %v2951 = vadd.f32 %v2179, %v2181
      %v2952 = vadd.f32 %v2951, %v2183
      %v2953 = vadd.f32 %v2952, %v2185
      %v2954 = vrot.slane %v2953, 4
      %v2955 = vadd.f32 %v2953, %v2954
      %v2956 = vrot.slane %v2955, 2
      %v2957 = vadd.f32 %v2955, %v2956
      %v2958 = vrot.slane %v2957, 1
      %v2959 = vadd.f32 %v2957, %v2958
      %v2960 = vadd.f32 %v2180, %v2182
      %v2961 = vadd.f32 %v2960, %v2184
      %v2962 = vadd.f32 %v2961, %v2186
      %v2963 = vrot.slane %v2962, 4
      %v2964 = vadd.f32 %v2962, %v2963
      %v2965 = vrot.slane %v2964, 2
      %v2966 = vadd.f32 %v2964, %v2965
      %v2967 = vrot.slane %v2966, 1
      %v2968 = vadd.f32 %v2966, %v2967
      %v2969 = vadd.f32 %v2187, %v2189
      %v2970 = vadd.f32 %v2969, %v2191
      %v2971 = vadd.f32 %v2970, %v2193
      %v2972 = vrot.slane %v2971, 4
      %v2973 = vadd.f32 %v2971, %v2972
      %v2974 = vrot.slane %v2973, 2
      %v2975 = vadd.f32 %v2973, %v2974
      %v2976 = vrot.slane %v2975, 1
      %v2977 = vadd.f32 %v2975, %v2976
      %v2978 = vadd.f32 %v2188, %v2190
      %v2979 = vadd.f32 %v2978, %v2192
      %v2980 = vadd.f32 %v2979, %v2194
      %v2981 = vrot.slane %v2980, 4
      %v2982 = vadd.f32 %v2980, %v2981
      %v2983 = vrot.slane %v2982, 2
      %v2984 = vadd.f32 %v2982, %v2983
      %v2985 = vrot.slane %v2984, 1
      %v2986 = vadd.f32 %v2984, %v2985
      %v2987 = vadd.f32 %v2195, %v2197
      %v2988 = vadd.f32 %v2987, %v2199
      %v2989 = vadd.f32 %v2988, %v2201
      %v2990 = vrot.slane %v2989, 4
      %v2991 = vadd.f32 %v2989, %v2990
      %v2992 = vrot.slane %v2991, 2
      %v2993 = vadd.f32 %v2991, %v2992
      %v2994 = vrot.slane %v2993, 1
      %v2995 = vadd.f32 %v2993, %v2994
      %v2996 = vadd.f32 %v2196, %v2198
      %v2997 = vadd.f32 %v2996, %v2200
      %v2998 = vadd.f32 %v2997, %v2202
      %v2999 = vrot.slane %v2998, 4
      %v3000 = vadd.f32 %v2998, %v2999
      %v3001 = vrot.slane %v3000, 2
      %v3002 = vadd.f32 %v3000, %v3001
      %v3003 = vrot.slane %v3002, 1
      %v3004 = vadd.f32 %v3002, %v3003
      %v3005 = vadd.f32 %v2203, %v2205
      %v3006 = vadd.f32 %v3005, %v2207
      %v3007 = vadd.f32 %v3006, %v2209
      %v3008 = vrot.slane %v3007, 4
      %v3009 = vadd.f32 %v3007, %v3008
      %v3010 = vrot.slane %v3009, 2
      %v3011 = vadd.f32 %v3009, %v3010
      %v3012 = vrot.slane %v3011, 1
      %v3013 = vadd.f32 %v3011, %v3012
      %v3014 = vadd.f32 %v2204, %v2206
      %v3015 = vadd.f32 %v3014, %v2208
      %v3016 = vadd.f32 %v3015, %v2210
      %v3017 = vrot.slane %v3016, 4
      %v3018 = vadd.f32 %v3016, %v3017
      %v3019 = vrot.slane %v3018, 2
      %v3020 = vadd.f32 %v3018, %v3019
      %v3021 = vrot.slane %v3020, 1
      %v3022 = vadd.f32 %v3020, %v3021
      %v3023 = vadd.f32 %v2211, %v2213
      %v3024 = vadd.f32 %v3023, %v2215
      %v3025 = vadd.f32 %v3024, %v2217
      %v3026 = vrot.slane %v3025, 4
      %v3027 = vadd.f32 %v3025, %v3026
      %v3028 = vrot.slane %v3027, 2
      %v3029 = vadd.f32 %v3027, %v3028
      %v3030 = vrot.slane %v3029, 1
      %v3031 = vadd.f32 %v3029, %v3030
      %v3032 = vadd.f32 %v2212, %v2214
      %v3033 = vadd.f32 %v3032, %v2216
      %v3034 = vadd.f32 %v3033, %v2218
      %v3035 = vrot.slane %v3034, 4
      %v3036 = vadd.f32 %v3034, %v3035
      %v3037 = vrot.slane %v3036, 2
      %v3038 = vadd.f32 %v3036, %v3037
      %v3039 = vrot.slane %v3038, 1
      %v3040 = vadd.f32 %v3038, %v3039
      %v3041 = vadd.f32 %v2219, %v2221
      %v3042 = vadd.f32 %v3041, %v2223
      %v3043 = vadd.f32 %v3042, %v2225
      %v3044 = vrot.slane %v3043, 4
      %v3045 = vadd.f32 %v3043, %v3044
      %v3046 = vrot.slane %v3045, 2
      %v3047 = vadd.f32 %v3045, %v3046
      %v3048 = vrot.slane %v3047, 1
      %v3049 = vadd.f32 %v3047, %v3048
      %v3050 = vadd.f32 %v2220, %v2222
      %v3051 = vadd.f32 %v3050, %v2224
      %v3052 = vadd.f32 %v3051, %v2226
      %v3053 = vrot.slane %v3052, 4
      %v3054 = vadd.f32 %v3052, %v3053
      %v3055 = vrot.slane %v3054, 2
      %v3056 = vadd.f32 %v3054, %v3055
      %v3057 = vrot.slane %v3056, 1
      %v3058 = vadd.f32 %v3056, %v3057
      %v3059 = vadd.f32 %v2227, %v2229
      %v3060 = vadd.f32 %v3059, %v2231
      %v3061 = vadd.f32 %v3060, %v2233
      %v3062 = vrot.slane %v3061, 4
      %v3063 = vadd.f32 %v3061, %v3062
      %v3064 = vrot.slane %v3063, 2
      %v3065 = vadd.f32 %v3063, %v3064
      %v3066 = vrot.slane %v3065, 1
      %v3067 = vadd.f32 %v3065, %v3066
      %v3068 = vadd.f32 %v2228, %v2230
      %v3069 = vadd.f32 %v3068, %v2232
      %v3070 = vadd.f32 %v3069, %v2234
      %v3071 = vrot.slane %v3070, 4
      %v3072 = vadd.f32 %v3070, %v3071
      %v3073 = vrot.slane %v3072, 2
      %v3074 = vadd.f32 %v3072, %v3073
      %v3075 = vrot.slane %v3074, 1
      %v3076 = vadd.f32 %v3074, %v3075
      %v3077 = vadd.f32 %v2235, %v2237
      %v3078 = vadd.f32 %v3077, %v2239
      %v3079 = vadd.f32 %v3078, %v2241
      %v3080 = vrot.slane %v3079, 4
      %v3081 = vadd.f32 %v3079, %v3080
      %v3082 = vrot.slane %v3081, 2
      %v3083 = vadd.f32 %v3081, %v3082
      %v3084 = vrot.slane %v3083, 1
      %v3085 = vadd.f32 %v3083, %v3084
      %v3086 = vadd.f32 %v2236, %v2238
      %v3087 = vadd.f32 %v3086, %v2240
      %v3088 = vadd.f32 %v3087, %v2242
      %v3089 = vrot.slane %v3088, 4
      %v3090 = vadd.f32 %v3088, %v3089
      %v3091 = vrot.slane %v3090, 2
      %v3092 = vadd.f32 %v3090, %v3091
      %v3093 = vrot.slane %v3092, 1
      %v3094 = vadd.f32 %v3092, %v3093
      %v3095 = vadd.f32 %v2243, %v2245
      %v3096 = vadd.f32 %v3095, %v2247
      %v3097 = vadd.f32 %v3096, %v2249
      %v3098 = vrot.slane %v3097, 4
      %v3099 = vadd.f32 %v3097, %v3098
      %v3100 = vrot.slane %v3099, 2
      %v3101 = vadd.f32 %v3099, %v3100
      %v3102 = vrot.slane %v3101, 1
      %v3103 = vadd.f32 %v3101, %v3102
      %v3104 = vadd.f32 %v2244, %v2246
      %v3105 = vadd.f32 %v3104, %v2248
      %v3106 = vadd.f32 %v3105, %v2250
      %v3107 = vrot.slane %v3106, 4
      %v3108 = vadd.f32 %v3106, %v3107
      %v3109 = vrot.slane %v3108, 2
      %v3110 = vadd.f32 %v3108, %v3109
      %v3111 = vrot.slane %v3110, 1
      %v3112 = vadd.f32 %v3110, %v3111
      %v3113 = vadd.f32 %v2251, %v2253
      %v3114 = vadd.f32 %v3113, %v2255
      %v3115 = vadd.f32 %v3114, %v2257
      %v3116 = vrot.slane %v3115, 4
      %v3117 = vadd.f32 %v3115, %v3116
      %v3118 = vrot.slane %v3117, 2
      %v3119 = vadd.f32 %v3117, %v3118
      %v3120 = vrot.slane %v3119, 1
      %v3121 = vadd.f32 %v3119, %v3120
      %v3122 = vadd.f32 %v2252, %v2254
      %v3123 = vadd.f32 %v3122, %v2256
      %v3124 = vadd.f32 %v3123, %v2258
      %v3125 = vrot.slane %v3124, 4
      %v3126 = vadd.f32 %v3124, %v3125
      %v3127 = vrot.slane %v3126, 2
      %v3128 = vadd.f32 %v3126, %v3127
      %v3129 = vrot.slane %v3128, 1
      %v3130 = vadd.f32 %v3128, %v3129
      %v3131 = vadd.f32 %v2259, %v2261
      %v3132 = vadd.f32 %v3131, %v2263
      %v3133 = vadd.f32 %v3132, %v2265
      %v3134 = vrot.slane %v3133, 4
      %v3135 = vadd.f32 %v3133, %v3134
      %v3136 = vrot.slane %v3135, 2
      %v3137 = vadd.f32 %v3135, %v3136
      %v3138 = vrot.slane %v3137, 1
      %v3139 = vadd.f32 %v3137, %v3138
      %v3140 = vadd.f32 %v2260, %v2262
      %v3141 = vadd.f32 %v3140, %v2264
      %v3142 = vadd.f32 %v3141, %v2266
      %v3143 = vrot.slane %v3142, 4
      %v3144 = vadd.f32 %v3142, %v3143
      %v3145 = vrot.slane %v3144, 2
      %v3146 = vadd.f32 %v3144, %v3145
      %v3147 = vrot.slane %v3146, 1
      %v3148 = vadd.f32 %v3146, %v3147
      %v3149 = vadd.f32 %v2267, %v2269
      %v3150 = vadd.f32 %v3149, %v2271
      %v3151 = vadd.f32 %v3150, %v2273
      %v3152 = vrot.slane %v3151, 4
      %v3153 = vadd.f32 %v3151, %v3152
      %v3154 = vrot.slane %v3153, 2
      %v3155 = vadd.f32 %v3153, %v3154
      %v3156 = vrot.slane %v3155, 1
      %v3157 = vadd.f32 %v3155, %v3156
      %v3158 = vadd.f32 %v2268, %v2270
      %v3159 = vadd.f32 %v3158, %v2272
      %v3160 = vadd.f32 %v3159, %v2274
      %v3161 = vrot.slane %v3160, 4
      %v3162 = vadd.f32 %v3160, %v3161
      %v3163 = vrot.slane %v3162, 2
      %v3164 = vadd.f32 %v3162, %v3163
      %v3165 = vrot.slane %v3164, 1
      %v3166 = vadd.f32 %v3164, %v3165
      %v3167 = vadd.f32 %v2275, %v2277
      %v3168 = vadd.f32 %v3167, %v2279
      %v3169 = vadd.f32 %v3168, %v2281
      %v3170 = vrot.slane %v3169, 4
      %v3171 = vadd.f32 %v3169, %v3170
      %v3172 = vrot.slane %v3171, 2
      %v3173 = vadd.f32 %v3171, %v3172
      %v3174 = vrot.slane %v3173, 1
      %v3175 = vadd.f32 %v3173, %v3174
      %v3176 = vadd.f32 %v2276, %v2278
      %v3177 = vadd.f32 %v3176, %v2280
      %v3178 = vadd.f32 %v3177, %v2282
      %v3179 = vrot.slane %v3178, 4
      %v3180 = vadd.f32 %v3178, %v3179
      %v3181 = vrot.slane %v3180, 2
      %v3182 = vadd.f32 %v3180, %v3181
      %v3183 = vrot.slane %v3182, 1
      %v3184 = vadd.f32 %v3182, %v3183
      %v3185 = vadd.f32 %v2283, %v2285
      %v3186 = vadd.f32 %v3185, %v2287
      %v3187 = vadd.f32 %v3186, %v2289
      %v3188 = vrot.slane %v3187, 4
      %v3189 = vadd.f32 %v3187, %v3188
      %v3190 = vrot.slane %v3189, 2
      %v3191 = vadd.f32 %v3189, %v3190
      %v3192 = vrot.slane %v3191, 1
      %v3193 = vadd.f32 %v3191, %v3192
      %v3194 = vadd.f32 %v2284, %v2286
      %v3195 = vadd.f32 %v3194, %v2288
      %v3196 = vadd.f32 %v3195, %v2290
      %v3197 = vrot.slane %v3196, 4
      %v3198 = vadd.f32 %v3196, %v3197
      %v3199 = vrot.slane %v3198, 2
      %v3200 = vadd.f32 %v3198, %v3199
      %v3201 = vrot.slane %v3200, 1
      %v3202 = vadd.f32 %v3200, %v3201
      %v3203 = vadd.f32 %v2291, %v2293
      %v3204 = vadd.f32 %v3203, %v2295
      %v3205 = vadd.f32 %v3204, %v2297
      %v3206 = vrot.slane %v3205, 4
      %v3207 = vadd.f32 %v3205, %v3206
      %v3208 = vrot.slane %v3207, 2
      %v3209 = vadd.f32 %v3207, %v3208
      %v3210 = vrot.slane %v3209, 1
      %v3211 = vadd.f32 %v3209, %v3210
      %v3212 = vadd.f32 %v2292, %v2294
      %v3213 = vadd.f32 %v3212, %v2296
      %v3214 = vadd.f32 %v3213, %v2298
      %v3215 = vrot.slane %v3214, 4
      %v3216 = vadd.f32 %v3214, %v3215
      %v3217 = vrot.slane %v3216, 2
      %v3218 = vadd.f32 %v3216, %v3217
      %v3219 = vrot.slane %v3218, 1
      %v3220 = vadd.f32 %v3218, %v3219
      %v3221 = vadd.f32 %v2299, %v2301
      %v3222 = vadd.f32 %v3221, %v2303
      %v3223 = vadd.f32 %v3222, %v2305
      %v3224 = vrot.slane %v3223, 4
      %v3225 = vadd.f32 %v3223, %v3224
      %v3226 = vrot.slane %v3225, 2
      %v3227 = vadd.f32 %v3225, %v3226
      %v3228 = vrot.slane %v3227, 1
      %v3229 = vadd.f32 %v3227, %v3228
      %v3230 = vadd.f32 %v2300, %v2302
      %v3231 = vadd.f32 %v3230, %v2304
      %v3232 = vadd.f32 %v3231, %v2306
      %v3233 = vrot.slane %v3232, 4
      %v3234 = vadd.f32 %v3232, %v3233
      %v3235 = vrot.slane %v3234, 2
      %v3236 = vadd.f32 %v3234, %v3235
      %v3237 = vrot.slane %v3236, 1
      %v3238 = vadd.f32 %v3236, %v3237
      %v3239 = vadd.f32 %v2307, %v2309
      %v3240 = vadd.f32 %v3239, %v2311
      %v3241 = vadd.f32 %v3240, %v2313
      %v3242 = vrot.slane %v3241, 4
      %v3243 = vadd.f32 %v3241, %v3242
      %v3244 = vrot.slane %v3243, 2
      %v3245 = vadd.f32 %v3243, %v3244
      %v3246 = vrot.slane %v3245, 1
      %v3247 = vadd.f32 %v3245, %v3246
      %v3248 = vadd.f32 %v2308, %v2310
      %v3249 = vadd.f32 %v3248, %v2312
      %v3250 = vadd.f32 %v3249, %v2314
      %v3251 = vrot.slane %v3250, 4
      %v3252 = vadd.f32 %v3250, %v3251
      %v3253 = vrot.slane %v3252, 2
      %v3254 = vadd.f32 %v3252, %v3253
      %v3255 = vrot.slane %v3254, 1
      %v3256 = vadd.f32 %v3254, %v3255
      %v3257 = vadd.f32 %v2315, %v2317
      %v3258 = vadd.f32 %v3257, %v2319
      %v3259 = vadd.f32 %v3258, %v2321
      %v3260 = vrot.slane %v3259, 4
      %v3261 = vadd.f32 %v3259, %v3260
      %v3262 = vrot.slane %v3261, 2
      %v3263 = vadd.f32 %v3261, %v3262
      %v3264 = vrot.slane %v3263, 1
      %v3265 = vadd.f32 %v3263, %v3264
      %v3266 = vadd.f32 %v2316, %v2318
      %v3267 = vadd.f32 %v3266, %v2320
      %v3268 = vadd.f32 %v3267, %v2322
      %v3269 = vrot.slane %v3268, 4
      %v3270 = vadd.f32 %v3268, %v3269
      %v3271 = vrot.slane %v3270, 2
      %v3272 = vadd.f32 %v3270, %v3271
      %v3273 = vrot.slane %v3272, 1
      %v3274 = vadd.f32 %v3272, %v3273
      %v3275 = vadd.f32 %v2323, %v2325
      %v3276 = vadd.f32 %v3275, %v2327
      %v3277 = vadd.f32 %v3276, %v2329
      %v3278 = vrot.slane %v3277, 4
      %v3279 = vadd.f32 %v3277, %v3278
      %v3280 = vrot.slane %v3279, 2
      %v3281 = vadd.f32 %v3279, %v3280
      %v3282 = vrot.slane %v3281, 1
      %v3283 = vadd.f32 %v3281, %v3282
      %v3284 = vadd.f32 %v2324, %v2326
      %v3285 = vadd.f32 %v3284, %v2328
      %v3286 = vadd.f32 %v3285, %v2330
      %v3287 = vrot.slane %v3286, 4
      %v3288 = vadd.f32 %v3286, %v3287
      %v3289 = vrot.slane %v3288, 2
      %v3290 = vadd.f32 %v3288, %v3289
      %v3291 = vrot.slane %v3290, 1
      %v3292 = vadd.f32 %v3290, %v3291
      %v3293 = vadd.f32 %v2331, %v2333
      %v3294 = vadd.f32 %v3293, %v2335
      %v3295 = vadd.f32 %v3294, %v2337
      %v3296 = vrot.slane %v3295, 4
      %v3297 = vadd.f32 %v3295, %v3296
      %v3298 = vrot.slane %v3297, 2
      %v3299 = vadd.f32 %v3297, %v3298
      %v3300 = vrot.slane %v3299, 1
      %v3301 = vadd.f32 %v3299, %v3300
      %v3302 = vadd.f32 %v2332, %v2334
      %v3303 = vadd.f32 %v3302, %v2336
      %v3304 = vadd.f32 %v3303, %v2338
      %v3305 = vrot.slane %v3304, 4
      %v3306 = vadd.f32 %v3304, %v3305
      %v3307 = vrot.slane %v3306, 2
      %v3308 = vadd.f32 %v3306, %v3307
      %v3309 = vrot.slane %v3308, 1
      %v3310 = vadd.f32 %v3308, %v3309
      %v3311 = vadd.f32 %v2339, %v2341
      %v3312 = vadd.f32 %v3311, %v2343
      %v3313 = vadd.f32 %v3312, %v2345
      %v3314 = vrot.slane %v3313, 4
      %v3315 = vadd.f32 %v3313, %v3314
      %v3316 = vrot.slane %v3315, 2
      %v3317 = vadd.f32 %v3315, %v3316
      %v3318 = vrot.slane %v3317, 1
      %v3319 = vadd.f32 %v3317, %v3318
      %v3320 = vadd.f32 %v2340, %v2342
      %v3321 = vadd.f32 %v3320, %v2344
      %v3322 = vadd.f32 %v3321, %v2346
      %v3323 = vrot.slane %v3322, 4
      %v3324 = vadd.f32 %v3322, %v3323
      %v3325 = vrot.slane %v3324, 2
      %v3326 = vadd.f32 %v3324, %v3325
      %v3327 = vrot.slane %v3326, 1
      %v3328 = vadd.f32 %v3326, %v3327
      %v3329 = vadd.f32 %v2347, %v2349
      %v3330 = vadd.f32 %v3329, %v2351
      %v3331 = vadd.f32 %v3330, %v2353
      %v3332 = vrot.slane %v3331, 4
      %v3333 = vadd.f32 %v3331, %v3332
      %v3334 = vrot.slane %v3333, 2
      %v3335 = vadd.f32 %v3333, %v3334
      %v3336 = vrot.slane %v3335, 1
      %v3337 = vadd.f32 %v3335, %v3336
      %v3338 = vadd.f32 %v2348, %v2350
      %v3339 = vadd.f32 %v3338, %v2352
      %v3340 = vadd.f32 %v3339, %v2354
      %v3341 = vrot.slane %v3340, 4
      %v3342 = vadd.f32 %v3340, %v3341
      %v3343 = vrot.slane %v3342, 2
      %v3344 = vadd.f32 %v3342, %v3343
      %v3345 = vrot.slane %v3344, 1
      %v3346 = vadd.f32 %v3344, %v3345
      %v3347 = vadd.f32 %v2355, %v2357
      %v3348 = vadd.f32 %v3347, %v2359
      %v3349 = vadd.f32 %v3348, %v2361
      %v3350 = vrot.slane %v3349, 4
      %v3351 = vadd.f32 %v3349, %v3350
      %v3352 = vrot.slane %v3351, 2
      %v3353 = vadd.f32 %v3351, %v3352
      %v3354 = vrot.slane %v3353, 1
      %v3355 = vadd.f32 %v3353, %v3354
      %v3356 = vadd.f32 %v2356, %v2358
      %v3357 = vadd.f32 %v3356, %v2360
      %v3358 = vadd.f32 %v3357, %v2362
      %v3359 = vrot.slane %v3358, 4
      %v3360 = vadd.f32 %v3358, %v3359
      %v3361 = vrot.slane %v3360, 2
      %v3362 = vadd.f32 %v3360, %v3361
      %v3363 = vrot.slane %v3362, 1
      %v3364 = vadd.f32 %v3362, %v3363
      %v3365 = vadd.f32 %v2363, %v2365
      %v3366 = vadd.f32 %v3365, %v2367
      %v3367 = vadd.f32 %v3366, %v2369
      %v3368 = vrot.slane %v3367, 4
      %v3369 = vadd.f32 %v3367, %v3368
      %v3370 = vrot.slane %v3369, 2
      %v3371 = vadd.f32 %v3369, %v3370
      %v3372 = vrot.slane %v3371, 1
      %v3373 = vadd.f32 %v3371, %v3372
      %v3374 = vadd.f32 %v2364, %v2366
      %v3375 = vadd.f32 %v3374, %v2368
      %v3376 = vadd.f32 %v3375, %v2370
      %v3377 = vrot.slane %v3376, 4
      %v3378 = vadd.f32 %v3376, %v3377
      %v3379 = vrot.slane %v3378, 2
      %v3380 = vadd.f32 %v3378, %v3379
      %v3381 = vrot.slane %v3380, 1
      %v3382 = vadd.f32 %v3380, %v3381
      %v3383 = vadd.f32 %v2371, %v2373
      %v3384 = vadd.f32 %v3383, %v2375
      %v3385 = vadd.f32 %v3384, %v2377
      %v3386 = vrot.slane %v3385, 4
      %v3387 = vadd.f32 %v3385, %v3386
      %v3388 = vrot.slane %v3387, 2
      %v3389 = vadd.f32 %v3387, %v3388
      %v3390 = vrot.slane %v3389, 1
      %v3391 = vadd.f32 %v3389, %v3390
      %v3392 = vadd.f32 %v2372, %v2374
      %v3393 = vadd.f32 %v3392, %v2376
      %v3394 = vadd.f32 %v3393, %v2378
      %v3395 = vrot.slane %v3394, 4
      %v3396 = vadd.f32 %v3394, %v3395
      %v3397 = vrot.slane %v3396, 2
      %v3398 = vadd.f32 %v3396, %v3397
      %v3399 = vrot.slane %v3398, 1
      %v3400 = vadd.f32 %v3398, %v3399
      %v3401 = vadd.f32 %v2379, %v2381
      %v3402 = vadd.f32 %v3401, %v2383
      %v3403 = vadd.f32 %v3402, %v2385
      %v3404 = vrot.slane %v3403, 4
      %v3405 = vadd.f32 %v3403, %v3404
      %v3406 = vrot.slane %v3405, 2
      %v3407 = vadd.f32 %v3405, %v3406
      %v3408 = vrot.slane %v3407, 1
      %v3409 = vadd.f32 %v3407, %v3408
      %v3410 = vadd.f32 %v2380, %v2382
      %v3411 = vadd.f32 %v3410, %v2384
      %v3412 = vadd.f32 %v3411, %v2386
      %v3413 = vrot.slane %v3412, 4
      %v3414 = vadd.f32 %v3412, %v3413
      %v3415 = vrot.slane %v3414, 2
      %v3416 = vadd.f32 %v3414, %v3415
      %v3417 = vrot.slane %v3416, 1
      %v3418 = vadd.f32 %v3416, %v3417
      %v3419 = vadd.f32 %v2387, %v2389
      %v3420 = vadd.f32 %v3419, %v2391
      %v3421 = vadd.f32 %v3420, %v2393
      %v3422 = vrot.slane %v3421, 4
      %v3423 = vadd.f32 %v3421, %v3422
      %v3424 = vrot.slane %v3423, 2
      %v3425 = vadd.f32 %v3423, %v3424
      %v3426 = vrot.slane %v3425, 1
      %v3427 = vadd.f32 %v3425, %v3426
      %v3428 = vadd.f32 %v2388, %v2390
      %v3429 = vadd.f32 %v3428, %v2392
      %v3430 = vadd.f32 %v3429, %v2394
      %v3431 = vrot.slane %v3430, 4
      %v3432 = vadd.f32 %v3430, %v3431
      %v3433 = vrot.slane %v3432, 2
      %v3434 = vadd.f32 %v3432, %v3433
      %v3435 = vrot.slane %v3434, 1
      %v3436 = vadd.f32 %v3434, %v3435
      %v3437 = vadd.f32 %v2395, %v2397
      %v3438 = vadd.f32 %v3437, %v2399
      %v3439 = vadd.f32 %v3438, %v2401
      %v3440 = vrot.slane %v3439, 4
      %v3441 = vadd.f32 %v3439, %v3440
      %v3442 = vrot.slane %v3441, 2
      %v3443 = vadd.f32 %v3441, %v3442
      %v3444 = vrot.slane %v3443, 1
      %v3445 = vadd.f32 %v3443, %v3444
      %v3446 = vadd.f32 %v2396, %v2398
      %v3447 = vadd.f32 %v3446, %v2400
      %v3448 = vadd.f32 %v3447, %v2402
      %v3449 = vrot.slane %v3448, 4
      %v3450 = vadd.f32 %v3448, %v3449
      %v3451 = vrot.slane %v3450, 2
      %v3452 = vadd.f32 %v3450, %v3451
      %v3453 = vrot.slane %v3452, 1
      %v3454 = vadd.f32 %v3452, %v3453
      %v3455 = vadd.f32 %v2403, %v2405
      %v3456 = vadd.f32 %v3455, %v2407
      %v3457 = vadd.f32 %v3456, %v2409
      %v3458 = vrot.slane %v3457, 4
      %v3459 = vadd.f32 %v3457, %v3458
      %v3460 = vrot.slane %v3459, 2
      %v3461 = vadd.f32 %v3459, %v3460
      %v3462 = vrot.slane %v3461, 1
      %v3463 = vadd.f32 %v3461, %v3462
      %v3464 = vadd.f32 %v2404, %v2406
      %v3465 = vadd.f32 %v3464, %v2408
      %v3466 = vadd.f32 %v3465, %v2410
      %v3467 = vrot.slane %v3466, 4
      %v3468 = vadd.f32 %v3466, %v3467
      %v3469 = vrot.slane %v3468, 2
      %v3470 = vadd.f32 %v3468, %v3469
      %v3471 = vrot.slane %v3470, 1
      %v3472 = vadd.f32 %v3470, %v3471
      %v3473 = vadd.f32 %v2411, %v2413
      %v3474 = vadd.f32 %v3473, %v2415
      %v3475 = vadd.f32 %v3474, %v2417
      %v3476 = vrot.slane %v3475, 4
      %v3477 = vadd.f32 %v3475, %v3476
      %v3478 = vrot.slane %v3477, 2
      %v3479 = vadd.f32 %v3477, %v3478
      %v3480 = vrot.slane %v3479, 1
      %v3481 = vadd.f32 %v3479, %v3480
      %v3482 = vadd.f32 %v2412, %v2414
      %v3483 = vadd.f32 %v3482, %v2416
      %v3484 = vadd.f32 %v3483, %v2418
      %v3485 = vrot.slane %v3484, 4
      %v3486 = vadd.f32 %v3484, %v3485
      %v3487 = vrot.slane %v3486, 2
      %v3488 = vadd.f32 %v3486, %v3487
      %v3489 = vrot.slane %v3488, 1
      %v3490 = vadd.f32 %v3488, %v3489
      %v3491 = vadd.f32 %v2419, %v2421
      %v3492 = vadd.f32 %v3491, %v2423
      %v3493 = vadd.f32 %v3492, %v2425
      %v3494 = vrot.slane %v3493, 4
      %v3495 = vadd.f32 %v3493, %v3494
      %v3496 = vrot.slane %v3495, 2
      %v3497 = vadd.f32 %v3495, %v3496
      %v3498 = vrot.slane %v3497, 1
      %v3499 = vadd.f32 %v3497, %v3498
      %v3500 = vadd.f32 %v2420, %v2422
      %v3501 = vadd.f32 %v3500, %v2424
      %v3502 = vadd.f32 %v3501, %v2426
      %v3503 = vrot.slane %v3502, 4
      %v3504 = vadd.f32 %v3502, %v3503
      %v3505 = vrot.slane %v3504, 2
      %v3506 = vadd.f32 %v3504, %v3505
      %v3507 = vrot.slane %v3506, 1
      %v3508 = vadd.f32 %v3506, %v3507
      %v3509 = vadd.f32 %v2427, %v2429
      %v3510 = vadd.f32 %v3509, %v2431
      %v3511 = vadd.f32 %v3510, %v2433
      %v3512 = vrot.slane %v3511, 4
      %v3513 = vadd.f32 %v3511, %v3512
      %v3514 = vrot.slane %v3513, 2
      %v3515 = vadd.f32 %v3513, %v3514
      %v3516 = vrot.slane %v3515, 1
      %v3517 = vadd.f32 %v3515, %v3516
      %v3518 = vadd.f32 %v2428, %v2430
      %v3519 = vadd.f32 %v3518, %v2432
      %v3520 = vadd.f32 %v3519, %v2434
      %v3521 = vrot.slane %v3520, 4
      %v3522 = vadd.f32 %v3520, %v3521
      %v3523 = vrot.slane %v3522, 2
      %v3524 = vadd.f32 %v3522, %v3523
      %v3525 = vrot.slane %v3524, 1
      %v3526 = vadd.f32 %v3524, %v3525
      %v3527 = vadd.f32 %v2435, %v2437
      %v3528 = vadd.f32 %v3527, %v2439
      %v3529 = vadd.f32 %v3528, %v2441
      %v3530 = vrot.slane %v3529, 4
      %v3531 = vadd.f32 %v3529, %v3530
      %v3532 = vrot.slane %v3531, 2
      %v3533 = vadd.f32 %v3531, %v3532
      %v3534 = vrot.slane %v3533, 1
      %v3535 = vadd.f32 %v3533, %v3534
      %v3536 = vadd.f32 %v2436, %v2438
      %v3537 = vadd.f32 %v3536, %v2440
      %v3538 = vadd.f32 %v3537, %v2442
      %v3539 = vrot.slane %v3538, 4
      %v3540 = vadd.f32 %v3538, %v3539
      %v3541 = vrot.slane %v3540, 2
      %v3542 = vadd.f32 %v3540, %v3541
      %v3543 = vrot.slane %v3542, 1
      %v3544 = vadd.f32 %v3542, %v3543
      %v3545 = vadd.f32 %v2443, %v2445
      %v3546 = vadd.f32 %v3545, %v2447
      %v3547 = vadd.f32 %v3546, %v2449
      %v3548 = vrot.slane %v3547, 4
      %v3549 = vadd.f32 %v3547, %v3548
      %v3550 = vrot.slane %v3549, 2
      %v3551 = vadd.f32 %v3549, %v3550
      %v3552 = vrot.slane %v3551, 1
      %v3553 = vadd.f32 %v3551, %v3552
      %v3554 = vadd.f32 %v2444, %v2446
      %v3555 = vadd.f32 %v3554, %v2448
      %v3556 = vadd.f32 %v3555, %v2450
      %v3557 = vrot.slane %v3556, 4
      %v3558 = vadd.f32 %v3556, %v3557
      %v3559 = vrot.slane %v3558, 2
      %v3560 = vadd.f32 %v3558, %v3559
      %v3561 = vrot.slane %v3560, 1
      %v3562 = vadd.f32 %v3560, %v3561
      %v3563 = vadd.f32 %v2451, %v2453
      %v3564 = vadd.f32 %v3563, %v2455
      %v3565 = vadd.f32 %v3564, %v2457
      %v3566 = vrot.slane %v3565, 4
      %v3567 = vadd.f32 %v3565, %v3566
      %v3568 = vrot.slane %v3567, 2
      %v3569 = vadd.f32 %v3567, %v3568
      %v3570 = vrot.slane %v3569, 1
      %v3571 = vadd.f32 %v3569, %v3570
      %v3572 = vadd.f32 %v2452, %v2454
      %v3573 = vadd.f32 %v3572, %v2456
      %v3574 = vadd.f32 %v3573, %v2458
      %v3575 = vrot.slane %v3574, 4
      %v3576 = vadd.f32 %v3574, %v3575
      %v3577 = vrot.slane %v3576, 2
      %v3578 = vadd.f32 %v3576, %v3577
      %v3579 = vrot.slane %v3578, 1
      %v3580 = vadd.f32 %v3578, %v3579
      %v3581 = vadd.f32 %v2459, %v2461
      %v3582 = vadd.f32 %v3581, %v2463
      %v3583 = vadd.f32 %v3582, %v2465
      %v3584 = vrot.slane %v3583, 4
      %v3585 = vadd.f32 %v3583, %v3584
      %v3586 = vrot.slane %v3585, 2
      %v3587 = vadd.f32 %v3585, %v3586
      %v3588 = vrot.slane %v3587, 1
      %v3589 = vadd.f32 %v3587, %v3588
      %v3590 = vadd.f32 %v2460, %v2462
      %v3591 = vadd.f32 %v3590, %v2464
      %v3592 = vadd.f32 %v3591, %v2466
      %v3593 = vrot.slane %v3592, 4
      %v3594 = vadd.f32 %v3592, %v3593
      %v3595 = vrot.slane %v3594, 2
      %v3596 = vadd.f32 %v3594, %v3595
      %v3597 = vrot.slane %v3596, 1
      %v3598 = vadd.f32 %v3596, %v3597
      %v3599 = vadd.f32 %v2467, %v2469
      %v3600 = vadd.f32 %v3599, %v2471
      %v3601 = vadd.f32 %v3600, %v2473
      %v3602 = vrot.slane %v3601, 4
      %v3603 = vadd.f32 %v3601, %v3602
      %v3604 = vrot.slane %v3603, 2
      %v3605 = vadd.f32 %v3603, %v3604
      %v3606 = vrot.slane %v3605, 1
      %v3607 = vadd.f32 %v3605, %v3606
      %v3608 = vadd.f32 %v2468, %v2470
      %v3609 = vadd.f32 %v3608, %v2472
      %v3610 = vadd.f32 %v3609, %v2474
      %v3611 = vrot.slane %v3610, 4
      %v3612 = vadd.f32 %v3610, %v3611
      %v3613 = vrot.slane %v3612, 2
      %v3614 = vadd.f32 %v3612, %v3613
      %v3615 = vrot.slane %v3614, 1
      %v3616 = vadd.f32 %v3614, %v3615
      %v3617 = vadd.f32 %v2475, %v2477
      %v3618 = vadd.f32 %v3617, %v2479
      %v3619 = vadd.f32 %v3618, %v2481
      %v3620 = vrot.slane %v3619, 4
      %v3621 = vadd.f32 %v3619, %v3620
      %v3622 = vrot.slane %v3621, 2
      %v3623 = vadd.f32 %v3621, %v3622
      %v3624 = vrot.slane %v3623, 1
      %v3625 = vadd.f32 %v3623, %v3624
      %v3626 = vadd.f32 %v2476, %v2478
      %v3627 = vadd.f32 %v3626, %v2480
      %v3628 = vadd.f32 %v3627, %v2482
      %v3629 = vrot.slane %v3628, 4
      %v3630 = vadd.f32 %v3628, %v3629
      %v3631 = vrot.slane %v3630, 2
      %v3632 = vadd.f32 %v3630, %v3631
      %v3633 = vrot.slane %v3632, 1
      %v3634 = vadd.f32 %v3632, %v3633
      %v3635 = vmul.f32 %v2491, 0.17677669
      %v3636 = vmul.f32 %v2500, 0.17677669
      %v3637 = vmul.f32 %v2509, 0.17677669
      %v3638 = vmul.f32 %v2518, 0.17677669
      %v3639 = vmul.f32 %v2527, 0.17677669
      %v3640 = vmul.f32 %v2536, 0.17677669
      %v3641 = vmul.f32 %v2545, 0.17677669
      %v3642 = vmul.f32 %v2554, 0.17677669
      %v3643 = vmul.f32 %v2563, 0.17677669
      %v3644 = vmul.f32 %v2572, 0.17677669
      %v3645 = vmul.f32 %v2581, 0.17677669
      %v3646 = vmul.f32 %v2590, 0.17677669
      %v3647 = vmul.f32 %v2599, 0.17677669
      %v3648 = vmul.f32 %v2608, 0.17677669
      %v3649 = vmul.f32 %v2617, 0.17677669
      %v3650 = vmul.f32 %v2626, 0.17677669
      %v3651 = vmul.f32 %v2635, 0.17677669
      %v3652 = vmul.f32 %v2644, 0.17677669
      %v3653 = vmul.f32 %v2653, 0.17677669
      %v3654 = vmul.f32 %v2662, 0.17677669
      %v3655 = vmul.f32 %v2671, 0.17677669
      %v3656 = vmul.f32 %v2680, 0.17677669
      %v3657 = vmul.f32 %v2689, 0.17677669
      %v3658 = vmul.f32 %v2698, 0.17677669
      %v3659 = vmul.f32 %v2707, 0.17677669
      %v3660 = vmul.f32 %v2716, 0.17677669
      %v3661 = vmul.f32 %v2725, 0.17677669
      %v3662 = vmul.f32 %v2734, 0.17677669
      %v3663 = vmul.f32 %v2743, 0.17677669
      %v3664 = vmul.f32 %v2752, 0.17677669
      %v3665 = vmul.f32 %v2761, 0.17677669
      %v3666 = vmul.f32 %v2770, 0.17677669
      %v3667 = vmul.f32 %v2779, 0.17677669
      %v3668 = vmul.f32 %v2788, 0.17677669
      %v3669 = vmul.f32 %v2797, 0.17677669
      %v3670 = vmul.f32 %v2806, 0.17677669
      %v3671 = vmul.f32 %v2815, 0.17677669
      %v3672 = vmul.f32 %v2824, 0.17677669
      %v3673 = vmul.f32 %v2833, 0.17677669
      %v3674 = vmul.f32 %v2842, 0.17677669
      %v3675 = vmul.f32 %v2851, 0.17677669
      %v3676 = vmul.f32 %v2860, 0.17677669
      %v3677 = vmul.f32 %v2869, 0.17677669
      %v3678 = vmul.f32 %v2878, 0.17677669
      %v3679 = vmul.f32 %v2887, 0.17677669
      %v3680 = vmul.f32 %v2896, 0.17677669
      %v3681 = vmul.f32 %v2905, 0.17677669
      %v3682 = vmul.f32 %v2914, 0.17677669
      %v3683 = vmul.f32 %v2923, 0.17677669
      %v3684 = vmul.f32 %v2932, 0.17677669
      %v3685 = vmul.f32 %v2941, 0.17677669
      %v3686 = vmul.f32 %v2950, 0.17677669
      %v3687 = vmul.f32 %v2959, 0.17677669
      %v3688 = vmul.f32 %v2968, 0.17677669
      %v3689 = vmul.f32 %v2977, 0.17677669
      %v3690 = vmul.f32 %v2986, 0.17677669
      %v3691 = vmul.f32 %v2995, 0.17677669
      %v3692 = vmul.f32 %v3004, 0.17677669
      %v3693 = vmul.f32 %v3013, 0.17677669
      %v3694 = vmul.f32 %v3022, 0.17677669
      %v3695 = vmul.f32 %v3031, 0.17677669
      %v3696 = vmul.f32 %v3040, 0.17677669
      %v3697 = vmul.f32 %v3049, 0.17677669
      %v3698 = vmul.f32 %v3058, 0.17677669
      %v3699 = vmul.f32 %v3067, 0.17677669
      %v3700 = vmul.f32 %v3076, 0.17677669
      %v3701 = vmul.f32 %v3085, 0.17677669
      %v3702 = vmul.f32 %v3094, 0.17677669
      %v3703 = vmul.f32 %v3103, 0.17677669
      %v3704 = vmul.f32 %v3112, 0.17677669
      %v3705 = vmul.f32 %v3121, 0.17677669
      %v3706 = vmul.f32 %v3130, 0.17677669
      %v3707 = vmul.f32 %v3139, 0.17677669
      %v3708 = vmul.f32 %v3148, 0.17677669
      %v3709 = vmul.f32 %v3157, 0.17677669
      %v3710 = vmul.f32 %v3166, 0.17677669
      %v3711 = vmul.f32 %v3175, 0.17677669
      %v3712 = vmul.f32 %v3184, 0.17677669
      %v3713 = vmul.f32 %v3193, 0.17677669
      %v3714 = vmul.f32 %v3202, 0.17677669
      %v3715 = vmul.f32 %v3211, 0.17677669
      %v3716 = vmul.f32 %v3220, 0.17677669
      %v3717 = vmul.f32 %v3229, 0.17677669
      %v3718 = vmul.f32 %v3238, 0.17677669
      %v3719 = vmul.f32 %v3247, 0.17677669
      %v3720 = vmul.f32 %v3256, 0.17677669
      %v3721 = vmul.f32 %v3265, 0.17677669
      %v3722 = vmul.f32 %v3274, 0.17677669
      %v3723 = vmul.f32 %v3283, 0.17677669
      %v3724 = vmul.f32 %v3292, 0.17677669
      %v3725 = vmul.f32 %v3301, 0.17677669
      %v3726 = vmul.f32 %v3310, 0.17677669
      %v3727 = vmul.f32 %v3319, 0.17677669
      %v3728 = vmul.f32 %v3328, 0.17677669
      %v3729 = vmul.f32 %v3337, 0.17677669
      %v3730 = vmul.f32 %v3346, 0.17677669
      %v3731 = vmul.f32 %v3355, 0.17677669
      %v3732 = vmul.f32 %v3364, 0.17677669
      %v3733 = vmul.f32 %v3373, 0.17677669
      %v3734 = vmul.f32 %v3382, 0.17677669
      %v3735 = vmul.f32 %v3391, 0.17677669
      %v3736 = vmul.f32 %v3400, 0.17677669
      %v3737 = vmul.f32 %v3409, 0.17677669
      %v3738 = vmul.f32 %v3418, 0.17677669
      %v3739 = vmul.f32 %v3427, 0.17677669
      %v3740 = vmul.f32 %v3436, 0.17677669
      %v3741 = vmul.f32 %v3445, 0.17677669
      %v3742 = vmul.f32 %v3454, 0.17677669
      %v3743 = vmul.f32 %v3463, 0.17677669
      %v3744 = vmul.f32 %v3472, 0.17677669
      %v3745 = vmul.f32 %v3481, 0.17677669
      %v3746 = vmul.f32 %v3490, 0.17677669
      %v3747 = vmul.f32 %v3499, 0.17677669
      %v3748 = vmul.f32 %v3508, 0.17677669
      %v3749 = vmul.f32 %v3517, 0.17677669
      %v3750 = vmul.f32 %v3526, 0.17677669
      %v3751 = vmul.f32 %v3535, 0.17677669
      %v3752 = vmul.f32 %v3544, 0.17677669
      %v3753 = vmul.f32 %v3553, 0.17677669
      %v3754 = vmul.f32 %v3562, 0.17677669
      %v3755 = vmul.f32 %v3571, 0.17677669
      %v3756 = vmul.f32 %v3580, 0.17677669
      %v3757 = vmul.f32 %v3589, 0.17677669
      %v3758 = vmul.f32 %v3598, 0.17677669
      %v3759 = vmul.f32 %v3607, 0.17677669
      %v3760 = vmul.f32 %v3616, 0.17677669
      %v3761 = vmul.f32 %v3625, 0.17677669
      %v3762 = vmul.f32 %v3634, 0.17677669
      %v3763 = vmax.f32 %v3635, %v3637
      %v3764 = vmax.f32 %v3763, %v3639
      %v3765 = vmax.f32 %v3764, %v3641
      %v3766 = vmax.f32 %v3765, %v3643
      %v3767 = vmax.f32 %v3766, %v3645
      %v3768 = vmax.f32 %v3767, %v3647
      %v3769 = vmax.f32 %v3768, %v3649
      %v3770 = vmax.f32 %v3636, %v3638
      %v3771 = vmax.f32 %v3770, %v3640
      %v3772 = vmax.f32 %v3771, %v3642
      %v3773 = vmax.f32 %v3772, %v3644
      %v3774 = vmax.f32 %v3773, %v3646
      %v3775 = vmax.f32 %v3774, %v3648
      %v3776 = vmax.f32 %v3775, %v3650
      %v3777 = vmax.f32 %v3651, %v3653
      %v3778 = vmax.f32 %v3777, %v3655
      %v3779 = vmax.f32 %v3778, %v3657
      %v3780 = vmax.f32 %v3779, %v3659
      %v3781 = vmax.f32 %v3780, %v3661
      %v3782 = vmax.f32 %v3781, %v3663
      %v3783 = vmax.f32 %v3782, %v3665
      %v3784 = vmax.f32 %v3652, %v3654
      %v3785 = vmax.f32 %v3784, %v3656
      %v3786 = vmax.f32 %v3785, %v3658
      %v3787 = vmax.f32 %v3786, %v3660
      %v3788 = vmax.f32 %v3787, %v3662
      %v3789 = vmax.f32 %v3788, %v3664
      %v3790 = vmax.f32 %v3789, %v3666
      %v3791 = vmax.f32 %v3667, %v3669
      %v3792 = vmax.f32 %v3791, %v3671
      %v3793 = vmax.f32 %v3792, %v3673
      %v3794 = vmax.f32 %v3793, %v3675
      %v3795 = vmax.f32 %v3794, %v3677
      %v3796 = vmax.f32 %v3795, %v3679
      %v3797 = vmax.f32 %v3796, %v3681
      %v3798 = vmax.f32 %v3668, %v3670
      %v3799 = vmax.f32 %v3798, %v3672
      %v3800 = vmax.f32 %v3799, %v3674
      %v3801 = vmax.f32 %v3800, %v3676
      %v3802 = vmax.f32 %v3801, %v3678
      %v3803 = vmax.f32 %v3802, %v3680
      %v3804 = vmax.f32 %v3803, %v3682
      %v3805 = vmax.f32 %v3683, %v3685
      %v3806 = vmax.f32 %v3805, %v3687
      %v3807 = vmax.f32 %v3806, %v3689
      %v3808 = vmax.f32 %v3807, %v3691
      %v3809 = vmax.f32 %v3808, %v3693
      %v3810 = vmax.f32 %v3809, %v3695
      %v3811 = vmax.f32 %v3810, %v3697
      %v3812 = vmax.f32 %v3684, %v3686
      %v3813 = vmax.f32 %v3812, %v3688
      %v3814 = vmax.f32 %v3813, %v3690
      %v3815 = vmax.f32 %v3814, %v3692
      %v3816 = vmax.f32 %v3815, %v3694
      %v3817 = vmax.f32 %v3816, %v3696
      %v3818 = vmax.f32 %v3817, %v3698
      %v3819 = vmax.f32 %v3699, %v3701
      %v3820 = vmax.f32 %v3819, %v3703
      %v3821 = vmax.f32 %v3820, %v3705
      %v3822 = vmax.f32 %v3821, %v3707
      %v3823 = vmax.f32 %v3822, %v3709
      %v3824 = vmax.f32 %v3823, %v3711
      %v3825 = vmax.f32 %v3824, %v3713
      %v3826 = vmax.f32 %v3700, %v3702
      %v3827 = vmax.f32 %v3826, %v3704
      %v3828 = vmax.f32 %v3827, %v3706
      %v3829 = vmax.f32 %v3828, %v3708
      %v3830 = vmax.f32 %v3829, %v3710
      %v3831 = vmax.f32 %v3830, %v3712
      %v3832 = vmax.f32 %v3831, %v3714
      %v3833 = vmax.f32 %v3715, %v3717
      %v3834 = vmax.f32 %v3833, %v3719
      %v3835 = vmax.f32 %v3834, %v3721
      %v3836 = vmax.f32 %v3835, %v3723
      %v3837 = vmax.f32 %v3836, %v3725
      %v3838 = vmax.f32 %v3837, %v3727
      %v3839 = vmax.f32 %v3838, %v3729
      %v3840 = vmax.f32 %v3716, %v3718
      %v3841 = vmax.f32 %v3840, %v3720
      %v3842 = vmax.f32 %v3841, %v3722
      %v3843 = vmax.f32 %v3842, %v3724
      %v3844 = vmax.f32 %v3843, %v3726
      %v3845 = vmax.f32 %v3844, %v3728
      %v3846 = vmax.f32 %v3845, %v3730
      %v3847 = vmax.f32 %v3731, %v3733
      %v3848 = vmax.f32 %v3847, %v3735
      %v3849 = vmax.f32 %v3848, %v3737
      %v3850 = vmax.f32 %v3849, %v3739
      %v3851 = vmax.f32 %v3850, %v3741
      %v3852 = vmax.f32 %v3851, %v3743
      %v3853 = vmax.f32 %v3852, %v3745
      %v3854 = vmax.f32 %v3732, %v3734
      %v3855 = vmax.f32 %v3854, %v3736
      %v3856 = vmax.f32 %v3855, %v3738
      %v3857 = vmax.f32 %v3856, %v3740
      %v3858 = vmax.f32 %v3857, %v3742
      %v3859 = vmax.f32 %v3858, %v3744
      %v3860 = vmax.f32 %v3859, %v3746
      %v3861 = vmax.f32 %v3747, %v3749
      %v3862 = vmax.f32 %v3861, %v3751
      %v3863 = vmax.f32 %v3862, %v3753
      %v3864 = vmax.f32 %v3863, %v3755
      %v3865 = vmax.f32 %v3864, %v3757
      %v3866 = vmax.f32 %v3865, %v3759
      %v3867 = vmax.f32 %v3866, %v3761
      %v3868 = vmax.f32 %v3748, %v3750
      %v3869 = vmax.f32 %v3868, %v3752
      %v3870 = vmax.f32 %v3869, %v3754
      %v3871 = vmax.f32 %v3870, %v3756
      %v3872 = vmax.f32 %v3871, %v3758
      %v3873 = vmax.f32 %v3872, %v3760
      %v3874 = vmax.f32 %v3873, %v3762
      %v3875 = vsub.f32 %v3635, %v3769
      %v3876 = vsub.f32 %v3636, %v3776
      %v3877 = vsub.f32 %v3637, %v3769
      %v3878 = vsub.f32 %v3638, %v3776
      %v3879 = vsub.f32 %v3639, %v3769
      %v3880 = vsub.f32 %v3640, %v3776
      %v3881 = vsub.f32 %v3641, %v3769
      %v3882 = vsub.f32 %v3642, %v3776
      %v3883 = vsub.f32 %v3643, %v3769
      %v3884 = vsub.f32 %v3644, %v3776
      %v3885 = vsub.f32 %v3645, %v3769
      %v3886 = vsub.f32 %v3646, %v3776
      %v3887 = vsub.f32 %v3647, %v3769
      %v3888 = vsub.f32 %v3648, %v3776
      %v3889 = vsub.f32 %v3649, %v3769
      %v3890 = vsub.f32 %v3650, %v3776
      %v3891 = vsub.f32 %v3651, %v3783
      %v3892 = vsub.f32 %v3652, %v3790
      %v3893 = vsub.f32 %v3653, %v3783
      %v3894 = vsub.f32 %v3654, %v3790
      %v3895 = vsub.f32 %v3655, %v3783
      %v3896 = vsub.f32 %v3656, %v3790
      %v3897 = vsub.f32 %v3657, %v3783
      %v3898 = vsub.f32 %v3658, %v3790
      %v3899 = vsub.f32 %v3659, %v3783
      %v3900 = vsub.f32 %v3660, %v3790
      %v3901 = vsub.f32 %v3661, %v3783
      %v3902 = vsub.f32 %v3662, %v3790
      %v3903 = vsub.f32 %v3663, %v3783
      %v3904 = vsub.f32 %v3664, %v3790
      %v3905 = vsub.f32 %v3665, %v3783
      %v3906 = vsub.f32 %v3666, %v3790
      %v3907 = vsub.f32 %v3667, %v3797
      %v3908 = vsub.f32 %v3668, %v3804
      %v3909 = vsub.f32 %v3669, %v3797
      %v3910 = vsub.f32 %v3670, %v3804
      %v3911 = vsub.f32 %v3671, %v3797
      %v3912 = vsub.f32 %v3672, %v3804
      %v3913 = vsub.f32 %v3673, %v3797
      %v3914 = vsub.f32 %v3674, %v3804
      %v3915 = vsub.f32 %v3675, %v3797
      %v3916 = vsub.f32 %v3676, %v3804
      %v3917 = vsub.f32 %v3677, %v3797
      %v3918 = vsub.f32 %v3678, %v3804
      %v3919 = vsub.f32 %v3679, %v3797
      %v3920 = vsub.f32 %v3680, %v3804
      %v3921 = vsub.f32 %v3681, %v3797
      %v3922 = vsub.f32 %v3682, %v3804
      %v3923 = vsub.f32 %v3683, %v3811
      %v3924 = vsub.f32 %v3684, %v3818
      %v3925 = vsub.f32 %v3685, %v3811
      %v3926 = vsub.f32 %v3686, %v3818
      %v3927 = vsub.f32 %v3687, %v3811
      %v3928 = vsub.f32 %v3688, %v3818
      %v3929 = vsub.f32 %v3689, %v3811
      %v3930 = vsub.f32 %v3690, %v3818
      %v3931 = vsub.f32 %v3691, %v3811
      %v3932 = vsub.f32 %v3692, %v3818
      %v3933 = vsub.f32 %v3693, %v3811
      %v3934 = vsub.f32 %v3694, %v3818
      %v3935 = vsub.f32 %v3695, %v3811
      %v3936 = vsub.f32 %v3696, %v3818
      %v3937 = vsub.f32 %v3697, %v3811
      %v3938 = vsub.f32 %v3698, %v3818
      %v3939 = vsub.f32 %v3699, %v3825
      %v3940 = vsub.f32 %v3700, %v3832
      %v3941 = vsub.f32 %v3701, %v3825
      %v3942 = vsub.f32 %v3702, %v3832
      %v3943 = vsub.f32 %v3703, %v3825
      %v3944 = vsub.f32 %v3704, %v3832
      %v3945 = vsub.f32 %v3705, %v3825
      %v3946 = vsub.f32 %v3706, %v3832
      %v3947 = vsub.f32 %v3707, %v3825
      %v3948 = vsub.f32 %v3708, %v3832
      %v3949 = vsub.f32 %v3709, %v3825
      %v3950 = vsub.f32 %v3710, %v3832
      %v3951 = vsub.f32 %v3711, %v3825
      %v3952 = vsub.f32 %v3712, %v3832
      %v3953 = vsub.f32 %v3713, %v3825
      %v3954 = vsub.f32 %v3714, %v3832
      %v3955 = vsub.f32 %v3715, %v3839
      %v3956 = vsub.f32 %v3716, %v3846
      %v3957 = vsub.f32 %v3717, %v3839
      %v3958 = vsub.f32 %v3718, %v3846
      %v3959 = vsub.f32 %v3719, %v3839
      %v3960 = vsub.f32 %v3720, %v3846
      %v3961 = vsub.f32 %v3721, %v3839
      %v3962 = vsub.f32 %v3722, %v3846
      %v3963 = vsub.f32 %v3723, %v3839
      %v3964 = vsub.f32 %v3724, %v3846
      %v3965 = vsub.f32 %v3725, %v3839
      %v3966 = vsub.f32 %v3726, %v3846
      %v3967 = vsub.f32 %v3727, %v3839
      %v3968 = vsub.f32 %v3728, %v3846
      %v3969 = vsub.f32 %v3729, %v3839
      %v3970 = vsub.f32 %v3730, %v3846
      %v3971 = vsub.f32 %v3731, %v3853
      %v3972 = vsub.f32 %v3732, %v3860
      %v3973 = vsub.f32 %v3733, %v3853
      %v3974 = vsub.f32 %v3734, %v3860
      %v3975 = vsub.f32 %v3735, %v3853
      %v3976 = vsub.f32 %v3736, %v3860
      %v3977 = vsub.f32 %v3737, %v3853
      %v3978 = vsub.f32 %v3738, %v3860
      %v3979 = vsub.f32 %v3739, %v3853
      %v3980 = vsub.f32 %v3740, %v3860
      %v3981 = vsub.f32 %v3741, %v3853
      %v3982 = vsub.f32 %v3742, %v3860
      %v3983 = vsub.f32 %v3743, %v3853
      %v3984 = vsub.f32 %v3744, %v3860
      %v3985 = vsub.f32 %v3745, %v3853
      %v3986 = vsub.f32 %v3746, %v3860
      %v3987 = vsub.f32 %v3747, %v3867
      %v3988 = vsub.f32 %v3748, %v3874
      %v3989 = vsub.f32 %v3749, %v3867
      %v3990 = vsub.f32 %v3750, %v3874
      %v3991 = vsub.f32 %v3751, %v3867
      %v3992 = vsub.f32 %v3752, %v3874
      %v3993 = vsub.f32 %v3753, %v3867
      %v3994 = vsub.f32 %v3754, %v3874
      %v3995 = vsub.f32 %v3755, %v3867
      %v3996 = vsub.f32 %v3756, %v3874
      %v3997 = vsub.f32 %v3757, %v3867
      %v3998 = vsub.f32 %v3758, %v3874
      %v3999 = vsub.f32 %v3759, %v3867
      %v4000 = vsub.f32 %v3760, %v3874
      %v4001 = vsub.f32 %v3761, %v3867
      %v4002 = vsub.f32 %v3762, %v3874
      %v4003 = vmul.f32 %v3875, 1.442695
      %v4004 = vpow.pop %v4003
      %v4005 = vmul.f32 %v3876, 1.442695
      %v4006 = vpow.pop %v4005
      %v4007 = vmul.f32 %v3877, 1.442695
      %v4008 = vpow.pop %v4007
      %v4009 = vmul.f32 %v3878, 1.442695
      %v4010 = vpow.pop %v4009
      %v4011 = vmul.f32 %v3879, 1.442695
      %v4012 = vpow.pop %v4011
      %v4013 = vmul.f32 %v3880, 1.442695
      %v4014 = vpow.pop %v4013
      %v4015 = vmul.f32 %v3881, 1.442695
      %v4016 = vpow.pop %v4015
      %v4017 = vmul.f32 %v3882, 1.442695
      %v4018 = vpow.pop %v4017
      %v4019 = vmul.f32 %v3883, 1.442695
      %v4020 = vpow.pop %v4019
      %v4021 = vmul.f32 %v3884, 1.442695
      %v4022 = vpow.pop %v4021
      %v4023 = vmul.f32 %v3885, 1.442695
      %v4024 = vpow.pop %v4023
      %v4025 = vmul.f32 %v3886, 1.442695
      %v4026 = vpow.pop %v4025
      %v4027 = vmul.f32 %v3887, 1.442695
      %v4028 = vpow.pop %v4027
      %v4029 = vmul.f32 %v3888, 1.442695
      %v4030 = vpow.pop %v4029
      %v4031 = vmul.f32 %v3889, 1.442695
      %v4032 = vpow.pop %v4031
      %v4033 = vmul.f32 %v3890, 1.442695
      %v4034 = vpow.pop %v4033
      %v4035 = vmul.f32 %v3891, 1.442695
      %v4036 = vpow.pop %v4035
      %v4037 = vmul.f32 %v3892, 1.442695
      %v4038 = vpow.pop %v4037
      %v4039 = vmul.f32 %v3893, 1.442695
      %v4040 = vpow.pop %v4039
      %v4041 = vmul.f32 %v3894, 1.442695
      %v4042 = vpow.pop %v4041
      %v4043 = vmul.f32 %v3895, 1.442695
      %v4044 = vpow.pop %v4043
      %v4045 = vmul.f32 %v3896, 1.442695
      %v4046 = vpow.pop %v4045
      %v4047 = vmul.f32 %v3897, 1.442695
      %v4048 = vpow.pop %v4047
      %v4049 = vmul.f32 %v3898, 1.442695
      %v4050 = vpow.pop %v4049
      %v4051 = vmul.f32 %v3899, 1.442695
      %v4052 = vpow.pop %v4051
      %v4053 = vmul.f32 %v3900, 1.442695
      %v4054 = vpow.pop %v4053
      %v4055 = vmul.f32 %v3901, 1.442695
      %v4056 = vpow.pop %v4055
      %v4057 = vmul.f32 %v3902, 1.442695
      %v4058 = vpow.pop %v4057
      %v4059 = vmul.f32 %v3903, 1.442695
      %v4060 = vpow.pop %v4059
      %v4061 = vmul.f32 %v3904, 1.442695
      %v4062 = vpow.pop %v4061
      %v4063 = vmul.f32 %v3905, 1.442695
      %v4064 = vpow.pop %v4063
      %v4065 = vmul.f32 %v3906, 1.442695
      %v4066 = vpow.pop %v4065
      %v4067 = vmul.f32 %v3907, 1.442695
      %v4068 = vpow.pop %v4067
      %v4069 = vmul.f32 %v3908, 1.442695
      %v4070 = vpow.pop %v4069
      %v4071 = vmul.f32 %v3909, 1.442695
      %v4072 = vpow.pop %v4071
      %v4073 = vmul.f32 %v3910, 1.442695
      %v4074 = vpow.pop %v4073
      %v4075 = vmul.f32 %v3911, 1.442695
      %v4076 = vpow.pop %v4075
      %v4077 = vmul.f32 %v3912, 1.442695
      %v4078 = vpow.pop %v4077
      %v4079 = vmul.f32 %v3913, 1.442695
      %v4080 = vpow.pop %v4079
      %v4081 = vmul.f32 %v3914, 1.442695
      %v4082 = vpow.pop %v4081
      %v4083 = vmul.f32 %v3915, 1.442695
      %v4084 = vpow.pop %v4083
      %v4085 = vmul.f32 %v3916, 1.442695
      %v4086 = vpow.pop %v4085
      %v4087 = vmul.f32 %v3917, 1.442695
      %v4088 = vpow.pop %v4087
      %v4089 = vmul.f32 %v3918, 1.442695
      %v4090 = vpow.pop %v4089
      %v4091 = vmul.f32 %v3919, 1.442695
      %v4092 = vpow.pop %v4091
      %v4093 = vmul.f32 %v3920, 1.442695
      %v4094 = vpow.pop %v4093
      %v4095 = vmul.f32 %v3921, 1.442695
      %v4096 = vpow.pop %v4095
      %v4097 = vmul.f32 %v3922, 1.442695
      %v4098 = vpow.pop %v4097
      %v4099 = vmul.f32 %v3923, 1.442695
      %v4100 = vpow.pop %v4099
      %v4101 = vmul.f32 %v3924, 1.442695
      %v4102 = vpow.pop %v4101
      %v4103 = vmul.f32 %v3925, 1.442695
      %v4104 = vpow.pop %v4103
      %v4105 = vmul.f32 %v3926, 1.442695
      %v4106 = vpow.pop %v4105
      %v4107 = vmul.f32 %v3927, 1.442695
      %v4108 = vpow.pop %v4107
      %v4109 = vmul.f32 %v3928, 1.442695
      %v4110 = vpow.pop %v4109
      %v4111 = vmul.f32 %v3929, 1.442695
      %v4112 = vpow.pop %v4111
      %v4113 = vmul.f32 %v3930, 1.442695
      %v4114 = vpow.pop %v4113
      %v4115 = vmul.f32 %v3931, 1.442695
      %v4116 = vpow.pop %v4115
      %v4117 = vmul.f32 %v3932, 1.442695
      %v4118 = vpow.pop %v4117
      %v4119 = vmul.f32 %v3933, 1.442695
      %v4120 = vpow.pop %v4119
      %v4121 = vmul.f32 %v3934, 1.442695
      %v4122 = vpow.pop %v4121
      %v4123 = vmul.f32 %v3935, 1.442695
      %v4124 = vpow.pop %v4123
      %v4125 = vmul.f32 %v3936, 1.442695
      %v4126 = vpow.pop %v4125
      %v4127 = vmul.f32 %v3937, 1.442695
      %v4128 = vpow.pop %v4127
      %v4129 = vmul.f32 %v3938, 1.442695
      %v4130 = vpow.pop %v4129
      %v4131 = vmul.f32 %v3939, 1.442695
      %v4132 = vpow.pop %v4131
      %v4133 = vmul.f32 %v3940, 1.442695
      %v4134 = vpow.pop %v4133
      %v4135 = vmul.f32 %v3941, 1.442695
      %v4136 = vpow.pop %v4135
      %v4137 = vmul.f32 %v3942, 1.442695
      %v4138 = vpow.pop %v4137
      %v4139 = vmul.f32 %v3943, 1.442695
      %v4140 = vpow.pop %v4139
      %v4141 = vmul.f32 %v3944, 1.442695
      %v4142 = vpow.pop %v4141
      %v4143 = vmul.f32 %v3945, 1.442695
      %v4144 = vpow.pop %v4143
      %v4145 = vmul.f32 %v3946, 1.442695
      %v4146 = vpow.pop %v4145
      %v4147 = vmul.f32 %v3947, 1.442695
      %v4148 = vpow.pop %v4147
      %v4149 = vmul.f32 %v3948, 1.442695
      %v4150 = vpow.pop %v4149
      %v4151 = vmul.f32 %v3949, 1.442695
      %v4152 = vpow.pop %v4151
      %v4153 = vmul.f32 %v3950, 1.442695
      %v4154 = vpow.pop %v4153
      %v4155 = vmul.f32 %v3951, 1.442695
      %v4156 = vpow.pop %v4155
      %v4157 = vmul.f32 %v3952, 1.442695
      %v4158 = vpow.pop %v4157
      %v4159 = vmul.f32 %v3953, 1.442695
      %v4160 = vpow.pop %v4159
      %v4161 = vmul.f32 %v3954, 1.442695
      %v4162 = vpow.pop %v4161
      %v4163 = vmul.f32 %v3955, 1.442695
      %v4164 = vpow.pop %v4163
      %v4165 = vmul.f32 %v3956, 1.442695
      %v4166 = vpow.pop %v4165
      %v4167 = vmul.f32 %v3957, 1.442695
      %v4168 = vpow.pop %v4167
      %v4169 = vmul.f32 %v3958, 1.442695
      %v4170 = vpow.pop %v4169
      %v4171 = vmul.f32 %v3959, 1.442695
      %v4172 = vpow.pop %v4171
      %v4173 = vmul.f32 %v3960, 1.442695
      %v4174 = vpow.pop %v4173
      %v4175 = vmul.f32 %v3961, 1.442695
      %v4176 = vpow.pop %v4175
      %v4177 = vmul.f32 %v3962, 1.442695
      %v4178 = vpow.pop %v4177
      %v4179 = vmul.f32 %v3963, 1.442695
      %v4180 = vpow.pop %v4179
      %v4181 = vmul.f32 %v3964, 1.442695
      %v4182 = vpow.pop %v4181
      %v4183 = vmul.f32 %v3965, 1.442695
      %v4184 = vpow.pop %v4183
      %v4185 = vmul.f32 %v3966, 1.442695
      %v4186 = vpow.pop %v4185
      %v4187 = vmul.f32 %v3967, 1.442695
      %v4188 = vpow.pop %v4187
      %v4189 = vmul.f32 %v3968, 1.442695
      %v4190 = vpow.pop %v4189
      %v4191 = vmul.f32 %v3969, 1.442695
      %v4192 = vpow.pop %v4191
      %v4193 = vmul.f32 %v3970, 1.442695
      %v4194 = vpow.pop %v4193
      %v4195 = vmul.f32 %v3971, 1.442695
      %v4196 = vpow.pop %v4195
      %v4197 = vmul.f32 %v3972, 1.442695
      %v4198 = vpow.pop %v4197
      %v4199 = vmul.f32 %v3973, 1.442695
      %v4200 = vpow.pop %v4199
      %v4201 = vmul.f32 %v3974, 1.442695
      %v4202 = vpow.pop %v4201
      %v4203 = vmul.f32 %v3975, 1.442695
      %v4204 = vpow.pop %v4203
      %v4205 = vmul.f32 %v3976, 1.442695
      %v4206 = vpow.pop %v4205
      %v4207 = vmul.f32 %v3977, 1.442695
      %v4208 = vpow.pop %v4207
      %v4209 = vmul.f32 %v3978, 1.442695
      %v4210 = vpow.pop %v4209
      %v4211 = vmul.f32 %v3979, 1.442695
      %v4212 = vpow.pop %v4211
      %v4213 = vmul.f32 %v3980, 1.442695
      %v4214 = vpow.pop %v4213
      %v4215 = vmul.f32 %v3981, 1.442695
      %v4216 = vpow.pop %v4215
      %v4217 = vmul.f32 %v3982, 1.442695
      %v4218 = vpow.pop %v4217
      %v4219 = vmul.f32 %v3983, 1.442695
      %v4220 = vpow.pop %v4219
      %v4221 = vmul.f32 %v3984, 1.442695
      %v4222 = vpow.pop %v4221
      %v4223 = vmul.f32 %v3985, 1.442695
      %v4224 = vpow.pop %v4223
      %v4225 = vmul.f32 %v3986, 1.442695
      %v4226 = vpow.pop %v4225
      %v4227 = vmul.f32 %v3987, 1.442695
      %v4228 = vpow.pop %v4227
      %v4229 = vmul.f32 %v3988, 1.442695
      %v4230 = vpow.pop %v4229
      %v4231 = vmul.f32 %v3989, 1.442695
      %v4232 = vpow.pop %v4231
      %v4233 = vmul.f32 %v3990, 1.442695
      %v4234 = vpow.pop %v4233
      %v4235 = vmul.f32 %v3991, 1.442695
      %v4236 = vpow.pop %v4235
      %v4237 = vmul.f32 %v3992, 1.442695
      %v4238 = vpow.pop %v4237
      %v4239 = vmul.f32 %v3993, 1.442695
      %v4240 = vpow.pop %v4239
      %v4241 = vmul.f32 %v3994, 1.442695
      %v4242 = vpow.pop %v4241
      %v4243 = vmul.f32 %v3995, 1.442695
      %v4244 = vpow.pop %v4243
      %v4245 = vmul.f32 %v3996, 1.442695
      %v4246 = vpow.pop %v4245
      %v4247 = vmul.f32 %v3997, 1.442695
      %v4248 = vpow.pop %v4247
      %v4249 = vmul.f32 %v3998, 1.442695
      %v4250 = vpow.pop %v4249
      %v4251 = vmul.f32 %v3999, 1.442695
      %v4252 = vpow.pop %v4251
      %v4253 = vmul.f32 %v4000, 1.442695
      %v4254 = vpow.pop %v4253
      %v4255 = vmul.f32 %v4001, 1.442695
      %v4256 = vpow.pop %v4255
      %v4257 = vmul.f32 %v4002, 1.442695
      %v4258 = vpow.pop %v4257
      %v4387 = vrot.slane %v4008, 7
      %vm4388 = vcmask 1041409
      %v4389 = vsel %vm4388, %v4387, %v4004
      %v4390 = vrot.slane %v4012, 6
      %vm4391 = vcmask 1042434
      %v4392 = vsel %vm4391, %v4390, %v4389
      %v4393 = vrot.slane %v4016, 5
      %vm4394 = vcmask 1043459
      %v4395 = vsel %vm4394, %v4393, %v4392
      %v4396 = vrot.slane %v4020, 4
      %vm4397 = vcmask 1044484
      %v4398 = vsel %vm4397, %v4396, %v4395
      %v4399 = vrot.slane %v4024, 3
      %vm4400 = vcmask 1045509
      %v4401 = vsel %vm4400, %v4399, %v4398
      %v4402 = vrot.slane %v4028, 2
      %vm4403 = vcmask 1046534
      %v4404 = vsel %vm4403, %v4402, %v4401
      %v4405 = vrot.slane %v4032, 1
      %vm4406 = vcmask 1047559
      %v4407 = vsel %vm4406, %v4405, %v4404
      %v4408 = vrot.slane %v4010, 7
      %v4409 = vsel %vm4388, %v4408, %v4006
      %v4410 = vrot.slane %v4014, 6
      %v4411 = vsel %vm4391, %v4410, %v4409
      %v4412 = vrot.slane %v4018, 5
      %v4413 = vsel %vm4394, %v4412, %v4411
      %v4414 = vrot.slane %v4022, 4
      %v4415 = vsel %vm4397, %v4414, %v4413
      %v4416 = vrot.slane %v4026, 3
      %v4417 = vsel %vm4400, %v4416, %v4415
      %v4418 = vrot.slane %v4030, 2
      %v4419 = vsel %vm4403, %v4418, %v4417
      %v4420 = vrot.slane %v4034, 1
      %v4421 = vsel %vm4406, %v4420, %v4419
      %v4422 = vrot.slane %v4040, 7
      %v4423 = vsel %vm4388, %v4422, %v4036
      %v4424 = vrot.slane %v4044, 6
      %v4425 = vsel %vm4391, %v4424, %v4423
      %v4426 = vrot.slane %v4048, 5
      %v4427 = vsel %vm4394, %v4426, %v4425
      %v4428 = vrot.slane %v4052, 4
      %v4429 = vsel %vm4397, %v4428, %v4427
      %v4430 = vrot.slane %v4056, 3
      %v4431 = vsel %vm4400, %v4430, %v4429
      %v4432 = vrot.slane %v4060, 2
      %v4433 = vsel %vm4403, %v4432, %v4431
      %v4434 = vrot.slane %v4064, 1
      %v4435 = vsel %vm4406, %v4434, %v4433
      %v4436 = vrot.slane %v4042, 7
      %v4437 = vsel %vm4388, %v4436, %v4038
      %v4438 = vrot.slane %v4046, 6
      %v4439 = vsel %vm4391, %v4438, %v4437
      %v4440 = vrot.slane %v4050, 5
      %v4441 = vsel %vm4394, %v4440, %v4439
      %v4442 = vrot.slane %v4054, 4
      %v4443 = vsel %vm4397, %v4442, %v4441
      %v4444 = vrot.slane %v4058, 3
      %v4445 = vsel %vm4400, %v4444, %v4443
      %v4446 = vrot.slane %v4062, 2
      %v4447 = vsel %vm4403, %v4446, %v4445
      %v4448 = vrot.slane %v4066, 1
      %v4449 = vsel %vm4406, %v4448, %v4447
      %v4450 = vrot.slane %v4072, 7
      %v4451 = vsel %vm4388, %v4450, %v4068
      %v4452 = vrot.slane %v4076, 6
      %v4453 = vsel %vm4391, %v4452, %v4451
      %v4454 = vrot.slane %v4080, 5
      %v4455 = vsel %vm4394, %v4454, %v4453
      %v4456 = vrot.slane %v4084, 4
      %v4457 = vsel %vm4397, %v4456, %v4455
      %v4458 = vrot.slane %v4088, 3
      %v4459 = vsel %vm4400, %v4458, %v4457
      %v4460 = vrot.slane %v4092, 2
      %v4461 = vsel %vm4403, %v4460, %v4459
      %v4462 = vrot.slane %v4096, 1
      %v4463 = vsel %vm4406, %v4462, %v4461
      %v4464 = vrot.slane %v4074, 7
      %v4465 = vsel %vm4388, %v4464, %v4070
      %v4466 = vrot.slane %v4078, 6
      %v4467 = vsel %vm4391, %v4466, %v4465
      %v4468 = vrot.slane %v4082, 5
      %v4469 = vsel %vm4394, %v4468, %v4467
      %v4470 = vrot.slane %v4086, 4
      %v4471 = vsel %vm4397, %v4470, %v4469
      %v4472 = vrot.slane %v4090, 3
      %v4473 = vsel %vm4400, %v4472, %v4471
      %v4474 = vrot.slane %v4094, 2
      %v4475 = vsel %vm4403, %v4474, %v4473
      %v4476 = vrot.slane %v4098, 1
      %v4477 = vsel %vm4406, %v4476, %v4475
      %v4478 = vrot.slane %v4104, 7
      %v4479 = vsel %vm4388, %v4478, %v4100
      %v4480 = vrot.slane %v4108, 6
      %v4481 = vsel %vm4391, %v4480, %v4479
      %v4482 = vrot.slane %v4112, 5
      %v4483 = vsel %vm4394, %v4482, %v4481
      %v4484 = vrot.slane %v4116, 4
      %v4485 = vsel %vm4397, %v4484, %v4483
      %v4486 = vrot.slane %v4120, 3
      %v4487 = vsel %vm4400, %v4486, %v4485
      %v4488 = vrot.slane %v4124, 2
      %v4489 = vsel %vm4403, %v4488, %v4487
      %v4490 = vrot.slane %v4128, 1
      %v4491 = vsel %vm4406, %v4490, %v4489
      %v4492 = vrot.slane %v4106, 7
      %v4493 = vsel %vm4388, %v4492, %v4102
      %v4494 = vrot.slane %v4110, 6
      %v4495 = vsel %vm4391, %v4494, %v4493
      %v4496 = vrot.slane %v4114, 5
      %v4497 = vsel %vm4394, %v4496, %v4495
      %v4498 = vrot.slane %v4118, 4
      %v4499 = vsel %vm4397, %v4498, %v4497
      %v4500 = vrot.slane %v4122, 3
      %v4501 = vsel %vm4400, %v4500, %v4499
      %v4502 = vrot.slane %v4126, 2
      %v4503 = vsel %vm4403, %v4502, %v4501
      %v4504 = vrot.slane %v4130, 1
      %v4505 = vsel %vm4406, %v4504, %v4503
      %v4506 = vrot.slane %v4136, 7
      %v4507 = vsel %vm4388, %v4506, %v4132
      %v4508 = vrot.slane %v4140, 6
      %v4509 = vsel %vm4391, %v4508, %v4507
      %v4510 = vrot.slane %v4144, 5
      %v4511 = vsel %vm4394, %v4510, %v4509
      %v4512 = vrot.slane %v4148, 4
      %v4513 = vsel %vm4397, %v4512, %v4511
      %v4514 = vrot.slane %v4152, 3
      %v4515 = vsel %vm4400, %v4514, %v4513
      %v4516 = vrot.slane %v4156, 2
      %v4517 = vsel %vm4403, %v4516, %v4515
      %v4518 = vrot.slane %v4160, 1
      %v4519 = vsel %vm4406, %v4518, %v4517
      %v4520 = vrot.slane %v4138, 7
      %v4521 = vsel %vm4388, %v4520, %v4134
      %v4522 = vrot.slane %v4142, 6
      %v4523 = vsel %vm4391, %v4522, %v4521
      %v4524 = vrot.slane %v4146, 5
      %v4525 = vsel %vm4394, %v4524, %v4523
      %v4526 = vrot.slane %v4150, 4
      %v4527 = vsel %vm4397, %v4526, %v4525
      %v4528 = vrot.slane %v4154, 3
      %v4529 = vsel %vm4400, %v4528, %v4527
      %v4530 = vrot.slane %v4158, 2
      %v4531 = vsel %vm4403, %v4530, %v4529
      %v4532 = vrot.slane %v4162, 1
      %v4533 = vsel %vm4406, %v4532, %v4531
      %v4534 = vrot.slane %v4168, 7
      %v4535 = vsel %vm4388, %v4534, %v4164
      %v4536 = vrot.slane %v4172, 6
      %v4537 = vsel %vm4391, %v4536, %v4535
      %v4538 = vrot.slane %v4176, 5
      %v4539 = vsel %vm4394, %v4538, %v4537
      %v4540 = vrot.slane %v4180, 4
      %v4541 = vsel %vm4397, %v4540, %v4539
      %v4542 = vrot.slane %v4184, 3
      %v4543 = vsel %vm4400, %v4542, %v4541
      %v4544 = vrot.slane %v4188, 2
      %v4545 = vsel %vm4403, %v4544, %v4543
      %v4546 = vrot.slane %v4192, 1
      %v4547 = vsel %vm4406, %v4546, %v4545
      %v4548 = vrot.slane %v4170, 7
      %v4549 = vsel %vm4388, %v4548, %v4166
      %v4550 = vrot.slane %v4174, 6
      %v4551 = vsel %vm4391, %v4550, %v4549
      %v4552 = vrot.slane %v4178, 5
      %v4553 = vsel %vm4394, %v4552, %v4551
      %v4554 = vrot.slane %v4182, 4
      %v4555 = vsel %vm4397, %v4554, %v4553
      %v4556 = vrot.slane %v4186, 3
      %v4557 = vsel %vm4400, %v4556, %v4555
      %v4558 = vrot.slane %v4190, 2
      %v4559 = vsel %vm4403, %v4558, %v4557
      %v4560 = vrot.slane %v4194, 1
      %v4561 = vsel %vm4406, %v4560, %v4559
      %v4562 = vrot.slane %v4200, 7
      %v4563 = vsel %vm4388, %v4562, %v4196
      %v4564 = vrot.slane %v4204, 6
      %v4565 = vsel %vm4391, %v4564, %v4563
      %v4566 = vrot.slane %v4208, 5
      %v4567 = vsel %vm4394, %v4566, %v4565
      %v4568 = vrot.slane %v4212, 4
      %v4569 = vsel %vm4397, %v4568, %v4567
      %v4570 = vrot.slane %v4216, 3
      %v4571 = vsel %vm4400, %v4570, %v4569
      %v4572 = vrot.slane %v4220, 2
      %v4573 = vsel %vm4403, %v4572, %v4571
      %v4574 = vrot.slane %v4224, 1
      %v4575 = vsel %vm4406, %v4574, %v4573
      %v4576 = vrot.slane %v4202, 7
      %v4577 = vsel %vm4388, %v4576, %v4198
      %v4578 = vrot.slane %v4206, 6
      %v4579 = vsel %vm4391, %v4578, %v4577
      %v4580 = vrot.slane %v4210, 5
      %v4581 = vsel %vm4394, %v4580, %v4579
      %v4582 = vrot.slane %v4214, 4
      %v4583 = vsel %vm4397, %v4582, %v4581
      %v4584 = vrot.slane %v4218, 3
      %v4585 = vsel %vm4400, %v4584, %v4583
      %v4586 = vrot.slane %v4222, 2
      %v4587 = vsel %vm4403, %v4586, %v4585
      %v4588 = vrot.slane %v4226, 1
      %v4589 = vsel %vm4406, %v4588, %v4587
      %v4590 = vrot.slane %v4232, 7
      %v4591 = vsel %vm4388, %v4590, %v4228
      %v4592 = vrot.slane %v4236, 6
      %v4593 = vsel %vm4391, %v4592, %v4591
      %v4594 = vrot.slane %v4240, 5
      %v4595 = vsel %vm4394, %v4594, %v4593
      %v4596 = vrot.slane %v4244, 4
      %v4597 = vsel %vm4397, %v4596, %v4595
      %v4598 = vrot.slane %v4248, 3
      %v4599 = vsel %vm4400, %v4598, %v4597
      %v4600 = vrot.slane %v4252, 2
      %v4601 = vsel %vm4403, %v4600, %v4599
      %v4602 = vrot.slane %v4256, 1
      %v4603 = vsel %vm4406, %v4602, %v4601
      %v4604 = vrot.slane %v4234, 7
      %v4605 = vsel %vm4388, %v4604, %v4230
      %v4606 = vrot.slane %v4238, 6
      %v4607 = vsel %vm4391, %v4606, %v4605
      %v4608 = vrot.slane %v4242, 5
      %v4609 = vsel %vm4394, %v4608, %v4607
      %v4610 = vrot.slane %v4246, 4
      %v4611 = vsel %vm4397, %v4610, %v4609
      %v4612 = vrot.slane %v4250, 3
      %v4613 = vsel %vm4400, %v4612, %v4611
      %v4614 = vrot.slane %v4254, 2
      %v4615 = vsel %vm4403, %v4614, %v4613
      %v4616 = vrot.slane %v4258, 1
      %v4617 = vsel %vm4406, %v4616, %v4615
      %v4634 = vrot.slane %v4407, 4
      %v4635 = vadd.f32 %v4407, %v4634
      %v4636 = vrot.slane %v4635, 2
      %v4637 = vadd.f32 %v4635, %v4636
      %v4638 = vrot.slane %v4637, 1
      %v4639 = vadd.f32 %v4637, %v4638
      %v4640 = vrot.slane %v4421, 4
      %v4641 = vadd.f32 %v4421, %v4640
      %v4642 = vrot.slane %v4641, 2
      %v4643 = vadd.f32 %v4641, %v4642
      %v4644 = vrot.slane %v4643, 1
      %v4645 = vadd.f32 %v4643, %v4644
      %v4646 = vrot.slane %v4435, 4
      %v4647 = vadd.f32 %v4435, %v4646
      %v4648 = vrot.slane %v4647, 2
      %v4649 = vadd.f32 %v4647, %v4648
      %v4650 = vrot.slane %v4649, 1
      %v4651 = vadd.f32 %v4649, %v4650
      %v4652 = vrot.slane %v4449, 4
      %v4653 = vadd.f32 %v4449, %v4652
      %v4654 = vrot.slane %v4653, 2
      %v4655 = vadd.f32 %v4653, %v4654
      %v4656 = vrot.slane %v4655, 1
      %v4657 = vadd.f32 %v4655, %v4656
      %v4658 = vrot.slane %v4463, 4
      %v4659 = vadd.f32 %v4463, %v4658
      %v4660 = vrot.slane %v4659, 2
      %v4661 = vadd.f32 %v4659, %v4660
      %v4662 = vrot.slane %v4661, 1
      %v4663 = vadd.f32 %v4661, %v4662
      %v4664 = vrot.slane %v4477, 4
      %v4665 = vadd.f32 %v4477, %v4664
      %v4666 = vrot.slane %v4665, 2
      %v4667 = vadd.f32 %v4665, %v4666
      %v4668 = vrot.slane %v4667, 1
      %v4669 = vadd.f32 %v4667, %v4668
      %v4670 = vrot.slane %v4491, 4
      %v4671 = vadd.f32 %v4491, %v4670
      %v4672 = vrot.slane %v4671, 2
      %v4673 = vadd.f32 %v4671, %v4672
      %v4674 = vrot.slane %v4673, 1
      %v4675 = vadd.f32 %v4673, %v4674
      %v4676 = vrot.slane %v4505, 4
      %v4677 = vadd.f32 %v4505, %v4676
      %v4678 = vrot.slane %v4677, 2
      %v4679 = vadd.f32 %v4677, %v4678
      %v4680 = vrot.slane %v4679, 1
      %v4681 = vadd.f32 %v4679, %v4680
      %v4682 = vrot.slane %v4519, 4
      %v4683 = vadd.f32 %v4519, %v4682
      %v4684 = vrot.slane %v4683, 2
      %v4685 = vadd.f32 %v4683, %v4684
      %v4686 = vrot.slane %v4685, 1
      %v4687 = vadd.f32 %v4685, %v4686
      %v4688 = vrot.slane %v4533, 4
      %v4689 = vadd.f32 %v4533, %v4688
      %v4690 = vrot.slane %v4689, 2
      %v4691 = vadd.f32 %v4689, %v4690
      %v4692 = vrot.slane %v4691, 1
      %v4693 = vadd.f32 %v4691, %v4692
      %v4694 = vrot.slane %v4547, 4
      %v4695 = vadd.f32 %v4547, %v4694
      %v4696 = vrot.slane %v4695, 2
      %v4697 = vadd.f32 %v4695, %v4696
      %v4698 = vrot.slane %v4697, 1
      %v4699 = vadd.f32 %v4697, %v4698
      %v4700 = vrot.slane %v4561, 4
      %v4701 = vadd.f32 %v4561, %v4700
      %v4702 = vrot.slane %v4701, 2
      %v4703 = vadd.f32 %v4701, %v4702
      %v4704 = vrot.slane %v4703, 1
      %v4705 = vadd.f32 %v4703, %v4704
      %v4706 = vrot.slane %v4575, 4
      %v4707 = vadd.f32 %v4575, %v4706
      %v4708 = vrot.slane %v4707, 2
      %v4709 = vadd.f32 %v4707, %v4708
      %v4710 = vrot.slane %v4709, 1
      %v4711 = vadd.f32 %v4709, %v4710
      %v4712 = vrot.slane %v4589, 4
      %v4713 = vadd.f32 %v4589, %v4712
      %v4714 = vrot.slane %v4713, 2
      %v4715 = vadd.f32 %v4713, %v4714
      %v4716 = vrot.slane %v4715, 1
      %v4717 = vadd.f32 %v4715, %v4716
      %v4718 = vrot.slane %v4603, 4
      %v4719 = vadd.f32 %v4603, %v4718
      %v4720 = vrot.slane %v4719, 2
      %v4721 = vadd.f32 %v4719, %v4720
      %v4722 = vrot.slane %v4721, 1
      %v4723 = vadd.f32 %v4721, %v4722
      %v4724 = vrot.slane %v4617, 4
      %v4725 = vadd.f32 %v4617, %v4724
      %v4726 = vrot.slane %v4725, 2
      %v4727 = vadd.f32 %v4725, %v4726
      %v4728 = vrot.slane %v4727, 1
      %v4729 = vadd.f32 %v4727, %v4728
      %v4730 = vrcp.pop %v4639
      %v4731 = vrcp.pop %v4645
      %v4732 = vrcp.pop %v4651
      %v4733 = vrcp.pop %v4657
      %v4734 = vrcp.pop %v4663
      %v4735 = vrcp.pop %v4669
      %v4736 = vrcp.pop %v4675
      %v4737 = vrcp.pop %v4681
      %v4738 = vrcp.pop %v4687
      %v4739 = vrcp.pop %v4693
      %v4740 = vrcp.pop %v4699
      %v4741 = vrcp.pop %v4705
      %v4742 = vrcp.pop %v4711
      %v4743 = vrcp.pop %v4717
      %v4744 = vrcp.pop %v4723
      %v4745 = vrcp.pop %v4729
      %v4746 = vlaneseq
      %v4747 = vshrl.u32 %v4746, 7
      %v4748 = vsub.s32 0, %v4747
      %v4749 = vrot.slane %v4730, %v4748
      %v4750 = vlaneseq
      %v4751 = vshrl.u32 %v4750, 7
      %v4752 = vsub.s32 0, %v4751
      %v4753 = vrot.slane %v4731, %v4752
      %v4754 = vlaneseq
      %v4755 = vshrl.u32 %v4754, 7
      %v4756 = vsub.s32 0, %v4755
      %v4757 = vrot.slane %v4732, %v4756
      %v4758 = vlaneseq
      %v4759 = vshrl.u32 %v4758, 7
      %v4760 = vsub.s32 0, %v4759
      %v4761 = vrot.slane %v4733, %v4760
      %v4762 = vlaneseq
      %v4763 = vshrl.u32 %v4762, 7
      %v4764 = vsub.s32 0, %v4763
      %v4765 = vrot.slane %v4734, %v4764
      %v4766 = vlaneseq
      %v4767 = vshrl.u32 %v4766, 7
      %v4768 = vsub.s32 0, %v4767
      %v4769 = vrot.slane %v4735, %v4768
      %v4770 = vlaneseq
      %v4771 = vshrl.u32 %v4770, 7
      %v4772 = vsub.s32 0, %v4771
      %v4773 = vrot.slane %v4736, %v4772
      %v4774 = vlaneseq
      %v4775 = vshrl.u32 %v4774, 7
      %v4776 = vsub.s32 0, %v4775
      %v4777 = vrot.slane %v4737, %v4776
      %v4778 = vlaneseq
      %v4779 = vshrl.u32 %v4778, 7
      %v4780 = vsub.s32 0, %v4779
      %v4781 = vrot.slane %v4738, %v4780
      %v4782 = vlaneseq
      %v4783 = vshrl.u32 %v4782, 7
      %v4784 = vsub.s32 0, %v4783
      %v4785 = vrot.slane %v4739, %v4784
      %v4786 = vlaneseq
      %v4787 = vshrl.u32 %v4786, 7
      %v4788 = vsub.s32 0, %v4787
      %v4789 = vrot.slane %v4740, %v4788
      %v4790 = vlaneseq
      %v4791 = vshrl.u32 %v4790, 7
      %v4792 = vsub.s32 0, %v4791
      %v4793 = vrot.slane %v4741, %v4792
      %v4794 = vlaneseq
      %v4795 = vshrl.u32 %v4794, 7
      %v4796 = vsub.s32 0, %v4795
      %v4797 = vrot.slane %v4742, %v4796
      %v4798 = vlaneseq
      %v4799 = vshrl.u32 %v4798, 7
      %v4800 = vsub.s32 0, %v4799
      %v4801 = vrot.slane %v4743, %v4800
      %v4802 = vlaneseq
      %v4803 = vshrl.u32 %v4802, 7
      %v4804 = vsub.s32 0, %v4803
      %v4805 = vrot.slane %v4744, %v4804
      %v4806 = vlaneseq
      %v4807 = vshrl.u32 %v4806, 7
      %v4808 = vsub.s32 0, %v4807
      %v4809 = vrot.slane %v4745, %v4808
      %v4810 = vmul.f32 %v4004, %v4749
      %v4811 = vmul.f32 %v4006, %v4753
      %v4812 = vmul.f32 %v4008, %v4749
      %v4813 = vmul.f32 %v4010, %v4753
      %v4814 = vmul.f32 %v4012, %v4749
      %v4815 = vmul.f32 %v4014, %v4753
      %v4816 = vmul.f32 %v4016, %v4749
      %v4817 = vmul.f32 %v4018, %v4753
      %v4818 = vmul.f32 %v4020, %v4749
      %v4819 = vmul.f32 %v4022, %v4753
      %v4820 = vmul.f32 %v4024, %v4749
      %v4821 = vmul.f32 %v4026, %v4753
      %v4822 = vmul.f32 %v4028, %v4749
      %v4823 = vmul.f32 %v4030, %v4753
      %v4824 = vmul.f32 %v4032, %v4749
      %v4825 = vmul.f32 %v4034, %v4753
      %v4826 = vmul.f32 %v4036, %v4757
      %v4827 = vmul.f32 %v4038, %v4761
      %v4828 = vmul.f32 %v4040, %v4757
      %v4829 = vmul.f32 %v4042, %v4761
      %v4830 = vmul.f32 %v4044, %v4757
      %v4831 = vmul.f32 %v4046, %v4761
      %v4832 = vmul.f32 %v4048, %v4757
      %v4833 = vmul.f32 %v4050, %v4761
      %v4834 = vmul.f32 %v4052, %v4757
      %v4835 = vmul.f32 %v4054, %v4761
      %v4836 = vmul.f32 %v4056, %v4757
      %v4837 = vmul.f32 %v4058, %v4761
      %v4838 = vmul.f32 %v4060, %v4757
      %v4839 = vmul.f32 %v4062, %v4761
      %v4840 = vmul.f32 %v4064, %v4757
      %v4841 = vmul.f32 %v4066, %v4761
      %v4842 = vmul.f32 %v4068, %v4765
      %v4843 = vmul.f32 %v4070, %v4769
      %v4844 = vmul.f32 %v4072, %v4765
      %v4845 = vmul.f32 %v4074, %v4769
      %v4846 = vmul.f32 %v4076, %v4765
      %v4847 = vmul.f32 %v4078, %v4769
      %v4848 = vmul.f32 %v4080, %v4765
      %v4849 = vmul.f32 %v4082, %v4769
      %v4850 = vmul.f32 %v4084, %v4765
      %v4851 = vmul.f32 %v4086, %v4769
      %v4852 = vmul.f32 %v4088, %v4765
      %v4853 = vmul.f32 %v4090, %v4769
      %v4854 = vmul.f32 %v4092, %v4765
      %v4855 = vmul.f32 %v4094, %v4769
      %v4856 = vmul.f32 %v4096, %v4765
      %v4857 = vmul.f32 %v4098, %v4769
      %v4858 = vmul.f32 %v4100, %v4773
      %v4859 = vmul.f32 %v4102, %v4777
      %v4860 = vmul.f32 %v4104, %v4773
      %v4861 = vmul.f32 %v4106, %v4777
      %v4862 = vmul.f32 %v4108, %v4773
      %v4863 = vmul.f32 %v4110, %v4777
      %v4864 = vmul.f32 %v4112, %v4773
      %v4865 = vmul.f32 %v4114, %v4777
      %v4866 = vmul.f32 %v4116, %v4773
      %v4867 = vmul.f32 %v4118, %v4777
      %v4868 = vmul.f32 %v4120, %v4773
      %v4869 = vmul.f32 %v4122, %v4777
      %v4870 = vmul.f32 %v4124, %v4773
      %v4871 = vmul.f32 %v4126, %v4777
      %v4872 = vmul.f32 %v4128, %v4773
      %v4873 = vmul.f32 %v4130, %v4777
      %v4874 = vmul.f32 %v4132, %v4781
      %v4875 = vmul.f32 %v4134, %v4785
      %v4876 = vmul.f32 %v4136, %v4781
      %v4877 = vmul.f32 %v4138, %v4785
      %v4878 = vmul.f32 %v4140, %v4781
      %v4879 = vmul.f32 %v4142, %v4785
      %v4880 = vmul.f32 %v4144, %v4781
      %v4881 = vmul.f32 %v4146, %v4785
      %v4882 = vmul.f32 %v4148, %v4781
      %v4883 = vmul.f32 %v4150, %v4785
      %v4884 = vmul.f32 %v4152, %v4781
      %v4885 = vmul.f32 %v4154, %v4785
      %v4886 = vmul.f32 %v4156, %v4781
      %v4887 = vmul.f32 %v4158, %v4785
      %v4888 = vmul.f32 %v4160, %v4781
      %v4889 = vmul.f32 %v4162, %v4785
      %v4890 = vmul.f32 %v4164, %v4789
      %v4891 = vmul.f32 %v4166, %v4793
      %v4892 = vmul.f32 %v4168, %v4789
      %v4893 = vmul.f32 %v4170, %v4793
      %v4894 = vmul.f32 %v4172, %v4789
      %v4895 = vmul.f32 %v4174, %v4793
      %v4896 = vmul.f32 %v4176, %v4789
      %v4897 = vmul.f32 %v4178, %v4793
      %v4898 = vmul.f32 %v4180, %v4789
      %v4899 = vmul.f32 %v4182, %v4793
      %v4900 = vmul.f32 %v4184, %v4789
      %v4901 = vmul.f32 %v4186, %v4793
      %v4902 = vmul.f32 %v4188, %v4789
      %v4903 = vmul.f32 %v4190, %v4793
      %v4904 = vmul.f32 %v4192, %v4789
      %v4905 = vmul.f32 %v4194, %v4793
      %v4906 = vmul.f32 %v4196, %v4797
      %v4907 = vmul.f32 %v4198, %v4801
      %v4908 = vmul.f32 %v4200, %v4797
      %v4909 = vmul.f32 %v4202, %v4801
      %v4910 = vmul.f32 %v4204, %v4797
      %v4911 = vmul.f32 %v4206, %v4801
      %v4912 = vmul.f32 %v4208, %v4797
      %v4913 = vmul.f32 %v4210, %v4801
      %v4914 = vmul.f32 %v4212, %v4797
      %v4915 = vmul.f32 %v4214, %v4801
      %v4916 = vmul.f32 %v4216, %v4797
      %v4917 = vmul.f32 %v4218, %v4801
      %v4918 = vmul.f32 %v4220, %v4797
      %v4919 = vmul.f32 %v4222, %v4801
      %v4920 = vmul.f32 %v4224, %v4797
      %v4921 = vmul.f32 %v4226, %v4801
      %v4922 = vmul.f32 %v4228, %v4805
      %v4923 = vmul.f32 %v4230, %v4809
      %v4924 = vmul.f32 %v4232, %v4805
      %v4925 = vmul.f32 %v4234, %v4809
      %v4926 = vmul.f32 %v4236, %v4805
      %v4927 = vmul.f32 %v4238, %v4809
      %v4928 = vmul.f32 %v4240, %v4805
      %v4929 = vmul.f32 %v4242, %v4809
      %v4930 = vmul.f32 %v4244, %v4805
      %v4931 = vmul.f32 %v4246, %v4809
      %v4932 = vmul.f32 %v4248, %v4805
      %v4933 = vmul.f32 %v4250, %v4809
      %v4934 = vmul.f32 %v4252, %v4805
      %v4935 = vmul.f32 %v4254, %v4809
      %v4936 = vmul.f32 %v4256, %v4805
      %v4937 = vmul.f32 %v4258, %v4809
      %v4938 = vlaneseq
      %v4939 = vshrl.u32 %v4938, 7
      %v4940 = vsub.s32 0, %v4939
      %v4941 = vrot.slane %v4810, %v4940
      %v4942 = vlaneseq
      %v4943 = vshrl.u32 %v4942, 7
      %v4944 = vsub.s32 0, %v4943
      %v4945 = vrot.slane %v4811, %v4944
      %v4946 = vlaneseq
      %v4947 = vshrl.u32 %v4946, 7
      %v4948 = vsub.s32 0, %v4947
      %v4949 = vrot.slane %v4812, %v4948
      %v4950 = vlaneseq
      %v4951 = vshrl.u32 %v4950, 7
      %v4952 = vsub.s32 0, %v4951
      %v4953 = vrot.slane %v4813, %v4952
      %v4954 = vlaneseq
      %v4955 = vshrl.u32 %v4954, 7
      %v4956 = vsub.s32 0, %v4955
      %v4957 = vrot.slane %v4814, %v4956
      %v4958 = vlaneseq
      %v4959 = vshrl.u32 %v4958, 7
      %v4960 = vsub.s32 0, %v4959
      %v4961 = vrot.slane %v4815, %v4960
      %v4962 = vlaneseq
      %v4963 = vshrl.u32 %v4962, 7
      %v4964 = vsub.s32 0, %v4963
      %v4965 = vrot.slane %v4816, %v4964
      %v4966 = vlaneseq
      %v4967 = vshrl.u32 %v4966, 7
      %v4968 = vsub.s32 0, %v4967
      %v4969 = vrot.slane %v4817, %v4968
      %v4970 = vlaneseq
      %v4971 = vshrl.u32 %v4970, 7
      %v4972 = vsub.s32 0, %v4971
      %v4973 = vrot.slane %v4818, %v4972
      %v4974 = vlaneseq
      %v4975 = vshrl.u32 %v4974, 7
      %v4976 = vsub.s32 0, %v4975
      %v4977 = vrot.slane %v4819, %v4976
      %v4978 = vlaneseq
      %v4979 = vshrl.u32 %v4978, 7
      %v4980 = vsub.s32 0, %v4979
      %v4981 = vrot.slane %v4820, %v4980
      %v4982 = vlaneseq
      %v4983 = vshrl.u32 %v4982, 7
      %v4984 = vsub.s32 0, %v4983
      %v4985 = vrot.slane %v4821, %v4984
      %v4986 = vlaneseq
      %v4987 = vshrl.u32 %v4986, 7
      %v4988 = vsub.s32 0, %v4987
      %v4989 = vrot.slane %v4822, %v4988
      %v4990 = vlaneseq
      %v4991 = vshrl.u32 %v4990, 7
      %v4992 = vsub.s32 0, %v4991
      %v4993 = vrot.slane %v4823, %v4992
      %v4994 = vlaneseq
      %v4995 = vshrl.u32 %v4994, 7
      %v4996 = vsub.s32 0, %v4995
      %v4997 = vrot.slane %v4824, %v4996
      %v4998 = vlaneseq
      %v4999 = vshrl.u32 %v4998, 7
      %v5000 = vsub.s32 0, %v4999
      %v5001 = vrot.slane %v4825, %v5000
      %v5002 = vlaneseq
      %v5003 = vshrl.u32 %v5002, 7
      %v5004 = vsub.s32 0, %v5003
      %v5005 = vrot.slane %v4826, %v5004
      %v5006 = vlaneseq
      %v5007 = vshrl.u32 %v5006, 7
      %v5008 = vsub.s32 0, %v5007
      %v5009 = vrot.slane %v4827, %v5008
      %v5010 = vlaneseq
      %v5011 = vshrl.u32 %v5010, 7
      %v5012 = vsub.s32 0, %v5011
      %v5013 = vrot.slane %v4828, %v5012
      %v5014 = vlaneseq
      %v5015 = vshrl.u32 %v5014, 7
      %v5016 = vsub.s32 0, %v5015
      %v5017 = vrot.slane %v4829, %v5016
      %v5018 = vlaneseq
      %v5019 = vshrl.u32 %v5018, 7
      %v5020 = vsub.s32 0, %v5019
      %v5021 = vrot.slane %v4830, %v5020
      %v5022 = vlaneseq
      %v5023 = vshrl.u32 %v5022, 7
      %v5024 = vsub.s32 0, %v5023
      %v5025 = vrot.slane %v4831, %v5024
      %v5026 = vlaneseq
      %v5027 = vshrl.u32 %v5026, 7
      %v5028 = vsub.s32 0, %v5027
      %v5029 = vrot.slane %v4832, %v5028
      %v5030 = vlaneseq
      %v5031 = vshrl.u32 %v5030, 7
      %v5032 = vsub.s32 0, %v5031
      %v5033 = vrot.slane %v4833, %v5032
      %v5034 = vlaneseq
      %v5035 = vshrl.u32 %v5034, 7
      %v5036 = vsub.s32 0, %v5035
      %v5037 = vrot.slane %v4834, %v5036
      %v5038 = vlaneseq
      %v5039 = vshrl.u32 %v5038, 7
      %v5040 = vsub.s32 0, %v5039
      %v5041 = vrot.slane %v4835, %v5040
      %v5042 = vlaneseq
      %v5043 = vshrl.u32 %v5042, 7
      %v5044 = vsub.s32 0, %v5043
      %v5045 = vrot.slane %v4836, %v5044
      %v5046 = vlaneseq
      %v5047 = vshrl.u32 %v5046, 7
      %v5048 = vsub.s32 0, %v5047
      %v5049 = vrot.slane %v4837, %v5048
      %v5050 = vlaneseq
      %v5051 = vshrl.u32 %v5050, 7
      %v5052 = vsub.s32 0, %v5051
      %v5053 = vrot.slane %v4838, %v5052
      %v5054 = vlaneseq
      %v5055 = vshrl.u32 %v5054, 7
      %v5056 = vsub.s32 0, %v5055
      %v5057 = vrot.slane %v4839, %v5056
      %v5058 = vlaneseq
      %v5059 = vshrl.u32 %v5058, 7
      %v5060 = vsub.s32 0, %v5059
      %v5061 = vrot.slane %v4840, %v5060
      %v5062 = vlaneseq
      %v5063 = vshrl.u32 %v5062, 7
      %v5064 = vsub.s32 0, %v5063
      %v5065 = vrot.slane %v4841, %v5064
      %v5066 = vlaneseq
      %v5067 = vshrl.u32 %v5066, 7
      %v5068 = vsub.s32 0, %v5067
      %v5069 = vrot.slane %v4842, %v5068
      %v5070 = vlaneseq
      %v5071 = vshrl.u32 %v5070, 7
      %v5072 = vsub.s32 0, %v5071
      %v5073 = vrot.slane %v4843, %v5072
      %v5074 = vlaneseq
      %v5075 = vshrl.u32 %v5074, 7
      %v5076 = vsub.s32 0, %v5075
      %v5077 = vrot.slane %v4844, %v5076
      %v5078 = vlaneseq
      %v5079 = vshrl.u32 %v5078, 7
      %v5080 = vsub.s32 0, %v5079
      %v5081 = vrot.slane %v4845, %v5080
      %v5082 = vlaneseq
      %v5083 = vshrl.u32 %v5082, 7
      %v5084 = vsub.s32 0, %v5083
      %v5085 = vrot.slane %v4846, %v5084
      %v5086 = vlaneseq
      %v5087 = vshrl.u32 %v5086, 7
      %v5088 = vsub.s32 0, %v5087
      %v5089 = vrot.slane %v4847, %v5088
      %v5090 = vlaneseq
      %v5091 = vshrl.u32 %v5090, 7
      %v5092 = vsub.s32 0, %v5091
      %v5093 = vrot.slane %v4848, %v5092
      %v5094 = vlaneseq
      %v5095 = vshrl.u32 %v5094, 7
      %v5096 = vsub.s32 0, %v5095
      %v5097 = vrot.slane %v4849, %v5096
      %v5098 = vlaneseq
      %v5099 = vshrl.u32 %v5098, 7
      %v5100 = vsub.s32 0, %v5099
      %v5101 = vrot.slane %v4850, %v5100
      %v5102 = vlaneseq
      %v5103 = vshrl.u32 %v5102, 7
      %v5104 = vsub.s32 0, %v5103
      %v5105 = vrot.slane %v4851, %v5104
      %v5106 = vlaneseq
      %v5107 = vshrl.u32 %v5106, 7
      %v5108 = vsub.s32 0, %v5107
      %v5109 = vrot.slane %v4852, %v5108
      %v5110 = vlaneseq
      %v5111 = vshrl.u32 %v5110, 7
      %v5112 = vsub.s32 0, %v5111
      %v5113 = vrot.slane %v4853, %v5112
      %v5114 = vlaneseq
      %v5115 = vshrl.u32 %v5114, 7
      %v5116 = vsub.s32 0, %v5115
      %v5117 = vrot.slane %v4854, %v5116
      %v5118 = vlaneseq
      %v5119 = vshrl.u32 %v5118, 7
      %v5120 = vsub.s32 0, %v5119
      %v5121 = vrot.slane %v4855, %v5120
      %v5122 = vlaneseq
      %v5123 = vshrl.u32 %v5122, 7
      %v5124 = vsub.s32 0, %v5123
      %v5125 = vrot.slane %v4856, %v5124
      %v5126 = vlaneseq
      %v5127 = vshrl.u32 %v5126, 7
      %v5128 = vsub.s32 0, %v5127
      %v5129 = vrot.slane %v4857, %v5128
      %v5130 = vlaneseq
      %v5131 = vshrl.u32 %v5130, 7
      %v5132 = vsub.s32 0, %v5131
      %v5133 = vrot.slane %v4858, %v5132
      %v5134 = vlaneseq
      %v5135 = vshrl.u32 %v5134, 7
      %v5136 = vsub.s32 0, %v5135
      %v5137 = vrot.slane %v4859, %v5136
      %v5138 = vlaneseq
      %v5139 = vshrl.u32 %v5138, 7
      %v5140 = vsub.s32 0, %v5139
      %v5141 = vrot.slane %v4860, %v5140
      %v5142 = vlaneseq
      %v5143 = vshrl.u32 %v5142, 7
      %v5144 = vsub.s32 0, %v5143
      %v5145 = vrot.slane %v4861, %v5144
      %v5146 = vlaneseq
      %v5147 = vshrl.u32 %v5146, 7
      %v5148 = vsub.s32 0, %v5147
      %v5149 = vrot.slane %v4862, %v5148
      %v5150 = vlaneseq
      %v5151 = vshrl.u32 %v5150, 7
      %v5152 = vsub.s32 0, %v5151
      %v5153 = vrot.slane %v4863, %v5152
      %v5154 = vlaneseq
      %v5155 = vshrl.u32 %v5154, 7
      %v5156 = vsub.s32 0, %v5155
      %v5157 = vrot.slane %v4864, %v5156
      %v5158 = vlaneseq
      %v5159 = vshrl.u32 %v5158, 7
      %v5160 = vsub.s32 0, %v5159
      %v5161 = vrot.slane %v4865, %v5160
      %v5162 = vlaneseq
      %v5163 = vshrl.u32 %v5162, 7
      %v5164 = vsub.s32 0, %v5163
      %v5165 = vrot.slane %v4866, %v5164
      %v5166 = vlaneseq
      %v5167 = vshrl.u32 %v5166, 7
      %v5168 = vsub.s32 0, %v5167
      %v5169 = vrot.slane %v4867, %v5168
      %v5170 = vlaneseq
      %v5171 = vshrl.u32 %v5170, 7
      %v5172 = vsub.s32 0, %v5171
      %v5173 = vrot.slane %v4868, %v5172
      %v5174 = vlaneseq
      %v5175 = vshrl.u32 %v5174, 7
      %v5176 = vsub.s32 0, %v5175
      %v5177 = vrot.slane %v4869, %v5176
      %v5178 = vlaneseq
      %v5179 = vshrl.u32 %v5178, 7
      %v5180 = vsub.s32 0, %v5179
      %v5181 = vrot.slane %v4870, %v5180
      %v5182 = vlaneseq
      %v5183 = vshrl.u32 %v5182, 7
      %v5184 = vsub.s32 0, %v5183
      %v5185 = vrot.slane %v4871, %v5184
      %v5186 = vlaneseq
      %v5187 = vshrl.u32 %v5186, 7
      %v5188 = vsub.s32 0, %v5187
      %v5189 = vrot.slane %v4872, %v5188
      %v5190 = vlaneseq
      %v5191 = vshrl.u32 %v5190, 7
      %v5192 = vsub.s32 0, %v5191
      %v5193 = vrot.slane %v4873, %v5192
      %v5194 = vlaneseq
      %v5195 = vshrl.u32 %v5194, 7
      %v5196 = vsub.s32 0, %v5195
      %v5197 = vrot.slane %v4874, %v5196
      %v5198 = vlaneseq
      %v5199 = vshrl.u32 %v5198, 7
      %v5200 = vsub.s32 0, %v5199
      %v5201 = vrot.slane %v4875, %v5200
      %v5202 = vlaneseq
      %v5203 = vshrl.u32 %v5202, 7
      %v5204 = vsub.s32 0, %v5203
      %v5205 = vrot.slane %v4876, %v5204
      %v5206 = vlaneseq
      %v5207 = vshrl.u32 %v5206, 7
      %v5208 = vsub.s32 0, %v5207
      %v5209 = vrot.slane %v4877, %v5208
      %v5210 = vlaneseq
      %v5211 = vshrl.u32 %v5210, 7
      %v5212 = vsub.s32 0, %v5211
      %v5213 = vrot.slane %v4878, %v5212
      %v5214 = vlaneseq
      %v5215 = vshrl.u32 %v5214, 7
      %v5216 = vsub.s32 0, %v5215
      %v5217 = vrot.slane %v4879, %v5216
      %v5218 = vlaneseq
      %v5219 = vshrl.u32 %v5218, 7
      %v5220 = vsub.s32 0, %v5219
      %v5221 = vrot.slane %v4880, %v5220
      %v5222 = vlaneseq
      %v5223 = vshrl.u32 %v5222, 7
      %v5224 = vsub.s32 0, %v5223
      %v5225 = vrot.slane %v4881, %v5224
      %v5226 = vlaneseq
      %v5227 = vshrl.u32 %v5226, 7
      %v5228 = vsub.s32 0, %v5227
      %v5229 = vrot.slane %v4882, %v5228
      %v5230 = vlaneseq
      %v5231 = vshrl.u32 %v5230, 7
      %v5232 = vsub.s32 0, %v5231
      %v5233 = vrot.slane %v4883, %v5232
      %v5234 = vlaneseq
      %v5235 = vshrl.u32 %v5234, 7
      %v5236 = vsub.s32 0, %v5235
      %v5237 = vrot.slane %v4884, %v5236
      %v5238 = vlaneseq
      %v5239 = vshrl.u32 %v5238, 7
      %v5240 = vsub.s32 0, %v5239
      %v5241 = vrot.slane %v4885, %v5240
      %v5242 = vlaneseq
      %v5243 = vshrl.u32 %v5242, 7
      %v5244 = vsub.s32 0, %v5243
      %v5245 = vrot.slane %v4886, %v5244
      %v5246 = vlaneseq
      %v5247 = vshrl.u32 %v5246, 7
      %v5248 = vsub.s32 0, %v5247
      %v5249 = vrot.slane %v4887, %v5248
      %v5250 = vlaneseq
      %v5251 = vshrl.u32 %v5250, 7
      %v5252 = vsub.s32 0, %v5251
      %v5253 = vrot.slane %v4888, %v5252
      %v5254 = vlaneseq
      %v5255 = vshrl.u32 %v5254, 7
      %v5256 = vsub.s32 0, %v5255
      %v5257 = vrot.slane %v4889, %v5256
      %v5258 = vlaneseq
      %v5259 = vshrl.u32 %v5258, 7
      %v5260 = vsub.s32 0, %v5259
      %v5261 = vrot.slane %v4890, %v5260
      %v5262 = vlaneseq
      %v5263 = vshrl.u32 %v5262, 7
      %v5264 = vsub.s32 0, %v5263
      %v5265 = vrot.slane %v4891, %v5264
      %v5266 = vlaneseq
      %v5267 = vshrl.u32 %v5266, 7
      %v5268 = vsub.s32 0, %v5267
      %v5269 = vrot.slane %v4892, %v5268
      %v5270 = vlaneseq
      %v5271 = vshrl.u32 %v5270, 7
      %v5272 = vsub.s32 0, %v5271
      %v5273 = vrot.slane %v4893, %v5272
      %v5274 = vlaneseq
      %v5275 = vshrl.u32 %v5274, 7
      %v5276 = vsub.s32 0, %v5275
      %v5277 = vrot.slane %v4894, %v5276
      %v5278 = vlaneseq
      %v5279 = vshrl.u32 %v5278, 7
      %v5280 = vsub.s32 0, %v5279
      %v5281 = vrot.slane %v4895, %v5280
      %v5282 = vlaneseq
      %v5283 = vshrl.u32 %v5282, 7
      %v5284 = vsub.s32 0, %v5283
      %v5285 = vrot.slane %v4896, %v5284
      %v5286 = vlaneseq
      %v5287 = vshrl.u32 %v5286, 7
      %v5288 = vsub.s32 0, %v5287
      %v5289 = vrot.slane %v4897, %v5288
      %v5290 = vlaneseq
      %v5291 = vshrl.u32 %v5290, 7
      %v5292 = vsub.s32 0, %v5291
      %v5293 = vrot.slane %v4898, %v5292
      %v5294 = vlaneseq
      %v5295 = vshrl.u32 %v5294, 7
      %v5296 = vsub.s32 0, %v5295
      %v5297 = vrot.slane %v4899, %v5296
      %v5298 = vlaneseq
      %v5299 = vshrl.u32 %v5298, 7
      %v5300 = vsub.s32 0, %v5299
      %v5301 = vrot.slane %v4900, %v5300
      %v5302 = vlaneseq
      %v5303 = vshrl.u32 %v5302, 7
      %v5304 = vsub.s32 0, %v5303
      %v5305 = vrot.slane %v4901, %v5304
      %v5306 = vlaneseq
      %v5307 = vshrl.u32 %v5306, 7
      %v5308 = vsub.s32 0, %v5307
      %v5309 = vrot.slane %v4902, %v5308
      %v5310 = vlaneseq
      %v5311 = vshrl.u32 %v5310, 7
      %v5312 = vsub.s32 0, %v5311
      %v5313 = vrot.slane %v4903, %v5312
      %v5314 = vlaneseq
      %v5315 = vshrl.u32 %v5314, 7
      %v5316 = vsub.s32 0, %v5315
      %v5317 = vrot.slane %v4904, %v5316
      %v5318 = vlaneseq
      %v5319 = vshrl.u32 %v5318, 7
      %v5320 = vsub.s32 0, %v5319
      %v5321 = vrot.slane %v4905, %v5320
      %v5322 = vlaneseq
      %v5323 = vshrl.u32 %v5322, 7
      %v5324 = vsub.s32 0, %v5323
      %v5325 = vrot.slane %v4906, %v5324
      %v5326 = vlaneseq
      %v5327 = vshrl.u32 %v5326, 7
      %v5328 = vsub.s32 0, %v5327
      %v5329 = vrot.slane %v4907, %v5328
      %v5330 = vlaneseq
      %v5331 = vshrl.u32 %v5330, 7
      %v5332 = vsub.s32 0, %v5331
      %v5333 = vrot.slane %v4908, %v5332
      %v5334 = vlaneseq
      %v5335 = vshrl.u32 %v5334, 7
      %v5336 = vsub.s32 0, %v5335
      %v5337 = vrot.slane %v4909, %v5336
      %v5338 = vlaneseq
      %v5339 = vshrl.u32 %v5338, 7
      %v5340 = vsub.s32 0, %v5339
      %v5341 = vrot.slane %v4910, %v5340
      %v5342 = vlaneseq
      %v5343 = vshrl.u32 %v5342, 7
      %v5344 = vsub.s32 0, %v5343
      %v5345 = vrot.slane %v4911, %v5344
      %v5346 = vlaneseq
      %v5347 = vshrl.u32 %v5346, 7
      %v5348 = vsub.s32 0, %v5347
      %v5349 = vrot.slane %v4912, %v5348
      %v5350 = vlaneseq
      %v5351 = vshrl.u32 %v5350, 7
      %v5352 = vsub.s32 0, %v5351
      %v5353 = vrot.slane %v4913, %v5352
      %v5354 = vlaneseq
      %v5355 = vshrl.u32 %v5354, 7
      %v5356 = vsub.s32 0, %v5355
      %v5357 = vrot.slane %v4914, %v5356
      %v5358 = vlaneseq
      %v5359 = vshrl.u32 %v5358, 7
      %v5360 = vsub.s32 0, %v5359
      %v5361 = vrot.slane %v4915, %v5360
      %v5362 = vlaneseq
      %v5363 = vshrl.u32 %v5362, 7
      %v5364 = vsub.s32 0, %v5363
      %v5365 = vrot.slane %v4916, %v5364
      %v5366 = vlaneseq
      %v5367 = vshrl.u32 %v5366, 7
      %v5368 = vsub.s32 0, %v5367
      %v5369 = vrot.slane %v4917, %v5368
      %v5370 = vlaneseq
      %v5371 = vshrl.u32 %v5370, 7
      %v5372 = vsub.s32 0, %v5371
      %v5373 = vrot.slane %v4918, %v5372
      %v5374 = vlaneseq
      %v5375 = vshrl.u32 %v5374, 7
      %v5376 = vsub.s32 0, %v5375
      %v5377 = vrot.slane %v4919, %v5376
      %v5378 = vlaneseq
      %v5379 = vshrl.u32 %v5378, 7
      %v5380 = vsub.s32 0, %v5379
      %v5381 = vrot.slane %v4920, %v5380
      %v5382 = vlaneseq
      %v5383 = vshrl.u32 %v5382, 7
      %v5384 = vsub.s32 0, %v5383
      %v5385 = vrot.slane %v4921, %v5384
      %v5386 = vlaneseq
      %v5387 = vshrl.u32 %v5386, 7
      %v5388 = vsub.s32 0, %v5387
      %v5389 = vrot.slane %v4922, %v5388
      %v5390 = vlaneseq
      %v5391 = vshrl.u32 %v5390, 7
      %v5392 = vsub.s32 0, %v5391
      %v5393 = vrot.slane %v4923, %v5392
      %v5394 = vlaneseq
      %v5395 = vshrl.u32 %v5394, 7
      %v5396 = vsub.s32 0, %v5395
      %v5397 = vrot.slane %v4924, %v5396
      %v5398 = vlaneseq
      %v5399 = vshrl.u32 %v5398, 7
      %v5400 = vsub.s32 0, %v5399
      %v5401 = vrot.slane %v4925, %v5400
      %v5402 = vlaneseq
      %v5403 = vshrl.u32 %v5402, 7
      %v5404 = vsub.s32 0, %v5403
      %v5405 = vrot.slane %v4926, %v5404
      %v5406 = vlaneseq
      %v5407 = vshrl.u32 %v5406, 7
      %v5408 = vsub.s32 0, %v5407
      %v5409 = vrot.slane %v4927, %v5408
      %v5410 = vlaneseq
      %v5411 = vshrl.u32 %v5410, 7
      %v5412 = vsub.s32 0, %v5411
      %v5413 = vrot.slane %v4928, %v5412
      %v5414 = vlaneseq
      %v5415 = vshrl.u32 %v5414, 7
      %v5416 = vsub.s32 0, %v5415
      %v5417 = vrot.slane %v4929, %v5416
      %v5418 = vlaneseq
      %v5419 = vshrl.u32 %v5418, 7
      %v5420 = vsub.s32 0, %v5419
      %v5421 = vrot.slane %v4930, %v5420
      %v5422 = vlaneseq
      %v5423 = vshrl.u32 %v5422, 7
      %v5424 = vsub.s32 0, %v5423
      %v5425 = vrot.slane %v4931, %v5424
      %v5426 = vlaneseq
      %v5427 = vshrl.u32 %v5426, 7
      %v5428 = vsub.s32 0, %v5427
      %v5429 = vrot.slane %v4932, %v5428
      %v5430 = vlaneseq
      %v5431 = vshrl.u32 %v5430, 7
      %v5432 = vsub.s32 0, %v5431
      %v5433 = vrot.slane %v4933, %v5432
      %v5434 = vlaneseq
      %v5435 = vshrl.u32 %v5434, 7
      %v5436 = vsub.s32 0, %v5435
      %v5437 = vrot.slane %v4934, %v5436
      %v5438 = vlaneseq
      %v5439 = vshrl.u32 %v5438, 7
      %v5440 = vsub.s32 0, %v5439
      %v5441 = vrot.slane %v4935, %v5440
      %v5442 = vlaneseq
      %v5443 = vshrl.u32 %v5442, 7
      %v5444 = vsub.s32 0, %v5443
      %v5445 = vrot.slane %v4936, %v5444
      %v5446 = vlaneseq
      %v5447 = vshrl.u32 %v5446, 7
      %v5448 = vsub.s32 0, %v5447
      %v5449 = vrot.slane %v4937, %v5448
      %v5450 = vmul.f32 %v4941, %v1813
      %v5451 = vmul.f32 %v4945, %v1815
      %v5452 = vmul.f32 %v4941, %v1817
      %v5453 = vmul.f32 %v4945, %v1819
      %v5454 = vmul.f32 %v4941, %v1823
      %v5455 = vmul.f32 %v4945, %v1825
      %v5456 = vmul.f32 %v4941, %v1827
      %v5457 = vmul.f32 %v4945, %v1829
      %v5458 = vmul.f32 %v4949, %v1833
      %v5459 = vmul.f32 %v4953, %v1835
      %v5460 = vmul.f32 %v4949, %v1837
      %v5461 = vmul.f32 %v4953, %v1839
      %v5462 = vmul.f32 %v4949, %v1843
      %v5463 = vmul.f32 %v4953, %v1845
      %v5464 = vmul.f32 %v4949, %v1847
      %v5465 = vmul.f32 %v4953, %v1849
      %v5466 = vmul.f32 %v4957, %v1853
      %v5467 = vmul.f32 %v4961, %v1855
      %v5468 = vmul.f32 %v4957, %v1857
      %v5469 = vmul.f32 %v4961, %v1859
      %v5470 = vmul.f32 %v4957, %v1863
      %v5471 = vmul.f32 %v4961, %v1865
      %v5472 = vmul.f32 %v4957, %v1867
      %v5473 = vmul.f32 %v4961, %v1869
      %v5474 = vmul.f32 %v4965, %v1873
      %v5475 = vmul.f32 %v4969, %v1875
      %v5476 = vmul.f32 %v4965, %v1877
      %v5477 = vmul.f32 %v4969, %v1879
      %v5478 = vmul.f32 %v4965, %v1883
      %v5479 = vmul.f32 %v4969, %v1885
      %v5480 = vmul.f32 %v4965, %v1887
      %v5481 = vmul.f32 %v4969, %v1889
      %v5482 = vmul.f32 %v4973, %v1893
      %v5483 = vmul.f32 %v4977, %v1895
      %v5484 = vmul.f32 %v4973, %v1897
      %v5485 = vmul.f32 %v4977, %v1899
      %v5486 = vmul.f32 %v4973, %v1903
      %v5487 = vmul.f32 %v4977, %v1905
      %v5488 = vmul.f32 %v4973, %v1907
      %v5489 = vmul.f32 %v4977, %v1909
      %v5490 = vmul.f32 %v4981, %v1913
      %v5491 = vmul.f32 %v4985, %v1915
      %v5492 = vmul.f32 %v4981, %v1917
      %v5493 = vmul.f32 %v4985, %v1919
      %v5494 = vmul.f32 %v4981, %v1923
      %v5495 = vmul.f32 %v4985, %v1925
      %v5496 = vmul.f32 %v4981, %v1927
      %v5497 = vmul.f32 %v4985, %v1929
      %v5498 = vmul.f32 %v4989, %v1933
      %v5499 = vmul.f32 %v4993, %v1935
      %v5500 = vmul.f32 %v4989, %v1937
      %v5501 = vmul.f32 %v4993, %v1939
      %v5502 = vmul.f32 %v4989, %v1943
      %v5503 = vmul.f32 %v4993, %v1945
      %v5504 = vmul.f32 %v4989, %v1947
      %v5505 = vmul.f32 %v4993, %v1949
      %v5506 = vmul.f32 %v4997, %v1953
      %v5507 = vmul.f32 %v5001, %v1955
      %v5508 = vmul.f32 %v4997, %v1957
      %v5509 = vmul.f32 %v5001, %v1959
      %v5510 = vmul.f32 %v4997, %v1963
      %v5511 = vmul.f32 %v5001, %v1965
      %v5512 = vmul.f32 %v4997, %v1967
      %v5513 = vmul.f32 %v5001, %v1969
      %v5514 = vmul.f32 %v5005, %v1813
      %v5515 = vmul.f32 %v5009, %v1815
      %v5516 = vmul.f32 %v5005, %v1817
      %v5517 = vmul.f32 %v5009, %v1819
      %v5518 = vmul.f32 %v5005, %v1823
      %v5519 = vmul.f32 %v5009, %v1825
      %v5520 = vmul.f32 %v5005, %v1827
      %v5521 = vmul.f32 %v5009, %v1829
      %v5522 = vmul.f32 %v5013, %v1833
      %v5523 = vmul.f32 %v5017, %v1835
      %v5524 = vmul.f32 %v5013, %v1837
      %v5525 = vmul.f32 %v5017, %v1839
      %v5526 = vmul.f32 %v5013, %v1843
      %v5527 = vmul.f32 %v5017, %v1845
      %v5528 = vmul.f32 %v5013, %v1847
      %v5529 = vmul.f32 %v5017, %v1849
      %v5530 = vmul.f32 %v5021, %v1853
      %v5531 = vmul.f32 %v5025, %v1855
      %v5532 = vmul.f32 %v5021, %v1857
      %v5533 = vmul.f32 %v5025, %v1859
      %v5534 = vmul.f32 %v5021, %v1863
      %v5535 = vmul.f32 %v5025, %v1865
      %v5536 = vmul.f32 %v5021, %v1867
      %v5537 = vmul.f32 %v5025, %v1869
      %v5538 = vmul.f32 %v5029, %v1873
      %v5539 = vmul.f32 %v5033, %v1875
      %v5540 = vmul.f32 %v5029, %v1877
      %v5541 = vmul.f32 %v5033, %v1879
      %v5542 = vmul.f32 %v5029, %v1883
      %v5543 = vmul.f32 %v5033, %v1885
      %v5544 = vmul.f32 %v5029, %v1887
      %v5545 = vmul.f32 %v5033, %v1889
      %v5546 = vmul.f32 %v5037, %v1893
      %v5547 = vmul.f32 %v5041, %v1895
      %v5548 = vmul.f32 %v5037, %v1897
      %v5549 = vmul.f32 %v5041, %v1899
      %v5550 = vmul.f32 %v5037, %v1903
      %v5551 = vmul.f32 %v5041, %v1905
      %v5552 = vmul.f32 %v5037, %v1907
      %v5553 = vmul.f32 %v5041, %v1909
      %v5554 = vmul.f32 %v5045, %v1913
      %v5555 = vmul.f32 %v5049, %v1915
      %v5556 = vmul.f32 %v5045, %v1917
      %v5557 = vmul.f32 %v5049, %v1919
      %v5558 = vmul.f32 %v5045, %v1923
      %v5559 = vmul.f32 %v5049, %v1925
      %v5560 = vmul.f32 %v5045, %v1927
      %v5561 = vmul.f32 %v5049, %v1929
      %v5562 = vmul.f32 %v5053, %v1933
      %v5563 = vmul.f32 %v5057, %v1935
      %v5564 = vmul.f32 %v5053, %v1937
      %v5565 = vmul.f32 %v5057, %v1939
      %v5566 = vmul.f32 %v5053, %v1943
      %v5567 = vmul.f32 %v5057, %v1945
      %v5568 = vmul.f32 %v5053, %v1947
      %v5569 = vmul.f32 %v5057, %v1949
      %v5570 = vmul.f32 %v5061, %v1953
      %v5571 = vmul.f32 %v5065, %v1955
      %v5572 = vmul.f32 %v5061, %v1957
      %v5573 = vmul.f32 %v5065, %v1959
      %v5574 = vmul.f32 %v5061, %v1963
      %v5575 = vmul.f32 %v5065, %v1965
      %v5576 = vmul.f32 %v5061, %v1967
      %v5577 = vmul.f32 %v5065, %v1969
      %v5578 = vmul.f32 %v5069, %v1813
      %v5579 = vmul.f32 %v5073, %v1815
      %v5580 = vmul.f32 %v5069, %v1817
      %v5581 = vmul.f32 %v5073, %v1819
      %v5582 = vmul.f32 %v5069, %v1823
      %v5583 = vmul.f32 %v5073, %v1825
      %v5584 = vmul.f32 %v5069, %v1827
      %v5585 = vmul.f32 %v5073, %v1829
      %v5586 = vmul.f32 %v5077, %v1833
      %v5587 = vmul.f32 %v5081, %v1835
      %v5588 = vmul.f32 %v5077, %v1837
      %v5589 = vmul.f32 %v5081, %v1839
      %v5590 = vmul.f32 %v5077, %v1843
      %v5591 = vmul.f32 %v5081, %v1845
      %v5592 = vmul.f32 %v5077, %v1847
      %v5593 = vmul.f32 %v5081, %v1849
      %v5594 = vmul.f32 %v5085, %v1853
      %v5595 = vmul.f32 %v5089, %v1855
      %v5596 = vmul.f32 %v5085, %v1857
      %v5597 = vmul.f32 %v5089, %v1859
      %v5598 = vmul.f32 %v5085, %v1863
      %v5599 = vmul.f32 %v5089, %v1865
      %v5600 = vmul.f32 %v5085, %v1867
      %v5601 = vmul.f32 %v5089, %v1869
      %v5602 = vmul.f32 %v5093, %v1873
      %v5603 = vmul.f32 %v5097, %v1875
      %v5604 = vmul.f32 %v5093, %v1877
      %v5605 = vmul.f32 %v5097, %v1879
      %v5606 = vmul.f32 %v5093, %v1883
      %v5607 = vmul.f32 %v5097, %v1885
      %v5608 = vmul.f32 %v5093, %v1887
      %v5609 = vmul.f32 %v5097, %v1889
      %v5610 = vmul.f32 %v5101, %v1893
      %v5611 = vmul.f32 %v5105, %v1895
      %v5612 = vmul.f32 %v5101, %v1897
      %v5613 = vmul.f32 %v5105, %v1899
      %v5614 = vmul.f32 %v5101, %v1903
      %v5615 = vmul.f32 %v5105, %v1905
      %v5616 = vmul.f32 %v5101, %v1907
      %v5617 = vmul.f32 %v5105, %v1909
      %v5618 = vmul.f32 %v5109, %v1913
      %v5619 = vmul.f32 %v5113, %v1915
      %v5620 = vmul.f32 %v5109, %v1917
      %v5621 = vmul.f32 %v5113, %v1919
      %v5622 = vmul.f32 %v5109, %v1923
      %v5623 = vmul.f32 %v5113, %v1925
      %v5624 = vmul.f32 %v5109, %v1927
      %v5625 = vmul.f32 %v5113, %v1929
      %v5626 = vmul.f32 %v5117, %v1933
      %v5627 = vmul.f32 %v5121, %v1935
      %v5628 = vmul.f32 %v5117, %v1937
      %v5629 = vmul.f32 %v5121, %v1939
      %v5630 = vmul.f32 %v5117, %v1943
      %v5631 = vmul.f32 %v5121, %v1945
      %v5632 = vmul.f32 %v5117, %v1947
      %v5633 = vmul.f32 %v5121, %v1949
      %v5634 = vmul.f32 %v5125, %v1953
      %v5635 = vmul.f32 %v5129, %v1955
      %v5636 = vmul.f32 %v5125, %v1957
      %v5637 = vmul.f32 %v5129, %v1959
      %v5638 = vmul.f32 %v5125, %v1963
      %v5639 = vmul.f32 %v5129, %v1965
      %v5640 = vmul.f32 %v5125, %v1967
      %v5641 = vmul.f32 %v5129, %v1969
      %v5642 = vmul.f32 %v5133, %v1813
      %v5643 = vmul.f32 %v5137, %v1815
      %v5644 = vmul.f32 %v5133, %v1817
      %v5645 = vmul.f32 %v5137, %v1819
      %v5646 = vmul.f32 %v5133, %v1823
      %v5647 = vmul.f32 %v5137, %v1825
      %v5648 = vmul.f32 %v5133, %v1827
      %v5649 = vmul.f32 %v5137, %v1829
      %v5650 = vmul.f32 %v5141, %v1833
      %v5651 = vmul.f32 %v5145, %v1835
      %v5652 = vmul.f32 %v5141, %v1837
      %v5653 = vmul.f32 %v5145, %v1839
      %v5654 = vmul.f32 %v5141, %v1843
      %v5655 = vmul.f32 %v5145, %v1845
      %v5656 = vmul.f32 %v5141, %v1847
      %v5657 = vmul.f32 %v5145, %v1849
      %v5658 = vmul.f32 %v5149, %v1853
      %v5659 = vmul.f32 %v5153, %v1855
      %v5660 = vmul.f32 %v5149, %v1857
      %v5661 = vmul.f32 %v5153, %v1859
      %v5662 = vmul.f32 %v5149, %v1863
      %v5663 = vmul.f32 %v5153, %v1865
      %v5664 = vmul.f32 %v5149, %v1867
      %v5665 = vmul.f32 %v5153, %v1869
      %v5666 = vmul.f32 %v5157, %v1873
      %v5667 = vmul.f32 %v5161, %v1875
      %v5668 = vmul.f32 %v5157, %v1877
      %v5669 = vmul.f32 %v5161, %v1879
      %v5670 = vmul.f32 %v5157, %v1883
      %v5671 = vmul.f32 %v5161, %v1885
      %v5672 = vmul.f32 %v5157, %v1887
      %v5673 = vmul.f32 %v5161, %v1889
      %v5674 = vmul.f32 %v5165, %v1893
      %v5675 = vmul.f32 %v5169, %v1895
      %v5676 = vmul.f32 %v5165, %v1897
      %v5677 = vmul.f32 %v5169, %v1899
      %v5678 = vmul.f32 %v5165, %v1903
      %v5679 = vmul.f32 %v5169, %v1905
      %v5680 = vmul.f32 %v5165, %v1907
      %v5681 = vmul.f32 %v5169, %v1909
      %v5682 = vmul.f32 %v5173, %v1913
      %v5683 = vmul.f32 %v5177, %v1915
      %v5684 = vmul.f32 %v5173, %v1917
      %v5685 = vmul.f32 %v5177, %v1919
      %v5686 = vmul.f32 %v5173, %v1923
      %v5687 = vmul.f32 %v5177, %v1925
      %v5688 = vmul.f32 %v5173, %v1927
      %v5689 = vmul.f32 %v5177, %v1929
      %v5690 = vmul.f32 %v5181, %v1933
      %v5691 = vmul.f32 %v5185, %v1935
      %v5692 = vmul.f32 %v5181, %v1937
      %v5693 = vmul.f32 %v5185, %v1939
      %v5694 = vmul.f32 %v5181, %v1943
      %v5695 = vmul.f32 %v5185, %v1945
      %v5696 = vmul.f32 %v5181, %v1947
      %v5697 = vmul.f32 %v5185, %v1949
      %v5698 = vmul.f32 %v5189, %v1953
      %v5699 = vmul.f32 %v5193, %v1955
      %v5700 = vmul.f32 %v5189, %v1957
      %v5701 = vmul.f32 %v5193, %v1959
      %v5702 = vmul.f32 %v5189, %v1963
      %v5703 = vmul.f32 %v5193, %v1965
      %v5704 = vmul.f32 %v5189, %v1967
      %v5705 = vmul.f32 %v5193, %v1969
      %v5706 = vmul.f32 %v5197, %v1813
      %v5707 = vmul.f32 %v5201, %v1815
      %v5708 = vmul.f32 %v5197, %v1817
      %v5709 = vmul.f32 %v5201, %v1819
      %v5710 = vmul.f32 %v5197, %v1823
      %v5711 = vmul.f32 %v5201, %v1825
      %v5712 = vmul.f32 %v5197, %v1827
      %v5713 = vmul.f32 %v5201, %v1829
      %v5714 = vmul.f32 %v5205, %v1833
      %v5715 = vmul.f32 %v5209, %v1835
      %v5716 = vmul.f32 %v5205, %v1837
      %v5717 = vmul.f32 %v5209, %v1839
      %v5718 = vmul.f32 %v5205, %v1843
      %v5719 = vmul.f32 %v5209, %v1845
      %v5720 = vmul.f32 %v5205, %v1847
      %v5721 = vmul.f32 %v5209, %v1849
      %v5722 = vmul.f32 %v5213, %v1853
      %v5723 = vmul.f32 %v5217, %v1855
      %v5724 = vmul.f32 %v5213, %v1857
      %v5725 = vmul.f32 %v5217, %v1859
      %v5726 = vmul.f32 %v5213, %v1863
      %v5727 = vmul.f32 %v5217, %v1865
      %v5728 = vmul.f32 %v5213, %v1867
      %v5729 = vmul.f32 %v5217, %v1869
      %v5730 = vmul.f32 %v5221, %v1873
      %v5731 = vmul.f32 %v5225, %v1875
      %v5732 = vmul.f32 %v5221, %v1877
      %v5733 = vmul.f32 %v5225, %v1879
      %v5734 = vmul.f32 %v5221, %v1883
      %v5735 = vmul.f32 %v5225, %v1885
      %v5736 = vmul.f32 %v5221, %v1887
      %v5737 = vmul.f32 %v5225, %v1889
      %v5738 = vmul.f32 %v5229, %v1893
      %v5739 = vmul.f32 %v5233, %v1895
      %v5740 = vmul.f32 %v5229, %v1897
      %v5741 = vmul.f32 %v5233, %v1899
      %v5742 = vmul.f32 %v5229, %v1903
      %v5743 = vmul.f32 %v5233, %v1905
      %v5744 = vmul.f32 %v5229, %v1907
      %v5745 = vmul.f32 %v5233, %v1909
      %v5746 = vmul.f32 %v5237, %v1913
      %v5747 = vmul.f32 %v5241, %v1915
      %v5748 = vmul.f32 %v5237, %v1917
      %v5749 = vmul.f32 %v5241, %v1919
      %v5750 = vmul.f32 %v5237, %v1923
      %v5751 = vmul.f32 %v5241, %v1925
      %v5752 = vmul.f32 %v5237, %v1927
      %v5753 = vmul.f32 %v5241, %v1929
      %v5754 = vmul.f32 %v5245, %v1933
      %v5755 = vmul.f32 %v5249, %v1935
      %v5756 = vmul.f32 %v5245, %v1937
      %v5757 = vmul.f32 %v5249, %v1939
      %v5758 = vmul.f32 %v5245, %v1943
      %v5759 = vmul.f32 %v5249, %v1945
      %v5760 = vmul.f32 %v5245, %v1947
      %v5761 = vmul.f32 %v5249, %v1949
      %v5762 = vmul.f32 %v5253, %v1953
      %v5763 = vmul.f32 %v5257, %v1955
      %v5764 = vmul.f32 %v5253, %v1957
      %v5765 = vmul.f32 %v5257, %v1959
      %v5766 = vmul.f32 %v5253, %v1963
      %v5767 = vmul.f32 %v5257, %v1965
      %v5768 = vmul.f32 %v5253, %v1967
      %v5769 = vmul.f32 %v5257, %v1969
      %v5770 = vmul.f32 %v5261, %v1813
      %v5771 = vmul.f32 %v5265, %v1815
      %v5772 = vmul.f32 %v5261, %v1817
      %v5773 = vmul.f32 %v5265, %v1819
      %v5774 = vmul.f32 %v5261, %v1823
      %v5775 = vmul.f32 %v5265, %v1825
      %v5776 = vmul.f32 %v5261, %v1827
      %v5777 = vmul.f32 %v5265, %v1829
      %v5778 = vmul.f32 %v5269, %v1833
      %v5779 = vmul.f32 %v5273, %v1835
      %v5780 = vmul.f32 %v5269, %v1837
      %v5781 = vmul.f32 %v5273, %v1839
      %v5782 = vmul.f32 %v5269, %v1843
      %v5783 = vmul.f32 %v5273, %v1845
      %v5784 = vmul.f32 %v5269, %v1847
      %v5785 = vmul.f32 %v5273, %v1849
      %v5786 = vmul.f32 %v5277, %v1853
      %v5787 = vmul.f32 %v5281, %v1855
      %v5788 = vmul.f32 %v5277, %v1857
      %v5789 = vmul.f32 %v5281, %v1859
      %v5790 = vmul.f32 %v5277, %v1863
      %v5791 = vmul.f32 %v5281, %v1865
      %v5792 = vmul.f32 %v5277, %v1867
      %v5793 = vmul.f32 %v5281, %v1869
      %v5794 = vmul.f32 %v5285, %v1873
      %v5795 = vmul.f32 %v5289, %v1875
      %v5796 = vmul.f32 %v5285, %v1877
      %v5797 = vmul.f32 %v5289, %v1879
      %v5798 = vmul.f32 %v5285, %v1883
      %v5799 = vmul.f32 %v5289, %v1885
      %v5800 = vmul.f32 %v5285, %v1887
      %v5801 = vmul.f32 %v5289, %v1889
      %v5802 = vmul.f32 %v5293, %v1893
      %v5803 = vmul.f32 %v5297, %v1895
      %v5804 = vmul.f32 %v5293, %v1897
      %v5805 = vmul.f32 %v5297, %v1899
      %v5806 = vmul.f32 %v5293, %v1903
      %v5807 = vmul.f32 %v5297, %v1905
      %v5808 = vmul.f32 %v5293, %v1907
      %v5809 = vmul.f32 %v5297, %v1909
      %v5810 = vmul.f32 %v5301, %v1913
      %v5811 = vmul.f32 %v5305, %v1915
      %v5812 = vmul.f32 %v5301, %v1917
      %v5813 = vmul.f32 %v5305, %v1919
      %v5814 = vmul.f32 %v5301, %v1923
      %v5815 = vmul.f32 %v5305, %v1925
      %v5816 = vmul.f32 %v5301, %v1927
      %v5817 = vmul.f32 %v5305, %v1929
      %v5818 = vmul.f32 %v5309, %v1933
      %v5819 = vmul.f32 %v5313, %v1935
      %v5820 = vmul.f32 %v5309, %v1937
      %v5821 = vmul.f32 %v5313, %v1939
      %v5822 = vmul.f32 %v5309, %v1943
      %v5823 = vmul.f32 %v5313, %v1945
      %v5824 = vmul.f32 %v5309, %v1947
      %v5825 = vmul.f32 %v5313, %v1949
      %v5826 = vmul.f32 %v5317, %v1953
      %v5827 = vmul.f32 %v5321, %v1955
      %v5828 = vmul.f32 %v5317, %v1957
      %v5829 = vmul.f32 %v5321, %v1959
      %v5830 = vmul.f32 %v5317, %v1963
      %v5831 = vmul.f32 %v5321, %v1965
      %v5832 = vmul.f32 %v5317, %v1967
      %v5833 = vmul.f32 %v5321, %v1969
      %v5834 = vmul.f32 %v5325, %v1813
      %v5835 = vmul.f32 %v5329, %v1815
      %v5836 = vmul.f32 %v5325, %v1817
      %v5837 = vmul.f32 %v5329, %v1819
      %v5838 = vmul.f32 %v5325, %v1823
      %v5839 = vmul.f32 %v5329, %v1825
      %v5840 = vmul.f32 %v5325, %v1827
      %v5841 = vmul.f32 %v5329, %v1829
      %v5842 = vmul.f32 %v5333, %v1833
      %v5843 = vmul.f32 %v5337, %v1835
      %v5844 = vmul.f32 %v5333, %v1837
      %v5845 = vmul.f32 %v5337, %v1839
      %v5846 = vmul.f32 %v5333, %v1843
      %v5847 = vmul.f32 %v5337, %v1845
      %v5848 = vmul.f32 %v5333, %v1847
      %v5849 = vmul.f32 %v5337, %v1849
      %v5850 = vmul.f32 %v5341, %v1853
      %v5851 = vmul.f32 %v5345, %v1855
      %v5852 = vmul.f32 %v5341, %v1857
      %v5853 = vmul.f32 %v5345, %v1859
      %v5854 = vmul.f32 %v5341, %v1863
      %v5855 = vmul.f32 %v5345, %v1865
      %v5856 = vmul.f32 %v5341, %v1867
      %v5857 = vmul.f32 %v5345, %v1869
      %v5858 = vmul.f32 %v5349, %v1873
      %v5859 = vmul.f32 %v5353, %v1875
      %v5860 = vmul.f32 %v5349, %v1877
      %v5861 = vmul.f32 %v5353, %v1879
      %v5862 = vmul.f32 %v5349, %v1883
      %v5863 = vmul.f32 %v5353, %v1885
      %v5864 = vmul.f32 %v5349, %v1887
      %v5865 = vmul.f32 %v5353, %v1889
      %v5866 = vmul.f32 %v5357, %v1893
      %v5867 = vmul.f32 %v5361, %v1895
      %v5868 = vmul.f32 %v5357, %v1897
      %v5869 = vmul.f32 %v5361, %v1899
      %v5870 = vmul.f32 %v5357, %v1903
      %v5871 = vmul.f32 %v5361, %v1905
      %v5872 = vmul.f32 %v5357, %v1907
      %v5873 = vmul.f32 %v5361, %v1909
      %v5874 = vmul.f32 %v5365, %v1913
      %v5875 = vmul.f32 %v5369, %v1915
      %v5876 = vmul.f32 %v5365, %v1917
      %v5877 = vmul.f32 %v5369, %v1919
      %v5878 = vmul.f32 %v5365, %v1923
      %v5879 = vmul.f32 %v5369, %v1925
      %v5880 = vmul.f32 %v5365, %v1927
      %v5881 = vmul.f32 %v5369, %v1929
      %v5882 = vmul.f32 %v5373, %v1933
      %v5883 = vmul.f32 %v5377, %v1935
      %v5884 = vmul.f32 %v5373, %v1937
      %v5885 = vmul.f32 %v5377, %v1939
      %v5886 = vmul.f32 %v5373, %v1943
      %v5887 = vmul.f32 %v5377, %v1945
      %v5888 = vmul.f32 %v5373, %v1947
      %v5889 = vmul.f32 %v5377, %v1949
      %v5890 = vmul.f32 %v5381, %v1953
      %v5891 = vmul.f32 %v5385, %v1955
      %v5892 = vmul.f32 %v5381, %v1957
      %v5893 = vmul.f32 %v5385, %v1959
      %v5894 = vmul.f32 %v5381, %v1963
      %v5895 = vmul.f32 %v5385, %v1965
      %v5896 = vmul.f32 %v5381, %v1967
      %v5897 = vmul.f32 %v5385, %v1969
      %v5898 = vmul.f32 %v5389, %v1813
      %v5899 = vmul.f32 %v5393, %v1815
      %v5900 = vmul.f32 %v5389, %v1817
      %v5901 = vmul.f32 %v5393, %v1819
      %v5902 = vmul.f32 %v5389, %v1823
      %v5903 = vmul.f32 %v5393, %v1825
      %v5904 = vmul.f32 %v5389, %v1827
      %v5905 = vmul.f32 %v5393, %v1829
      %v5906 = vmul.f32 %v5397, %v1833
      %v5907 = vmul.f32 %v5401, %v1835
      %v5908 = vmul.f32 %v5397, %v1837
      %v5909 = vmul.f32 %v5401, %v1839
      %v5910 = vmul.f32 %v5397, %v1843
      %v5911 = vmul.f32 %v5401, %v1845
      %v5912 = vmul.f32 %v5397, %v1847
      %v5913 = vmul.f32 %v5401, %v1849
      %v5914 = vmul.f32 %v5405, %v1853
      %v5915 = vmul.f32 %v5409, %v1855
      %v5916 = vmul.f32 %v5405, %v1857
      %v5917 = vmul.f32 %v5409, %v1859
      %v5918 = vmul.f32 %v5405, %v1863
      %v5919 = vmul.f32 %v5409, %v1865
      %v5920 = vmul.f32 %v5405, %v1867
      %v5921 = vmul.f32 %v5409, %v1869
      %v5922 = vmul.f32 %v5413, %v1873
      %v5923 = vmul.f32 %v5417, %v1875
      %v5924 = vmul.f32 %v5413, %v1877
      %v5925 = vmul.f32 %v5417, %v1879
      %v5926 = vmul.f32 %v5413, %v1883
      %v5927 = vmul.f32 %v5417, %v1885
      %v5928 = vmul.f32 %v5413, %v1887
      %v5929 = vmul.f32 %v5417, %v1889
      %v5930 = vmul.f32 %v5421, %v1893
      %v5931 = vmul.f32 %v5425, %v1895
      %v5932 = vmul.f32 %v5421, %v1897
      %v5933 = vmul.f32 %v5425, %v1899
      %v5934 = vmul.f32 %v5421, %v1903
      %v5935 = vmul.f32 %v5425, %v1905
      %v5936 = vmul.f32 %v5421, %v1907
      %v5937 = vmul.f32 %v5425, %v1909
      %v5938 = vmul.f32 %v5429, %v1913
      %v5939 = vmul.f32 %v5433, %v1915
      %v5940 = vmul.f32 %v5429, %v1917
      %v5941 = vmul.f32 %v5433, %v1919
      %v5942 = vmul.f32 %v5429, %v1923
      %v5943 = vmul.f32 %v5433, %v1925
      %v5944 = vmul.f32 %v5429, %v1927
      %v5945 = vmul.f32 %v5433, %v1929
      %v5946 = vmul.f32 %v5437, %v1933
      %v5947 = vmul.f32 %v5441, %v1935
      %v5948 = vmul.f32 %v5437, %v1937
      %v5949 = vmul.f32 %v5441, %v1939
      %v5950 = vmul.f32 %v5437, %v1943
      %v5951 = vmul.f32 %v5441, %v1945
      %v5952 = vmul.f32 %v5437, %v1947
      %v5953 = vmul.f32 %v5441, %v1949
      %v5954 = vmul.f32 %v5445, %v1953
      %v5955 = vmul.f32 %v5449, %v1955
      %v5956 = vmul.f32 %v5445, %v1957
      %v5957 = vmul.f32 %v5449, %v1959
      %v5958 = vmul.f32 %v5445, %v1963
      %v5959 = vmul.f32 %v5449, %v1965
      %v5960 = vmul.f32 %v5445, %v1967
      %v5961 = vmul.f32 %v5449, %v1969
      %v5962 = vadd.f32 %v5450, %v5458
      %v5963 = vadd.f32 %v5962, %v5466
      %v5964 = vadd.f32 %v5963, %v5474
      %v5965 = vadd.f32 %v5964, %v5482
      %v5966 = vadd.f32 %v5965, %v5490
      %v5967 = vadd.f32 %v5966, %v5498
      %v5968 = vadd.f32 %v5967, %v5506
      %v5969 = vadd.f32 %v5451, %v5459
      %v5970 = vadd.f32 %v5969, %v5467
      %v5971 = vadd.f32 %v5970, %v5475
      %v5972 = vadd.f32 %v5971, %v5483
      %v5973 = vadd.f32 %v5972, %v5491
      %v5974 = vadd.f32 %v5973, %v5499
      %v5975 = vadd.f32 %v5974, %v5507
      %v5976 = vadd.f32 %v5452, %v5460
      %v5977 = vadd.f32 %v5976, %v5468
      %v5978 = vadd.f32 %v5977, %v5476
      %v5979 = vadd.f32 %v5978, %v5484
      %v5980 = vadd.f32 %v5979, %v5492
      %v5981 = vadd.f32 %v5980, %v5500
      %v5982 = vadd.f32 %v5981, %v5508
      %v5983 = vadd.f32 %v5453, %v5461
      %v5984 = vadd.f32 %v5983, %v5469
      %v5985 = vadd.f32 %v5984, %v5477
      %v5986 = vadd.f32 %v5985, %v5485
      %v5987 = vadd.f32 %v5986, %v5493
      %v5988 = vadd.f32 %v5987, %v5501
      %v5989 = vadd.f32 %v5988, %v5509
      %v5990 = vadd.f32 %v5454, %v5462
      %v5991 = vadd.f32 %v5990, %v5470
      %v5992 = vadd.f32 %v5991, %v5478
      %v5993 = vadd.f32 %v5992, %v5486
      %v5994 = vadd.f32 %v5993, %v5494
      %v5995 = vadd.f32 %v5994, %v5502
      %v5996 = vadd.f32 %v5995, %v5510
      %v5997 = vadd.f32 %v5455, %v5463
      %v5998 = vadd.f32 %v5997, %v5471
      %v5999 = vadd.f32 %v5998, %v5479
      %v6000 = vadd.f32 %v5999, %v5487
      %v6001 = vadd.f32 %v6000, %v5495
      %v6002 = vadd.f32 %v6001, %v5503
      %v6003 = vadd.f32 %v6002, %v5511
      %v6004 = vadd.f32 %v5456, %v5464
      %v6005 = vadd.f32 %v6004, %v5472
      %v6006 = vadd.f32 %v6005, %v5480
      %v6007 = vadd.f32 %v6006, %v5488
      %v6008 = vadd.f32 %v6007, %v5496
      %v6009 = vadd.f32 %v6008, %v5504
      %v6010 = vadd.f32 %v6009, %v5512
      %v6011 = vadd.f32 %v5457, %v5465
      %v6012 = vadd.f32 %v6011, %v5473
      %v6013 = vadd.f32 %v6012, %v5481
      %v6014 = vadd.f32 %v6013, %v5489
      %v6015 = vadd.f32 %v6014, %v5497
      %v6016 = vadd.f32 %v6015, %v5505
      %v6017 = vadd.f32 %v6016, %v5513
      %v6018 = vadd.f32 %v5514, %v5522
      %v6019 = vadd.f32 %v6018, %v5530
      %v6020 = vadd.f32 %v6019, %v5538
      %v6021 = vadd.f32 %v6020, %v5546
      %v6022 = vadd.f32 %v6021, %v5554
      %v6023 = vadd.f32 %v6022, %v5562
      %v6024 = vadd.f32 %v6023, %v5570
      %v6025 = vadd.f32 %v5515, %v5523
      %v6026 = vadd.f32 %v6025, %v5531
      %v6027 = vadd.f32 %v6026, %v5539
      %v6028 = vadd.f32 %v6027, %v5547
      %v6029 = vadd.f32 %v6028, %v5555
      %v6030 = vadd.f32 %v6029, %v5563
      %v6031 = vadd.f32 %v6030, %v5571
      %v6032 = vadd.f32 %v5516, %v5524
      %v6033 = vadd.f32 %v6032, %v5532
      %v6034 = vadd.f32 %v6033, %v5540
      %v6035 = vadd.f32 %v6034, %v5548
      %v6036 = vadd.f32 %v6035, %v5556
      %v6037 = vadd.f32 %v6036, %v5564
      %v6038 = vadd.f32 %v6037, %v5572
      %v6039 = vadd.f32 %v5517, %v5525
      %v6040 = vadd.f32 %v6039, %v5533
      %v6041 = vadd.f32 %v6040, %v5541
      %v6042 = vadd.f32 %v6041, %v5549
      %v6043 = vadd.f32 %v6042, %v5557
      %v6044 = vadd.f32 %v6043, %v5565
      %v6045 = vadd.f32 %v6044, %v5573
      %v6046 = vadd.f32 %v5518, %v5526
      %v6047 = vadd.f32 %v6046, %v5534
      %v6048 = vadd.f32 %v6047, %v5542
      %v6049 = vadd.f32 %v6048, %v5550
      %v6050 = vadd.f32 %v6049, %v5558
      %v6051 = vadd.f32 %v6050, %v5566
      %v6052 = vadd.f32 %v6051, %v5574
      %v6053 = vadd.f32 %v5519, %v5527
      %v6054 = vadd.f32 %v6053, %v5535
      %v6055 = vadd.f32 %v6054, %v5543
      %v6056 = vadd.f32 %v6055, %v5551
      %v6057 = vadd.f32 %v6056, %v5559
      %v6058 = vadd.f32 %v6057, %v5567
      %v6059 = vadd.f32 %v6058, %v5575
      %v6060 = vadd.f32 %v5520, %v5528
      %v6061 = vadd.f32 %v6060, %v5536
      %v6062 = vadd.f32 %v6061, %v5544
      %v6063 = vadd.f32 %v6062, %v5552
      %v6064 = vadd.f32 %v6063, %v5560
      %v6065 = vadd.f32 %v6064, %v5568
      %v6066 = vadd.f32 %v6065, %v5576
      %v6067 = vadd.f32 %v5521, %v5529
      %v6068 = vadd.f32 %v6067, %v5537
      %v6069 = vadd.f32 %v6068, %v5545
      %v6070 = vadd.f32 %v6069, %v5553
      %v6071 = vadd.f32 %v6070, %v5561
      %v6072 = vadd.f32 %v6071, %v5569
      %v6073 = vadd.f32 %v6072, %v5577
      %v6074 = vadd.f32 %v5578, %v5586
      %v6075 = vadd.f32 %v6074, %v5594
      %v6076 = vadd.f32 %v6075, %v5602
      %v6077 = vadd.f32 %v6076, %v5610
      %v6078 = vadd.f32 %v6077, %v5618
      %v6079 = vadd.f32 %v6078, %v5626
      %v6080 = vadd.f32 %v6079, %v5634
      %v6081 = vadd.f32 %v5579, %v5587
      %v6082 = vadd.f32 %v6081, %v5595
      %v6083 = vadd.f32 %v6082, %v5603
      %v6084 = vadd.f32 %v6083, %v5611
      %v6085 = vadd.f32 %v6084, %v5619
      %v6086 = vadd.f32 %v6085, %v5627
      %v6087 = vadd.f32 %v6086, %v5635
      %v6088 = vadd.f32 %v5580, %v5588
      %v6089 = vadd.f32 %v6088, %v5596
      %v6090 = vadd.f32 %v6089, %v5604
      %v6091 = vadd.f32 %v6090, %v5612
      %v6092 = vadd.f32 %v6091, %v5620
      %v6093 = vadd.f32 %v6092, %v5628
      %v6094 = vadd.f32 %v6093, %v5636
      %v6095 = vadd.f32 %v5581, %v5589
      %v6096 = vadd.f32 %v6095, %v5597
      %v6097 = vadd.f32 %v6096, %v5605
      %v6098 = vadd.f32 %v6097, %v5613
      %v6099 = vadd.f32 %v6098, %v5621
      %v6100 = vadd.f32 %v6099, %v5629
      %v6101 = vadd.f32 %v6100, %v5637
      %v6102 = vadd.f32 %v5582, %v5590
      %v6103 = vadd.f32 %v6102, %v5598
      %v6104 = vadd.f32 %v6103, %v5606
      %v6105 = vadd.f32 %v6104, %v5614
      %v6106 = vadd.f32 %v6105, %v5622
      %v6107 = vadd.f32 %v6106, %v5630
      %v6108 = vadd.f32 %v6107, %v5638
      %v6109 = vadd.f32 %v5583, %v5591
      %v6110 = vadd.f32 %v6109, %v5599
      %v6111 = vadd.f32 %v6110, %v5607
      %v6112 = vadd.f32 %v6111, %v5615
      %v6113 = vadd.f32 %v6112, %v5623
      %v6114 = vadd.f32 %v6113, %v5631
      %v6115 = vadd.f32 %v6114, %v5639
      %v6116 = vadd.f32 %v5584, %v5592
      %v6117 = vadd.f32 %v6116, %v5600
      %v6118 = vadd.f32 %v6117, %v5608
      %v6119 = vadd.f32 %v6118, %v5616
      %v6120 = vadd.f32 %v6119, %v5624
      %v6121 = vadd.f32 %v6120, %v5632
      %v6122 = vadd.f32 %v6121, %v5640
      %v6123 = vadd.f32 %v5585, %v5593
      %v6124 = vadd.f32 %v6123, %v5601
      %v6125 = vadd.f32 %v6124, %v5609
      %v6126 = vadd.f32 %v6125, %v5617
      %v6127 = vadd.f32 %v6126, %v5625
      %v6128 = vadd.f32 %v6127, %v5633
      %v6129 = vadd.f32 %v6128, %v5641
      %v6130 = vadd.f32 %v5642, %v5650
      %v6131 = vadd.f32 %v6130, %v5658
      %v6132 = vadd.f32 %v6131, %v5666
      %v6133 = vadd.f32 %v6132, %v5674
      %v6134 = vadd.f32 %v6133, %v5682
      %v6135 = vadd.f32 %v6134, %v5690
      %v6136 = vadd.f32 %v6135, %v5698
      %v6137 = vadd.f32 %v5643, %v5651
      %v6138 = vadd.f32 %v6137, %v5659
      %v6139 = vadd.f32 %v6138, %v5667
      %v6140 = vadd.f32 %v6139, %v5675
      %v6141 = vadd.f32 %v6140, %v5683
      %v6142 = vadd.f32 %v6141, %v5691
      %v6143 = vadd.f32 %v6142, %v5699
      %v6144 = vadd.f32 %v5644, %v5652
      %v6145 = vadd.f32 %v6144, %v5660
      %v6146 = vadd.f32 %v6145, %v5668
      %v6147 = vadd.f32 %v6146, %v5676
      %v6148 = vadd.f32 %v6147, %v5684
      %v6149 = vadd.f32 %v6148, %v5692
      %v6150 = vadd.f32 %v6149, %v5700
      %v6151 = vadd.f32 %v5645, %v5653
      %v6152 = vadd.f32 %v6151, %v5661
      %v6153 = vadd.f32 %v6152, %v5669
      %v6154 = vadd.f32 %v6153, %v5677
      %v6155 = vadd.f32 %v6154, %v5685
      %v6156 = vadd.f32 %v6155, %v5693
      %v6157 = vadd.f32 %v6156, %v5701
      %v6158 = vadd.f32 %v5646, %v5654
      %v6159 = vadd.f32 %v6158, %v5662
      %v6160 = vadd.f32 %v6159, %v5670
      %v6161 = vadd.f32 %v6160, %v5678
      %v6162 = vadd.f32 %v6161, %v5686
      %v6163 = vadd.f32 %v6162, %v5694
      %v6164 = vadd.f32 %v6163, %v5702
      %v6165 = vadd.f32 %v5647, %v5655
      %v6166 = vadd.f32 %v6165, %v5663
      %v6167 = vadd.f32 %v6166, %v5671
      %v6168 = vadd.f32 %v6167, %v5679
      %v6169 = vadd.f32 %v6168, %v5687
      %v6170 = vadd.f32 %v6169, %v5695
      %v6171 = vadd.f32 %v6170, %v5703
      %v6172 = vadd.f32 %v5648, %v5656
      %v6173 = vadd.f32 %v6172, %v5664
      %v6174 = vadd.f32 %v6173, %v5672
      %v6175 = vadd.f32 %v6174, %v5680
      %v6176 = vadd.f32 %v6175, %v5688
      %v6177 = vadd.f32 %v6176, %v5696
      %v6178 = vadd.f32 %v6177, %v5704
      %v6179 = vadd.f32 %v5649, %v5657
      %v6180 = vadd.f32 %v6179, %v5665
      %v6181 = vadd.f32 %v6180, %v5673
      %v6182 = vadd.f32 %v6181, %v5681
      %v6183 = vadd.f32 %v6182, %v5689
      %v6184 = vadd.f32 %v6183, %v5697
      %v6185 = vadd.f32 %v6184, %v5705
      %v6186 = vadd.f32 %v5706, %v5714
      %v6187 = vadd.f32 %v6186, %v5722
      %v6188 = vadd.f32 %v6187, %v5730
      %v6189 = vadd.f32 %v6188, %v5738
      %v6190 = vadd.f32 %v6189, %v5746
      %v6191 = vadd.f32 %v6190, %v5754
      %v6192 = vadd.f32 %v6191, %v5762
      %v6193 = vadd.f32 %v5707, %v5715
      %v6194 = vadd.f32 %v6193, %v5723
      %v6195 = vadd.f32 %v6194, %v5731
      %v6196 = vadd.f32 %v6195, %v5739
      %v6197 = vadd.f32 %v6196, %v5747
      %v6198 = vadd.f32 %v6197, %v5755
      %v6199 = vadd.f32 %v6198, %v5763
      %v6200 = vadd.f32 %v5708, %v5716
      %v6201 = vadd.f32 %v6200, %v5724
      %v6202 = vadd.f32 %v6201, %v5732
      %v6203 = vadd.f32 %v6202, %v5740
      %v6204 = vadd.f32 %v6203, %v5748
      %v6205 = vadd.f32 %v6204, %v5756
      %v6206 = vadd.f32 %v6205, %v5764
      %v6207 = vadd.f32 %v5709, %v5717
      %v6208 = vadd.f32 %v6207, %v5725
      %v6209 = vadd.f32 %v6208, %v5733
      %v6210 = vadd.f32 %v6209, %v5741
      %v6211 = vadd.f32 %v6210, %v5749
      %v6212 = vadd.f32 %v6211, %v5757
      %v6213 = vadd.f32 %v6212, %v5765
      %v6214 = vadd.f32 %v5710, %v5718
      %v6215 = vadd.f32 %v6214, %v5726
      %v6216 = vadd.f32 %v6215, %v5734
      %v6217 = vadd.f32 %v6216, %v5742
      %v6218 = vadd.f32 %v6217, %v5750
      %v6219 = vadd.f32 %v6218, %v5758
      %v6220 = vadd.f32 %v6219, %v5766
      %v6221 = vadd.f32 %v5711, %v5719
      %v6222 = vadd.f32 %v6221, %v5727
      %v6223 = vadd.f32 %v6222, %v5735
      %v6224 = vadd.f32 %v6223, %v5743
      %v6225 = vadd.f32 %v6224, %v5751
      %v6226 = vadd.f32 %v6225, %v5759
      %v6227 = vadd.f32 %v6226, %v5767
      %v6228 = vadd.f32 %v5712, %v5720
      %v6229 = vadd.f32 %v6228, %v5728
      %v6230 = vadd.f32 %v6229, %v5736
      %v6231 = vadd.f32 %v6230, %v5744
      %v6232 = vadd.f32 %v6231, %v5752
      %v6233 = vadd.f32 %v6232, %v5760
      %v6234 = vadd.f32 %v6233, %v5768
      %v6235 = vadd.f32 %v5713, %v5721
      %v6236 = vadd.f32 %v6235, %v5729
      %v6237 = vadd.f32 %v6236, %v5737
      %v6238 = vadd.f32 %v6237, %v5745
      %v6239 = vadd.f32 %v6238, %v5753
      %v6240 = vadd.f32 %v6239, %v5761
      %v6241 = vadd.f32 %v6240, %v5769
      %v6242 = vadd.f32 %v5770, %v5778
      %v6243 = vadd.f32 %v6242, %v5786
      %v6244 = vadd.f32 %v6243, %v5794
      %v6245 = vadd.f32 %v6244, %v5802
      %v6246 = vadd.f32 %v6245, %v5810
      %v6247 = vadd.f32 %v6246, %v5818
      %v6248 = vadd.f32 %v6247, %v5826
      %v6249 = vadd.f32 %v5771, %v5779
      %v6250 = vadd.f32 %v6249, %v5787
      %v6251 = vadd.f32 %v6250, %v5795
      %v6252 = vadd.f32 %v6251, %v5803
      %v6253 = vadd.f32 %v6252, %v5811
      %v6254 = vadd.f32 %v6253, %v5819
      %v6255 = vadd.f32 %v6254, %v5827
      %v6256 = vadd.f32 %v5772, %v5780
      %v6257 = vadd.f32 %v6256, %v5788
      %v6258 = vadd.f32 %v6257, %v5796
      %v6259 = vadd.f32 %v6258, %v5804
      %v6260 = vadd.f32 %v6259, %v5812
      %v6261 = vadd.f32 %v6260, %v5820
      %v6262 = vadd.f32 %v6261, %v5828
      %v6263 = vadd.f32 %v5773, %v5781
      %v6264 = vadd.f32 %v6263, %v5789
      %v6265 = vadd.f32 %v6264, %v5797
      %v6266 = vadd.f32 %v6265, %v5805
      %v6267 = vadd.f32 %v6266, %v5813
      %v6268 = vadd.f32 %v6267, %v5821
      %v6269 = vadd.f32 %v6268, %v5829
      %v6270 = vadd.f32 %v5774, %v5782
      %v6271 = vadd.f32 %v6270, %v5790
      %v6272 = vadd.f32 %v6271, %v5798
      %v6273 = vadd.f32 %v6272, %v5806
      %v6274 = vadd.f32 %v6273, %v5814
      %v6275 = vadd.f32 %v6274, %v5822
      %v6276 = vadd.f32 %v6275, %v5830
      %v6277 = vadd.f32 %v5775, %v5783
      %v6278 = vadd.f32 %v6277, %v5791
      %v6279 = vadd.f32 %v6278, %v5799
      %v6280 = vadd.f32 %v6279, %v5807
      %v6281 = vadd.f32 %v6280, %v5815
      %v6282 = vadd.f32 %v6281, %v5823
      %v6283 = vadd.f32 %v6282, %v5831
      %v6284 = vadd.f32 %v5776, %v5784
      %v6285 = vadd.f32 %v6284, %v5792
      %v6286 = vadd.f32 %v6285, %v5800
      %v6287 = vadd.f32 %v6286, %v5808
      %v6288 = vadd.f32 %v6287, %v5816
      %v6289 = vadd.f32 %v6288, %v5824
      %v6290 = vadd.f32 %v6289, %v5832
      %v6291 = vadd.f32 %v5777, %v5785
      %v6292 = vadd.f32 %v6291, %v5793
      %v6293 = vadd.f32 %v6292, %v5801
      %v6294 = vadd.f32 %v6293, %v5809
      %v6295 = vadd.f32 %v6294, %v5817
      %v6296 = vadd.f32 %v6295, %v5825
      %v6297 = vadd.f32 %v6296, %v5833
      %v6298 = vadd.f32 %v5834, %v5842
      %v6299 = vadd.f32 %v6298, %v5850
      %v6300 = vadd.f32 %v6299, %v5858
      %v6301 = vadd.f32 %v6300, %v5866
      %v6302 = vadd.f32 %v6301, %v5874
      %v6303 = vadd.f32 %v6302, %v5882
      %v6304 = vadd.f32 %v6303, %v5890
      %v6305 = vadd.f32 %v5835, %v5843
      %v6306 = vadd.f32 %v6305, %v5851
      %v6307 = vadd.f32 %v6306, %v5859
      %v6308 = vadd.f32 %v6307, %v5867
      %v6309 = vadd.f32 %v6308, %v5875
      %v6310 = vadd.f32 %v6309, %v5883
      %v6311 = vadd.f32 %v6310, %v5891
      %v6312 = vadd.f32 %v5836, %v5844
      %v6313 = vadd.f32 %v6312, %v5852
      %v6314 = vadd.f32 %v6313, %v5860
      %v6315 = vadd.f32 %v6314, %v5868
      %v6316 = vadd.f32 %v6315, %v5876
      %v6317 = vadd.f32 %v6316, %v5884
      %v6318 = vadd.f32 %v6317, %v5892
      %v6319 = vadd.f32 %v5837, %v5845
      %v6320 = vadd.f32 %v6319, %v5853
      %v6321 = vadd.f32 %v6320, %v5861
      %v6322 = vadd.f32 %v6321, %v5869
      %v6323 = vadd.f32 %v6322, %v5877
      %v6324 = vadd.f32 %v6323, %v5885
      %v6325 = vadd.f32 %v6324, %v5893
      %v6326 = vadd.f32 %v5838, %v5846
      %v6327 = vadd.f32 %v6326, %v5854
      %v6328 = vadd.f32 %v6327, %v5862
      %v6329 = vadd.f32 %v6328, %v5870
      %v6330 = vadd.f32 %v6329, %v5878
      %v6331 = vadd.f32 %v6330, %v5886
      %v6332 = vadd.f32 %v6331, %v5894
      %v6333 = vadd.f32 %v5839, %v5847
      %v6334 = vadd.f32 %v6333, %v5855
      %v6335 = vadd.f32 %v6334, %v5863
      %v6336 = vadd.f32 %v6335, %v5871
      %v6337 = vadd.f32 %v6336, %v5879
      %v6338 = vadd.f32 %v6337, %v5887
      %v6339 = vadd.f32 %v6338, %v5895
      %v6340 = vadd.f32 %v5840, %v5848
      %v6341 = vadd.f32 %v6340, %v5856
      %v6342 = vadd.f32 %v6341, %v5864
      %v6343 = vadd.f32 %v6342, %v5872
      %v6344 = vadd.f32 %v6343, %v5880
      %v6345 = vadd.f32 %v6344, %v5888
      %v6346 = vadd.f32 %v6345, %v5896
      %v6347 = vadd.f32 %v5841, %v5849
      %v6348 = vadd.f32 %v6347, %v5857
      %v6349 = vadd.f32 %v6348, %v5865
      %v6350 = vadd.f32 %v6349, %v5873
      %v6351 = vadd.f32 %v6350, %v5881
      %v6352 = vadd.f32 %v6351, %v5889
      %v6353 = vadd.f32 %v6352, %v5897
      %v6354 = vadd.f32 %v5898, %v5906
      %v6355 = vadd.f32 %v6354, %v5914
      %v6356 = vadd.f32 %v6355, %v5922
      %v6357 = vadd.f32 %v6356, %v5930
      %v6358 = vadd.f32 %v6357, %v5938
      %v6359 = vadd.f32 %v6358, %v5946
      %v6360 = vadd.f32 %v6359, %v5954
      %v6361 = vadd.f32 %v5899, %v5907
      %v6362 = vadd.f32 %v6361, %v5915
      %v6363 = vadd.f32 %v6362, %v5923
      %v6364 = vadd.f32 %v6363, %v5931
      %v6365 = vadd.f32 %v6364, %v5939
      %v6366 = vadd.f32 %v6365, %v5947
      %v6367 = vadd.f32 %v6366, %v5955
      %v6368 = vadd.f32 %v5900, %v5908
      %v6369 = vadd.f32 %v6368, %v5916
      %v6370 = vadd.f32 %v6369, %v5924
      %v6371 = vadd.f32 %v6370, %v5932
      %v6372 = vadd.f32 %v6371, %v5940
      %v6373 = vadd.f32 %v6372, %v5948
      %v6374 = vadd.f32 %v6373, %v5956
      %v6375 = vadd.f32 %v5901, %v5909
      %v6376 = vadd.f32 %v6375, %v5917
      %v6377 = vadd.f32 %v6376, %v5925
      %v6378 = vadd.f32 %v6377, %v5933
      %v6379 = vadd.f32 %v6378, %v5941
      %v6380 = vadd.f32 %v6379, %v5949
      %v6381 = vadd.f32 %v6380, %v5957
      %v6382 = vadd.f32 %v5902, %v5910
      %v6383 = vadd.f32 %v6382, %v5918
      %v6384 = vadd.f32 %v6383, %v5926
      %v6385 = vadd.f32 %v6384, %v5934
      %v6386 = vadd.f32 %v6385, %v5942
      %v6387 = vadd.f32 %v6386, %v5950
      %v6388 = vadd.f32 %v6387, %v5958
      %v6389 = vadd.f32 %v5903, %v5911
      %v6390 = vadd.f32 %v6389, %v5919
      %v6391 = vadd.f32 %v6390, %v5927
      %v6392 = vadd.f32 %v6391, %v5935
      %v6393 = vadd.f32 %v6392, %v5943
      %v6394 = vadd.f32 %v6393, %v5951
      %v6395 = vadd.f32 %v6394, %v5959
      %v6396 = vadd.f32 %v5904, %v5912
      %v6397 = vadd.f32 %v6396, %v5920
      %v6398 = vadd.f32 %v6397, %v5928
      %v6399 = vadd.f32 %v6398, %v5936
      %v6400 = vadd.f32 %v6399, %v5944
      %v6401 = vadd.f32 %v6400, %v5952
      %v6402 = vadd.f32 %v6401, %v5960
      %v6403 = vadd.f32 %v5905, %v5913
      %v6404 = vadd.f32 %v6403, %v5921
      %v6405 = vadd.f32 %v6404, %v5929
      %v6406 = vadd.f32 %v6405, %v5937
      %v6407 = vadd.f32 %v6406, %v5945
      %v6408 = vadd.f32 %v6407, %v5953
      %v6409 = vadd.f32 %v6408, %v5961
      %v6410 = vld [vmem:[%s2] sm:$0xff]
      %v6411 = vld [vmem:[%s2 + $0x8] sm:$0xff]
      %v6412 = vld [vmem:[%s2 + $0x10] sm:$0xff]
      %v6413 = vld [vmem:[%s2 + $0x18] sm:$0xff]
      %v6414 = vld [vmem:[%s2 + $0x20] sm:$0xff]
      %v6415 = vld [vmem:[%s2 + $0x28] sm:$0xff]
      %v6416 = vld [vmem:[%s2 + $0x30] sm:$0xff]
      %v6417 = vld [vmem:[%s2 + $0x38] sm:$0xff]
      %v6418 = vld [vmem:[%s2 + $0x40] sm:$0xff]
      %v6419 = vld [vmem:[%s2 + $0x48] sm:$0xff]
      %v6420 = vld [vmem:[%s2 + $0x50] sm:$0xff]
      %v6421 = vld [vmem:[%s2 + $0x58] sm:$0xff]
      %v6422 = vld [vmem:[%s2 + $0x60] sm:$0xff]
      %v6423 = vld [vmem:[%s2 + $0x68] sm:$0xff]
      %v6424 = vld [vmem:[%s2 + $0x70] sm:$0xff]
      %v6425 = vld [vmem:[%s2 + $0x78] sm:$0xff]
      %v6426 = vld [vmem:[%s2 + $0x80] sm:$0xff]
      %v6427 = vld [vmem:[%s2 + $0x88] sm:$0xff]
      %v6428 = vld [vmem:[%s2 + $0x90] sm:$0xff]
      %v6429 = vld [vmem:[%s2 + $0x98] sm:$0xff]
      %v6430 = vld [vmem:[%s2 + $0xa0] sm:$0xff]
      %v6431 = vld [vmem:[%s2 + $0xa8] sm:$0xff]
      %v6432 = vld [vmem:[%s2 + $0xb0] sm:$0xff]
      %v6433 = vld [vmem:[%s2 + $0xb8] sm:$0xff]
      %v6434 = vld [vmem:[%s2 + $0xc0] sm:$0xff]
      %v6435 = vld [vmem:[%s2 + $0xc8] sm:$0xff]
      %v6436 = vld [vmem:[%s2 + $0xd0] sm:$0xff]
      %v6437 = vld [vmem:[%s2 + $0xd8] sm:$0xff]
      %v6438 = vld [vmem:[%s2 + $0xe0] sm:$0xff]
      %v6439 = vld [vmem:[%s2 + $0xe8] sm:$0xff]
      %v6440 = vld [vmem:[%s2 + $0xf0] sm:$0xff]
      %v6441 = vld [vmem:[%s2 + $0xf8] sm:$0xff]
      %v6442 = vadd.f32 %v5968, %v210
      %v6443 = vadd.f32 %v5975, %v211
      %v6444 = vadd.f32 %v5982, %v212
      %v6445 = vadd.f32 %v5989, %v213
      %v6446 = vadd.f32 %v5996, %v214
      %v6447 = vadd.f32 %v6003, %v215
      %v6448 = vadd.f32 %v6010, %v216
      %v6449 = vadd.f32 %v6017, %v217
      %v6450 = vadd.f32 %v6024, %v218
      %v6451 = vadd.f32 %v6031, %v219
      %v6452 = vadd.f32 %v6038, %v220
      %v6453 = vadd.f32 %v6045, %v221
      %v6454 = vadd.f32 %v6052, %v222
      %v6455 = vadd.f32 %v6059, %v223
      %v6456 = vadd.f32 %v6066, %v224
      %v6457 = vadd.f32 %v6073, %v225
      %v6458 = vadd.f32 %v6080, %v226
      %v6459 = vadd.f32 %v6087, %v227
      %v6460 = vadd.f32 %v6094, %v228
      %v6461 = vadd.f32 %v6101, %v229
      %v6462 = vadd.f32 %v6108, %v230
      %v6463 = vadd.f32 %v6115, %v231
      %v6464 = vadd.f32 %v6122, %v232
      %v6465 = vadd.f32 %v6129, %v233
      %v6466 = vadd.f32 %v6136, %v234
      %v6467 = vadd.f32 %v6143, %v235
      %v6468 = vadd.f32 %v6150, %v236
      %v6469 = vadd.f32 %v6157, %v237
      %v6470 = vadd.f32 %v6164, %v238
      %v6471 = vadd.f32 %v6171, %v239
      %v6472 = vadd.f32 %v6178, %v240
      %v6473 = vadd.f32 %v6185, %v241
      %v6474 = vadd.f32 %v6192, %v242
      %v6475 = vadd.f32 %v6199, %v243
      %v6476 = vadd.f32 %v6206, %v244
      %v6477 = vadd.f32 %v6213, %v245
      %v6478 = vadd.f32 %v6220, %v246
      %v6479 = vadd.f32 %v6227, %v247
      %v6480 = vadd.f32 %v6234, %v248
      %v6481 = vadd.f32 %v6241, %v249
      %v6482 = vadd.f32 %v6248, %v250
      %v6483 = vadd.f32 %v6255, %v251
      %v6484 = vadd.f32 %v6262, %v252
      %v6485 = vadd.f32 %v6269, %v253
      %v6486 = vadd.f32 %v6276, %v254
      %v6487 = vadd.f32 %v6283, %v255
      %v6488 = vadd.f32 %v6290, %v256
      %v6489 = vadd.f32 %v6297, %v257
      %v6490 = vadd.f32 %v6304, %v258
      %v6491 = vadd.f32 %v6311, %v259
      %v6492 = vadd.f32 %v6318, %v260
      %v6493 = vadd.f32 %v6325, %v261
      %v6494 = vadd.f32 %v6332, %v262
      %v6495 = vadd.f32 %v6339, %v263
      %v6496 = vadd.f32 %v6346, %v264
      %v6497 = vadd.f32 %v6353, %v265
      %v6498 = vadd.f32 %v6360, %v266
      %v6499 = vadd.f32 %v6367, %v267
      %v6500 = vadd.f32 %v6374, %v268
      %v6501 = vadd.f32 %v6381, %v269
      %v6502 = vadd.f32 %v6388, %v270
      %v6503 = vadd.f32 %v6395, %v271
      %v6504 = vadd.f32 %v6402, %v272
      %v6505 = vadd.f32 %v6409, %v273
      %v6506 = vadd.f32 %v6442, %v6444
      %v6507 = vadd.f32 %v6506, %v6446
      %v6508 = vadd.f32 %v6507, %v6448
      %v6509 = vrot.slane %v6508, 4
      %v6510 = vadd.f32 %v6508, %v6509
      %v6511 = vrot.slane %v6510, 2
      %v6512 = vadd.f32 %v6510, %v6511
      %v6513 = vrot.slane %v6512, 1
      %v6514 = vadd.f32 %v6512, %v6513
      %v6515 = vadd.f32 %v6443, %v6445
      %v6516 = vadd.f32 %v6515, %v6447
      %v6517 = vadd.f32 %v6516, %v6449
      %v6518 = vrot.slane %v6517, 4
      %v6519 = vadd.f32 %v6517, %v6518
      %v6520 = vrot.slane %v6519, 2
      %v6521 = vadd.f32 %v6519, %v6520
      %v6522 = vrot.slane %v6521, 1
      %v6523 = vadd.f32 %v6521, %v6522
      %v6524 = vadd.f32 %v6450, %v6452
      %v6525 = vadd.f32 %v6524, %v6454
      %v6526 = vadd.f32 %v6525, %v6456
      %v6527 = vrot.slane %v6526, 4
      %v6528 = vadd.f32 %v6526, %v6527
      %v6529 = vrot.slane %v6528, 2
      %v6530 = vadd.f32 %v6528, %v6529
      %v6531 = vrot.slane %v6530, 1
      %v6532 = vadd.f32 %v6530, %v6531
      %v6533 = vadd.f32 %v6451, %v6453
      %v6534 = vadd.f32 %v6533, %v6455
      %v6535 = vadd.f32 %v6534, %v6457
      %v6536 = vrot.slane %v6535, 4
      %v6537 = vadd.f32 %v6535, %v6536
      %v6538 = vrot.slane %v6537, 2
      %v6539 = vadd.f32 %v6537, %v6538
      %v6540 = vrot.slane %v6539, 1
      %v6541 = vadd.f32 %v6539, %v6540
      %v6542 = vadd.f32 %v6458, %v6460
      %v6543 = vadd.f32 %v6542, %v6462
      %v6544 = vadd.f32 %v6543, %v6464
      %v6545 = vrot.slane %v6544, 4
      %v6546 = vadd.f32 %v6544, %v6545
      %v6547 = vrot.slane %v6546, 2
      %v6548 = vadd.f32 %v6546, %v6547
      %v6549 = vrot.slane %v6548, 1
      %v6550 = vadd.f32 %v6548, %v6549
      %v6551 = vadd.f32 %v6459, %v6461
      %v6552 = vadd.f32 %v6551, %v6463
      %v6553 = vadd.f32 %v6552, %v6465
      %v6554 = vrot.slane %v6553, 4
      %v6555 = vadd.f32 %v6553, %v6554
      %v6556 = vrot.slane %v6555, 2
      %v6557 = vadd.f32 %v6555, %v6556
      %v6558 = vrot.slane %v6557, 1
      %v6559 = vadd.f32 %v6557, %v6558
      %v6560 = vadd.f32 %v6466, %v6468
      %v6561 = vadd.f32 %v6560, %v6470
      %v6562 = vadd.f32 %v6561, %v6472
      %v6563 = vrot.slane %v6562, 4
      %v6564 = vadd.f32 %v6562, %v6563
      %v6565 = vrot.slane %v6564, 2
      %v6566 = vadd.f32 %v6564, %v6565
      %v6567 = vrot.slane %v6566, 1
      %v6568 = vadd.f32 %v6566, %v6567
      %v6569 = vadd.f32 %v6467, %v6469
      %v6570 = vadd.f32 %v6569, %v6471
      %v6571 = vadd.f32 %v6570, %v6473
      %v6572 = vrot.slane %v6571, 4
      %v6573 = vadd.f32 %v6571, %v6572
      %v6574 = vrot.slane %v6573, 2
      %v6575 = vadd.f32 %v6573, %v6574
      %v6576 = vrot.slane %v6575, 1
      %v6577 = vadd.f32 %v6575, %v6576
      %v6578 = vadd.f32 %v6474, %v6476
      %v6579 = vadd.f32 %v6578, %v6478
      %v6580 = vadd.f32 %v6579, %v6480
      %v6581 = vrot.slane %v6580, 4
      %v6582 = vadd.f32 %v6580, %v6581
      %v6583 = vrot.slane %v6582, 2
      %v6584 = vadd.f32 %v6582, %v6583
      %v6585 = vrot.slane %v6584, 1
      %v6586 = vadd.f32 %v6584, %v6585
      %v6587 = vadd.f32 %v6475, %v6477
      %v6588 = vadd.f32 %v6587, %v6479
      %v6589 = vadd.f32 %v6588, %v6481
      %v6590 = vrot.slane %v6589, 4
      %v6591 = vadd.f32 %v6589, %v6590
      %v6592 = vrot.slane %v6591, 2
      %v6593 = vadd.f32 %v6591, %v6592
      %v6594 = vrot.slane %v6593, 1
      %v6595 = vadd.f32 %v6593, %v6594
      %v6596 = vadd.f32 %v6482, %v6484
      %v6597 = vadd.f32 %v6596, %v6486
      %v6598 = vadd.f32 %v6597, %v6488
      %v6599 = vrot.slane %v6598, 4
      %v6600 = vadd.f32 %v6598, %v6599
      %v6601 = vrot.slane %v6600, 2
      %v6602 = vadd.f32 %v6600, %v6601
      %v6603 = vrot.slane %v6602, 1
      %v6604 = vadd.f32 %v6602, %v6603
      %v6605 = vadd.f32 %v6483, %v6485
      %v6606 = vadd.f32 %v6605, %v6487
      %v6607 = vadd.f32 %v6606, %v6489
      %v6608 = vrot.slane %v6607, 4
      %v6609 = vadd.f32 %v6607, %v6608
      %v6610 = vrot.slane %v6609, 2
      %v6611 = vadd.f32 %v6609, %v6610
      %v6612 = vrot.slane %v6611, 1
      %v6613 = vadd.f32 %v6611, %v6612
      %v6614 = vadd.f32 %v6490, %v6492
      %v6615 = vadd.f32 %v6614, %v6494
      %v6616 = vadd.f32 %v6615, %v6496
      %v6617 = vrot.slane %v6616, 4
      %v6618 = vadd.f32 %v6616, %v6617
      %v6619 = vrot.slane %v6618, 2
      %v6620 = vadd.f32 %v6618, %v6619
      %v6621 = vrot.slane %v6620, 1
      %v6622 = vadd.f32 %v6620, %v6621
      %v6623 = vadd.f32 %v6491, %v6493
      %v6624 = vadd.f32 %v6623, %v6495
      %v6625 = vadd.f32 %v6624, %v6497
      %v6626 = vrot.slane %v6625, 4
      %v6627 = vadd.f32 %v6625, %v6626
      %v6628 = vrot.slane %v6627, 2
      %v6629 = vadd.f32 %v6627, %v6628
      %v6630 = vrot.slane %v6629, 1
      %v6631 = vadd.f32 %v6629, %v6630
      %v6632 = vadd.f32 %v6498, %v6500
      %v6633 = vadd.f32 %v6632, %v6502
      %v6634 = vadd.f32 %v6633, %v6504
      %v6635 = vrot.slane %v6634, 4
      %v6636 = vadd.f32 %v6634, %v6635
      %v6637 = vrot.slane %v6636, 2
      %v6638 = vadd.f32 %v6636, %v6637
      %v6639 = vrot.slane %v6638, 1
      %v6640 = vadd.f32 %v6638, %v6639
      %v6641 = vadd.f32 %v6499, %v6501
      %v6642 = vadd.f32 %v6641, %v6503
      %v6643 = vadd.f32 %v6642, %v6505
      %v6644 = vrot.slane %v6643, 4
      %v6645 = vadd.f32 %v6643, %v6644
      %v6646 = vrot.slane %v6645, 2
      %v6647 = vadd.f32 %v6645, %v6646
      %v6648 = vrot.slane %v6647, 1
      %v6649 = vadd.f32 %v6647, %v6648
      %v6650 = vrcp.pop 32.0
      %v6651 = vmul.f32 %v6514, %v6650
      %v6652 = vmul.f32 %v6523, %v6650
      %v6653 = vmul.f32 %v6532, %v6650
      %v6654 = vmul.f32 %v6541, %v6650
      %v6655 = vmul.f32 %v6550, %v6650
      %v6656 = vmul.f32 %v6559, %v6650
      %v6657 = vmul.f32 %v6568, %v6650
      %v6658 = vmul.f32 %v6577, %v6650
      %v6659 = vmul.f32 %v6586, %v6650
      %v6660 = vmul.f32 %v6595, %v6650
      %v6661 = vmul.f32 %v6604, %v6650
      %v6662 = vmul.f32 %v6613, %v6650
      %v6663 = vmul.f32 %v6622, %v6650
      %v6664 = vmul.f32 %v6631, %v6650
      %v6665 = vmul.f32 %v6640, %v6650
      %v6666 = vmul.f32 %v6649, %v6650
      %v6667 = vsub.f32 %v6442, %v6651
      %v6668 = vsub.f32 %v6443, %v6652
      %v6669 = vsub.f32 %v6444, %v6651
      %v6670 = vsub.f32 %v6445, %v6652
      %v6671 = vsub.f32 %v6446, %v6651
      %v6672 = vsub.f32 %v6447, %v6652
      %v6673 = vsub.f32 %v6448, %v6651
      %v6674 = vsub.f32 %v6449, %v6652
      %v6675 = vsub.f32 %v6450, %v6653
      %v6676 = vsub.f32 %v6451, %v6654
      %v6677 = vsub.f32 %v6452, %v6653
      %v6678 = vsub.f32 %v6453, %v6654
      %v6679 = vsub.f32 %v6454, %v6653
      %v6680 = vsub.f32 %v6455, %v6654
      %v6681 = vsub.f32 %v6456, %v6653
      %v6682 = vsub.f32 %v6457, %v6654
      %v6683 = vsub.f32 %v6458, %v6655
      %v6684 = vsub.f32 %v6459, %v6656
      %v6685 = vsub.f32 %v6460, %v6655
      %v6686 = vsub.f32 %v6461, %v6656
      %v6687 = vsub.f32 %v6462, %v6655
      %v6688 = vsub.f32 %v6463, %v6656
      %v6689 = vsub.f32 %v6464, %v6655
      %v6690 = vsub.f32 %v6465, %v6656
      %v6691 = vsub.f32 %v6466, %v6657
      %v6692 = vsub.f32 %v6467, %v6658
      %v6693 = vsub.f32 %v6468, %v6657
      %v6694 = vsub.f32 %v6469, %v6658
      %v6695 = vsub.f32 %v6470, %v6657
      %v6696 = vsub.f32 %v6471, %v6658
      %v6697 = vsub.f32 %v6472, %v6657
      %v6698 = vsub.f32 %v6473, %v6658
      %v6699 = vsub.f32 %v6474, %v6659
      %v6700 = vsub.f32 %v6475, %v6660
      %v6701 = vsub.f32 %v6476, %v6659
      %v6702 = vsub.f32 %v6477, %v6660
      %v6703 = vsub.f32 %v6478, %v6659
      %v6704 = vsub.f32 %v6479, %v6660
      %v6705 = vsub.f32 %v6480, %v6659
      %v6706 = vsub.f32 %v6481, %v6660
      %v6707 = vsub.f32 %v6482, %v6661
      %v6708 = vsub.f32 %v6483, %v6662
      %v6709 = vsub.f32 %v6484, %v6661
      %v6710 = vsub.f32 %v6485, %v6662
      %v6711 = vsub.f32 %v6486, %v6661
      %v6712 = vsub.f32 %v6487, %v6662
      %v6713 = vsub.f32 %v6488, %v6661
      %v6714 = vsub.f32 %v6489, %v6662
      %v6715 = vsub.f32 %v6490, %v6663
      %v6716 = vsub.f32 %v6491, %v6664
      %v6717 = vsub.f32 %v6492, %v6663
      %v6718 = vsub.f32 %v6493, %v6664
      %v6719 = vsub.f32 %v6494, %v6663
      %v6720 = vsub.f32 %v6495, %v6664
      %v6721 = vsub.f32 %v6496, %v6663
      %v6722 = vsub.f32 %v6497, %v6664
      %v6723 = vsub.f32 %v6498, %v6665
      %v6724 = vsub.f32 %v6499, %v6666
      %v6725 = vsub.f32 %v6500, %v6665
      %v6726 = vsub.f32 %v6501, %v6666
      %v6727 = vsub.f32 %v6502, %v6665
      %v6728 = vsub.f32 %v6503, %v6666
      %v6729 = vsub.f32 %v6504, %v6665
      %v6730 = vsub.f32 %v6505, %v6666
      %v6731 = vmul.f32 %v6667, %v6667
      %v6732 = vmul.f32 %v6668, %v6668
      %v6733 = vmul.f32 %v6669, %v6669
      %v6734 = vmul.f32 %v6670, %v6670
      %v6735 = vmul.f32 %v6671, %v6671
      %v6736 = vmul.f32 %v6672, %v6672
      %v6737 = vmul.f32 %v6673, %v6673
      %v6738 = vmul.f32 %v6674, %v6674
      %v6739 = vmul.f32 %v6675, %v6675
      %v6740 = vmul.f32 %v6676, %v6676
      %v6741 = vmul.f32 %v6677, %v6677
      %v6742 = vmul.f32 %v6678, %v6678
      %v6743 = vmul.f32 %v6679, %v6679
      %v6744 = vmul.f32 %v6680, %v6680
      %v6745 = vmul.f32 %v6681, %v6681
      %v6746 = vmul.f32 %v6682, %v6682
      %v6747 = vmul.f32 %v6683, %v6683
      %v6748 = vmul.f32 %v6684, %v6684
      %v6749 = vmul.f32 %v6685, %v6685
      %v6750 = vmul.f32 %v6686, %v6686
      %v6751 = vmul.f32 %v6687, %v6687
      %v6752 = vmul.f32 %v6688, %v6688
      %v6753 = vmul.f32 %v6689, %v6689
      %v6754 = vmul.f32 %v6690, %v6690
      %v6755 = vmul.f32 %v6691, %v6691
      %v6756 = vmul.f32 %v6692, %v6692
      %v6757 = vmul.f32 %v6693, %v6693
      %v6758 = vmul.f32 %v6694, %v6694
      %v6759 = vmul.f32 %v6695, %v6695
      %v6760 = vmul.f32 %v6696, %v6696
      %v6761 = vmul.f32 %v6697, %v6697
      %v6762 = vmul.f32 %v6698, %v6698
      %v6763 = vmul.f32 %v6699, %v6699
      %v6764 = vmul.f32 %v6700, %v6700
      %v6765 = vmul.f32 %v6701, %v6701
      %v6766 = vmul.f32 %v6702, %v6702
      %v6767 = vmul.f32 %v6703, %v6703
      %v6768 = vmul.f32 %v6704, %v6704
      %v6769 = vmul.f32 %v6705, %v6705
      %v6770 = vmul.f32 %v6706, %v6706
      %v6771 = vmul.f32 %v6707, %v6707
      %v6772 = vmul.f32 %v6708, %v6708
      %v6773 = vmul.f32 %v6709, %v6709
      %v6774 = vmul.f32 %v6710, %v6710
      %v6775 = vmul.f32 %v6711, %v6711
      %v6776 = vmul.f32 %v6712, %v6712
      %v6777 = vmul.f32 %v6713, %v6713
      %v6778 = vmul.f32 %v6714, %v6714
      %v6779 = vmul.f32 %v6715, %v6715
      %v6780 = vmul.f32 %v6716, %v6716
      %v6781 = vmul.f32 %v6717, %v6717
      %v6782 = vmul.f32 %v6718, %v6718
      %v6783 = vmul.f32 %v6719, %v6719
      %v6784 = vmul.f32 %v6720, %v6720
      %v6785 = vmul.f32 %v6721, %v6721
      %v6786 = vmul.f32 %v6722, %v6722
      %v6787 = vmul.f32 %v6723, %v6723
      %v6788 = vmul.f32 %v6724, %v6724
      %v6789 = vmul.f32 %v6725, %v6725
      %v6790 = vmul.f32 %v6726, %v6726
      %v6791 = vmul.f32 %v6727, %v6727
      %v6792 = vmul.f32 %v6728, %v6728
      %v6793 = vmul.f32 %v6729, %v6729
      %v6794 = vmul.f32 %v6730, %v6730
      %v6795 = vadd.f32 %v6731, %v6733
      %v6796 = vadd.f32 %v6795, %v6735
      %v6797 = vadd.f32 %v6796, %v6737
      %v6798 = vrot.slane %v6797, 4
      %v6799 = vadd.f32 %v6797, %v6798
      %v6800 = vrot.slane %v6799, 2
      %v6801 = vadd.f32 %v6799, %v6800
      %v6802 = vrot.slane %v6801, 1
      %v6803 = vadd.f32 %v6801, %v6802
      %v6804 = vadd.f32 %v6732, %v6734
      %v6805 = vadd.f32 %v6804, %v6736
      %v6806 = vadd.f32 %v6805, %v6738
      %v6807 = vrot.slane %v6806, 4
      %v6808 = vadd.f32 %v6806, %v6807
      %v6809 = vrot.slane %v6808, 2
      %v6810 = vadd.f32 %v6808, %v6809
      %v6811 = vrot.slane %v6810, 1
      %v6812 = vadd.f32 %v6810, %v6811
      %v6813 = vadd.f32 %v6739, %v6741
      %v6814 = vadd.f32 %v6813, %v6743
      %v6815 = vadd.f32 %v6814, %v6745
      %v6816 = vrot.slane %v6815, 4
      %v6817 = vadd.f32 %v6815, %v6816
      %v6818 = vrot.slane %v6817, 2
      %v6819 = vadd.f32 %v6817, %v6818
      %v6820 = vrot.slane %v6819, 1
      %v6821 = vadd.f32 %v6819, %v6820
      %v6822 = vadd.f32 %v6740, %v6742
      %v6823 = vadd.f32 %v6822, %v6744
      %v6824 = vadd.f32 %v6823, %v6746
      %v6825 = vrot.slane %v6824, 4
      %v6826 = vadd.f32 %v6824, %v6825
      %v6827 = vrot.slane %v6826, 2
      %v6828 = vadd.f32 %v6826, %v6827
      %v6829 = vrot.slane %v6828, 1
      %v6830 = vadd.f32 %v6828, %v6829
      %v6831 = vadd.f32 %v6747, %v6749
      %v6832 = vadd.f32 %v6831, %v6751
      %v6833 = vadd.f32 %v6832, %v6753
      %v6834 = vrot.slane %v6833, 4
      %v6835 = vadd.f32 %v6833, %v6834
      %v6836 = vrot.slane %v6835, 2
      %v6837 = vadd.f32 %v6835, %v6836
      %v6838 = vrot.slane %v6837, 1
      %v6839 = vadd.f32 %v6837, %v6838
      %v6840 = vadd.f32 %v6748, %v6750
      %v6841 = vadd.f32 %v6840, %v6752
      %v6842 = vadd.f32 %v6841, %v6754
      %v6843 = vrot.slane %v6842, 4
      %v6844 = vadd.f32 %v6842, %v6843
      %v6845 = vrot.slane %v6844, 2
      %v6846 = vadd.f32 %v6844, %v6845
      %v6847 = vrot.slane %v6846, 1
      %v6848 = vadd.f32 %v6846, %v6847
      %v6849 = vadd.f32 %v6755, %v6757
      %v6850 = vadd.f32 %v6849, %v6759
      %v6851 = vadd.f32 %v6850, %v6761
      %v6852 = vrot.slane %v6851, 4
      %v6853 = vadd.f32 %v6851, %v6852
      %v6854 = vrot.slane %v6853, 2
      %v6855 = vadd.f32 %v6853, %v6854
      %v6856 = vrot.slane %v6855, 1
      %v6857 = vadd.f32 %v6855, %v6856
      %v6858 = vadd.f32 %v6756, %v6758
      %v6859 = vadd.f32 %v6858, %v6760
      %v6860 = vadd.f32 %v6859, %v6762
      %v6861 = vrot.slane %v6860, 4
      %v6862 = vadd.f32 %v6860, %v6861
      %v6863 = vrot.slane %v6862, 2
      %v6864 = vadd.f32 %v6862, %v6863
      %v6865 = vrot.slane %v6864, 1
      %v6866 = vadd.f32 %v6864, %v6865
      %v6867 = vadd.f32 %v6763, %v6765
      %v6868 = vadd.f32 %v6867, %v6767
      %v6869 = vadd.f32 %v6868, %v6769
      %v6870 = vrot.slane %v6869, 4
      %v6871 = vadd.f32 %v6869, %v6870
      %v6872 = vrot.slane %v6871, 2
      %v6873 = vadd.f32 %v6871, %v6872
      %v6874 = vrot.slane %v6873, 1
      %v6875 = vadd.f32 %v6873, %v6874
      %v6876 = vadd.f32 %v6764, %v6766
      %v6877 = vadd.f32 %v6876, %v6768
      %v6878 = vadd.f32 %v6877, %v6770
      %v6879 = vrot.slane %v6878, 4
      %v6880 = vadd.f32 %v6878, %v6879
      %v6881 = vrot.slane %v6880, 2
      %v6882 = vadd.f32 %v6880, %v6881
      %v6883 = vrot.slane %v6882, 1
      %v6884 = vadd.f32 %v6882, %v6883
      %v6885 = vadd.f32 %v6771, %v6773
      %v6886 = vadd.f32 %v6885, %v6775
      %v6887 = vadd.f32 %v6886, %v6777
      %v6888 = vrot.slane %v6887, 4
      %v6889 = vadd.f32 %v6887, %v6888
      %v6890 = vrot.slane %v6889, 2
      %v6891 = vadd.f32 %v6889, %v6890
      %v6892 = vrot.slane %v6891, 1
      %v6893 = vadd.f32 %v6891, %v6892
      %v6894 = vadd.f32 %v6772, %v6774
      %v6895 = vadd.f32 %v6894, %v6776
      %v6896 = vadd.f32 %v6895, %v6778
      %v6897 = vrot.slane %v6896, 4
      %v6898 = vadd.f32 %v6896, %v6897
      %v6899 = vrot.slane %v6898, 2
      %v6900 = vadd.f32 %v6898, %v6899
      %v6901 = vrot.slane %v6900, 1
      %v6902 = vadd.f32 %v6900, %v6901
      %v6903 = vadd.f32 %v6779, %v6781
      %v6904 = vadd.f32 %v6903, %v6783
      %v6905 = vadd.f32 %v6904, %v6785
      %v6906 = vrot.slane %v6905, 4
      %v6907 = vadd.f32 %v6905, %v6906
      %v6908 = vrot.slane %v6907, 2
      %v6909 = vadd.f32 %v6907, %v6908
      %v6910 = vrot.slane %v6909, 1
      %v6911 = vadd.f32 %v6909, %v6910
      %v6912 = vadd.f32 %v6780, %v6782
      %v6913 = vadd.f32 %v6912, %v6784
      %v6914 = vadd.f32 %v6913, %v6786
      %v6915 = vrot.slane %v6914, 4
      %v6916 = vadd.f32 %v6914, %v6915
      %v6917 = vrot.slane %v6916, 2
      %v6918 = vadd.f32 %v6916, %v6917
      %v6919 = vrot.slane %v6918, 1
      %v6920 = vadd.f32 %v6918, %v6919
      %v6921 = vadd.f32 %v6787, %v6789
      %v6922 = vadd.f32 %v6921, %v6791
      %v6923 = vadd.f32 %v6922, %v6793
      %v6924 = vrot.slane %v6923, 4
      %v6925 = vadd.f32 %v6923, %v6924
      %v6926 = vrot.slane %v6925, 2
      %v6927 = vadd.f32 %v6925, %v6926
      %v6928 = vrot.slane %v6927, 1
      %v6929 = vadd.f32 %v6927, %v6928
      %v6930 = vadd.f32 %v6788, %v6790
      %v6931 = vadd.f32 %v6930, %v6792
      %v6932 = vadd.f32 %v6931, %v6794
      %v6933 = vrot.slane %v6932, 4
      %v6934 = vadd.f32 %v6932, %v6933
      %v6935 = vrot.slane %v6934, 2
      %v6936 = vadd.f32 %v6934, %v6935
      %v6937 = vrot.slane %v6936, 1
      %v6938 = vadd.f32 %v6936, %v6937
      %v6939 = vmul.f32 %v6803, %v6650
      %v6940 = vmul.f32 %v6812, %v6650
      %v6941 = vmul.f32 %v6821, %v6650
      %v6942 = vmul.f32 %v6830, %v6650
      %v6943 = vmul.f32 %v6839, %v6650
      %v6944 = vmul.f32 %v6848, %v6650
      %v6945 = vmul.f32 %v6857, %v6650
      %v6946 = vmul.f32 %v6866, %v6650
      %v6947 = vmul.f32 %v6875, %v6650
      %v6948 = vmul.f32 %v6884, %v6650
      %v6949 = vmul.f32 %v6893, %v6650
      %v6950 = vmul.f32 %v6902, %v6650
      %v6951 = vmul.f32 %v6911, %v6650
      %v6952 = vmul.f32 %v6920, %v6650
      %v6953 = vmul.f32 %v6929, %v6650
      %v6954 = vmul.f32 %v6938, %v6650
      %v6955 = vadd.f32 %v6939, 1e-05
      %v6956 = vadd.f32 %v6940, 1e-05
      %v6957 = vadd.f32 %v6941, 1e-05
      %v6958 = vadd.f32 %v6942, 1e-05
      %v6959 = vadd.f32 %v6943, 1e-05
      %v6960 = vadd.f32 %v6944, 1e-05
      %v6961 = vadd.f32 %v6945, 1e-05
      %v6962 = vadd.f32 %v6946, 1e-05
      %v6963 = vadd.f32 %v6947, 1e-05
      %v6964 = vadd.f32 %v6948, 1e-05
      %v6965 = vadd.f32 %v6949, 1e-05
      %v6966 = vadd.f32 %v6950, 1e-05
      %v6967 = vadd.f32 %v6951, 1e-05
      %v6968 = vadd.f32 %v6952, 1e-05
      %v6969 = vadd.f32 %v6953, 1e-05
      %v6970 = vadd.f32 %v6954, 1e-05
      %v6971 = vrsqrt.pop %v6955
      %v6972 = vrsqrt.pop %v6956
      %v6973 = vrsqrt.pop %v6957
      %v6974 = vrsqrt.pop %v6958
      %v6975 = vrsqrt.pop %v6959
      %v6976 = vrsqrt.pop %v6960
      %v6977 = vrsqrt.pop %v6961
      %v6978 = vrsqrt.pop %v6962
      %v6979 = vrsqrt.pop %v6963
      %v6980 = vrsqrt.pop %v6964
      %v6981 = vrsqrt.pop %v6965
      %v6982 = vrsqrt.pop %v6966
      %v6983 = vrsqrt.pop %v6967
      %v6984 = vrsqrt.pop %v6968
      %v6985 = vrsqrt.pop %v6969
      %v6986 = vrsqrt.pop %v6970
      %v6987 = vmul.f32 %v6667, %v6971
      %v6988 = vmul.f32 %v6668, %v6972
      %v6989 = vmul.f32 %v6669, %v6971
      %v6990 = vmul.f32 %v6670, %v6972
      %v6991 = vmul.f32 %v6671, %v6971
      %v6992 = vmul.f32 %v6672, %v6972
      %v6993 = vmul.f32 %v6673, %v6971
      %v6994 = vmul.f32 %v6674, %v6972
      %v6995 = vmul.f32 %v6675, %v6973
      %v6996 = vmul.f32 %v6676, %v6974
      %v6997 = vmul.f32 %v6677, %v6973
      %v6998 = vmul.f32 %v6678, %v6974
      %v6999 = vmul.f32 %v6679, %v6973
      %v7000 = vmul.f32 %v6680, %v6974
      %v7001 = vmul.f32 %v6681, %v6973
      %v7002 = vmul.f32 %v6682, %v6974
      %v7003 = vmul.f32 %v6683, %v6975
      %v7004 = vmul.f32 %v6684, %v6976
      %v7005 = vmul.f32 %v6685, %v6975
      %v7006 = vmul.f32 %v6686, %v6976
      %v7007 = vmul.f32 %v6687, %v6975
      %v7008 = vmul.f32 %v6688, %v6976
      %v7009 = vmul.f32 %v6689, %v6975
      %v7010 = vmul.f32 %v6690, %v6976
      %v7011 = vmul.f32 %v6691, %v6977
      %v7012 = vmul.f32 %v6692, %v6978
      %v7013 = vmul.f32 %v6693, %v6977
      %v7014 = vmul.f32 %v6694, %v6978
      %v7015 = vmul.f32 %v6695, %v6977
      %v7016 = vmul.f32 %v6696, %v6978
      %v7017 = vmul.f32 %v6697, %v6977
      %v7018 = vmul.f32 %v6698, %v6978
      %v7019 = vmul.f32 %v6699, %v6979
      %v7020 = vmul.f32 %v6700, %v6980
      %v7021 = vmul.f32 %v6701, %v6979
      %v7022 = vmul.f32 %v6702, %v6980
      %v7023 = vmul.f32 %v6703, %v6979
      %v7024 = vmul.f32 %v6704, %v6980
      %v7025 = vmul.f32 %v6705, %v6979
      %v7026 = vmul.f32 %v6706, %v6980
      %v7027 = vmul.f32 %v6707, %v6981
      %v7028 = vmul.f32 %v6708, %v6982
      %v7029 = vmul.f32 %v6709, %v6981
      %v7030 = vmul.f32 %v6710, %v6982
      %v7031 = vmul.f32 %v6711, %v6981
      %v7032 = vmul.f32 %v6712, %v6982
      %v7033 = vmul.f32 %v6713, %v6981
      %v7034 = vmul.f32 %v6714, %v6982
      %v7035 = vmul.f32 %v6715, %v6983
      %v7036 = vmul.f32 %v6716, %v6984
      %v7037 = vmul.f32 %v6717, %v6983
      %v7038 = vmul.f32 %v6718, %v6984
      %v7039 = vmul.f32 %v6719, %v6983
      %v7040 = vmul.f32 %v6720, %v6984
      %v7041 = vmul.f32 %v6721, %v6983
      %v7042 = vmul.f32 %v6722, %v6984
      %v7043 = vmul.f32 %v6723, %v6985
      %v7044 = vmul.f32 %v6724, %v6986
      %v7045 = vmul.f32 %v6725, %v6985
      %v7046 = vmul.f32 %v6726, %v6986
      %v7047 = vmul.f32 %v6727, %v6985
      %v7048 = vmul.f32 %v6728, %v6986
      %v7049 = vmul.f32 %v6729, %v6985
      %v7050 = vmul.f32 %v6730, %v6986
      %7052 = vset.pattern.permute.xlu0 1
      %7053 = vperm.xlu0 %7052, %v6410
      %v7054 = vpop.permute.xlu0 %7053
      %7057 = vset.pattern.permute.xlu0 1
      %7058 = vperm.xlu0 %7057, %v6411
      %v7059 = vpop.permute.xlu0 %7058
      %7062 = vset.pattern.permute.xlu0 1
      %7063 = vperm.xlu0 %7062, %v6412
      %v7064 = vpop.permute.xlu0 %7063
      %7067 = vset.pattern.permute.xlu0 1
      %7068 = vperm.xlu0 %7067, %v6413
      %v7069 = vpop.permute.xlu0 %7068
      %7072 = vset.pattern.permute.xlu0 1
      %7073 = vperm.xlu0 %7072, %v6414
      %v7074 = vpop.permute.xlu0 %7073
      %7077 = vset.pattern.permute.xlu0 1
      %7078 = vperm.xlu0 %7077, %v6415
      %v7079 = vpop.permute.xlu0 %7078
      %7082 = vset.pattern.permute.xlu0 1
      %7083 = vperm.xlu0 %7082, %v6416
      %v7084 = vpop.permute.xlu0 %7083
      %7087 = vset.pattern.permute.xlu0 1
      %7088 = vperm.xlu0 %7087, %v6417
      %v7089 = vpop.permute.xlu0 %7088
      %7092 = vset.pattern.permute.xlu0 1
      %7093 = vperm.xlu0 %7092, %v6418
      %v7094 = vpop.permute.xlu0 %7093
      %7097 = vset.pattern.permute.xlu0 1
      %7098 = vperm.xlu0 %7097, %v6419
      %v7099 = vpop.permute.xlu0 %7098
      %7102 = vset.pattern.permute.xlu0 1
      %7103 = vperm.xlu0 %7102, %v6420
      %v7104 = vpop.permute.xlu0 %7103
      %7107 = vset.pattern.permute.xlu0 1
      %7108 = vperm.xlu0 %7107, %v6421
      %v7109 = vpop.permute.xlu0 %7108
      %7112 = vset.pattern.permute.xlu0 1
      %7113 = vperm.xlu0 %7112, %v6422
      %v7114 = vpop.permute.xlu0 %7113
      %7117 = vset.pattern.permute.xlu0 1
      %7118 = vperm.xlu0 %7117, %v6423
      %v7119 = vpop.permute.xlu0 %7118
      %7122 = vset.pattern.permute.xlu0 1
      %7123 = vperm.xlu0 %7122, %v6424
      %v7124 = vpop.permute.xlu0 %7123
      %7127 = vset.pattern.permute.xlu0 1
      %7128 = vperm.xlu0 %7127, %v6425
      %v7129 = vpop.permute.xlu0 %7128
      %7132 = vset.pattern.permute.xlu0 1
      %7133 = vperm.xlu0 %7132, %v6426
      %v7134 = vpop.permute.xlu0 %7133
      %7137 = vset.pattern.permute.xlu0 1
      %7138 = vperm.xlu0 %7137, %v6427
      %v7139 = vpop.permute.xlu0 %7138
      %7142 = vset.pattern.permute.xlu0 1
      %7143 = vperm.xlu0 %7142, %v6428
      %v7144 = vpop.permute.xlu0 %7143
      %7147 = vset.pattern.permute.xlu0 1
      %7148 = vperm.xlu0 %7147, %v6429
      %v7149 = vpop.permute.xlu0 %7148
      %7152 = vset.pattern.permute.xlu0 1
      %7153 = vperm.xlu0 %7152, %v6430
      %v7154 = vpop.permute.xlu0 %7153
      %7157 = vset.pattern.permute.xlu0 1
      %7158 = vperm.xlu0 %7157, %v6431
      %v7159 = vpop.permute.xlu0 %7158
      %7162 = vset.pattern.permute.xlu0 1
      %7163 = vperm.xlu0 %7162, %v6432
      %v7164 = vpop.permute.xlu0 %7163
      %7167 = vset.pattern.permute.xlu0 1
      %7168 = vperm.xlu0 %7167, %v6433
      %v7169 = vpop.permute.xlu0 %7168
      %7172 = vset.pattern.permute.xlu0 1
      %7173 = vperm.xlu0 %7172, %v6434
      %v7174 = vpop.permute.xlu0 %7173
      %7177 = vset.pattern.permute.xlu0 1
      %7178 = vperm.xlu0 %7177, %v6435
      %v7179 = vpop.permute.xlu0 %7178
      %7182 = vset.pattern.permute.xlu0 1
      %7183 = vperm.xlu0 %7182, %v6436
      %v7184 = vpop.permute.xlu0 %7183
      %7187 = vset.pattern.permute.xlu0 1
      %7188 = vperm.xlu0 %7187, %v6437
      %v7189 = vpop.permute.xlu0 %7188
      %7192 = vset.pattern.permute.xlu0 1
      %7193 = vperm.xlu0 %7192, %v6438
      %v7194 = vpop.permute.xlu0 %7193
      %7197 = vset.pattern.permute.xlu0 1
      %7198 = vperm.xlu0 %7197, %v6439
      %v7199 = vpop.permute.xlu0 %7198
      %7202 = vset.pattern.permute.xlu0 1
      %7203 = vperm.xlu0 %7202, %v6440
      %v7204 = vpop.permute.xlu0 %7203
      %7207 = vset.pattern.permute.xlu0 1
      %7208 = vperm.xlu0 %7207, %v6441
      %v7209 = vpop.permute.xlu0 %7208
      %v7211 = vmul.f32 %v6987, %v7054
      %v7212 = vmul.f32 %v6988, %v7054
      %v7213 = vmul.f32 %v6989, %v7059
      %v7214 = vmul.f32 %v6990, %v7059
      %v7215 = vmul.f32 %v6991, %v7064
      %v7216 = vmul.f32 %v6992, %v7064
      %v7217 = vmul.f32 %v6993, %v7069
      %v7218 = vmul.f32 %v6994, %v7069
      %v7219 = vmul.f32 %v6995, %v7074
      %v7220 = vmul.f32 %v6996, %v7074
      %v7221 = vmul.f32 %v6997, %v7079
      %v7222 = vmul.f32 %v6998, %v7079
      %v7223 = vmul.f32 %v6999, %v7084
      %v7224 = vmul.f32 %v7000, %v7084
      %v7225 = vmul.f32 %v7001, %v7089
      %v7226 = vmul.f32 %v7002, %v7089
      %v7227 = vmul.f32 %v7003, %v7094
      %v7228 = vmul.f32 %v7004, %v7094
      %v7229 = vmul.f32 %v7005, %v7099
      %v7230 = vmul.f32 %v7006, %v7099
      %v7231 = vmul.f32 %v7007, %v7104
      %v7232 = vmul.f32 %v7008, %v7104
      %v7233 = vmul.f32 %v7009, %v7109
      %v7234 = vmul.f32 %v7010, %v7109
      %v7235 = vmul.f32 %v7011, %v7114
      %v7236 = vmul.f32 %v7012, %v7114
      %v7237 = vmul.f32 %v7013, %v7119
      %v7238 = vmul.f32 %v7014, %v7119
      %v7239 = vmul.f32 %v7015, %v7124
      %v7240 = vmul.f32 %v7016, %v7124
      %v7241 = vmul.f32 %v7017, %v7129
      %v7242 = vmul.f32 %v7018, %v7129
      %v7243 = vmul.f32 %v7019, %v7134
      %v7244 = vmul.f32 %v7020, %v7134
      %v7245 = vmul.f32 %v7021, %v7139
      %v7246 = vmul.f32 %v7022, %v7139
      %v7247 = vmul.f32 %v7023, %v7144
      %v7248 = vmul.f32 %v7024, %v7144
      %v7249 = vmul.f32 %v7025, %v7149
      %v7250 = vmul.f32 %v7026, %v7149
      %v7251 = vmul.f32 %v7027, %v7154
      %v7252 = vmul.f32 %v7028, %v7154
      %v7253 = vmul.f32 %v7029, %v7159
      %v7254 = vmul.f32 %v7030, %v7159
      %v7255 = vmul.f32 %v7031, %v7164
      %v7256 = vmul.f32 %v7032, %v7164
      %v7257 = vmul.f32 %v7033, %v7169
      %v7258 = vmul.f32 %v7034, %v7169
      %v7259 = vmul.f32 %v7035, %v7174
      %v7260 = vmul.f32 %v7036, %v7174
      %v7261 = vmul.f32 %v7037, %v7179
      %v7262 = vmul.f32 %v7038, %v7179
      %v7263 = vmul.f32 %v7039, %v7184
      %v7264 = vmul.f32 %v7040, %v7184
      %v7265 = vmul.f32 %v7041, %v7189
      %v7266 = vmul.f32 %v7042, %v7189
      %v7267 = vmul.f32 %v7043, %v7194
      %v7268 = vmul.f32 %v7044, %v7194
      %v7269 = vmul.f32 %v7045, %v7199
      %v7270 = vmul.f32 %v7046, %v7199
      %v7271 = vmul.f32 %v7047, %v7204
      %v7272 = vmul.f32 %v7048, %v7204
      %v7273 = vmul.f32 %v7049, %v7209
      %v7274 = vmul.f32 %v7050, %v7209
      %7275 = vset.pattern.permute.xlu0 2
      %7276 = vperm.xlu0 %7275, %v6410
      %v7277 = vpop.permute.xlu0 %7276
      %7279 = vset.pattern.permute.xlu0 2
      %7280 = vperm.xlu0 %7279, %v6411
      %v7281 = vpop.permute.xlu0 %7280
      %7283 = vset.pattern.permute.xlu0 2
      %7284 = vperm.xlu0 %7283, %v6412
      %v7285 = vpop.permute.xlu0 %7284
      %7287 = vset.pattern.permute.xlu0 2
      %7288 = vperm.xlu0 %7287, %v6413
      %v7289 = vpop.permute.xlu0 %7288
      %7291 = vset.pattern.permute.xlu0 2
      %7292 = vperm.xlu0 %7291, %v6414
      %v7293 = vpop.permute.xlu0 %7292
      %7295 = vset.pattern.permute.xlu0 2
      %7296 = vperm.xlu0 %7295, %v6415
      %v7297 = vpop.permute.xlu0 %7296
      %7299 = vset.pattern.permute.xlu0 2
      %7300 = vperm.xlu0 %7299, %v6416
      %v7301 = vpop.permute.xlu0 %7300
      %7303 = vset.pattern.permute.xlu0 2
      %7304 = vperm.xlu0 %7303, %v6417
      %v7305 = vpop.permute.xlu0 %7304
      %7307 = vset.pattern.permute.xlu0 2
      %7308 = vperm.xlu0 %7307, %v6418
      %v7309 = vpop.permute.xlu0 %7308
      %7311 = vset.pattern.permute.xlu0 2
      %7312 = vperm.xlu0 %7311, %v6419
      %v7313 = vpop.permute.xlu0 %7312
      %7315 = vset.pattern.permute.xlu0 2
      %7316 = vperm.xlu0 %7315, %v6420
      %v7317 = vpop.permute.xlu0 %7316
      %7319 = vset.pattern.permute.xlu0 2
      %7320 = vperm.xlu0 %7319, %v6421
      %v7321 = vpop.permute.xlu0 %7320
      %7323 = vset.pattern.permute.xlu0 2
      %7324 = vperm.xlu0 %7323, %v6422
      %v7325 = vpop.permute.xlu0 %7324
      %7327 = vset.pattern.permute.xlu0 2
      %7328 = vperm.xlu0 %7327, %v6423
      %v7329 = vpop.permute.xlu0 %7328
      %7331 = vset.pattern.permute.xlu0 2
      %7332 = vperm.xlu0 %7331, %v6424
      %v7333 = vpop.permute.xlu0 %7332
      %7335 = vset.pattern.permute.xlu0 2
      %7336 = vperm.xlu0 %7335, %v6425
      %v7337 = vpop.permute.xlu0 %7336
      %7339 = vset.pattern.permute.xlu0 2
      %7340 = vperm.xlu0 %7339, %v6426
      %v7341 = vpop.permute.xlu0 %7340
      %7343 = vset.pattern.permute.xlu0 2
      %7344 = vperm.xlu0 %7343, %v6427
      %v7345 = vpop.permute.xlu0 %7344
      %7347 = vset.pattern.permute.xlu0 2
      %7348 = vperm.xlu0 %7347, %v6428
      %v7349 = vpop.permute.xlu0 %7348
      %7351 = vset.pattern.permute.xlu0 2
      %7352 = vperm.xlu0 %7351, %v6429
      %v7353 = vpop.permute.xlu0 %7352
      %7355 = vset.pattern.permute.xlu0 2
      %7356 = vperm.xlu0 %7355, %v6430
      %v7357 = vpop.permute.xlu0 %7356
      %7359 = vset.pattern.permute.xlu0 2
      %7360 = vperm.xlu0 %7359, %v6431
      %v7361 = vpop.permute.xlu0 %7360
      %7363 = vset.pattern.permute.xlu0 2
      %7364 = vperm.xlu0 %7363, %v6432
      %v7365 = vpop.permute.xlu0 %7364
      %7367 = vset.pattern.permute.xlu0 2
      %7368 = vperm.xlu0 %7367, %v6433
      %v7369 = vpop.permute.xlu0 %7368
      %7371 = vset.pattern.permute.xlu0 2
      %7372 = vperm.xlu0 %7371, %v6434
      %v7373 = vpop.permute.xlu0 %7372
      %7375 = vset.pattern.permute.xlu0 2
      %7376 = vperm.xlu0 %7375, %v6435
      %v7377 = vpop.permute.xlu0 %7376
      %7379 = vset.pattern.permute.xlu0 2
      %7380 = vperm.xlu0 %7379, %v6436
      %v7381 = vpop.permute.xlu0 %7380
      %7383 = vset.pattern.permute.xlu0 2
      %7384 = vperm.xlu0 %7383, %v6437
      %v7385 = vpop.permute.xlu0 %7384
      %7387 = vset.pattern.permute.xlu0 2
      %7388 = vperm.xlu0 %7387, %v6438
      %v7389 = vpop.permute.xlu0 %7388
      %7391 = vset.pattern.permute.xlu0 2
      %7392 = vperm.xlu0 %7391, %v6439
      %v7393 = vpop.permute.xlu0 %7392
      %7395 = vset.pattern.permute.xlu0 2
      %7396 = vperm.xlu0 %7395, %v6440
      %v7397 = vpop.permute.xlu0 %7396
      %7399 = vset.pattern.permute.xlu0 2
      %7400 = vperm.xlu0 %7399, %v6441
      %v7401 = vpop.permute.xlu0 %7400
      %v7403 = vadd.f32 %v7211, %v7277
      %v7404 = vadd.f32 %v7212, %v7277
      %v7405 = vadd.f32 %v7213, %v7281
      %v7406 = vadd.f32 %v7214, %v7281
      %v7407 = vadd.f32 %v7215, %v7285
      %v7408 = vadd.f32 %v7216, %v7285
      %v7409 = vadd.f32 %v7217, %v7289
      %v7410 = vadd.f32 %v7218, %v7289
      %v7411 = vadd.f32 %v7219, %v7293
      %v7412 = vadd.f32 %v7220, %v7293
      %v7413 = vadd.f32 %v7221, %v7297
      %v7414 = vadd.f32 %v7222, %v7297
      %v7415 = vadd.f32 %v7223, %v7301
      %v7416 = vadd.f32 %v7224, %v7301
      %v7417 = vadd.f32 %v7225, %v7305
      %v7418 = vadd.f32 %v7226, %v7305
      %v7419 = vadd.f32 %v7227, %v7309
      %v7420 = vadd.f32 %v7228, %v7309
      %v7421 = vadd.f32 %v7229, %v7313
      %v7422 = vadd.f32 %v7230, %v7313
      %v7423 = vadd.f32 %v7231, %v7317
      %v7424 = vadd.f32 %v7232, %v7317
      %v7425 = vadd.f32 %v7233, %v7321
      %v7426 = vadd.f32 %v7234, %v7321
      %v7427 = vadd.f32 %v7235, %v7325
      %v7428 = vadd.f32 %v7236, %v7325
      %v7429 = vadd.f32 %v7237, %v7329
      %v7430 = vadd.f32 %v7238, %v7329
      %v7431 = vadd.f32 %v7239, %v7333
      %v7432 = vadd.f32 %v7240, %v7333
      %v7433 = vadd.f32 %v7241, %v7337
      %v7434 = vadd.f32 %v7242, %v7337
      %v7435 = vadd.f32 %v7243, %v7341
      %v7436 = vadd.f32 %v7244, %v7341
      %v7437 = vadd.f32 %v7245, %v7345
      %v7438 = vadd.f32 %v7246, %v7345
      %v7439 = vadd.f32 %v7247, %v7349
      %v7440 = vadd.f32 %v7248, %v7349
      %v7441 = vadd.f32 %v7249, %v7353
      %v7442 = vadd.f32 %v7250, %v7353
      %v7443 = vadd.f32 %v7251, %v7357
      %v7444 = vadd.f32 %v7252, %v7357
      %v7445 = vadd.f32 %v7253, %v7361
      %v7446 = vadd.f32 %v7254, %v7361
      %v7447 = vadd.f32 %v7255, %v7365
      %v7448 = vadd.f32 %v7256, %v7365
      %v7449 = vadd.f32 %v7257, %v7369
      %v7450 = vadd.f32 %v7258, %v7369
      %v7451 = vadd.f32 %v7259, %v7373
      %v7452 = vadd.f32 %v7260, %v7373
      %v7453 = vadd.f32 %v7261, %v7377
      %v7454 = vadd.f32 %v7262, %v7377
      %v7455 = vadd.f32 %v7263, %v7381
      %v7456 = vadd.f32 %v7264, %v7381
      %v7457 = vadd.f32 %v7265, %v7385
      %v7458 = vadd.f32 %v7266, %v7385
      %v7459 = vadd.f32 %v7267, %v7389
      %v7460 = vadd.f32 %v7268, %v7389
      %v7461 = vadd.f32 %v7269, %v7393
      %v7462 = vadd.f32 %v7270, %v7393
      %v7463 = vadd.f32 %v7271, %v7397
      %v7464 = vadd.f32 %v7272, %v7397
      %v7465 = vadd.f32 %v7273, %v7401
      %v7466 = vadd.f32 %v7274, %v7401
      %v7467 = vld [vmem:[%s1 + $0x300] sm:$0xff]
      %v7468 = vld [vmem:[%s1 + $0x308] sm:$0xff]
      %v7469 = vld [vmem:[%s1 + $0x310] sm:$0xff]
      %v7470 = vld [vmem:[%s1 + $0x318] sm:$0xff]
      %v7471 = vld [vmem:[%s1 + $0x320] sm:$0xff]
      %v7472 = vld [vmem:[%s1 + $0x328] sm:$0xff]
      %v7473 = vld [vmem:[%s1 + $0x330] sm:$0xff]
      %v7474 = vld [vmem:[%s1 + $0x338] sm:$0xff]
      %v7475 = vld [vmem:[%s1 + $0x340] sm:$0xff]
      %v7476 = vld [vmem:[%s1 + $0x348] sm:$0xff]
      %v7477 = vld [vmem:[%s1 + $0x350] sm:$0xff]
      %v7478 = vld [vmem:[%s1 + $0x358] sm:$0xff]
      %v7479 = vld [vmem:[%s1 + $0x360] sm:$0xff]
      %v7480 = vld [vmem:[%s1 + $0x368] sm:$0xff]
      %v7481 = vld [vmem:[%s1 + $0x370] sm:$0xff]
      %v7482 = vld [vmem:[%s1 + $0x378] sm:$0xff]
      %v7483 = vld [vmem:[%s1 + $0x380] sm:$0xff]
      %v7484 = vld [vmem:[%s1 + $0x388] sm:$0xff]
      %v7485 = vld [vmem:[%s1 + $0x390] sm:$0xff]
      %v7486 = vld [vmem:[%s1 + $0x398] sm:$0xff]
      %v7487 = vld [vmem:[%s1 + $0x3a0] sm:$0xff]
      %v7488 = vld [vmem:[%s1 + $0x3a8] sm:$0xff]
      %v7489 = vld [vmem:[%s1 + $0x3b0] sm:$0xff]
      %v7490 = vld [vmem:[%s1 + $0x3b8] sm:$0xff]
      %v7491 = vld [vmem:[%s1 + $0x3c0] sm:$0xff]
      %v7492 = vld [vmem:[%s1 + $0x3c8] sm:$0xff]
      %v7493 = vld [vmem:[%s1 + $0x3d0] sm:$0xff]
      %v7494 = vld [vmem:[%s1 + $0x3d8] sm:$0xff]
      %v7495 = vld [vmem:[%s1 + $0x3e0] sm:$0xff]
      %v7496 = vld [vmem:[%s1 + $0x3e8] sm:$0xff]
      %v7497 = vld [vmem:[%s1 + $0x3f0] sm:$0xff]
      %v7498 = vld [vmem:[%s1 + $0x3f8] sm:$0xff]
      %v7499 = vpack.c.bf16 %v7405, %v7403
      %v7500 = vpack.c.bf16 %v7406, %v7404
      %v7501 = vpack.c.bf16 %v7409, %v7407
      %v7502 = vpack.c.bf16 %v7410, %v7408
      %v7503 = vpack.c.bf16 %v7413, %v7411
      %v7504 = vpack.c.bf16 %v7414, %v7412
      %v7505 = vpack.c.bf16 %v7417, %v7415
      %v7506 = vpack.c.bf16 %v7418, %v7416
      %v7507 = vpack.c.bf16 %v7421, %v7419
      %v7508 = vpack.c.bf16 %v7422, %v7420
      %v7509 = vpack.c.bf16 %v7425, %v7423
      %v7510 = vpack.c.bf16 %v7426, %v7424
      %v7511 = vpack.c.bf16 %v7429, %v7427
      %v7512 = vpack.c.bf16 %v7430, %v7428
      %v7513 = vpack.c.bf16 %v7433, %v7431
      %v7514 = vpack.c.bf16 %v7434, %v7432
      %v7515 = vpack.c.bf16 %v7437, %v7435
      %v7516 = vpack.c.bf16 %v7438, %v7436
      %v7517 = vpack.c.bf16 %v7441, %v7439
      %v7518 = vpack.c.bf16 %v7442, %v7440
      %v7519 = vpack.c.bf16 %v7445, %v7443
      %v7520 = vpack.c.bf16 %v7446, %v7444
      %v7521 = vpack.c.bf16 %v7449, %v7447
      %v7522 = vpack.c.bf16 %v7450, %v7448
      %v7523 = vpack.c.bf16 %v7453, %v7451
      %v7524 = vpack.c.bf16 %v7454, %v7452
      %v7525 = vpack.c.bf16 %v7457, %v7455
      %v7526 = vpack.c.bf16 %v7458, %v7456
      %v7527 = vpack.c.bf16 %v7461, %v7459
      %v7528 = vpack.c.bf16 %v7462, %v7460
      %v7529 = vpack.c.bf16 %v7465, %v7463
      %v7530 = vpack.c.bf16 %v7466, %v7464
      %7531 = vset.pattern.permute.xlu0 3
      %7532 = vperm.xlu0 %7531, %v6410
      %v7533 = vpop.permute.xlu0 %7532
      %7535 = vset.pattern.permute.xlu0 3
      %7536 = vperm.xlu0 %7535, %v6411
      %v7537 = vpop.permute.xlu0 %7536
      %7539 = vset.pattern.permute.xlu0 3
      %7540 = vperm.xlu0 %7539, %v6412
      %v7541 = vpop.permute.xlu0 %7540
      %7543 = vset.pattern.permute.xlu0 3
      %7544 = vperm.xlu0 %7543, %v6413
      %v7545 = vpop.permute.xlu0 %7544
      %7547 = vset.pattern.permute.xlu0 3
      %7548 = vperm.xlu0 %7547, %v6414
      %v7549 = vpop.permute.xlu0 %7548
      %7551 = vset.pattern.permute.xlu0 3
      %7552 = vperm.xlu0 %7551, %v6415
      %v7553 = vpop.permute.xlu0 %7552
      %7555 = vset.pattern.permute.xlu0 3
      %7556 = vperm.xlu0 %7555, %v6416
      %v7557 = vpop.permute.xlu0 %7556
      %7559 = vset.pattern.permute.xlu0 3
      %7560 = vperm.xlu0 %7559, %v6417
      %v7561 = vpop.permute.xlu0 %7560
      %7563 = vset.pattern.permute.xlu0 3
      %7564 = vperm.xlu0 %7563, %v6418
      %v7565 = vpop.permute.xlu0 %7564
      %7567 = vset.pattern.permute.xlu0 3
      %7568 = vperm.xlu0 %7567, %v6419
      %v7569 = vpop.permute.xlu0 %7568
      %7571 = vset.pattern.permute.xlu0 3
      %7572 = vperm.xlu0 %7571, %v6420
      %v7573 = vpop.permute.xlu0 %7572
      %7575 = vset.pattern.permute.xlu0 3
      %7576 = vperm.xlu0 %7575, %v6421
      %v7577 = vpop.permute.xlu0 %7576
      %7579 = vset.pattern.permute.xlu0 3
      %7580 = vperm.xlu0 %7579, %v6422
      %v7581 = vpop.permute.xlu0 %7580
      %7583 = vset.pattern.permute.xlu0 3
      %7584 = vperm.xlu0 %7583, %v6423
      %v7585 = vpop.permute.xlu0 %7584
      %7587 = vset.pattern.permute.xlu0 3
      %7588 = vperm.xlu0 %7587, %v6424
      %v7589 = vpop.permute.xlu0 %7588
      %7591 = vset.pattern.permute.xlu0 3
      %7592 = vperm.xlu0 %7591, %v6425
      %v7593 = vpop.permute.xlu0 %7592
      %7595 = vset.pattern.permute.xlu0 3
      %7596 = vperm.xlu0 %7595, %v6426
      %v7597 = vpop.permute.xlu0 %7596
      %7599 = vset.pattern.permute.xlu0 3
      %7600 = vperm.xlu0 %7599, %v6427
      %v7601 = vpop.permute.xlu0 %7600
      %7603 = vset.pattern.permute.xlu0 3
      %7604 = vperm.xlu0 %7603, %v6428
      %v7605 = vpop.permute.xlu0 %7604
      %7607 = vset.pattern.permute.xlu0 3
      %7608 = vperm.xlu0 %7607, %v6429
      %v7609 = vpop.permute.xlu0 %7608
      %7611 = vset.pattern.permute.xlu0 3
      %7612 = vperm.xlu0 %7611, %v6430
      %v7613 = vpop.permute.xlu0 %7612
      %7615 = vset.pattern.permute.xlu0 3
      %7616 = vperm.xlu0 %7615, %v6431
      %v7617 = vpop.permute.xlu0 %7616
      %7619 = vset.pattern.permute.xlu0 3
      %7620 = vperm.xlu0 %7619, %v6432
      %v7621 = vpop.permute.xlu0 %7620
      %7623 = vset.pattern.permute.xlu0 3
      %7624 = vperm.xlu0 %7623, %v6433
      %v7625 = vpop.permute.xlu0 %7624
      %7627 = vset.pattern.permute.xlu0 3
      %7628 = vperm.xlu0 %7627, %v6434
      %v7629 = vpop.permute.xlu0 %7628
      %7631 = vset.pattern.permute.xlu0 3
      %7632 = vperm.xlu0 %7631, %v6435
      %v7633 = vpop.permute.xlu0 %7632
      %7635 = vset.pattern.permute.xlu0 3
      %7636 = vperm.xlu0 %7635, %v6436
      %v7637 = vpop.permute.xlu0 %7636
      %7639 = vset.pattern.permute.xlu0 3
      %7640 = vperm.xlu0 %7639, %v6437
      %v7641 = vpop.permute.xlu0 %7640
      %7643 = vset.pattern.permute.xlu0 3
      %7644 = vperm.xlu0 %7643, %v6438
      %v7645 = vpop.permute.xlu0 %7644
      %7647 = vset.pattern.permute.xlu0 3
      %7648 = vperm.xlu0 %7647, %v6439
      %v7649 = vpop.permute.xlu0 %7648
      %7651 = vset.pattern.permute.xlu0 3
      %7652 = vperm.xlu0 %7651, %v6440
      %v7653 = vpop.permute.xlu0 %7652
      %7655 = vset.pattern.permute.xlu0 3
      %7656 = vperm.xlu0 %7655, %v6441
      %v7657 = vpop.permute.xlu0 %7656
      %v7691 = vunpack.c.l.b16 %v7467
      %v7692 = vunpack.c.h.b16 %v7467
      %v7693 = vunpack.c.l.b16 %v7468
      %v7694 = vunpack.c.h.b16 %v7468
      %v7695 = vunpack.c.l.b16 %v7469
      %v7696 = vunpack.c.h.b16 %v7469
      %v7697 = vunpack.c.l.b16 %v7470
      %v7698 = vunpack.c.h.b16 %v7470
      %v7699 = vunpack.c.l.b16 %v7471
      %v7700 = vunpack.c.h.b16 %v7471
      %v7701 = vunpack.c.l.b16 %v7472
      %v7702 = vunpack.c.h.b16 %v7472
      %v7703 = vunpack.c.l.b16 %v7473
      %v7704 = vunpack.c.h.b16 %v7473
      %v7705 = vunpack.c.l.b16 %v7474
      %v7706 = vunpack.c.h.b16 %v7474
      %v7707 = vunpack.c.l.b16 %v7475
      %v7708 = vunpack.c.h.b16 %v7475
      %v7709 = vunpack.c.l.b16 %v7476
      %v7710 = vunpack.c.h.b16 %v7476
      %v7711 = vunpack.c.l.b16 %v7477
      %v7712 = vunpack.c.h.b16 %v7477
      %v7713 = vunpack.c.l.b16 %v7478
      %v7714 = vunpack.c.h.b16 %v7478
      %v7715 = vunpack.c.l.b16 %v7479
      %v7716 = vunpack.c.h.b16 %v7479
      %v7717 = vunpack.c.l.b16 %v7480
      %v7718 = vunpack.c.h.b16 %v7480
      %v7719 = vunpack.c.l.b16 %v7481
      %v7720 = vunpack.c.h.b16 %v7481
      %v7721 = vunpack.c.l.b16 %v7482
      %v7722 = vunpack.c.h.b16 %v7482
      %v7723 = vunpack.c.l.b16 %v7483
      %v7724 = vunpack.c.h.b16 %v7483
      %v7725 = vunpack.c.l.b16 %v7484
      %v7726 = vunpack.c.h.b16 %v7484
      %v7727 = vunpack.c.l.b16 %v7485
      %v7728 = vunpack.c.h.b16 %v7485
      %v7729 = vunpack.c.l.b16 %v7486
      %v7730 = vunpack.c.h.b16 %v7486
      %v7731 = vunpack.c.l.b16 %v7487
      %v7732 = vunpack.c.h.b16 %v7487
      %v7733 = vunpack.c.l.b16 %v7488
      %v7734 = vunpack.c.h.b16 %v7488
      %v7735 = vunpack.c.l.b16 %v7489
      %v7736 = vunpack.c.h.b16 %v7489
      %v7737 = vunpack.c.l.b16 %v7490
      %v7738 = vunpack.c.h.b16 %v7490
      %v7739 = vunpack.c.l.b16 %v7491
      %v7740 = vunpack.c.h.b16 %v7491
      %v7741 = vunpack.c.l.b16 %v7492
      %v7742 = vunpack.c.h.b16 %v7492
      %v7743 = vunpack.c.l.b16 %v7493
      %v7744 = vunpack.c.h.b16 %v7493
      %v7745 = vunpack.c.l.b16 %v7494
      %v7746 = vunpack.c.h.b16 %v7494
      %v7747 = vunpack.c.l.b16 %v7495
      %v7748 = vunpack.c.h.b16 %v7495
      %v7749 = vunpack.c.l.b16 %v7496
      %v7750 = vunpack.c.h.b16 %v7496
      %v7751 = vunpack.c.l.b16 %v7497
      %v7752 = vunpack.c.h.b16 %v7497
      %v7753 = vunpack.c.l.b16 %v7498
      %v7754 = vunpack.c.h.b16 %v7498
      %v7755 = vpack.c.b16 %v7693, %v7691
      %v7756 = vpack.c.b16 %v7694, %v7692
      %v7757 = vpack.c.b16 %v7697, %v7695
      %v7758 = vpack.c.b16 %v7698, %v7696
      %v7759 = vpack.c.b16 %v7701, %v7699
      %v7760 = vpack.c.b16 %v7702, %v7700
      %v7761 = vpack.c.b16 %v7705, %v7703
      %v7762 = vpack.c.b16 %v7706, %v7704
      %v7763 = vpack.c.b16 %v7709, %v7707
      %v7764 = vpack.c.b16 %v7710, %v7708
      %v7765 = vpack.c.b16 %v7713, %v7711
      %v7766 = vpack.c.b16 %v7714, %v7712
      %v7767 = vpack.c.b16 %v7717, %v7715
      %v7768 = vpack.c.b16 %v7718, %v7716
      %v7769 = vpack.c.b16 %v7721, %v7719
      %v7770 = vpack.c.b16 %v7722, %v7720
      %v7771 = vpack.c.b16 %v7725, %v7723
      %v7772 = vpack.c.b16 %v7726, %v7724
      %v7773 = vpack.c.b16 %v7729, %v7727
      %v7774 = vpack.c.b16 %v7730, %v7728
      %v7775 = vpack.c.b16 %v7733, %v7731
      %v7776 = vpack.c.b16 %v7734, %v7732
      %v7777 = vpack.c.b16 %v7737, %v7735
      %v7778 = vpack.c.b16 %v7738, %v7736
      %v7779 = vpack.c.b16 %v7741, %v7739
      %v7780 = vpack.c.b16 %v7742, %v7740
      %v7781 = vpack.c.b16 %v7745, %v7743
      %v7782 = vpack.c.b16 %v7746, %v7744
      %v7783 = vpack.c.b16 %v7749, %v7747
      %v7784 = vpack.c.b16 %v7750, %v7748
      %v7785 = vpack.c.b16 %v7753, %v7751
      %v7786 = vpack.c.b16 %v7754, %v7752
      %7819 = vmatprep.subr.bf16.mxu0 %v7514
      %7820 = vmatpush1.bf16.msra.mxu0 %v7513
      %7821 = vmatprep.subr.bf16.mxu0 %v7512
      %7822 = vmatpush1.bf16.msra.mxu0 %v7511
      %7823 = vmatprep.subr.bf16.mxu0 %v7510
      %7824 = vmatpush1.bf16.msra.mxu0 %v7509
      %7825 = vmatprep.subr.bf16.mxu0 %v7508
      %7826 = vmatpush1.bf16.msra.mxu0 %v7507
      %7827 = vmatprep.subr.bf16.mxu0 %v7506
      %7828 = vmatpush1.bf16.msra.mxu0 %v7505
      %7829 = vmatprep.subr.bf16.mxu0 %v7504
      %7830 = vmatpush1.bf16.msra.mxu0 %v7503
      %7831 = vmatprep.subr.bf16.mxu0 %v7502
      %7832 = vmatpush1.bf16.msra.mxu0 %v7501
      %7833 = vmatprep.subr.bf16.mxu0 %v7500
      %7834 = vmatpush1.bf16.msra.mxu0 %v7499
      %7835 = vmatprep.subr.bf16.mxu0 %v7530
      %7836 = vmatpush2.bf16.msra.mxu0 %v7529
      %7837 = vmatprep.subr.bf16.mxu0 %v7528
      %7838 = vmatpush2.bf16.msra.mxu0 %v7527
      %7839 = vmatprep.subr.bf16.mxu0 %v7526
      %7840 = vmatpush2.bf16.msra.mxu0 %v7525
      %7841 = vmatprep.subr.bf16.mxu0 %v7524
      %7842 = vmatpush2.bf16.msra.mxu0 %v7523
      %7843 = vmatprep.subr.bf16.mxu0 %v7522
      %7844 = vmatpush2.bf16.msra.mxu0 %v7521
      %7845 = vmatprep.subr.bf16.mxu0 %v7520
      %7846 = vmatpush2.bf16.msra.mxu0 %v7519
      %7847 = vmatprep.subr.bf16.mxu0 %v7518
      %7848 = vmatpush2.bf16.msra.mxu0 %v7517
      %7849 = vmatprep.subr.bf16.mxu0 %v7516
      %7850 = vmatpush2.bf16.msra.mxu0 %v7515
      %7851 = vmatprep.mubr.bf16.mxu0 %v7756
      %7852 = vmatmul.mubr.bf16.gmra.mxu0 %v7755
      %v7853 = vpop.f32.mrf.mxu0
      %v7854 = vadd.f32 %v7533, %v7853
      %v7855 = vpop.f32.mrf.mxu0
      %v7856 = vadd.f32 %v7533, %v7855
      %v7857 = vpop.f32.mrf.mxu0
      %v7858 = vadd.f32 %v7537, %v7857
      %v7859 = vpop.f32.mrf.mxu0
      %v7860 = vadd.f32 %v7537, %v7859
      %7861 = vmatprep.mubr.bf16.mxu0 %v7758
      %7862 = vmatmul.mubr.bf16.gmra.mxu0 %v7757
      %v7863 = vpop.f32.mrf.mxu0
      %v7864 = vadd.f32 %v7541, %v7863
      %v7865 = vpop.f32.mrf.mxu0
      %v7866 = vadd.f32 %v7541, %v7865
      %v7867 = vpop.f32.mrf.mxu0
      %v7868 = vadd.f32 %v7545, %v7867
      %v7869 = vpop.f32.mrf.mxu0
      %v7870 = vadd.f32 %v7545, %v7869
      %7871 = vmatprep.mubr.bf16.mxu0 %v7760
      %7872 = vmatmul.mubr.bf16.gmra.mxu0 %v7759
      %v7873 = vpop.f32.mrf.mxu0
      %v7874 = vadd.f32 %v7549, %v7873
      %v7875 = vpop.f32.mrf.mxu0
      %v7876 = vadd.f32 %v7549, %v7875
      %v7877 = vpop.f32.mrf.mxu0
      %v7878 = vadd.f32 %v7553, %v7877
      %v7879 = vpop.f32.mrf.mxu0
      %v7880 = vadd.f32 %v7553, %v7879
      %7881 = vmatprep.mubr.bf16.mxu0 %v7762
      %7882 = vmatmul.mubr.bf16.gmra.mxu0 %v7761
      %v7883 = vpop.f32.mrf.mxu0
      %v7884 = vadd.f32 %v7557, %v7883
      %v7885 = vpop.f32.mrf.mxu0
      %v7886 = vadd.f32 %v7557, %v7885
      %v7887 = vpop.f32.mrf.mxu0
      %v7888 = vadd.f32 %v7561, %v7887
      %v7889 = vpop.f32.mrf.mxu0
      %v7890 = vadd.f32 %v7561, %v7889
      %7891 = vmatprep.mubr.bf16.mxu0 %v7764
      %7892 = vmatmul.mubr.bf16.gmra.mxu0 %v7763
      %v7893 = vpop.f32.mrf.mxu0
      %v7894 = vadd.f32 %v7565, %v7893
      %v7895 = vpop.f32.mrf.mxu0
      %v7896 = vadd.f32 %v7565, %v7895
      %v7897 = vpop.f32.mrf.mxu0
      %v7898 = vadd.f32 %v7569, %v7897
      %v7899 = vpop.f32.mrf.mxu0
      %v7900 = vadd.f32 %v7569, %v7899
      %7901 = vmatprep.mubr.bf16.mxu0 %v7766
      %7902 = vmatmul.mubr.bf16.gmra.mxu0 %v7765
      %v7903 = vpop.f32.mrf.mxu0
      %v7904 = vadd.f32 %v7573, %v7903
      %v7905 = vpop.f32.mrf.mxu0
      %v7906 = vadd.f32 %v7573, %v7905
      %v7907 = vpop.f32.mrf.mxu0
      %v7908 = vadd.f32 %v7577, %v7907
      %v7909 = vpop.f32.mrf.mxu0
      %v7910 = vadd.f32 %v7577, %v7909
      %7911 = vmatprep.mubr.bf16.mxu0 %v7768
      %7912 = vmatmul.mubr.bf16.gmra.mxu0 %v7767
      %v7913 = vpop.f32.mrf.mxu0
      %v7914 = vadd.f32 %v7581, %v7913
      %v7915 = vpop.f32.mrf.mxu0
      %v7916 = vadd.f32 %v7581, %v7915
      %v7917 = vpop.f32.mrf.mxu0
      %v7918 = vadd.f32 %v7585, %v7917
      %v7919 = vpop.f32.mrf.mxu0
      %v7920 = vadd.f32 %v7585, %v7919
      %7921 = vmatprep.mubr.bf16.mxu0 %v7770
      %7922 = vmatmul.mubr.bf16.gmra.mxu0 %v7769
      %v7923 = vpop.f32.mrf.mxu0
      %v7924 = vadd.f32 %v7589, %v7923
      %v7925 = vpop.f32.mrf.mxu0
      %v7926 = vadd.f32 %v7589, %v7925
      %v7927 = vpop.f32.mrf.mxu0
      %v7928 = vadd.f32 %v7593, %v7927
      %v7929 = vpop.f32.mrf.mxu0
      %v7930 = vadd.f32 %v7593, %v7929
      %7931 = vmatprep.mubr.bf16.mxu0 %v7772
      %7932 = vmatmul.mubr.bf16.gmra.mxu0 %v7771
      %v7933 = vpop.f32.mrf.mxu0
      %v7934 = vadd.f32 %v7597, %v7933
      %v7935 = vpop.f32.mrf.mxu0
      %v7936 = vadd.f32 %v7597, %v7935
      %v7937 = vpop.f32.mrf.mxu0
      %v7938 = vadd.f32 %v7601, %v7937
      %v7939 = vpop.f32.mrf.mxu0
      %v7940 = vadd.f32 %v7601, %v7939
      %7941 = vmatprep.mubr.bf16.mxu0 %v7774
      %7942 = vmatmul.mubr.bf16.gmra.mxu0 %v7773
      %v7943 = vpop.f32.mrf.mxu0
      %v7944 = vadd.f32 %v7605, %v7943
      %v7945 = vpop.f32.mrf.mxu0
      %v7946 = vadd.f32 %v7605, %v7945
      %v7947 = vpop.f32.mrf.mxu0
      %v7948 = vadd.f32 %v7609, %v7947
      %v7949 = vpop.f32.mrf.mxu0
      %v7950 = vadd.f32 %v7609, %v7949
      %7951 = vmatprep.mubr.bf16.mxu0 %v7776
      %7952 = vmatmul.mubr.bf16.gmra.mxu0 %v7775
      %v7953 = vpop.f32.mrf.mxu0
      %v7954 = vadd.f32 %v7613, %v7953
      %v7955 = vpop.f32.mrf.mxu0
      %v7956 = vadd.f32 %v7613, %v7955
      %v7957 = vpop.f32.mrf.mxu0
      %v7958 = vadd.f32 %v7617, %v7957
      %v7959 = vpop.f32.mrf.mxu0
      %v7960 = vadd.f32 %v7617, %v7959
      %7961 = vmatprep.mubr.bf16.mxu0 %v7778
      %7962 = vmatmul.mubr.bf16.gmra.mxu0 %v7777
      %v7963 = vpop.f32.mrf.mxu0
      %v7964 = vadd.f32 %v7621, %v7963
      %v7965 = vpop.f32.mrf.mxu0
      %v7966 = vadd.f32 %v7621, %v7965
      %v7967 = vpop.f32.mrf.mxu0
      %v7968 = vadd.f32 %v7625, %v7967
      %v7969 = vpop.f32.mrf.mxu0
      %v7970 = vadd.f32 %v7625, %v7969
      %7971 = vmatprep.mubr.bf16.mxu0 %v7780
      %7972 = vmatmul.mubr.bf16.gmra.mxu0 %v7779
      %v7973 = vpop.f32.mrf.mxu0
      %v7974 = vadd.f32 %v7629, %v7973
      %v7975 = vpop.f32.mrf.mxu0
      %v7976 = vadd.f32 %v7629, %v7975
      %v7977 = vpop.f32.mrf.mxu0
      %v7978 = vadd.f32 %v7633, %v7977
      %v7979 = vpop.f32.mrf.mxu0
      %v7980 = vadd.f32 %v7633, %v7979
      %7981 = vmatprep.mubr.bf16.mxu0 %v7782
      %7982 = vmatmul.mubr.bf16.gmra.mxu0 %v7781
      %v7983 = vpop.f32.mrf.mxu0
      %v7984 = vadd.f32 %v7637, %v7983
      %v7985 = vpop.f32.mrf.mxu0
      %v7986 = vadd.f32 %v7637, %v7985
      %v7987 = vpop.f32.mrf.mxu0
      %v7988 = vadd.f32 %v7641, %v7987
      %v7989 = vpop.f32.mrf.mxu0
      %v7990 = vadd.f32 %v7641, %v7989
      %7991 = vmatprep.mubr.bf16.mxu0 %v7784
      %7992 = vmatmul.mubr.bf16.gmra.mxu0 %v7783
      %v7993 = vpop.f32.mrf.mxu0
      %v7994 = vadd.f32 %v7645, %v7993
      %v7995 = vpop.f32.mrf.mxu0
      %v7996 = vadd.f32 %v7645, %v7995
      %v7997 = vpop.f32.mrf.mxu0
      %v7998 = vadd.f32 %v7649, %v7997
      %v7999 = vpop.f32.mrf.mxu0
      %v8000 = vadd.f32 %v7649, %v7999
      %8001 = vmatprep.mubr.bf16.mxu0 %v7786
      %8002 = vmatmul.mubr.bf16.gmra.mxu0 %v7785
      %v8003 = vpop.f32.mrf.mxu0
      %v8004 = vadd.f32 %v7653, %v8003
      %v8005 = vpop.f32.mrf.mxu0
      %v8006 = vadd.f32 %v7653, %v8005
      %v8007 = vpop.f32.mrf.mxu0
      %v8008 = vadd.f32 %v7657, %v8007
      %v8009 = vpop.f32.mrf.mxu0
      %v8010 = vadd.f32 %v7657, %v8009
      %8011 = vdwg.mxu0
      %v8012 = vadd.f32 %v7403, %v7854
      %v8013 = vadd.f32 %v7404, %v7856
      %v8014 = vadd.f32 %v7405, %v7858
      %v8015 = vadd.f32 %v7406, %v7860
      %v8016 = vadd.f32 %v7407, %v7864
      %v8017 = vadd.f32 %v7408, %v7866
      %v8018 = vadd.f32 %v7409, %v7868
      %v8019 = vadd.f32 %v7410, %v7870
      %v8020 = vadd.f32 %v7411, %v7874
      %v8021 = vadd.f32 %v7412, %v7876
      %v8022 = vadd.f32 %v7413, %v7878
      %v8023 = vadd.f32 %v7414, %v7880
      %v8024 = vadd.f32 %v7415, %v7884
      %v8025 = vadd.f32 %v7416, %v7886
      %v8026 = vadd.f32 %v7417, %v7888
      %v8027 = vadd.f32 %v7418, %v7890
      %v8028 = vadd.f32 %v7419, %v7894
      %v8029 = vadd.f32 %v7420, %v7896
      %v8030 = vadd.f32 %v7421, %v7898
      %v8031 = vadd.f32 %v7422, %v7900
      %v8032 = vadd.f32 %v7423, %v7904
      %v8033 = vadd.f32 %v7424, %v7906
      %v8034 = vadd.f32 %v7425, %v7908
      %v8035 = vadd.f32 %v7426, %v7910
      %v8036 = vadd.f32 %v7427, %v7914
      %v8037 = vadd.f32 %v7428, %v7916
      %v8038 = vadd.f32 %v7429, %v7918
      %v8039 = vadd.f32 %v7430, %v7920
      %v8040 = vadd.f32 %v7431, %v7924
      %v8041 = vadd.f32 %v7432, %v7926
      %v8042 = vadd.f32 %v7433, %v7928
      %v8043 = vadd.f32 %v7434, %v7930
      %v8044 = vadd.f32 %v7435, %v7934
      %v8045 = vadd.f32 %v7436, %v7936
      %v8046 = vadd.f32 %v7437, %v7938
      %v8047 = vadd.f32 %v7438, %v7940
      %v8048 = vadd.f32 %v7439, %v7944
      %v8049 = vadd.f32 %v7440, %v7946
      %v8050 = vadd.f32 %v7441, %v7948
      %v8051 = vadd.f32 %v7442, %v7950
      %v8052 = vadd.f32 %v7443, %v7954
      %v8053 = vadd.f32 %v7444, %v7956
      %v8054 = vadd.f32 %v7445, %v7958
      %v8055 = vadd.f32 %v7446, %v7960
      %v8056 = vadd.f32 %v7447, %v7964
      %v8057 = vadd.f32 %v7448, %v7966
      %v8058 = vadd.f32 %v7449, %v7968
      %v8059 = vadd.f32 %v7450, %v7970
      %v8060 = vadd.f32 %v7451, %v7974
      %v8061 = vadd.f32 %v7452, %v7976
      %v8062 = vadd.f32 %v7453, %v7978
      %v8063 = vadd.f32 %v7454, %v7980
      %v8064 = vadd.f32 %v7455, %v7984
      %v8065 = vadd.f32 %v7456, %v7986
      %v8066 = vadd.f32 %v7457, %v7988
      %v8067 = vadd.f32 %v7458, %v7990
      %v8068 = vadd.f32 %v7459, %v7994
      %v8069 = vadd.f32 %v7460, %v7996
      %v8070 = vadd.f32 %v7461, %v7998
      %v8071 = vadd.f32 %v7462, %v8000
      %v8072 = vadd.f32 %v7463, %v8004
      %v8073 = vadd.f32 %v7464, %v8006
      %v8074 = vadd.f32 %v7465, %v8008
      %v8075 = vadd.f32 %v7466, %v8010
      %v8076 = vadd.f32 %v8012, %v8014
      %v8077 = vadd.f32 %v8076, %v8016
      %v8078 = vadd.f32 %v8077, %v8018
      %v8079 = vrot.slane %v8078, 4
      %v8080 = vadd.f32 %v8078, %v8079
      %v8081 = vrot.slane %v8080, 2
      %v8082 = vadd.f32 %v8080, %v8081
      %v8083 = vrot.slane %v8082, 1
      %v8084 = vadd.f32 %v8082, %v8083
      %v8085 = vadd.f32 %v8013, %v8015
      %v8086 = vadd.f32 %v8085, %v8017
      %v8087 = vadd.f32 %v8086, %v8019
      %v8088 = vrot.slane %v8087, 4
      %v8089 = vadd.f32 %v8087, %v8088
      %v8090 = vrot.slane %v8089, 2
      %v8091 = vadd.f32 %v8089, %v8090
      %v8092 = vrot.slane %v8091, 1
      %v8093 = vadd.f32 %v8091, %v8092
      %v8094 = vadd.f32 %v8020, %v8022
      %v8095 = vadd.f32 %v8094, %v8024
      %v8096 = vadd.f32 %v8095, %v8026
      %v8097 = vrot.slane %v8096, 4
      %v8098 = vadd.f32 %v8096, %v8097
      %v8099 = vrot.slane %v8098, 2
      %v8100 = vadd.f32 %v8098, %v8099
      %v8101 = vrot.slane %v8100, 1
      %v8102 = vadd.f32 %v8100, %v8101
      %v8103 = vadd.f32 %v8021, %v8023
      %v8104 = vadd.f32 %v8103, %v8025
      %v8105 = vadd.f32 %v8104, %v8027
      %v8106 = vrot.slane %v8105, 4
      %v8107 = vadd.f32 %v8105, %v8106
      %v8108 = vrot.slane %v8107, 2
      %v8109 = vadd.f32 %v8107, %v8108
      %v8110 = vrot.slane %v8109, 1
      %v8111 = vadd.f32 %v8109, %v8110
      %v8112 = vadd.f32 %v8028, %v8030
      %v8113 = vadd.f32 %v8112, %v8032
      %v8114 = vadd.f32 %v8113, %v8034
      %v8115 = vrot.slane %v8114, 4
      %v8116 = vadd.f32 %v8114, %v8115
      %v8117 = vrot.slane %v8116, 2
      %v8118 = vadd.f32 %v8116, %v8117
      %v8119 = vrot.slane %v8118, 1
      %v8120 = vadd.f32 %v8118, %v8119
      %v8121 = vadd.f32 %v8029, %v8031
      %v8122 = vadd.f32 %v8121, %v8033
      %v8123 = vadd.f32 %v8122, %v8035
      %v8124 = vrot.slane %v8123, 4
      %v8125 = vadd.f32 %v8123, %v8124
      %v8126 = vrot.slane %v8125, 2
      %v8127 = vadd.f32 %v8125, %v8126
      %v8128 = vrot.slane %v8127, 1
      %v8129 = vadd.f32 %v8127, %v8128
      %v8130 = vadd.f32 %v8036, %v8038
      %v8131 = vadd.f32 %v8130, %v8040
      %v8132 = vadd.f32 %v8131, %v8042
      %v8133 = vrot.slane %v8132, 4
      %v8134 = vadd.f32 %v8132, %v8133
      %v8135 = vrot.slane %v8134, 2
      %v8136 = vadd.f32 %v8134, %v8135
      %v8137 = vrot.slane %v8136, 1
      %v8138 = vadd.f32 %v8136, %v8137
      %v8139 = vadd.f32 %v8037, %v8039
      %v8140 = vadd.f32 %v8139, %v8041
      %v8141 = vadd.f32 %v8140, %v8043
      %v8142 = vrot.slane %v8141, 4
      %v8143 = vadd.f32 %v8141, %v8142
      %v8144 = vrot.slane %v8143, 2
      %v8145 = vadd.f32 %v8143, %v8144
      %v8146 = vrot.slane %v8145, 1
      %v8147 = vadd.f32 %v8145, %v8146
      %v8148 = vadd.f32 %v8044, %v8046
      %v8149 = vadd.f32 %v8148, %v8048
      %v8150 = vadd.f32 %v8149, %v8050
      %v8151 = vrot.slane %v8150, 4
      %v8152 = vadd.f32 %v8150, %v8151
      %v8153 = vrot.slane %v8152, 2
      %v8154 = vadd.f32 %v8152, %v8153
      %v8155 = vrot.slane %v8154, 1
      %v8156 = vadd.f32 %v8154, %v8155
      %v8157 = vadd.f32 %v8045, %v8047
      %v8158 = vadd.f32 %v8157, %v8049
      %v8159 = vadd.f32 %v8158, %v8051
      %v8160 = vrot.slane %v8159, 4
      %v8161 = vadd.f32 %v8159, %v8160
      %v8162 = vrot.slane %v8161, 2
      %v8163 = vadd.f32 %v8161, %v8162
      %v8164 = vrot.slane %v8163, 1
      %v8165 = vadd.f32 %v8163, %v8164
      %v8166 = vadd.f32 %v8052, %v8054
      %v8167 = vadd.f32 %v8166, %v8056
      %v8168 = vadd.f32 %v8167, %v8058
      %v8169 = vrot.slane %v8168, 4
      %v8170 = vadd.f32 %v8168, %v8169
      %v8171 = vrot.slane %v8170, 2
      %v8172 = vadd.f32 %v8170, %v8171
      %v8173 = vrot.slane %v8172, 1
      %v8174 = vadd.f32 %v8172, %v8173
      %v8175 = vadd.f32 %v8053, %v8055
      %v8176 = vadd.f32 %v8175, %v8057
      %v8177 = vadd.f32 %v8176, %v8059
      %v8178 = vrot.slane %v8177, 4
      %v8179 = vadd.f32 %v8177, %v8178
      %v8180 = vrot.slane %v8179, 2
      %v8181 = vadd.f32 %v8179, %v8180
      %v8182 = vrot.slane %v8181, 1
      %v8183 = vadd.f32 %v8181, %v8182
      %v8184 = vadd.f32 %v8060, %v8062
      %v8185 = vadd.f32 %v8184, %v8064
      %v8186 = vadd.f32 %v8185, %v8066
      %v8187 = vrot.slane %v8186, 4
      %v8188 = vadd.f32 %v8186, %v8187
      %v8189 = vrot.slane %v8188, 2
      %v8190 = vadd.f32 %v8188, %v8189
      %v8191 = vrot.slane %v8190, 1
      %v8192 = vadd.f32 %v8190, %v8191
      %v8193 = vadd.f32 %v8061, %v8063
      %v8194 = vadd.f32 %v8193, %v8065
      %v8195 = vadd.f32 %v8194, %v8067
      %v8196 = vrot.slane %v8195, 4
      %v8197 = vadd.f32 %v8195, %v8196
      %v8198 = vrot.slane %v8197, 2
      %v8199 = vadd.f32 %v8197, %v8198
      %v8200 = vrot.slane %v8199, 1
      %v8201 = vadd.f32 %v8199, %v8200
      %v8202 = vadd.f32 %v8068, %v8070
      %v8203 = vadd.f32 %v8202, %v8072
      %v8204 = vadd.f32 %v8203, %v8074
      %v8205 = vrot.slane %v8204, 4
      %v8206 = vadd.f32 %v8204, %v8205
      %v8207 = vrot.slane %v8206, 2
      %v8208 = vadd.f32 %v8206, %v8207
      %v8209 = vrot.slane %v8208, 1
      %v8210 = vadd.f32 %v8208, %v8209
      %v8211 = vadd.f32 %v8069, %v8071
      %v8212 = vadd.f32 %v8211, %v8073
      %v8213 = vadd.f32 %v8212, %v8075
      %v8214 = vrot.slane %v8213, 4
      %v8215 = vadd.f32 %v8213, %v8214
      %v8216 = vrot.slane %v8215, 2
      %v8217 = vadd.f32 %v8215, %v8216
      %v8218 = vrot.slane %v8217, 1
      %v8219 = vadd.f32 %v8217, %v8218
      %v8220 = vmul.f32 %v8084, %v6650
      %v8221 = vmul.f32 %v8093, %v6650
      %v8222 = vmul.f32 %v8102, %v6650
      %v8223 = vmul.f32 %v8111, %v6650
      %v8224 = vmul.f32 %v8120, %v6650
      %v8225 = vmul.f32 %v8129, %v6650
      %v8226 = vmul.f32 %v8138, %v6650
      %v8227 = vmul.f32 %v8147, %v6650
      %v8228 = vmul.f32 %v8156, %v6650
      %v8229 = vmul.f32 %v8165, %v6650
      %v8230 = vmul.f32 %v8174, %v6650
      %v8231 = vmul.f32 %v8183, %v6650
      %v8232 = vmul.f32 %v8192, %v6650
      %v8233 = vmul.f32 %v8201, %v6650
      %v8234 = vmul.f32 %v8210, %v6650
      %v8235 = vmul.f32 %v8219, %v6650
      %v8236 = vsub.f32 %v8012, %v8220
      %v8237 = vsub.f32 %v8013, %v8221
      %v8238 = vsub.f32 %v8014, %v8220
      %v8239 = vsub.f32 %v8015, %v8221
      %v8240 = vsub.f32 %v8016, %v8220
      %v8241 = vsub.f32 %v8017, %v8221
      %v8242 = vsub.f32 %v8018, %v8220
      %v8243 = vsub.f32 %v8019, %v8221
      %v8244 = vsub.f32 %v8020, %v8222
      %v8245 = vsub.f32 %v8021, %v8223
      %v8246 = vsub.f32 %v8022, %v8222
      %v8247 = vsub.f32 %v8023, %v8223
      %v8248 = vsub.f32 %v8024, %v8222
      %v8249 = vsub.f32 %v8025, %v8223
      %v8250 = vsub.f32 %v8026, %v8222
      %v8251 = vsub.f32 %v8027, %v8223
      %v8252 = vsub.f32 %v8028, %v8224
      %v8253 = vsub.f32 %v8029, %v8225
      %v8254 = vsub.f32 %v8030, %v8224
      %v8255 = vsub.f32 %v8031, %v8225
      %v8256 = vsub.f32 %v8032, %v8224
      %v8257 = vsub.f32 %v8033, %v8225
      %v8258 = vsub.f32 %v8034, %v8224
      %v8259 = vsub.f32 %v8035, %v8225
      %v8260 = vsub.f32 %v8036, %v8226
      %v8261 = vsub.f32 %v8037, %v8227
      %v8262 = vsub.f32 %v8038, %v8226
      %v8263 = vsub.f32 %v8039, %v8227
      %v8264 = vsub.f32 %v8040, %v8226
      %v8265 = vsub.f32 %v8041, %v8227
      %v8266 = vsub.f32 %v8042, %v8226
      %v8267 = vsub.f32 %v8043, %v8227
      %v8268 = vsub.f32 %v8044, %v8228
      %v8269 = vsub.f32 %v8045, %v8229
      %v8270 = vsub.f32 %v8046, %v8228
      %v8271 = vsub.f32 %v8047, %v8229
      %v8272 = vsub.f32 %v8048, %v8228
      %v8273 = vsub.f32 %v8049, %v8229
      %v8274 = vsub.f32 %v8050, %v8228
      %v8275 = vsub.f32 %v8051, %v8229
      %v8276 = vsub.f32 %v8052, %v8230
      %v8277 = vsub.f32 %v8053, %v8231
      %v8278 = vsub.f32 %v8054, %v8230
      %v8279 = vsub.f32 %v8055, %v8231
      %v8280 = vsub.f32 %v8056, %v8230
      %v8281 = vsub.f32 %v8057, %v8231
      %v8282 = vsub.f32 %v8058, %v8230
      %v8283 = vsub.f32 %v8059, %v8231
      %v8284 = vsub.f32 %v8060, %v8232
      %v8285 = vsub.f32 %v8061, %v8233
      %v8286 = vsub.f32 %v8062, %v8232
      %v8287 = vsub.f32 %v8063, %v8233
      %v8288 = vsub.f32 %v8064, %v8232
      %v8289 = vsub.f32 %v8065, %v8233
      %v8290 = vsub.f32 %v8066, %v8232
      %v8291 = vsub.f32 %v8067, %v8233
      %v8292 = vsub.f32 %v8068, %v8234
      %v8293 = vsub.f32 %v8069, %v8235
      %v8294 = vsub.f32 %v8070, %v8234
      %v8295 = vsub.f32 %v8071, %v8235
      %v8296 = vsub.f32 %v8072, %v8234
      %v8297 = vsub.f32 %v8073, %v8235
      %v8298 = vsub.f32 %v8074, %v8234
      %v8299 = vsub.f32 %v8075, %v8235
      %v8300 = vmul.f32 %v8236, %v8236
      %v8301 = vmul.f32 %v8237, %v8237
      %v8302 = vmul.f32 %v8238, %v8238
      %v8303 = vmul.f32 %v8239, %v8239
      %v8304 = vmul.f32 %v8240, %v8240
      %v8305 = vmul.f32 %v8241, %v8241
      %v8306 = vmul.f32 %v8242, %v8242
      %v8307 = vmul.f32 %v8243, %v8243
      %v8308 = vmul.f32 %v8244, %v8244
      %v8309 = vmul.f32 %v8245, %v8245
      %v8310 = vmul.f32 %v8246, %v8246
      %v8311 = vmul.f32 %v8247, %v8247
      %v8312 = vmul.f32 %v8248, %v8248
      %v8313 = vmul.f32 %v8249, %v8249
      %v8314 = vmul.f32 %v8250, %v8250
      %v8315 = vmul.f32 %v8251, %v8251
      %v8316 = vmul.f32 %v8252, %v8252
      %v8317 = vmul.f32 %v8253, %v8253
      %v8318 = vmul.f32 %v8254, %v8254
      %v8319 = vmul.f32 %v8255, %v8255
      %v8320 = vmul.f32 %v8256, %v8256
      %v8321 = vmul.f32 %v8257, %v8257
      %v8322 = vmul.f32 %v8258, %v8258
      %v8323 = vmul.f32 %v8259, %v8259
      %v8324 = vmul.f32 %v8260, %v8260
      %v8325 = vmul.f32 %v8261, %v8261
      %v8326 = vmul.f32 %v8262, %v8262
      %v8327 = vmul.f32 %v8263, %v8263
      %v8328 = vmul.f32 %v8264, %v8264
      %v8329 = vmul.f32 %v8265, %v8265
      %v8330 = vmul.f32 %v8266, %v8266
      %v8331 = vmul.f32 %v8267, %v8267
      %v8332 = vmul.f32 %v8268, %v8268
      %v8333 = vmul.f32 %v8269, %v8269
      %v8334 = vmul.f32 %v8270, %v8270
      %v8335 = vmul.f32 %v8271, %v8271
      %v8336 = vmul.f32 %v8272, %v8272
      %v8337 = vmul.f32 %v8273, %v8273
      %v8338 = vmul.f32 %v8274, %v8274
      %v8339 = vmul.f32 %v8275, %v8275
      %v8340 = vmul.f32 %v8276, %v8276
      %v8341 = vmul.f32 %v8277, %v8277
      %v8342 = vmul.f32 %v8278, %v8278
      %v8343 = vmul.f32 %v8279, %v8279
      %v8344 = vmul.f32 %v8280, %v8280
      %v8345 = vmul.f32 %v8281, %v8281
      %v8346 = vmul.f32 %v8282, %v8282
      %v8347 = vmul.f32 %v8283, %v8283
      %v8348 = vmul.f32 %v8284, %v8284
      %v8349 = vmul.f32 %v8285, %v8285
      %v8350 = vmul.f32 %v8286, %v8286
      %v8351 = vmul.f32 %v8287, %v8287
      %v8352 = vmul.f32 %v8288, %v8288
      %v8353 = vmul.f32 %v8289, %v8289
      %v8354 = vmul.f32 %v8290, %v8290
      %v8355 = vmul.f32 %v8291, %v8291
      %v8356 = vmul.f32 %v8292, %v8292
      %v8357 = vmul.f32 %v8293, %v8293
      %v8358 = vmul.f32 %v8294, %v8294
      %v8359 = vmul.f32 %v8295, %v8295
      %v8360 = vmul.f32 %v8296, %v8296
      %v8361 = vmul.f32 %v8297, %v8297
      %v8362 = vmul.f32 %v8298, %v8298
      %v8363 = vmul.f32 %v8299, %v8299
      %v8364 = vadd.f32 %v8300, %v8302
      %v8365 = vadd.f32 %v8364, %v8304
      %v8366 = vadd.f32 %v8365, %v8306
      %v8367 = vrot.slane %v8366, 4
      %v8368 = vadd.f32 %v8366, %v8367
      %v8369 = vrot.slane %v8368, 2
      %v8370 = vadd.f32 %v8368, %v8369
      %v8371 = vrot.slane %v8370, 1
      %v8372 = vadd.f32 %v8370, %v8371
      %v8373 = vadd.f32 %v8301, %v8303
      %v8374 = vadd.f32 %v8373, %v8305
      %v8375 = vadd.f32 %v8374, %v8307
      %v8376 = vrot.slane %v8375, 4
      %v8377 = vadd.f32 %v8375, %v8376
      %v8378 = vrot.slane %v8377, 2
      %v8379 = vadd.f32 %v8377, %v8378
      %v8380 = vrot.slane %v8379, 1
      %v8381 = vadd.f32 %v8379, %v8380
      %v8382 = vadd.f32 %v8308, %v8310
      %v8383 = vadd.f32 %v8382, %v8312
      %v8384 = vadd.f32 %v8383, %v8314
      %v8385 = vrot.slane %v8384, 4
      %v8386 = vadd.f32 %v8384, %v8385
      %v8387 = vrot.slane %v8386, 2
      %v8388 = vadd.f32 %v8386, %v8387
      %v8389 = vrot.slane %v8388, 1
      %v8390 = vadd.f32 %v8388, %v8389
      %v8391 = vadd.f32 %v8309, %v8311
      %v8392 = vadd.f32 %v8391, %v8313
      %v8393 = vadd.f32 %v8392, %v8315
      %v8394 = vrot.slane %v8393, 4
      %v8395 = vadd.f32 %v8393, %v8394
      %v8396 = vrot.slane %v8395, 2
      %v8397 = vadd.f32 %v8395, %v8396
      %v8398 = vrot.slane %v8397, 1
      %v8399 = vadd.f32 %v8397, %v8398
      %v8400 = vadd.f32 %v8316, %v8318
      %v8401 = vadd.f32 %v8400, %v8320
      %v8402 = vadd.f32 %v8401, %v8322
      %v8403 = vrot.slane %v8402, 4
      %v8404 = vadd.f32 %v8402, %v8403
      %v8405 = vrot.slane %v8404, 2
      %v8406 = vadd.f32 %v8404, %v8405
      %v8407 = vrot.slane %v8406, 1
      %v8408 = vadd.f32 %v8406, %v8407
      %v8409 = vadd.f32 %v8317, %v8319
      %v8410 = vadd.f32 %v8409, %v8321
      %v8411 = vadd.f32 %v8410, %v8323
      %v8412 = vrot.slane %v8411, 4
      %v8413 = vadd.f32 %v8411, %v8412
      %v8414 = vrot.slane %v8413, 2
      %v8415 = vadd.f32 %v8413, %v8414
      %v8416 = vrot.slane %v8415, 1
      %v8417 = vadd.f32 %v8415, %v8416
      %v8418 = vadd.f32 %v8324, %v8326
      %v8419 = vadd.f32 %v8418, %v8328
      %v8420 = vadd.f32 %v8419, %v8330
      %v8421 = vrot.slane %v8420, 4
      %v8422 = vadd.f32 %v8420, %v8421
      %v8423 = vrot.slane %v8422, 2
      %v8424 = vadd.f32 %v8422, %v8423
      %v8425 = vrot.slane %v8424, 1
      %v8426 = vadd.f32 %v8424, %v8425
      %v8427 = vadd.f32 %v8325, %v8327
      %v8428 = vadd.f32 %v8427, %v8329
      %v8429 = vadd.f32 %v8428, %v8331
      %v8430 = vrot.slane %v8429, 4
      %v8431 = vadd.f32 %v8429, %v8430
      %v8432 = vrot.slane %v8431, 2
      %v8433 = vadd.f32 %v8431, %v8432
      %v8434 = vrot.slane %v8433, 1
      %v8435 = vadd.f32 %v8433, %v8434
      %v8436 = vadd.f32 %v8332, %v8334
      %v8437 = vadd.f32 %v8436, %v8336
      %v8438 = vadd.f32 %v8437, %v8338
      %v8439 = vrot.slane %v8438, 4
      %v8440 = vadd.f32 %v8438, %v8439
      %v8441 = vrot.slane %v8440, 2
      %v8442 = vadd.f32 %v8440, %v8441
      %v8443 = vrot.slane %v8442, 1
      %v8444 = vadd.f32 %v8442, %v8443
      %v8445 = vadd.f32 %v8333, %v8335
      %v8446 = vadd.f32 %v8445, %v8337
      %v8447 = vadd.f32 %v8446, %v8339
      %v8448 = vrot.slane %v8447, 4
      %v8449 = vadd.f32 %v8447, %v8448
      %v8450 = vrot.slane %v8449, 2
      %v8451 = vadd.f32 %v8449, %v8450
      %v8452 = vrot.slane %v8451, 1
      %v8453 = vadd.f32 %v8451, %v8452
      %v8454 = vadd.f32 %v8340, %v8342
      %v8455 = vadd.f32 %v8454, %v8344
      %v8456 = vadd.f32 %v8455, %v8346
      %v8457 = vrot.slane %v8456, 4
      %v8458 = vadd.f32 %v8456, %v8457
      %v8459 = vrot.slane %v8458, 2
      %v8460 = vadd.f32 %v8458, %v8459
      %v8461 = vrot.slane %v8460, 1
      %v8462 = vadd.f32 %v8460, %v8461
      %v8463 = vadd.f32 %v8341, %v8343
      %v8464 = vadd.f32 %v8463, %v8345
      %v8465 = vadd.f32 %v8464, %v8347
      %v8466 = vrot.slane %v8465, 4
      %v8467 = vadd.f32 %v8465, %v8466
      %v8468 = vrot.slane %v8467, 2
      %v8469 = vadd.f32 %v8467, %v8468
      %v8470 = vrot.slane %v8469, 1
      %v8471 = vadd.f32 %v8469, %v8470
      %v8472 = vadd.f32 %v8348, %v8350
      %v8473 = vadd.f32 %v8472, %v8352
      %v8474 = vadd.f32 %v8473, %v8354
      %v8475 = vrot.slane %v8474, 4
      %v8476 = vadd.f32 %v8474, %v8475
      %v8477 = vrot.slane %v8476, 2
      %v8478 = vadd.f32 %v8476, %v8477
      %v8479 = vrot.slane %v8478, 1
      %v8480 = vadd.f32 %v8478, %v8479
      %v8481 = vadd.f32 %v8349, %v8351
      %v8482 = vadd.f32 %v8481, %v8353
      %v8483 = vadd.f32 %v8482, %v8355
      %v8484 = vrot.slane %v8483, 4
      %v8485 = vadd.f32 %v8483, %v8484
      %v8486 = vrot.slane %v8485, 2
      %v8487 = vadd.f32 %v8485, %v8486
      %v8488 = vrot.slane %v8487, 1
      %v8489 = vadd.f32 %v8487, %v8488
      %v8490 = vadd.f32 %v8356, %v8358
      %v8491 = vadd.f32 %v8490, %v8360
      %v8492 = vadd.f32 %v8491, %v8362
      %v8493 = vrot.slane %v8492, 4
      %v8494 = vadd.f32 %v8492, %v8493
      %v8495 = vrot.slane %v8494, 2
      %v8496 = vadd.f32 %v8494, %v8495
      %v8497 = vrot.slane %v8496, 1
      %v8498 = vadd.f32 %v8496, %v8497
      %v8499 = vadd.f32 %v8357, %v8359
      %v8500 = vadd.f32 %v8499, %v8361
      %v8501 = vadd.f32 %v8500, %v8363
      %v8502 = vrot.slane %v8501, 4
      %v8503 = vadd.f32 %v8501, %v8502
      %v8504 = vrot.slane %v8503, 2
      %v8505 = vadd.f32 %v8503, %v8504
      %v8506 = vrot.slane %v8505, 1
      %v8507 = vadd.f32 %v8505, %v8506
      %v8508 = vmul.f32 %v8372, %v6650
      %v8509 = vmul.f32 %v8381, %v6650
      %v8510 = vmul.f32 %v8390, %v6650
      %v8511 = vmul.f32 %v8399, %v6650
      %v8512 = vmul.f32 %v8408, %v6650
      %v8513 = vmul.f32 %v8417, %v6650
      %v8514 = vmul.f32 %v8426, %v6650
      %v8515 = vmul.f32 %v8435, %v6650
      %v8516 = vmul.f32 %v8444, %v6650
      %v8517 = vmul.f32 %v8453, %v6650
      %v8518 = vmul.f32 %v8462, %v6650
      %v8519 = vmul.f32 %v8471, %v6650
      %v8520 = vmul.f32 %v8480, %v6650
      %v8521 = vmul.f32 %v8489, %v6650
      %v8522 = vmul.f32 %v8498, %v6650
      %v8523 = vmul.f32 %v8507, %v6650
      %v8524 = vadd.f32 %v8508, 1e-05
      %v8525 = vadd.f32 %v8509, 1e-05
      %v8526 = vadd.f32 %v8510, 1e-05
      %v8527 = vadd.f32 %v8511, 1e-05
      %v8528 = vadd.f32 %v8512, 1e-05
      %v8529 = vadd.f32 %v8513, 1e-05
      %v8530 = vadd.f32 %v8514, 1e-05
      %v8531 = vadd.f32 %v8515, 1e-05
      %v8532 = vadd.f32 %v8516, 1e-05
      %v8533 = vadd.f32 %v8517, 1e-05
      %v8534 = vadd.f32 %v8518, 1e-05
      %v8535 = vadd.f32 %v8519, 1e-05
      %v8536 = vadd.f32 %v8520, 1e-05
      %v8537 = vadd.f32 %v8521, 1e-05
      %v8538 = vadd.f32 %v8522, 1e-05
      %v8539 = vadd.f32 %v8523, 1e-05
      %v8540 = vrsqrt.pop %v8524
      %v8541 = vrsqrt.pop %v8525
      %v8542 = vrsqrt.pop %v8526
      %v8543 = vrsqrt.pop %v8527
      %v8544 = vrsqrt.pop %v8528
      %v8545 = vrsqrt.pop %v8529
      %v8546 = vrsqrt.pop %v8530
      %v8547 = vrsqrt.pop %v8531
      %v8548 = vrsqrt.pop %v8532
      %v8549 = vrsqrt.pop %v8533
      %v8550 = vrsqrt.pop %v8534
      %v8551 = vrsqrt.pop %v8535
      %v8552 = vrsqrt.pop %v8536
      %v8553 = vrsqrt.pop %v8537
      %v8554 = vrsqrt.pop %v8538
      %v8555 = vrsqrt.pop %v8539
      %v8556 = vmul.f32 %v8236, %v8540
      %v8557 = vmul.f32 %v8237, %v8541
      %v8558 = vmul.f32 %v8238, %v8540
      %v8559 = vmul.f32 %v8239, %v8541
      %v8560 = vmul.f32 %v8240, %v8540
      %v8561 = vmul.f32 %v8241, %v8541
      %v8562 = vmul.f32 %v8242, %v8540
      %v8563 = vmul.f32 %v8243, %v8541
      %v8564 = vmul.f32 %v8244, %v8542
      %v8565 = vmul.f32 %v8245, %v8543
      %v8566 = vmul.f32 %v8246, %v8542
      %v8567 = vmul.f32 %v8247, %v8543
      %v8568 = vmul.f32 %v8248, %v8542
      %v8569 = vmul.f32 %v8249, %v8543
      %v8570 = vmul.f32 %v8250, %v8542
      %v8571 = vmul.f32 %v8251, %v8543
      %v8572 = vmul.f32 %v8252, %v8544
      %v8573 = vmul.f32 %v8253, %v8545
      %v8574 = vmul.f32 %v8254, %v8544
      %v8575 = vmul.f32 %v8255, %v8545
      %v8576 = vmul.f32 %v8256, %v8544
      %v8577 = vmul.f32 %v8257, %v8545
      %v8578 = vmul.f32 %v8258, %v8544
      %v8579 = vmul.f32 %v8259, %v8545
      %v8580 = vmul.f32 %v8260, %v8546
      %v8581 = vmul.f32 %v8261, %v8547
      %v8582 = vmul.f32 %v8262, %v8546
      %v8583 = vmul.f32 %v8263, %v8547
      %v8584 = vmul.f32 %v8264, %v8546
      %v8585 = vmul.f32 %v8265, %v8547
      %v8586 = vmul.f32 %v8266, %v8546
      %v8587 = vmul.f32 %v8267, %v8547
      %v8588 = vmul.f32 %v8268, %v8548
      %v8589 = vmul.f32 %v8269, %v8549
      %v8590 = vmul.f32 %v8270, %v8548
      %v8591 = vmul.f32 %v8271, %v8549
      %v8592 = vmul.f32 %v8272, %v8548
      %v8593 = vmul.f32 %v8273, %v8549
      %v8594 = vmul.f32 %v8274, %v8548
      %v8595 = vmul.f32 %v8275, %v8549
      %v8596 = vmul.f32 %v8276, %v8550
      %v8597 = vmul.f32 %v8277, %v8551
      %v8598 = vmul.f32 %v8278, %v8550
      %v8599 = vmul.f32 %v8279, %v8551
      %v8600 = vmul.f32 %v8280, %v8550
      %v8601 = vmul.f32 %v8281, %v8551
      %v8602 = vmul.f32 %v8282, %v8550
      %v8603 = vmul.f32 %v8283, %v8551
      %v8604 = vmul.f32 %v8284, %v8552
      %v8605 = vmul.f32 %v8285, %v8553
      %v8606 = vmul.f32 %v8286, %v8552
      %v8607 = vmul.f32 %v8287, %v8553
      %v8608 = vmul.f32 %v8288, %v8552
      %v8609 = vmul.f32 %v8289, %v8553
      %v8610 = vmul.f32 %v8290, %v8552
      %v8611 = vmul.f32 %v8291, %v8553
      %v8612 = vmul.f32 %v8292, %v8554
      %v8613 = vmul.f32 %v8293, %v8555
      %v8614 = vmul.f32 %v8294, %v8554
      %v8615 = vmul.f32 %v8295, %v8555
      %v8616 = vmul.f32 %v8296, %v8554
      %v8617 = vmul.f32 %v8297, %v8555
      %v8618 = vmul.f32 %v8298, %v8554
      %v8619 = vmul.f32 %v8299, %v8555
      %8620 = vset.pattern.permute.xlu0 4
      %8621 = vperm.xlu0 %8620, %v6410
      %v8622 = vpop.permute.xlu0 %8621
      %8624 = vset.pattern.permute.xlu0 4
      %8625 = vperm.xlu0 %8624, %v6411
      %v8626 = vpop.permute.xlu0 %8625
      %8628 = vset.pattern.permute.xlu0 4
      %8629 = vperm.xlu0 %8628, %v6412
      %v8630 = vpop.permute.xlu0 %8629
      %8632 = vset.pattern.permute.xlu0 4
      %8633 = vperm.xlu0 %8632, %v6413
      %v8634 = vpop.permute.xlu0 %8633
      %8636 = vset.pattern.permute.xlu0 4
      %8637 = vperm.xlu0 %8636, %v6414
      %v8638 = vpop.permute.xlu0 %8637
      %8640 = vset.pattern.permute.xlu0 4
      %8641 = vperm.xlu0 %8640, %v6415
      %v8642 = vpop.permute.xlu0 %8641
      %8644 = vset.pattern.permute.xlu0 4
      %8645 = vperm.xlu0 %8644, %v6416
      %v8646 = vpop.permute.xlu0 %8645
      %8648 = vset.pattern.permute.xlu0 4
      %8649 = vperm.xlu0 %8648, %v6417
      %v8650 = vpop.permute.xlu0 %8649
      %8652 = vset.pattern.permute.xlu0 4
      %8653 = vperm.xlu0 %8652, %v6418
      %v8654 = vpop.permute.xlu0 %8653
      %8656 = vset.pattern.permute.xlu0 4
      %8657 = vperm.xlu0 %8656, %v6419
      %v8658 = vpop.permute.xlu0 %8657
      %8660 = vset.pattern.permute.xlu0 4
      %8661 = vperm.xlu0 %8660, %v6420
      %v8662 = vpop.permute.xlu0 %8661
      %8664 = vset.pattern.permute.xlu0 4
      %8665 = vperm.xlu0 %8664, %v6421
      %v8666 = vpop.permute.xlu0 %8665
      %8668 = vset.pattern.permute.xlu0 4
      %8669 = vperm.xlu0 %8668, %v6422
      %v8670 = vpop.permute.xlu0 %8669
      %8672 = vset.pattern.permute.xlu0 4
      %8673 = vperm.xlu0 %8672, %v6423
      %v8674 = vpop.permute.xlu0 %8673
      %8676 = vset.pattern.permute.xlu0 4
      %8677 = vperm.xlu0 %8676, %v6424
      %v8678 = vpop.permute.xlu0 %8677
      %8680 = vset.pattern.permute.xlu0 4
      %8681 = vperm.xlu0 %8680, %v6425
      %v8682 = vpop.permute.xlu0 %8681
      %8684 = vset.pattern.permute.xlu0 4
      %8685 = vperm.xlu0 %8684, %v6426
      %v8686 = vpop.permute.xlu0 %8685
      %8688 = vset.pattern.permute.xlu0 4
      %8689 = vperm.xlu0 %8688, %v6427
      %v8690 = vpop.permute.xlu0 %8689
      %8692 = vset.pattern.permute.xlu0 4
      %8693 = vperm.xlu0 %8692, %v6428
      %v8694 = vpop.permute.xlu0 %8693
      %8696 = vset.pattern.permute.xlu0 4
      %8697 = vperm.xlu0 %8696, %v6429
      %v8698 = vpop.permute.xlu0 %8697
      %8700 = vset.pattern.permute.xlu0 4
      %8701 = vperm.xlu0 %8700, %v6430
      %v8702 = vpop.permute.xlu0 %8701
      %8704 = vset.pattern.permute.xlu0 4
      %8705 = vperm.xlu0 %8704, %v6431
      %v8706 = vpop.permute.xlu0 %8705
      %8708 = vset.pattern.permute.xlu0 4
      %8709 = vperm.xlu0 %8708, %v6432
      %v8710 = vpop.permute.xlu0 %8709
      %8712 = vset.pattern.permute.xlu0 4
      %8713 = vperm.xlu0 %8712, %v6433
      %v8714 = vpop.permute.xlu0 %8713
      %8716 = vset.pattern.permute.xlu0 4
      %8717 = vperm.xlu0 %8716, %v6434
      %v8718 = vpop.permute.xlu0 %8717
      %8720 = vset.pattern.permute.xlu0 4
      %8721 = vperm.xlu0 %8720, %v6435
      %v8722 = vpop.permute.xlu0 %8721
      %8724 = vset.pattern.permute.xlu0 4
      %8725 = vperm.xlu0 %8724, %v6436
      %v8726 = vpop.permute.xlu0 %8725
      %8728 = vset.pattern.permute.xlu0 4
      %8729 = vperm.xlu0 %8728, %v6437
      %v8730 = vpop.permute.xlu0 %8729
      %8732 = vset.pattern.permute.xlu0 4
      %8733 = vperm.xlu0 %8732, %v6438
      %v8734 = vpop.permute.xlu0 %8733
      %8736 = vset.pattern.permute.xlu0 4
      %8737 = vperm.xlu0 %8736, %v6439
      %v8738 = vpop.permute.xlu0 %8737
      %8740 = vset.pattern.permute.xlu0 4
      %8741 = vperm.xlu0 %8740, %v6440
      %v8742 = vpop.permute.xlu0 %8741
      %8744 = vset.pattern.permute.xlu0 4
      %8745 = vperm.xlu0 %8744, %v6441
      %v8746 = vpop.permute.xlu0 %8745
      %v8748 = vmul.f32 %v8556, %v8622
      %v8749 = vmul.f32 %v8557, %v8622
      %v8750 = vmul.f32 %v8558, %v8626
      %v8751 = vmul.f32 %v8559, %v8626
      %v8752 = vmul.f32 %v8560, %v8630
      %v8753 = vmul.f32 %v8561, %v8630
      %v8754 = vmul.f32 %v8562, %v8634
      %v8755 = vmul.f32 %v8563, %v8634
      %v8756 = vmul.f32 %v8564, %v8638
      %v8757 = vmul.f32 %v8565, %v8638
      %v8758 = vmul.f32 %v8566, %v8642
      %v8759 = vmul.f32 %v8567, %v8642
      %v8760 = vmul.f32 %v8568, %v8646
      %v8761 = vmul.f32 %v8569, %v8646
      %v8762 = vmul.f32 %v8570, %v8650
      %v8763 = vmul.f32 %v8571, %v8650
      %v8764 = vmul.f32 %v8572, %v8654
      %v8765 = vmul.f32 %v8573, %v8654
      %v8766 = vmul.f32 %v8574, %v8658
      %v8767 = vmul.f32 %v8575, %v8658
      %v8768 = vmul.f32 %v8576, %v8662
      %v8769 = vmul.f32 %v8577, %v8662
      %v8770 = vmul.f32 %v8578, %v8666
      %v8771 = vmul.f32 %v8579, %v8666
      %v8772 = vmul.f32 %v8580, %v8670
      %v8773 = vmul.f32 %v8581, %v8670
      %v8774 = vmul.f32 %v8582, %v8674
      %v8775 = vmul.f32 %v8583, %v8674
      %v8776 = vmul.f32 %v8584, %v8678
      %v8777 = vmul.f32 %v8585, %v8678
      %v8778 = vmul.f32 %v8586, %v8682
      %v8779 = vmul.f32 %v8587, %v8682
      %v8780 = vmul.f32 %v8588, %v8686
      %v8781 = vmul.f32 %v8589, %v8686
      %v8782 = vmul.f32 %v8590, %v8690
      %v8783 = vmul.f32 %v8591, %v8690
      %v8784 = vmul.f32 %v8592, %v8694
      %v8785 = vmul.f32 %v8593, %v8694
      %v8786 = vmul.f32 %v8594, %v8698
      %v8787 = vmul.f32 %v8595, %v8698
      %v8788 = vmul.f32 %v8596, %v8702
      %v8789 = vmul.f32 %v8597, %v8702
      %v8790 = vmul.f32 %v8598, %v8706
      %v8791 = vmul.f32 %v8599, %v8706
      %v8792 = vmul.f32 %v8600, %v8710
      %v8793 = vmul.f32 %v8601, %v8710
      %v8794 = vmul.f32 %v8602, %v8714
      %v8795 = vmul.f32 %v8603, %v8714
      %v8796 = vmul.f32 %v8604, %v8718
      %v8797 = vmul.f32 %v8605, %v8718
      %v8798 = vmul.f32 %v8606, %v8722
      %v8799 = vmul.f32 %v8607, %v8722
      %v8800 = vmul.f32 %v8608, %v8726
      %v8801 = vmul.f32 %v8609, %v8726
      %v8802 = vmul.f32 %v8610, %v8730
      %v8803 = vmul.f32 %v8611, %v8730
      %v8804 = vmul.f32 %v8612, %v8734
      %v8805 = vmul.f32 %v8613, %v8734
      %v8806 = vmul.f32 %v8614, %v8738
      %v8807 = vmul.f32 %v8615, %v8738
      %v8808 = vmul.f32 %v8616, %v8742
      %v8809 = vmul.f32 %v8617, %v8742
      %v8810 = vmul.f32 %v8618, %v8746
      %v8811 = vmul.f32 %v8619, %v8746
      %8812 = vset.pattern.permute.xlu0 5
      %8813 = vperm.xlu0 %8812, %v6410
      %v8814 = vpop.permute.xlu0 %8813
      %8816 = vset.pattern.permute.xlu0 5
      %8817 = vperm.xlu0 %8816, %v6411
      %v8818 = vpop.permute.xlu0 %8817
      %8820 = vset.pattern.permute.xlu0 5
      %8821 = vperm.xlu0 %8820, %v6412
      %v8822 = vpop.permute.xlu0 %8821
      %8824 = vset.pattern.permute.xlu0 5
      %8825 = vperm.xlu0 %8824, %v6413
      %v8826 = vpop.permute.xlu0 %8825
      %8828 = vset.pattern.permute.xlu0 5
      %8829 = vperm.xlu0 %8828, %v6414
      %v8830 = vpop.permute.xlu0 %8829
      %8832 = vset.pattern.permute.xlu0 5
      %8833 = vperm.xlu0 %8832, %v6415
      %v8834 = vpop.permute.xlu0 %8833
      %8836 = vset.pattern.permute.xlu0 5
      %8837 = vperm.xlu0 %8836, %v6416
      %v8838 = vpop.permute.xlu0 %8837
      %8840 = vset.pattern.permute.xlu0 5
      %8841 = vperm.xlu0 %8840, %v6417
      %v8842 = vpop.permute.xlu0 %8841
      %8844 = vset.pattern.permute.xlu0 5
      %8845 = vperm.xlu0 %8844, %v6418
      %v8846 = vpop.permute.xlu0 %8845
      %8848 = vset.pattern.permute.xlu0 5
      %8849 = vperm.xlu0 %8848, %v6419
      %v8850 = vpop.permute.xlu0 %8849
      %8852 = vset.pattern.permute.xlu0 5
      %8853 = vperm.xlu0 %8852, %v6420
      %v8854 = vpop.permute.xlu0 %8853
      %8856 = vset.pattern.permute.xlu0 5
      %8857 = vperm.xlu0 %8856, %v6421
      %v8858 = vpop.permute.xlu0 %8857
      %8860 = vset.pattern.permute.xlu0 5
      %8861 = vperm.xlu0 %8860, %v6422
      %v8862 = vpop.permute.xlu0 %8861
      %8864 = vset.pattern.permute.xlu0 5
      %8865 = vperm.xlu0 %8864, %v6423
      %v8866 = vpop.permute.xlu0 %8865
      %8868 = vset.pattern.permute.xlu0 5
      %8869 = vperm.xlu0 %8868, %v6424
      %v8870 = vpop.permute.xlu0 %8869
      %8872 = vset.pattern.permute.xlu0 5
      %8873 = vperm.xlu0 %8872, %v6425
      %v8874 = vpop.permute.xlu0 %8873
      %8876 = vset.pattern.permute.xlu0 5
      %8877 = vperm.xlu0 %8876, %v6426
      %v8878 = vpop.permute.xlu0 %8877
      %8880 = vset.pattern.permute.xlu0 5
      %8881 = vperm.xlu0 %8880, %v6427
      %v8882 = vpop.permute.xlu0 %8881
      %8884 = vset.pattern.permute.xlu0 5
      %8885 = vperm.xlu0 %8884, %v6428
      %v8886 = vpop.permute.xlu0 %8885
      %8888 = vset.pattern.permute.xlu0 5
      %8889 = vperm.xlu0 %8888, %v6429
      %v8890 = vpop.permute.xlu0 %8889
      %8892 = vset.pattern.permute.xlu0 5
      %8893 = vperm.xlu0 %8892, %v6430
      %v8894 = vpop.permute.xlu0 %8893
      %8896 = vset.pattern.permute.xlu0 5
      %8897 = vperm.xlu0 %8896, %v6431
      %v8898 = vpop.permute.xlu0 %8897
      %8900 = vset.pattern.permute.xlu0 5
      %8901 = vperm.xlu0 %8900, %v6432
      %v8902 = vpop.permute.xlu0 %8901
      %8904 = vset.pattern.permute.xlu0 5
      %8905 = vperm.xlu0 %8904, %v6433
      %v8906 = vpop.permute.xlu0 %8905
      %8908 = vset.pattern.permute.xlu0 5
      %8909 = vperm.xlu0 %8908, %v6434
      %v8910 = vpop.permute.xlu0 %8909
      %8912 = vset.pattern.permute.xlu0 5
      %8913 = vperm.xlu0 %8912, %v6435
      %v8914 = vpop.permute.xlu0 %8913
      %8916 = vset.pattern.permute.xlu0 5
      %8917 = vperm.xlu0 %8916, %v6436
      %v8918 = vpop.permute.xlu0 %8917
      %8920 = vset.pattern.permute.xlu0 5
      %8921 = vperm.xlu0 %8920, %v6437
      %v8922 = vpop.permute.xlu0 %8921
      %8924 = vset.pattern.permute.xlu0 5
      %8925 = vperm.xlu0 %8924, %v6438
      %v8926 = vpop.permute.xlu0 %8925
      %8928 = vset.pattern.permute.xlu0 5
      %8929 = vperm.xlu0 %8928, %v6439
      %v8930 = vpop.permute.xlu0 %8929
      %8932 = vset.pattern.permute.xlu0 5
      %8933 = vperm.xlu0 %8932, %v6440
      %v8934 = vpop.permute.xlu0 %8933
      %8936 = vset.pattern.permute.xlu0 5
      %8937 = vperm.xlu0 %8936, %v6441
      %v8938 = vpop.permute.xlu0 %8937
      %v8940 = vadd.f32 %v8748, %v8814
      %v8941 = vadd.f32 %v8749, %v8814
      %v8942 = vadd.f32 %v8750, %v8818
      %v8943 = vadd.f32 %v8751, %v8818
      %v8944 = vadd.f32 %v8752, %v8822
      %v8945 = vadd.f32 %v8753, %v8822
      %v8946 = vadd.f32 %v8754, %v8826
      %v8947 = vadd.f32 %v8755, %v8826
      %v8948 = vadd.f32 %v8756, %v8830
      %v8949 = vadd.f32 %v8757, %v8830
      %v8950 = vadd.f32 %v8758, %v8834
      %v8951 = vadd.f32 %v8759, %v8834
      %v8952 = vadd.f32 %v8760, %v8838
      %v8953 = vadd.f32 %v8761, %v8838
      %v8954 = vadd.f32 %v8762, %v8842
      %v8955 = vadd.f32 %v8763, %v8842
      %v8956 = vadd.f32 %v8764, %v8846
      %v8957 = vadd.f32 %v8765, %v8846
      %v8958 = vadd.f32 %v8766, %v8850
      %v8959 = vadd.f32 %v8767, %v8850
      %v8960 = vadd.f32 %v8768, %v8854
      %v8961 = vadd.f32 %v8769, %v8854
      %v8962 = vadd.f32 %v8770, %v8858
      %v8963 = vadd.f32 %v8771, %v8858
      %v8964 = vadd.f32 %v8772, %v8862
      %v8965 = vadd.f32 %v8773, %v8862
      %v8966 = vadd.f32 %v8774, %v8866
      %v8967 = vadd.f32 %v8775, %v8866
      %v8968 = vadd.f32 %v8776, %v8870
      %v8969 = vadd.f32 %v8777, %v8870
      %v8970 = vadd.f32 %v8778, %v8874
      %v8971 = vadd.f32 %v8779, %v8874
      %v8972 = vadd.f32 %v8780, %v8878
      %v8973 = vadd.f32 %v8781, %v8878
      %v8974 = vadd.f32 %v8782, %v8882
      %v8975 = vadd.f32 %v8783, %v8882
      %v8976 = vadd.f32 %v8784, %v8886
      %v8977 = vadd.f32 %v8785, %v8886
      %v8978 = vadd.f32 %v8786, %v8890
      %v8979 = vadd.f32 %v8787, %v8890
      %v8980 = vadd.f32 %v8788, %v8894
      %v8981 = vadd.f32 %v8789, %v8894
      %v8982 = vadd.f32 %v8790, %v8898
      %v8983 = vadd.f32 %v8791, %v8898
      %v8984 = vadd.f32 %v8792, %v8902
      %v8985 = vadd.f32 %v8793, %v8902
      %v8986 = vadd.f32 %v8794, %v8906
      %v8987 = vadd.f32 %v8795, %v8906
      %v8988 = vadd.f32 %v8796, %v8910
      %v8989 = vadd.f32 %v8797, %v8910
      %v8990 = vadd.f32 %v8798, %v8914
      %v8991 = vadd.f32 %v8799, %v8914
      %v8992 = vadd.f32 %v8800, %v8918
      %v8993 = vadd.f32 %v8801, %v8918
      %v8994 = vadd.f32 %v8802, %v8922
      %v8995 = vadd.f32 %v8803, %v8922
      %v8996 = vadd.f32 %v8804, %v8926
      %v8997 = vadd.f32 %v8805, %v8926
      %v8998 = vadd.f32 %v8806, %v8930
      %v8999 = vadd.f32 %v8807, %v8930
      %v9000 = vadd.f32 %v8808, %v8934
      %v9001 = vadd.f32 %v8809, %v8934
      %v9002 = vadd.f32 %v8810, %v8938
      %v9003 = vadd.f32 %v8811, %v8938
      %v9004 = vld [vmem:[%s1 + $0x400] sm:$0xff]
      %v9005 = vld [vmem:[%s1 + $0x408] sm:$0xff]
      %v9006 = vld [vmem:[%s1 + $0x410] sm:$0xff]
      %v9007 = vld [vmem:[%s1 + $0x418] sm:$0xff]
      %v9008 = vld [vmem:[%s1 + $0x420] sm:$0xff]
      %v9009 = vld [vmem:[%s1 + $0x428] sm:$0xff]
      %v9010 = vld [vmem:[%s1 + $0x430] sm:$0xff]
      %v9011 = vld [vmem:[%s1 + $0x438] sm:$0xff]
      %v9012 = vld [vmem:[%s1 + $0x440] sm:$0xff]
      %v9013 = vld [vmem:[%s1 + $0x448] sm:$0xff]
      %v9014 = vld [vmem:[%s1 + $0x450] sm:$0xff]
      %v9015 = vld [vmem:[%s1 + $0x458] sm:$0xff]
      %v9016 = vld [vmem:[%s1 + $0x460] sm:$0xff]
      %v9017 = vld [vmem:[%s1 + $0x468] sm:$0xff]
      %v9018 = vld [vmem:[%s1 + $0x470] sm:$0xff]
      %v9019 = vld [vmem:[%s1 + $0x478] sm:$0xff]
      %v9020 = vld [vmem:[%s1 + $0x480] sm:$0xff]
      %v9021 = vld [vmem:[%s1 + $0x488] sm:$0xff]
      %v9022 = vld [vmem:[%s1 + $0x490] sm:$0xff]
      %v9023 = vld [vmem:[%s1 + $0x498] sm:$0xff]
      %v9024 = vld [vmem:[%s1 + $0x4a0] sm:$0xff]
      %v9025 = vld [vmem:[%s1 + $0x4a8] sm:$0xff]
      %v9026 = vld [vmem:[%s1 + $0x4b0] sm:$0xff]
      %v9027 = vld [vmem:[%s1 + $0x4b8] sm:$0xff]
      %v9028 = vld [vmem:[%s1 + $0x4c0] sm:$0xff]
      %v9029 = vld [vmem:[%s1 + $0x4c8] sm:$0xff]
      %v9030 = vld [vmem:[%s1 + $0x4d0] sm:$0xff]
      %v9031 = vld [vmem:[%s1 + $0x4d8] sm:$0xff]
      %v9032 = vld [vmem:[%s1 + $0x4e0] sm:$0xff]
      %v9033 = vld [vmem:[%s1 + $0x4e8] sm:$0xff]
      %v9034 = vld [vmem:[%s1 + $0x4f0] sm:$0xff]
      %v9035 = vld [vmem:[%s1 + $0x4f8] sm:$0xff]
      %v9036 = vpack.c.bf16 %v8942, %v8940
      %v9037 = vpack.c.bf16 %v8943, %v8941
      %v9038 = vpack.c.bf16 %v8946, %v8944
      %v9039 = vpack.c.bf16 %v8947, %v8945
      %v9040 = vpack.c.bf16 %v8950, %v8948
      %v9041 = vpack.c.bf16 %v8951, %v8949
      %v9042 = vpack.c.bf16 %v8954, %v8952
      %v9043 = vpack.c.bf16 %v8955, %v8953
      %v9044 = vpack.c.bf16 %v8958, %v8956
      %v9045 = vpack.c.bf16 %v8959, %v8957
      %v9046 = vpack.c.bf16 %v8962, %v8960
      %v9047 = vpack.c.bf16 %v8963, %v8961
      %v9048 = vpack.c.bf16 %v8966, %v8964
      %v9049 = vpack.c.bf16 %v8967, %v8965
      %v9050 = vpack.c.bf16 %v8970, %v8968
      %v9051 = vpack.c.bf16 %v8971, %v8969
      %v9052 = vpack.c.bf16 %v8974, %v8972
      %v9053 = vpack.c.bf16 %v8975, %v8973
      %v9054 = vpack.c.bf16 %v8978, %v8976
      %v9055 = vpack.c.bf16 %v8979, %v8977
      %v9056 = vpack.c.bf16 %v8982, %v8980
      %v9057 = vpack.c.bf16 %v8983, %v8981
      %v9058 = vpack.c.bf16 %v8986, %v8984
      %v9059 = vpack.c.bf16 %v8987, %v8985
      %v9060 = vpack.c.bf16 %v8990, %v8988
      %v9061 = vpack.c.bf16 %v8991, %v8989
      %v9062 = vpack.c.bf16 %v8994, %v8992
      %v9063 = vpack.c.bf16 %v8995, %v8993
      %v9064 = vpack.c.bf16 %v8998, %v8996
      %v9065 = vpack.c.bf16 %v8999, %v8997
      %v9066 = vpack.c.bf16 %v9002, %v9000
      %v9067 = vpack.c.bf16 %v9003, %v9001
      %9068 = vset.pattern.permute.xlu0 6
      %9069 = vperm.xlu0 %9068, %v6410
      %v9070 = vpop.permute.xlu0 %9069
      %9072 = vset.pattern.permute.xlu0 6
      %9073 = vperm.xlu0 %9072, %v6411
      %v9074 = vpop.permute.xlu0 %9073
      %9076 = vset.pattern.permute.xlu0 6
      %9077 = vperm.xlu0 %9076, %v6412
      %v9078 = vpop.permute.xlu0 %9077
      %9080 = vset.pattern.permute.xlu0 6
      %9081 = vperm.xlu0 %9080, %v6413
      %v9082 = vpop.permute.xlu0 %9081
      %9084 = vset.pattern.permute.xlu0 6
      %9085 = vperm.xlu0 %9084, %v6414
      %v9086 = vpop.permute.xlu0 %9085
      %9088 = vset.pattern.permute.xlu0 6
      %9089 = vperm.xlu0 %9088, %v6415
      %v9090 = vpop.permute.xlu0 %9089
      %9092 = vset.pattern.permute.xlu0 6
      %9093 = vperm.xlu0 %9092, %v6416
      %v9094 = vpop.permute.xlu0 %9093
      %9096 = vset.pattern.permute.xlu0 6
      %9097 = vperm.xlu0 %9096, %v6417
      %v9098 = vpop.permute.xlu0 %9097
      %9100 = vset.pattern.permute.xlu0 6
      %9101 = vperm.xlu0 %9100, %v6418
      %v9102 = vpop.permute.xlu0 %9101
      %9104 = vset.pattern.permute.xlu0 6
      %9105 = vperm.xlu0 %9104, %v6419
      %v9106 = vpop.permute.xlu0 %9105
      %9108 = vset.pattern.permute.xlu0 6
      %9109 = vperm.xlu0 %9108, %v6420
      %v9110 = vpop.permute.xlu0 %9109
      %9112 = vset.pattern.permute.xlu0 6
      %9113 = vperm.xlu0 %9112, %v6421
      %v9114 = vpop.permute.xlu0 %9113
      %9116 = vset.pattern.permute.xlu0 6
      %9117 = vperm.xlu0 %9116, %v6422
      %v9118 = vpop.permute.xlu0 %9117
      %9120 = vset.pattern.permute.xlu0 6
      %9121 = vperm.xlu0 %9120, %v6423
      %v9122 = vpop.permute.xlu0 %9121
      %9124 = vset.pattern.permute.xlu0 6
      %9125 = vperm.xlu0 %9124, %v6424
      %v9126 = vpop.permute.xlu0 %9125
      %9128 = vset.pattern.permute.xlu0 6
      %9129 = vperm.xlu0 %9128, %v6425
      %v9130 = vpop.permute.xlu0 %9129
      %9132 = vset.pattern.permute.xlu0 6
      %9133 = vperm.xlu0 %9132, %v6426
      %v9134 = vpop.permute.xlu0 %9133
      %9136 = vset.pattern.permute.xlu0 6
      %9137 = vperm.xlu0 %9136, %v6427
      %v9138 = vpop.permute.xlu0 %9137
      %9140 = vset.pattern.permute.xlu0 6
      %9141 = vperm.xlu0 %9140, %v6428
      %v9142 = vpop.permute.xlu0 %9141
      %9144 = vset.pattern.permute.xlu0 6
      %9145 = vperm.xlu0 %9144, %v6429
      %v9146 = vpop.permute.xlu0 %9145
      %9148 = vset.pattern.permute.xlu0 6
      %9149 = vperm.xlu0 %9148, %v6430
      %v9150 = vpop.permute.xlu0 %9149
      %9152 = vset.pattern.permute.xlu0 6
      %9153 = vperm.xlu0 %9152, %v6431
      %v9154 = vpop.permute.xlu0 %9153
      %9156 = vset.pattern.permute.xlu0 6
      %9157 = vperm.xlu0 %9156, %v6432
      %v9158 = vpop.permute.xlu0 %9157
      %9160 = vset.pattern.permute.xlu0 6
      %9161 = vperm.xlu0 %9160, %v6433
      %v9162 = vpop.permute.xlu0 %9161
      %9164 = vset.pattern.permute.xlu0 6
      %9165 = vperm.xlu0 %9164, %v6434
      %v9166 = vpop.permute.xlu0 %9165
      %9168 = vset.pattern.permute.xlu0 6
      %9169 = vperm.xlu0 %9168, %v6435
      %v9170 = vpop.permute.xlu0 %9169
      %9172 = vset.pattern.permute.xlu0 6
      %9173 = vperm.xlu0 %9172, %v6436
      %v9174 = vpop.permute.xlu0 %9173
      %9176 = vset.pattern.permute.xlu0 6
      %9177 = vperm.xlu0 %9176, %v6437
      %v9178 = vpop.permute.xlu0 %9177
      %9180 = vset.pattern.permute.xlu0 6
      %9181 = vperm.xlu0 %9180, %v6438
      %v9182 = vpop.permute.xlu0 %9181
      %9184 = vset.pattern.permute.xlu0 6
      %9185 = vperm.xlu0 %9184, %v6439
      %v9186 = vpop.permute.xlu0 %9185
      %9188 = vset.pattern.permute.xlu0 6
      %9189 = vperm.xlu0 %9188, %v6440
      %v9190 = vpop.permute.xlu0 %9189
      %9192 = vset.pattern.permute.xlu0 6
      %9193 = vperm.xlu0 %9192, %v6441
      %v9194 = vpop.permute.xlu0 %9193
      %v9228 = vunpack.c.l.b16 %v9004
      %v9229 = vunpack.c.h.b16 %v9004
      %v9230 = vunpack.c.l.b16 %v9005
      %v9231 = vunpack.c.h.b16 %v9005
      %v9232 = vunpack.c.l.b16 %v9006
      %v9233 = vunpack.c.h.b16 %v9006
      %v9234 = vunpack.c.l.b16 %v9007
      %v9235 = vunpack.c.h.b16 %v9007
      %v9236 = vunpack.c.l.b16 %v9008
      %v9237 = vunpack.c.h.b16 %v9008
      %v9238 = vunpack.c.l.b16 %v9009
      %v9239 = vunpack.c.h.b16 %v9009
      %v9240 = vunpack.c.l.b16 %v9010
      %v9241 = vunpack.c.h.b16 %v9010
      %v9242 = vunpack.c.l.b16 %v9011
      %v9243 = vunpack.c.h.b16 %v9011
      %v9244 = vunpack.c.l.b16 %v9012
      %v9245 = vunpack.c.h.b16 %v9012
      %v9246 = vunpack.c.l.b16 %v9013
      %v9247 = vunpack.c.h.b16 %v9013
      %v9248 = vunpack.c.l.b16 %v9014
      %v9249 = vunpack.c.h.b16 %v9014
      %v9250 = vunpack.c.l.b16 %v9015
      %v9251 = vunpack.c.h.b16 %v9015
      %v9252 = vunpack.c.l.b16 %v9016
      %v9253 = vunpack.c.h.b16 %v9016
      %v9254 = vunpack.c.l.b16 %v9017
      %v9255 = vunpack.c.h.b16 %v9017
      %v9256 = vunpack.c.l.b16 %v9018
      %v9257 = vunpack.c.h.b16 %v9018
      %v9258 = vunpack.c.l.b16 %v9019
      %v9259 = vunpack.c.h.b16 %v9019
      %v9260 = vunpack.c.l.b16 %v9020
      %v9261 = vunpack.c.h.b16 %v9020
      %v9262 = vunpack.c.l.b16 %v9021
      %v9263 = vunpack.c.h.b16 %v9021
      %v9264 = vunpack.c.l.b16 %v9022
      %v9265 = vunpack.c.h.b16 %v9022
      %v9266 = vunpack.c.l.b16 %v9023
      %v9267 = vunpack.c.h.b16 %v9023
      %v9268 = vunpack.c.l.b16 %v9024
      %v9269 = vunpack.c.h.b16 %v9024
      %v9270 = vunpack.c.l.b16 %v9025
      %v9271 = vunpack.c.h.b16 %v9025
      %v9272 = vunpack.c.l.b16 %v9026
      %v9273 = vunpack.c.h.b16 %v9026
      %v9274 = vunpack.c.l.b16 %v9027
      %v9275 = vunpack.c.h.b16 %v9027
      %v9276 = vunpack.c.l.b16 %v9028
      %v9277 = vunpack.c.h.b16 %v9028
      %v9278 = vunpack.c.l.b16 %v9029
      %v9279 = vunpack.c.h.b16 %v9029
      %v9280 = vunpack.c.l.b16 %v9030
      %v9281 = vunpack.c.h.b16 %v9030
      %v9282 = vunpack.c.l.b16 %v9031
      %v9283 = vunpack.c.h.b16 %v9031
      %v9284 = vunpack.c.l.b16 %v9032
      %v9285 = vunpack.c.h.b16 %v9032
      %v9286 = vunpack.c.l.b16 %v9033
      %v9287 = vunpack.c.h.b16 %v9033
      %v9288 = vunpack.c.l.b16 %v9034
      %v9289 = vunpack.c.h.b16 %v9034
      %v9290 = vunpack.c.l.b16 %v9035
      %v9291 = vunpack.c.h.b16 %v9035
      %v9292 = vpack.c.b16 %v9230, %v9228
      %v9293 = vpack.c.b16 %v9231, %v9229
      %v9294 = vpack.c.b16 %v9234, %v9232
      %v9295 = vpack.c.b16 %v9235, %v9233
      %v9296 = vpack.c.b16 %v9238, %v9236
      %v9297 = vpack.c.b16 %v9239, %v9237
      %v9298 = vpack.c.b16 %v9242, %v9240
      %v9299 = vpack.c.b16 %v9243, %v9241
      %v9300 = vpack.c.b16 %v9246, %v9244
      %v9301 = vpack.c.b16 %v9247, %v9245
      %v9302 = vpack.c.b16 %v9250, %v9248
      %v9303 = vpack.c.b16 %v9251, %v9249
      %v9304 = vpack.c.b16 %v9254, %v9252
      %v9305 = vpack.c.b16 %v9255, %v9253
      %v9306 = vpack.c.b16 %v9258, %v9256
      %v9307 = vpack.c.b16 %v9259, %v9257
      %v9308 = vpack.c.b16 %v9262, %v9260
      %v9309 = vpack.c.b16 %v9263, %v9261
      %v9310 = vpack.c.b16 %v9266, %v9264
      %v9311 = vpack.c.b16 %v9267, %v9265
      %v9312 = vpack.c.b16 %v9270, %v9268
      %v9313 = vpack.c.b16 %v9271, %v9269
      %v9314 = vpack.c.b16 %v9274, %v9272
      %v9315 = vpack.c.b16 %v9275, %v9273
      %v9316 = vpack.c.b16 %v9278, %v9276
      %v9317 = vpack.c.b16 %v9279, %v9277
      %v9318 = vpack.c.b16 %v9282, %v9280
      %v9319 = vpack.c.b16 %v9283, %v9281
      %v9320 = vpack.c.b16 %v9286, %v9284
      %v9321 = vpack.c.b16 %v9287, %v9285
      %v9322 = vpack.c.b16 %v9290, %v9288
      %v9323 = vpack.c.b16 %v9291, %v9289
      %9356 = vmatprep.subr.bf16.mxu0 %v9051
      %9357 = vmatpush1.bf16.msra.mxu0 %v9050
      %9358 = vmatprep.subr.bf16.mxu0 %v9049
      %9359 = vmatpush1.bf16.msra.mxu0 %v9048
      %9360 = vmatprep.subr.bf16.mxu0 %v9047
      %9361 = vmatpush1.bf16.msra.mxu0 %v9046
      %9362 = vmatprep.subr.bf16.mxu0 %v9045
      %9363 = vmatpush1.bf16.msra.mxu0 %v9044
      %9364 = vmatprep.subr.bf16.mxu0 %v9043
      %9365 = vmatpush1.bf16.msra.mxu0 %v9042
      %9366 = vmatprep.subr.bf16.mxu0 %v9041
      %9367 = vmatpush1.bf16.msra.mxu0 %v9040
      %9368 = vmatprep.subr.bf16.mxu0 %v9039
      %9369 = vmatpush1.bf16.msra.mxu0 %v9038
      %9370 = vmatprep.subr.bf16.mxu0 %v9037
      %9371 = vmatpush1.bf16.msra.mxu0 %v9036
      %9372 = vmatprep.subr.bf16.mxu0 %v9067
      %9373 = vmatpush2.bf16.msra.mxu0 %v9066
      %9374 = vmatprep.subr.bf16.mxu0 %v9065
      %9375 = vmatpush2.bf16.msra.mxu0 %v9064
      %9376 = vmatprep.subr.bf16.mxu0 %v9063
      %9377 = vmatpush2.bf16.msra.mxu0 %v9062
      %9378 = vmatprep.subr.bf16.mxu0 %v9061
      %9379 = vmatpush2.bf16.msra.mxu0 %v9060
      %9380 = vmatprep.subr.bf16.mxu0 %v9059
      %9381 = vmatpush2.bf16.msra.mxu0 %v9058
      %9382 = vmatprep.subr.bf16.mxu0 %v9057
      %9383 = vmatpush2.bf16.msra.mxu0 %v9056
      %9384 = vmatprep.subr.bf16.mxu0 %v9055
      %9385 = vmatpush2.bf16.msra.mxu0 %v9054
      %9386 = vmatprep.subr.bf16.mxu0 %v9053
      %9387 = vmatpush2.bf16.msra.mxu0 %v9052
      %9388 = vmatprep.mubr.bf16.mxu0 %v9293
      %9389 = vmatmul.mubr.bf16.gmra.mxu0 %v9292
      %v9390 = vpop.f32.mrf.mxu0
      %v9391 = vadd.f32 %v9070, %v9390
      %v9392 = vpop.f32.mrf.mxu0
      %v9393 = vadd.f32 %v9070, %v9392
      %v9394 = vpop.f32.mrf.mxu0
      %v9395 = vadd.f32 %v9074, %v9394
      %v9396 = vpop.f32.mrf.mxu0
      %v9397 = vadd.f32 %v9074, %v9396
      %9398 = vmatprep.mubr.bf16.mxu0 %v9295
      %9399 = vmatmul.mubr.bf16.gmra.mxu0 %v9294
      %v9400 = vpop.f32.mrf.mxu0
      %v9401 = vadd.f32 %v9078, %v9400
      %v9402 = vpop.f32.mrf.mxu0
      %v9403 = vadd.f32 %v9078, %v9402
      %v9404 = vpop.f32.mrf.mxu0
      %v9405 = vadd.f32 %v9082, %v9404
      %v9406 = vpop.f32.mrf.mxu0
      %v9407 = vadd.f32 %v9082, %v9406
      %9408 = vmatprep.mubr.bf16.mxu0 %v9297
      %9409 = vmatmul.mubr.bf16.gmra.mxu0 %v9296
      %v9410 = vpop.f32.mrf.mxu0
      %v9411 = vadd.f32 %v9086, %v9410
      %v9412 = vpop.f32.mrf.mxu0
      %v9413 = vadd.f32 %v9086, %v9412
      %v9414 = vpop.f32.mrf.mxu0
      %v9415 = vadd.f32 %v9090, %v9414
      %v9416 = vpop.f32.mrf.mxu0
      %v9417 = vadd.f32 %v9090, %v9416
      %9418 = vmatprep.mubr.bf16.mxu0 %v9299
      %9419 = vmatmul.mubr.bf16.gmra.mxu0 %v9298
      %v9420 = vpop.f32.mrf.mxu0
      %v9421 = vadd.f32 %v9094, %v9420
      %v9422 = vpop.f32.mrf.mxu0
      %v9423 = vadd.f32 %v9094, %v9422
      %v9424 = vpop.f32.mrf.mxu0
      %v9425 = vadd.f32 %v9098, %v9424
      %v9426 = vpop.f32.mrf.mxu0
      %v9427 = vadd.f32 %v9098, %v9426
      %9428 = vmatprep.mubr.bf16.mxu0 %v9301
      %9429 = vmatmul.mubr.bf16.gmra.mxu0 %v9300
      %v9430 = vpop.f32.mrf.mxu0
      %v9431 = vadd.f32 %v9102, %v9430
      %v9432 = vpop.f32.mrf.mxu0
      %v9433 = vadd.f32 %v9102, %v9432
      %v9434 = vpop.f32.mrf.mxu0
      %v9435 = vadd.f32 %v9106, %v9434
      %v9436 = vpop.f32.mrf.mxu0
      %v9437 = vadd.f32 %v9106, %v9436
      %9438 = vmatprep.mubr.bf16.mxu0 %v9303
      %9439 = vmatmul.mubr.bf16.gmra.mxu0 %v9302
      %v9440 = vpop.f32.mrf.mxu0
      %v9441 = vadd.f32 %v9110, %v9440
      %v9442 = vpop.f32.mrf.mxu0
      %v9443 = vadd.f32 %v9110, %v9442
      %v9444 = vpop.f32.mrf.mxu0
      %v9445 = vadd.f32 %v9114, %v9444
      %v9446 = vpop.f32.mrf.mxu0
      %v9447 = vadd.f32 %v9114, %v9446
      %9448 = vmatprep.mubr.bf16.mxu0 %v9305
      %9449 = vmatmul.mubr.bf16.gmra.mxu0 %v9304
      %v9450 = vpop.f32.mrf.mxu0
      %v9451 = vadd.f32 %v9118, %v9450
      %v9452 = vpop.f32.mrf.mxu0
      %v9453 = vadd.f32 %v9118, %v9452
      %v9454 = vpop.f32.mrf.mxu0
      %v9455 = vadd.f32 %v9122, %v9454
      %v9456 = vpop.f32.mrf.mxu0
      %v9457 = vadd.f32 %v9122, %v9456
      %9458 = vmatprep.mubr.bf16.mxu0 %v9307
      %9459 = vmatmul.mubr.bf16.gmra.mxu0 %v9306
      %v9460 = vpop.f32.mrf.mxu0
      %v9461 = vadd.f32 %v9126, %v9460
      %v9462 = vpop.f32.mrf.mxu0
      %v9463 = vadd.f32 %v9126, %v9462
      %v9464 = vpop.f32.mrf.mxu0
      %v9465 = vadd.f32 %v9130, %v9464
      %v9466 = vpop.f32.mrf.mxu0
      %v9467 = vadd.f32 %v9130, %v9466
      %9468 = vmatprep.mubr.bf16.mxu0 %v9309
      %9469 = vmatmul.mubr.bf16.gmra.mxu0 %v9308
      %v9470 = vpop.f32.mrf.mxu0
      %v9471 = vadd.f32 %v9134, %v9470
      %v9472 = vpop.f32.mrf.mxu0
      %v9473 = vadd.f32 %v9134, %v9472
      %v9474 = vpop.f32.mrf.mxu0
      %v9475 = vadd.f32 %v9138, %v9474
      %v9476 = vpop.f32.mrf.mxu0
      %v9477 = vadd.f32 %v9138, %v9476
      %9478 = vmatprep.mubr.bf16.mxu0 %v9311
      %9479 = vmatmul.mubr.bf16.gmra.mxu0 %v9310
      %v9480 = vpop.f32.mrf.mxu0
      %v9481 = vadd.f32 %v9142, %v9480
      %v9482 = vpop.f32.mrf.mxu0
      %v9483 = vadd.f32 %v9142, %v9482
      %v9484 = vpop.f32.mrf.mxu0
      %v9485 = vadd.f32 %v9146, %v9484
      %v9486 = vpop.f32.mrf.mxu0
      %v9487 = vadd.f32 %v9146, %v9486
      %9488 = vmatprep.mubr.bf16.mxu0 %v9313
      %9489 = vmatmul.mubr.bf16.gmra.mxu0 %v9312
      %v9490 = vpop.f32.mrf.mxu0
      %v9491 = vadd.f32 %v9150, %v9490
      %v9492 = vpop.f32.mrf.mxu0
      %v9493 = vadd.f32 %v9150, %v9492
      %v9494 = vpop.f32.mrf.mxu0
      %v9495 = vadd.f32 %v9154, %v9494
      %v9496 = vpop.f32.mrf.mxu0
      %v9497 = vadd.f32 %v9154, %v9496
      %9498 = vmatprep.mubr.bf16.mxu0 %v9315
      %9499 = vmatmul.mubr.bf16.gmra.mxu0 %v9314
      %v9500 = vpop.f32.mrf.mxu0
      %v9501 = vadd.f32 %v9158, %v9500
      %v9502 = vpop.f32.mrf.mxu0
      %v9503 = vadd.f32 %v9158, %v9502
      %v9504 = vpop.f32.mrf.mxu0
      %v9505 = vadd.f32 %v9162, %v9504
      %v9506 = vpop.f32.mrf.mxu0
      %v9507 = vadd.f32 %v9162, %v9506
      %9508 = vmatprep.mubr.bf16.mxu0 %v9317
      %9509 = vmatmul.mubr.bf16.gmra.mxu0 %v9316
      %v9510 = vpop.f32.mrf.mxu0
      %v9511 = vadd.f32 %v9166, %v9510
      %v9512 = vpop.f32.mrf.mxu0
      %v9513 = vadd.f32 %v9166, %v9512
      %v9514 = vpop.f32.mrf.mxu0
      %v9515 = vadd.f32 %v9170, %v9514
      %v9516 = vpop.f32.mrf.mxu0
      %v9517 = vadd.f32 %v9170, %v9516
      %9518 = vmatprep.mubr.bf16.mxu0 %v9319
      %9519 = vmatmul.mubr.bf16.gmra.mxu0 %v9318
      %v9520 = vpop.f32.mrf.mxu0
      %v9521 = vadd.f32 %v9174, %v9520
      %v9522 = vpop.f32.mrf.mxu0
      %v9523 = vadd.f32 %v9174, %v9522
      %v9524 = vpop.f32.mrf.mxu0
      %v9525 = vadd.f32 %v9178, %v9524
      %v9526 = vpop.f32.mrf.mxu0
      %v9527 = vadd.f32 %v9178, %v9526
      %9528 = vmatprep.mubr.bf16.mxu0 %v9321
      %9529 = vmatmul.mubr.bf16.gmra.mxu0 %v9320
      %v9530 = vpop.f32.mrf.mxu0
      %v9531 = vadd.f32 %v9182, %v9530
      %v9532 = vpop.f32.mrf.mxu0
      %v9533 = vadd.f32 %v9182, %v9532
      %v9534 = vpop.f32.mrf.mxu0
      %v9535 = vadd.f32 %v9186, %v9534
      %v9536 = vpop.f32.mrf.mxu0
      %v9537 = vadd.f32 %v9186, %v9536
      %9538 = vmatprep.mubr.bf16.mxu0 %v9323
      %9539 = vmatmul.mubr.bf16.gmra.mxu0 %v9322
      %v9540 = vpop.f32.mrf.mxu0
      %v9541 = vadd.f32 %v9190, %v9540
      %v9542 = vpop.f32.mrf.mxu0
      %v9543 = vadd.f32 %v9190, %v9542
      %v9544 = vpop.f32.mrf.mxu0
      %v9545 = vadd.f32 %v9194, %v9544
      %v9546 = vpop.f32.mrf.mxu0
      %v9547 = vadd.f32 %v9194, %v9546
      %9548 = vdwg.mxu0
      %v9549 = vadd.f32 %v9391, %v210
      %v9550 = vadd.f32 %v9393, %v211
      %v9551 = vadd.f32 %v9395, %v212
      %v9552 = vadd.f32 %v9397, %v213
      %v9553 = vadd.f32 %v9401, %v214
      %v9554 = vadd.f32 %v9403, %v215
      %v9555 = vadd.f32 %v9405, %v216
      %v9556 = vadd.f32 %v9407, %v217
      %v9557 = vadd.f32 %v9411, %v218
      %v9558 = vadd.f32 %v9413, %v219
      %v9559 = vadd.f32 %v9415, %v220
      %v9560 = vadd.f32 %v9417, %v221
      %v9561 = vadd.f32 %v9421, %v222
      %v9562 = vadd.f32 %v9423, %v223
      %v9563 = vadd.f32 %v9425, %v224
      %v9564 = vadd.f32 %v9427, %v225
      %v9565 = vadd.f32 %v9431, %v226
      %v9566 = vadd.f32 %v9433, %v227
      %v9567 = vadd.f32 %v9435, %v228
      %v9568 = vadd.f32 %v9437, %v229
      %v9569 = vadd.f32 %v9441, %v230
      %v9570 = vadd.f32 %v9443, %v231
      %v9571 = vadd.f32 %v9445, %v232
      %v9572 = vadd.f32 %v9447, %v233
      %v9573 = vadd.f32 %v9451, %v234
      %v9574 = vadd.f32 %v9453, %v235
      %v9575 = vadd.f32 %v9455, %v236
      %v9576 = vadd.f32 %v9457, %v237
      %v9577 = vadd.f32 %v9461, %v238
      %v9578 = vadd.f32 %v9463, %v239
      %v9579 = vadd.f32 %v9465, %v240
      %v9580 = vadd.f32 %v9467, %v241
      %v9581 = vadd.f32 %v9471, %v242
      %v9582 = vadd.f32 %v9473, %v243
      %v9583 = vadd.f32 %v9475, %v244
      %v9584 = vadd.f32 %v9477, %v245
      %v9585 = vadd.f32 %v9481, %v246
      %v9586 = vadd.f32 %v9483, %v247
      %v9587 = vadd.f32 %v9485, %v248
      %v9588 = vadd.f32 %v9487, %v249
      %v9589 = vadd.f32 %v9491, %v250
      %v9590 = vadd.f32 %v9493, %v251
      %v9591 = vadd.f32 %v9495, %v252
      %v9592 = vadd.f32 %v9497, %v253
      %v9593 = vadd.f32 %v9501, %v254
      %v9594 = vadd.f32 %v9503, %v255
      %v9595 = vadd.f32 %v9505, %v256
      %v9596 = vadd.f32 %v9507, %v257
      %v9597 = vadd.f32 %v9511, %v258
      %v9598 = vadd.f32 %v9513, %v259
      %v9599 = vadd.f32 %v9515, %v260
      %v9600 = vadd.f32 %v9517, %v261
      %v9601 = vadd.f32 %v9521, %v262
      %v9602 = vadd.f32 %v9523, %v263
      %v9603 = vadd.f32 %v9525, %v264
      %v9604 = vadd.f32 %v9527, %v265
      %v9605 = vadd.f32 %v9531, %v266
      %v9606 = vadd.f32 %v9533, %v267
      %v9607 = vadd.f32 %v9535, %v268
      %v9608 = vadd.f32 %v9537, %v269
      %v9609 = vadd.f32 %v9541, %v270
      %v9610 = vadd.f32 %v9543, %v271
      %v9611 = vadd.f32 %v9545, %v272
      %v9612 = vadd.f32 %v9547, %v273
      %9613 = vst [vmem:[%s208] sm:$0xff] %v9549
      %9614 = vst [vmem:[%s208 + $0x8] sm:$0xff] %v9550
      %9615 = vst [vmem:[%s208 + $0x10] sm:$0xff] %v9551
      %9616 = vst [vmem:[%s208 + $0x18] sm:$0xff] %v9552
      %9617 = vst [vmem:[%s208 + $0x20] sm:$0xff] %v9553
      %9618 = vst [vmem:[%s208 + $0x28] sm:$0xff] %v9554
      %9619 = vst [vmem:[%s208 + $0x30] sm:$0xff] %v9555
      %9620 = vst [vmem:[%s208 + $0x38] sm:$0xff] %v9556
      %9621 = vst [vmem:[%s208 + $0x40] sm:$0xff] %v9557
      %9622 = vst [vmem:[%s208 + $0x48] sm:$0xff] %v9558
      %9623 = vst [vmem:[%s208 + $0x50] sm:$0xff] %v9559
      %9624 = vst [vmem:[%s208 + $0x58] sm:$0xff] %v9560
      %9625 = vst [vmem:[%s208 + $0x60] sm:$0xff] %v9561
      %9626 = vst [vmem:[%s208 + $0x68] sm:$0xff] %v9562
      %9627 = vst [vmem:[%s208 + $0x70] sm:$0xff] %v9563
      %9628 = vst [vmem:[%s208 + $0x78] sm:$0xff] %v9564
      %9629 = vst [vmem:[%s208 + $0x80] sm:$0xff] %v9565
      %9630 = vst [vmem:[%s208 + $0x88] sm:$0xff] %v9566
      %9631 = vst [vmem:[%s208 + $0x90] sm:$0xff] %v9567
      %9632 = vst [vmem:[%s208 + $0x98] sm:$0xff] %v9568
      %9633 = vst [vmem:[%s208 + $0xa0] sm:$0xff] %v9569
      %9634 = vst [vmem:[%s208 + $0xa8] sm:$0xff] %v9570
      %9635 = vst [vmem:[%s208 + $0xb0] sm:$0xff] %v9571
      %9636 = vst [vmem:[%s208 + $0xb8] sm:$0xff] %v9572
      %9637 = vst [vmem:[%s208 + $0xc0] sm:$0xff] %v9573
      %9638 = vst [vmem:[%s208 + $0xc8] sm:$0xff] %v9574
      %9639 = vst [vmem:[%s208 + $0xd0] sm:$0xff] %v9575
      %9640 = vst [vmem:[%s208 + $0xd8] sm:$0xff] %v9576
      %9641 = vst [vmem:[%s208 + $0xe0] sm:$0xff] %v9577
      %9642 = vst [vmem:[%s208 + $0xe8] sm:$0xff] %v9578
      %9643 = vst [vmem:[%s208 + $0xf0] sm:$0xff] %v9579
      %9644 = vst [vmem:[%s208 + $0xf8] sm:$0xff] %v9580
      %9645 = vst [vmem:[%s208 + $0x100] sm:$0xff] %v9581
      %9646 = vst [vmem:[%s208 + $0x108] sm:$0xff] %v9582
      %9647 = vst [vmem:[%s208 + $0x110] sm:$0xff] %v9583
      %9648 = vst [vmem:[%s208 + $0x118] sm:$0xff] %v9584
      %9649 = vst [vmem:[%s208 + $0x120] sm:$0xff] %v9585
      %9650 = vst [vmem:[%s208 + $0x128] sm:$0xff] %v9586
      %9651 = vst [vmem:[%s208 + $0x130] sm:$0xff] %v9587
      %9652 = vst [vmem:[%s208 + $0x138] sm:$0xff] %v9588
      %9653 = vst [vmem:[%s208 + $0x140] sm:$0xff] %v9589
      %9654 = vst [vmem:[%s208 + $0x148] sm:$0xff] %v9590
      %9655 = vst [vmem:[%s208 + $0x150] sm:$0xff] %v9591
      %9656 = vst [vmem:[%s208 + $0x158] sm:$0xff] %v9592
      %9657 = vst [vmem:[%s208 + $0x160] sm:$0xff] %v9593
      %9658 = vst [vmem:[%s208 + $0x168] sm:$0xff] %v9594
      %9659 = vst [vmem:[%s208 + $0x170] sm:$0xff] %v9595
      %9660 = vst [vmem:[%s208 + $0x178] sm:$0xff] %v9596
      %9661 = vst [vmem:[%s208 + $0x180] sm:$0xff] %v9597
      %9662 = vst [vmem:[%s208 + $0x188] sm:$0xff] %v9598
      %9663 = vst [vmem:[%s208 + $0x190] sm:$0xff] %v9599
      %9664 = vst [vmem:[%s208 + $0x198] sm:$0xff] %v9600
      %9665 = vst [vmem:[%s208 + $0x1a0] sm:$0xff] %v9601
      %9666 = vst [vmem:[%s208 + $0x1a8] sm:$0xff] %v9602
      %9667 = vst [vmem:[%s208 + $0x1b0] sm:$0xff] %v9603
      %9668 = vst [vmem:[%s208 + $0x1b8] sm:$0xff] %v9604
      %9669 = vst [vmem:[%s208 + $0x1c0] sm:$0xff] %v9605
      %9670 = vst [vmem:[%s208 + $0x1c8] sm:$0xff] %v9606
      %9671 = vst [vmem:[%s208 + $0x1d0] sm:$0xff] %v9607
      %9672 = vst [vmem:[%s208 + $0x1d8] sm:$0xff] %v9608
      %9673 = vst [vmem:[%s208 + $0x1e0] sm:$0xff] %v9609
      %9674 = vst [vmem:[%s208 + $0x1e8] sm:$0xff] %v9610
      %9675 = vst [vmem:[%s208 + $0x1f0] sm:$0xff] %v9611
      %9676 = vst [vmem:[%s208 + $0x1f8] sm:$0xff] %v9612
      %s9677 = smul.u32 2, %s19
      %p9678 = scmp.lt.s32.totalorder %s18, 1
      %s9679 = scalar_select %p9678, %s18, 1
      %p9680 = scmp.lt.s32.totalorder %s9677, 1
      %s9681 = scalar_select %p9680, %s9677, 1
      %s9682 = smul.addr %s9679, 64
      %s9683 = sadd.s32 %s9681, %s9682
      %s9684 = smul.addr %s9683, 8
      %s9685 = scalar_lea.vmem %s3, %s9684
      // Predicated region
      $region33: #{temporal_attention_pallas.1} parent=31 // pred_check
        %p9686 = pneg %p116
      $region34: #{temporal_attention_pallas.1} parent=31 // pred_check_branch
        %9688 = sbr.rel (%p9686) target = $region36
      $region35: #{temporal_attention_pallas.1} parent=31 // pred_region
        %s9689 = smul.u32 2, %s19
      $region36: #{temporal_attention_pallas.1} parent=31 // pred_fallthru
        _
    $region32: #{temporal_attention_pallas.1} parent=5 // pred_fallthru
      _
    %p9690 = scmp.le.s32.totalorder 2, %s9
    // Predicated region
    $region37: #{temporal_attention_pallas.1} parent=5 // pred_check
      %p9691 = pneg %p9690
    $region38: #{temporal_attention_pallas.1} parent=5 // pred_check_branch
      %9693 = sbr.rel (%p9691) target = $region40
    $region39: #{temporal_attention_pallas.1} parent=5 // pred_region
      %s9694 = ssub.s32 %s9, 2
      // Predicated region
      $region41: #{temporal_attention_pallas.1} parent=39 // pred_check
        %p9695 = pneg %p122
      $region42: #{temporal_attention_pallas.1} parent=39 // pred_check_branch
        %9697 = sbr.rel (%p9695) target = $region44
      $region43: #{temporal_attention_pallas.1} parent=39 // pred_region
        %s9698 = smul.u32 2, %s21
        %p9699 = scmp.lt.s32.totalorder %s20, 1
        %s9700 = scalar_select %p9699, %s20, 1
        %p9701 = scmp.lt.s32.totalorder %s9698, 1
        %s9702 = scalar_select %p9701, %s9698, 1
        %s9703 = smul.addr %s9700, 64
        %s9704 = sadd.s32 %s9702, %s9703
        %s9705 = smul.addr %s9704, 8
        %s9706 = scalar_lea.vmem %s3, %s9705
      $region44: #{temporal_attention_pallas.1} parent=39 // pred_fallthru
        _
    $region40: #{temporal_attention_pallas.1} parent=5 // pred_fallthru
      _
  $region6: #{temporal_attention_pallas.1} parent=0 // loop_footer
    %s13 = sadd.s32 1, %s9
  $region7: #{temporal_attention_pallas.1} parent=0 // loop_footer_branch
    %8 = sbr.rel target = $region3
  $region8: #{temporal_attention_pallas.1} parent=0 // loop_exit
    _

</llo_original>
